<compile_context>
chip_gen: v7x
topology: tpu7x:2x2x1
jax: 0.10.0
libtpu: 0.0.40
codegen_flags: <defaults>
</compile_context>

<pallas_src>
import functools

import jax
import jax.numpy as jnp
from jax.experimental import pallas as pl
from jax.experimental.pallas import tpu as pltpu

LANE = 128
VMEM_LIMIT = 48 * 1024 * 1024  # > default scoped limit, < v7x physical 64 MiB


def _pad_to_lane(c):
    return ((c + LANE - 1) // LANE) * LANE


# --------------------------------------------------------------------------- kernels


def conv1x1_stats_kernel(x_ref, w_ref, out_ref, sum_ref, ssq_ref):
    """1x1 conv (channel matmul) + per-channel partial sum / sum-of-squares for BN."""
    _, h, w, _ = x_ref.shape
    cout = w_ref.shape[1]
    m = h * w
    x = x_ref[0].reshape(m, x_ref.shape[3])                      # bf16 operand
    acc = jnp.dot(x, w_ref[...], preferred_element_type=jnp.float32)
    out_ref[0] = acc.reshape(h, w, cout).astype(out_ref.dtype)
    sum_ref[0] = jnp.broadcast_to(jnp.sum(acc, axis=0, keepdims=True), (8, cout))
    ssq_ref[0] = jnp.broadcast_to(jnp.sum(acc * acc, axis=0, keepdims=True), (8, cout))


def conv3x3_stats_kernel(xraw_ref, scale_ref, shift_ref, w_ref,
                         out_ref, sum_ref, ssq_ref, ybuf_ref, *, stride):
    """Fused: BN+ReLU of the previous conv's raw output, then a 3x3 conv
    (stride, padding=1) as 9 shifted MXU accumulations over a halo'd VMEM tile,
    plus BN partial statistics of the conv output."""
    _, h, w, cin = xraw_ref.shape
    _, ho, wo, cout = out_ref.shape
    m = ho * wo

    # BN + ReLU of the incoming raw conv1 output, written into the interior of a
    # zero-initialized halo buffer (implements spatial padding=1 without HBM traffic).
    ybuf_ref[...] = jnp.zeros_like(ybuf_ref)
    act = jnp.maximum(
        xraw_ref[0].astype(jnp.float32) * scale_ref[...].reshape(1, 1, cin)
        + shift_ref[...].reshape(1, 1, cin), 0.0)
    ybuf_ref[pl.ds(1, h), pl.ds(1, w), :] = act

    acc = jnp.zeros((m, cout), jnp.float32)
    for kh in range(3):
        for kw in range(3):
            if stride == 1:
                patch = ybuf_ref[pl.ds(kh, ho), pl.ds(kw, wo), :]
            else:
                patch = ybuf_ref[pl.ds(kh, ho, stride), pl.ds(kw, wo, stride), :]
            acc += jnp.dot(patch.reshape(m, cin).astype(jnp.bfloat16),
                           w_ref[kh * 3 + kw],
                           preferred_element_type=jnp.float32)

    out_ref[0] = acc.reshape(ho, wo, cout).astype(out_ref.dtype)
    sum_ref[0] = jnp.broadcast_to(jnp.sum(acc, axis=0, keepdims=True), (8, cout))
    ssq_ref[0] = jnp.broadcast_to(jnp.sum(acc * acc, axis=0, keepdims=True), (8, cout))


def project_downsample_kernel(y2raw_ref, xs_ref, scale_ref, shift_ref, w3_ref, wd_ref,
                              out3_ref, outd_ref, sum3_ref, ssq3_ref, sumd_ref, ssqd_ref):
    """Fused: BN+ReLU of conv2's raw output, the 1x1 projection conv, and the 1x1
    downsample conv of the (strided) block input, plus BN partial stats for both."""
    _, ho, wo, cmid = y2raw_ref.shape
    cout = w3_ref.shape[1]
    m = ho * wo

    act = jnp.maximum(
        y2raw_ref[0].astype(jnp.float32) * scale_ref[...].reshape(1, 1, cmid)
        + shift_ref[...].reshape(1, 1, cmid), 0.0)
    a3 = jnp.dot(act.reshape(m, cmid).astype(jnp.bfloat16), w3_ref[...],
                 preferred_element_type=jnp.float32)
    xs = xs_ref[0].reshape(m, xs_ref.shape[3])                   # bf16 operand
    ad = jnp.dot(xs, wd_ref[...], preferred_element_type=jnp.float32)

    out3_ref[0] = a3.reshape(ho, wo, cout).astype(out3_ref.dtype)
    outd_ref[0] = ad.reshape(ho, wo, cout).astype(outd_ref.dtype)
    sum3_ref[0] = jnp.broadcast_to(jnp.sum(a3, axis=0, keepdims=True), (8, cout))
    ssq3_ref[0] = jnp.broadcast_to(jnp.sum(a3 * a3, axis=0, keepdims=True), (8, cout))
    sumd_ref[0] = jnp.broadcast_to(jnp.sum(ad, axis=0, keepdims=True), (8, cout))
    ssqd_ref[0] = jnp.broadcast_to(jnp.sum(ad * ad, axis=0, keepdims=True), (8, cout))


def residual_bn_relu_kernel(a3_ref, aid_ref, s3_ref, b3_ref, sid_ref, bid_ref, o_ref):
    """Fused: BN of conv3, BN (or identity) of the shortcut, residual add, ReLU."""
    _, ho, wo, cout = a3_ref.shape
    y3 = a3_ref[0] * s3_ref[...].reshape(1, 1, cout) + b3_ref[...].reshape(1, 1, cout)
    yid = aid_ref[0] * sid_ref[...].reshape(1, 1, cout) + bid_ref[...].reshape(1, 1, cout)
    o_ref[0] = jnp.maximum(y3 + yid, 0.0).astype(o_ref.dtype)


# --------------------------------------------------------------------------- host glue


def _bn_fold(sum_p, ssq_p, count, gamma, beta, cpad, eps):
    """Fold training-mode BatchNorm (biased batch variance) into per-channel scale/shift."""
    s = jnp.sum(sum_p[:, 0, :], axis=0)
    ss = jnp.sum(ssq_p[:, 0, :], axis=0)
    mean = s / count
    var = jnp.maximum(ss / count - mean * mean, 0.0)   # guard tiny negatives (cancellation)
    g = jnp.zeros((cpad,), jnp.float32).at[:gamma.shape[0]].set(gamma.astype(jnp.float32))
    b = jnp.zeros((cpad,), jnp.float32).at[:beta.shape[0]].set(beta.astype(jnp.float32))
    scale = g * jax.lax.rsqrt(var + eps)
    shift = b - mean * scale
    return scale[None, :], shift[None, :]              # (1, cpad) f32


def _prep_w_1x1(w, cin_pad, cout_pad):
    o, i = w.shape[0], w.shape[1]
    m = w.reshape(o, i).T
    return (jnp.zeros((cin_pad, cout_pad), jnp.float32)
            .at[:i, :o].set(m).astype(jnp.bfloat16))


def _prep_w_3x3(w, cin_pad, cout_pad):
    o, i, kh, kw = w.shape
    m = jnp.transpose(w, (2, 3, 1, 0)).reshape(kh * kw, i, o)
    return (jnp.zeros((kh * kw, cin_pad, cout_pad), jnp.float32)
            .at[:, :i, :o].set(m).astype(jnp.bfloat16))


def bottleneck_forward(x_nchw, params, *, stride=1, eps=1e-5, plain=False):
    """Forward of Bottleneck(in_ch, out_ch, stride, batch_norm=True, option='B')."""
    n, cin, h, w = x_nchw.shape
    cout = params["w3"].shape[0]
    assert stride in (1, 2)
    ho = (h - 1) // stride + 1
    wo = (w - 1) // stride + 1
    assert w % 8 == 0 and wo % 8 == 0, "spatial width must be a multiple of 8"

    cin_p, b_p, cout_p = _pad_to_lane(cin), _pad_to_lane(params["w1"].shape[0]), _pad_to_lane(cout)

    # NCHW -> NHWC, zero-pad channels to a lane multiple, bf16 MXU operand.
    x_nhwc = jnp.transpose(x_nchw, (0, 2, 3, 1)).astype(jnp.float32)
    x_bf16 = jnp.zeros((n, h, w, cin_p), jnp.float32).at[..., :cin].set(x_nhwc).astype(jnp.bfloat16)

    w1 = _prep_w_1x1(params["w1"], cin_p, b_p)
    w2 = _prep_w_3x3(params["w2"], b_p, b_p)
    w3 = _prep_w_1x1(params["w3"], b_p, cout_p)

    has_downsample = (not plain) and (params.get("wd") is not None)
    if has_downsample:
        wd = _prep_w_1x1(params["wd"], cin_p, cout_p)
    elif not plain:
        # identity shortcut (in_channels == out_channels): unit 1x1 "conv"
        wd = (jnp.zeros((cin_p, cout_p), jnp.float32)
              .at[:cin, :cin].set(jnp.eye(cin, dtype=jnp.float32)).astype(jnp.bfloat16))
    else:
        wd = jnp.zeros((cin_p, cout_p), jnp.bfloat16)

    cp = pltpu.CompilerParams(dimension_semantics=("parallel",),
                              vmem_limit_bytes=VMEM_LIMIT)

    # ---- conv1 (1x1) + BN1 batch stats --------------------------------------
    conv1raw, sum1, ssq1 = pl.pallas_call(
        conv1x1_stats_kernel,
        out_shape=(jax.ShapeDtypeStruct((n, h, w, b_p), jnp.float32),
                   jax.ShapeDtypeStruct((n, 8, b_p), jnp.float32),
                   jax.ShapeDtypeStruct((n, 8, b_p), jnp.float32)),
        grid_spec=pltpu.PrefetchScalarGridSpec(
            num_scalar_prefetch=0, grid=(n,),
            in_specs=[pl.BlockSpec((1, h, w, cin_p), lambda i: (i, 0, 0, 0)),
                      pl.BlockSpec((cin_p, b_p), lambda i: (0, 0))],
            out_specs=[pl.BlockSpec((1, h, w, b_p), lambda i: (i, 0, 0, 0)),
                       pl.BlockSpec((1, 8, b_p), lambda i: (i, 0, 0)),
                       pl.BlockSpec((1, 8, b_p), lambda i: (i, 0, 0))]),
        compiler_params=cp,
    )(x_bf16, w1)
    scale1, shift1 = _bn_fold(sum1, ssq1, n * h * w, params["g1"], params["b1"], b_p, eps)

    # ---- BN1+ReLU fused into conv2 (3x3, stride, padding=1) + BN2 stats ------
    conv2raw, sum2, ssq2 = pl.pallas_call(
        functools.partial(conv3x3_stats_kernel, stride=stride),
        out_shape=(jax.ShapeDtypeStruct((n, ho, wo, b_p), jnp.float32),
                   jax.ShapeDtypeStruct((n, 8, b_p), jnp.float32),
                   jax.ShapeDtypeStruct((n, 8, b_p), jnp.float32)),
        grid_spec=pltpu.PrefetchScalarGridSpec(
            num_scalar_prefetch=0, grid=(n,),
            in_specs=[pl.BlockSpec((1, h, w, b_p), lambda i: (i, 0, 0, 0)),
                      pl.BlockSpec((1, b_p), lambda i: (0, 0)),
                      pl.BlockSpec((1, b_p), lambda i: (0, 0)),
                      pl.BlockSpec((9, b_p, b_p), lambda i: (0, 0, 0))],
            out_specs=[pl.BlockSpec((1, ho, wo, b_p), lambda i: (i, 0, 0, 0)),
                       pl.BlockSpec((1, 8, b_p), lambda i: (i, 0, 0)),
                       pl.BlockSpec((1, 8, b_p), lambda i: (i, 0, 0))],
            scratch_shapes=[pltpu.VMEM((h + 2, w + 2, b_p), jnp.float32)]),
        compiler_params=cp,
    )(conv1raw, scale1, shift1, w2)
    scale2, shift2 = _bn_fold(sum2, ssq2, n * ho * wo, params["g2"], params["b2"], b_p, eps)

    # ---- BN2+ReLU fused into conv3 (1x1) + downsample (1x1, stride) ----------
    x_strided = x_bf16[:, ::stride, ::stride, :]
    conv3raw, idraw, sum3, ssq3, sumd, ssqd = pl.pallas_call(
        project_downsample_kernel,
        out_shape=(jax.ShapeDtypeStruct((n, ho, wo, cout_p), jnp.float32),
                   jax.ShapeDtypeStruct((n, ho, wo, cout_p), jnp.float32),
                   jax.ShapeDtypeStruct((n, 8, cout_p), jnp.float32),
                   jax.ShapeDtypeStruct((n, 8, cout_p), jnp.float32),
                   jax.ShapeDtypeStruct((n, 8, cout_p), jnp.float32),
                   jax.ShapeDtypeStruct((n, 8, cout_p), jnp.float32)),
        grid_spec=pltpu.PrefetchScalarGridSpec(
            num_scalar_prefetch=0, grid=(n,),
            in_specs=[pl.BlockSpec((1, ho, wo, b_p), lambda i: (i, 0, 0, 0)),
                      pl.BlockSpec((1, ho, wo, cin_p), lambda i: (i, 0, 0, 0)),
                      pl.BlockSpec((1, b_p), lambda i: (0, 0)),
                      pl.BlockSpec((1, b_p), lambda i: (0, 0)),
                      pl.BlockSpec((b_p, cout_p), lambda i: (0, 0)),
                      pl.BlockSpec((cin_p, cout_p), lambda i: (0, 0))],
            out_specs=[pl.BlockSpec((1, ho, wo, cout_p), lambda i: (i, 0, 0, 0)),
                       pl.BlockSpec((1, ho, wo, cout_p), lambda i: (i, 0, 0, 0)),
                       pl.BlockSpec((1, 8, cout_p), lambda i: (i, 0, 0)),
                       pl.BlockSpec((1, 8, cout_p), lambda i: (i, 0, 0)),
                       pl.BlockSpec((1, 8, cout_p), lambda i: (i, 0, 0)),
                       pl.BlockSpec((1, 8, cout_p), lambda i: (i, 0, 0))]),
        compiler_params=cp,
    )(conv2raw, x_strided, scale2, shift2, w3, wd)
    scale3, shift3 = _bn_fold(sum3, ssq3, n * ho * wo, params["g3"], params["b3"], cout_p, eps)

    if plain:
        scale_id = jnp.zeros((1, cout_p), jnp.float32)
        shift_id = jnp.zeros((1, cout_p), jnp.float32)
    elif has_downsample:
        scale_id, shift_id = _bn_fold(sumd, ssqd, n * ho * wo,
                                      params["gd"], params["bd"], cout_p, eps)
    else:
        scale_id = jnp.ones((1, cout_p), jnp.float32)
        shift_id = jnp.zeros((1, cout_p), jnp.float32)

    # ---- BN3 + shortcut BN + residual add + ReLU (aliases conv3raw) ----------
    out_nhwc = pl.pallas_call(
        residual_bn_relu_kernel,
        out_shape=jax.ShapeDtypeStruct((n, ho, wo, cout_p), jnp.float32),
        grid_spec=pltpu.PrefetchScalarGridSpec(
            num_scalar_prefetch=0, grid=(n,),
            in_specs=[pl.BlockSpec((1, ho, wo, cout_p), lambda i: (i, 0, 0, 0)),
                      pl.BlockSpec((1, ho, wo, cout_p), lambda i: (i, 0, 0, 0)),
                      pl.BlockSpec((1, cout_p), lambda i: (0, 0)),
                      pl.BlockSpec((1, cout_p), lambda i: (0, 0)),
                      pl.BlockSpec((1, cout_p), lambda i: (0, 0)),
                      pl.BlockSpec((1, cout_p), lambda i: (0, 0))],
            out_specs=pl.BlockSpec((1, ho, wo, cout_p), lambda i: (i, 0, 0, 0))),
        compiler_params=cp,
        input_output_aliases={0: 0},
    )(conv3raw, idraw, scale3, shift3, scale_id, shift_id)

    # Back to PyTorch's NCHW convention, real channels only.
    return jnp.transpose(out_nhwc[..., :cout], (0, 3, 1, 2))


# --------------------------------------------------------------------------- reference


def bottleneck_reference(x, params, *, stride=1, eps=1e-5):
    def conv(v, wgt, s, p):
        return jax.lax.conv_general_dilated(
            v, wgt, window_strides=(s, s), padding=((p, p), (p, p)),
            dimension_numbers=("NCHW", "OIHW", "NCHW"))

    def bn(v, g, b):
        mean = jnp.mean(v, axis=(0, 2, 3), keepdims=True)
        var = jnp.var(v, axis=(0, 2, 3), keepdims=True)
        return ((v - mean) * jax.lax.rsqrt(var + eps) * g[None, :, None, None]
                + b[None, :, None, None])

    y = jnp.maximum(bn(conv(x, params["w1"], 1, 0), params["g1"], params["b1"]), 0.0)
    y = jnp.maximum(bn(conv(y, params["w2"], stride, 1), params["g2"], params["b2"]), 0.0)
    y = bn(conv(y, params["w3"], 1, 0), params["g3"], params["b3"])
    ident = bn(conv(x, params["wd"], stride, 0), params["gd"], params["bd"])
    return jnp.maximum(y + ident, 0.0)


if __name__ == "__main__":
    key = jax.random.PRNGKey(0)
    ks = jax.random.split(key, 13)

    # Bottleneck(in_channels=16, out_channels=32, stride=1, batch_norm=True, option='B')
    N, Cin, H, W = 2, 16, 16, 16
    Cout, stride = 32, 1
    B = Cout // 4                                    # bottleneck width = 8

    def conv_w(k, o, i, kh, kw):
        return jax.random.normal(k, (o, i, kh, kw), jnp.float32) / jnp.sqrt(i * kh * kw)

    x = jax.random.normal(ks[0], (N, Cin, H, W), jnp.float32)
    params = {
        "w1": conv_w(ks[1], B, Cin, 1, 1),
        "g1": 1.0 + 0.1 * jax.random.normal(ks[2], (B,), jnp.float32),
        "b1": 0.1 * jax.random.normal(ks[3], (B,), jnp.float32),
        "w2": conv_w(ks[4], B, B, 3, 3),
        "g2": 1.0 + 0.1 * jax.random.normal(ks[5], (B,), jnp.float32),
        "b2": 0.1 * jax.random.normal(ks[6], (B,), jnp.float32),
        "w3": conv_w(ks[7], Cout, B, 1, 1),
        "g3": 1.0 + 0.1 * jax.random.normal(ks[8], (Cout,), jnp.float32),
        "b3": 0.1 * jax.random.normal(ks[9], (Cout,), jnp.float32),
        # option 'B' downsample (Cin != Cout): 1x1 conv + BatchNorm
        "wd": conv_w(ks[10], Cout, Cin, 1, 1),
        "gd": 1.0 + 0.1 * jax.random.normal(ks[11], (Cout,), jnp.float32),
        "bd": 0.1 * jax.random.normal(ks[12], (Cout,), jnp.float32),
    }

    fwd = jax.jit(functools.partial(bottleneck_forward, stride=stride))
    out = jax.block_until_ready(fwd(x, params))

    ref = bottleneck_reference(x, params, stride=stride)
    Ho = (H - 1) // stride + 1
    Wo = (W - 1) // stride + 1
    assert out.shape == (N, Cout, Ho, Wo)
    # bf16 MXU operands (f32 accumulation + f32 BN statistics) -> few-1e-2 tolerance.
    assert jnp.allclose(out, ref, atol=5e-2, rtol=5e-2), float(jnp.max(jnp.abs(out - ref)))
    print("KERNEL_OK")
</pallas_src>

<mosaic_0001>
module attributes {stable_mosaic.version = 11 : i64} {
  func.func @conv1x1_stats_kernel(%arg0: i32, %arg1: memref<1x16x16x128xbf16, #tpu.memory_space<vmem>>, %arg2: memref<128x128xbf16, #tpu.memory_space<vmem>>, %arg3: memref<1x16x16x128xf32, #tpu.memory_space<vmem>>, %arg4: memref<1x8x128xf32, #tpu.memory_space<vmem>>, %arg5: memref<1x8x128xf32, #tpu.memory_space<vmem>>) attributes {dimension_semantics = [#tpu.dimension_semantics<parallel>], iteration_bounds = array<i64: 2>, scalar_prefetch = 0 : i64, scratch_operands = 0 : i64, tpu.core_type = #tpu.core_type<tc>, window_params = [{transform_indices = @transform_0, window_bounds = array<i64: 1, 16, 16, 128>}, {pipeline_mode = #tpu.pipeline_mode<synchronous>, transform_indices = @transform_1, window_bounds = array<i64: 128, 128>}, {transform_indices = @transform_2, window_bounds = array<i64: 1, 16, 16, 128>}, {transform_indices = @transform_3, window_bounds = array<i64: 1, 8, 128>}, {transform_indices = @transform_4, window_bounds = array<i64: 1, 8, 128>}]} {
    %c0 = arith.constant 0 : index
    %c0_0 = arith.constant 0 : index
    %c0_1 = arith.constant 0 : index
    %c0_2 = arith.constant 0 : index
    %0 = vector.load %arg1[%c0, %c0_0, %c0_1, %c0_2] : memref<1x16x16x128xbf16, #tpu.memory_space<vmem>>, vector<1x16x16x128xbf16>
    %1 = vector.shape_cast %0 : vector<1x16x16x128xbf16> to vector<16x16x128xbf16>
    %2 = vector.shape_cast %1 : vector<16x16x128xbf16> to vector<256x128xbf16>
    %c0_3 = arith.constant 0 : index
    %c0_4 = arith.constant 0 : index
    %3 = vector.load %arg2[%c0_3, %c0_4] : memref<128x128xbf16, #tpu.memory_space<vmem>>, vector<128x128xbf16>
    %cst = arith.constant dense<0.000000e+00> : vector<256x128xf32>
    %4 = tpu.matmul %2, %3, %cst {dimension_numbers = #tpu.dot_dimension_numbers<[1], [0], [0], [1], [0, 0, 1, 1], [], []>} : vector<256x128xbf16>, vector<128x128xbf16>, vector<256x128xf32> -> vector<256x128xf32>
    %5 = vector.shape_cast %4 : vector<256x128xf32> to vector<16x16x128xf32>
    %c0_5 = arith.constant 0 : index
    %c0_6 = arith.constant 0 : index
    %c0_7 = arith.constant 0 : index
    %c0_8 = arith.constant 0 : index
    %6 = vector.load %arg3[%c0_5, %c0_6, %c0_7, %c0_8] : memref<1x16x16x128xf32, #tpu.memory_space<vmem>>, vector<1x16x16x128xf32>
    %7 = vector.shape_cast %6 : vector<1x16x16x128xf32> to vector<16x16x128xf32>
    %8 = vector.shape_cast %5 : vector<16x16x128xf32> to vector<1x16x16x128xf32>
    tpu.vector_store %arg3[%c0_5, %c0_6, %c0_7, %c0_8], %8 {strides = array<i32>} : memref<1x16x16x128xf32, #tpu.memory_space<vmem>>, vector<1x16x16x128xf32>,
    %cst_9 = arith.constant dense<0.000000e+00> : vector<128xf32>
    %9 = vector.multi_reduction <add>, %4, %cst_9 [0] : vector<256x128xf32> to vector<128xf32>
    %10 = vector.shape_cast %9 : vector<128xf32> to vector<1x128xf32>
    %11 = vector.shape_cast %10 : vector<1x128xf32> to vector<1x128xf32>
    %12 = vector.broadcast %11 : vector<1x128xf32> to vector<8x128xf32>
    %c0_10 = arith.constant 0 : index
    %c0_11 = arith.constant 0 : index
    %c0_12 = arith.constant 0 : index
    %13 = vector.load %arg4[%c0_10, %c0_11, %c0_12] : memref<1x8x128xf32, #tpu.memory_space<vmem>>, vector<1x8x128xf32>
    %14 = vector.shape_cast %13 : vector<1x8x128xf32> to vector<8x128xf32>
    %15 = vector.shape_cast %12 : vector<8x128xf32> to vector<1x8x128xf32>
    tpu.vector_store %arg4[%c0_10, %c0_11, %c0_12], %15 {strides = array<i32>} : memref<1x8x128xf32, #tpu.memory_space<vmem>>, vector<1x8x128xf32>,
    %16 = arith.mulf %4, %4 : vector<256x128xf32>
    %cst_13 = arith.constant dense<0.000000e+00> : vector<128xf32>
    %17 = vector.multi_reduction <add>, %16, %cst_13 [0] : vector<256x128xf32> to vector<128xf32>
    %18 = vector.shape_cast %17 : vector<128xf32> to vector<1x128xf32>
    %19 = vector.shape_cast %18 : vector<1x128xf32> to vector<1x128xf32>
    %20 = vector.broadcast %19 : vector<1x128xf32> to vector<8x128xf32>
    %c0_14 = arith.constant 0 : index
    %c0_15 = arith.constant 0 : index
    %c0_16 = arith.constant 0 : index
    %21 = vector.load %arg5[%c0_14, %c0_15, %c0_16] : memref<1x8x128xf32, #tpu.memory_space<vmem>>, vector<1x8x128xf32>
    %22 = vector.shape_cast %21 : vector<1x8x128xf32> to vector<8x128xf32>
    %23 = vector.shape_cast %20 : vector<8x128xf32> to vector<1x8x128xf32>
    tpu.vector_store %arg5[%c0_14, %c0_15, %c0_16], %23 {strides = array<i32>} : memref<1x8x128xf32, #tpu.memory_space<vmem>>, vector<1x8x128xf32>,
    return
  }
  func.func @transform_0(%arg0: i32) -> (i32, i32, i32, i32) {
    %c0_i32 = arith.constant 0 : i32
    %c0_i32_0 = arith.constant 0 : i32
    %c0_i32_1 = arith.constant 0 : i32
    %c0_i32_2 = arith.constant 0 : i32
    return %arg0, %c0_i32, %c0_i32_0, %c0_i32_1 : i32, i32, i32, i32
  }
  func.func @transform_1(%arg0: i32) -> (i32, i32) {
    %c0_i32 = arith.constant 0 : i32
    %c0_i32_0 = arith.constant 0 : i32
    %c0_i32_1 = arith.constant 0 : i32
    return %c0_i32, %c0_i32_0 : i32, i32
  }
  func.func @transform_2(%arg0: i32) -> (i32, i32, i32, i32) {
    %c0_i32 = arith.constant 0 : i32
    %c0_i32_0 = arith.constant 0 : i32
    %c0_i32_1 = arith.constant 0 : i32
    %c0_i32_2 = arith.constant 0 : i32
    return %arg0, %c0_i32, %c0_i32_0, %c0_i32_1 : i32, i32, i32, i32
  }
  func.func @transform_3(%arg0: i32) -> (i32, i32, i32) {
    %c0_i32 = arith.constant 0 : i32
    %c0_i32_0 = arith.constant 0 : i32
    %c0_i32_1 = arith.constant 0 : i32
    return %arg0, %c0_i32, %c0_i32_0 : i32, i32, i32
  }
  func.func @transform_4(%arg0: i32) -> (i32, i32, i32) {
    %c0_i32 = arith.constant 0 : i32
    %c0_i32_0 = arith.constant 0 : i32
    %c0_i32_1 = arith.constant 0 : i32
    return %arg0, %c0_i32, %c0_i32_0 : i32, i32, i32
  }
}

module attributes {stable_mosaic.version = 11 : i64} {
  func.func @conv3x3_stats_kernel(%arg0: i32, %arg1: memref<1x16x16x128xf32, #tpu.memory_space<vmem>>, %arg2: memref<1x128xf32, #tpu.memory_space<vmem>>, %arg3: memref<1x128xf32, #tpu.memory_space<vmem>>, %arg4: memref<9x128x128xbf16, #tpu.memory_space<vmem>>, %arg5: memref<1x16x16x128xf32, #tpu.memory_space<vmem>>, %arg6: memref<1x8x128xf32, #tpu.memory_space<vmem>>, %arg7: memref<1x8x128xf32, #tpu.memory_space<vmem>>, %arg8: memref<18x18x128xf32, #tpu.memory_space<vmem>>) attributes {dimension_semantics = [#tpu.dimension_semantics<parallel>], iteration_bounds = array<i64: 2>, scalar_prefetch = 0 : i64, scratch_operands = 1 : i64, tpu.core_type = #tpu.core_type<tc>, window_params = [{transform_indices = @transform_0, window_bounds = array<i64: 1, 16, 16, 128>}, {pipeline_mode = #tpu.pipeline_mode<synchronous>, transform_indices = @transform_1, window_bounds = array<i64: 1, 128>}, {pipeline_mode = #tpu.pipeline_mode<synchronous>, transform_indices = @transform_2, window_bounds = array<i64: 1, 128>}, {pipeline_mode = #tpu.pipeline_mode<synchronous>, transform_indices = @transform_3, window_bounds = array<i64: 9, 128, 128>}, {transform_indices = @transform_4, window_bounds = array<i64: 1, 16, 16, 128>}, {transform_indices = @transform_5, window_bounds = array<i64: 1, 8, 128>}, {transform_indices = @transform_6, window_bounds = array<i64: 1, 8, 128>}]} {
    %cst = arith.constant 0.000000e+00 : f32
    %0 = vector.broadcast %cst : f32 to vector<18x18x128xf32>
    %c0 = arith.constant 0 : index
    %c0_0 = arith.constant 0 : index
    %c0_1 = arith.constant 0 : index
    %1 = vector.load %arg8[%c0, %c0_0, %c0_1] : memref<18x18x128xf32, #tpu.memory_space<vmem>>, vector<18x18x128xf32>
    tpu.vector_store %arg8[%c0, %c0_0, %c0_1], %0 {strides = array<i32>} : memref<18x18x128xf32, #tpu.memory_space<vmem>>, vector<18x18x128xf32>,
    %c0_2 = arith.constant 0 : index
    %c0_3 = arith.constant 0 : index
    %c0_4 = arith.constant 0 : index
    %c0_5 = arith.constant 0 : index
    %2 = vector.load %arg1[%c0_2, %c0_3, %c0_4, %c0_5] : memref<1x16x16x128xf32, #tpu.memory_space<vmem>>, vector<1x16x16x128xf32>
    %3 = vector.shape_cast %2 : vector<1x16x16x128xf32> to vector<16x16x128xf32>
    %c0_6 = arith.constant 0 : index
    %c0_7 = arith.constant 0 : index
    %4 = vector.load %arg2[%c0_6, %c0_7] : memref<1x128xf32, #tpu.memory_space<vmem>>, vector<1x128xf32>
    %5 = vector.shape_cast %4 : vector<1x128xf32> to vector<1x1x128xf32>
    %6 = vector.broadcast %5 : vector<1x1x128xf32> to vector<16x16x128xf32>
    %7 = arith.mulf %3, %6 : vector<16x16x128xf32>
    %c0_8 = arith.constant 0 : index
    %c0_9 = arith.constant 0 : index
    %8 = vector.load %arg3[%c0_8, %c0_9] : memref<1x128xf32, #tpu.memory_space<vmem>>, vector<1x128xf32>
    %9 = vector.shape_cast %8 : vector<1x128xf32> to vector<1x1x128xf32>
    %10 = vector.broadcast %9 : vector<1x1x128xf32> to vector<16x16x128xf32>
    %11 = arith.addf %7, %10 : vector<16x16x128xf32>
    %cst_10 = arith.constant 0.000000e+00 : f32
    %12 = vector.broadcast %cst_10 : f32 to vector<16x16x128xf32>
    %13 = arith.maximumf %11, %12 : vector<16x16x128xf32>
    %c1 = arith.constant 1 : index
    %c1_11 = arith.constant 1 : index
    %c0_12 = arith.constant 0 : index
    %14 = vector.load %arg8[%c1, %c1_11, %c0_12] : memref<18x18x128xf32, #tpu.memory_space<vmem>>, vector<16x16x128xf32>
    tpu.vector_store %arg8[%c1, %c1_11, %c0_12], %13 {strides = array<i32>} : memref<18x18x128xf32, #tpu.memory_space<vmem>>, vector<16x16x128xf32>,
    %cst_13 = arith.constant 0.000000e+00 : f32
    %15 = vector.broadcast %cst_13 : f32 to vector<256x128xf32>
    %c0_14 = arith.constant 0 : index
    %c0_15 = arith.constant 0 : index
    %c0_16 = arith.constant 0 : index
    %16 = vector.load %arg8[%c0_14, %c0_15, %c0_16] : memref<18x18x128xf32, #tpu.memory_space<vmem>>, vector<16x16x128xf32>
    %17 = vector.shape_cast %16 : vector<16x16x128xf32> to vector<256x128xf32>
    %18 = arith.truncf %17 : vector<256x128xf32> to vector<256x128xbf16>
    %c0_17 = arith.constant 0 : index
    %c0_18 = arith.constant 0 : index
    %c0_19 = arith.constant 0 : index
    %19 = vector.load %arg4[%c0_17, %c0_18, %c0_19] : memref<9x128x128xbf16, #tpu.memory_space<vmem>>, vector<1x128x128xbf16>
    %20 = vector.shape_cast %19 : vector<1x128x128xbf16> to vector<128x128xbf16>
    %cst_20 = arith.constant dense<0.000000e+00> : vector<256x128xf32>
    %21 = tpu.matmul %18, %20, %cst_20 {dimension_numbers = #tpu.dot_dimension_numbers<[1], [0], [0], [1], [0, 0, 1, 1], [], []>} : vector<256x128xbf16>, vector<128x128xbf16>, vector<256x128xf32> -> vector<256x128xf32>
    %22 = arith.addf %15, %21 : vector<256x128xf32>
    %c0_21 = arith.constant 0 : index
    %c1_22 = arith.constant 1 : index
    %c0_23 = arith.constant 0 : index
    %23 = vector.load %arg8[%c0_21, %c1_22, %c0_23] : memref<18x18x128xf32, #tpu.memory_space<vmem>>, vector<16x16x128xf32>
    %24 = vector.shape_cast %23 : vector<16x16x128xf32> to vector<256x128xf32>
    %25 = arith.truncf %24 : vector<256x128xf32> to vector<256x128xbf16>
    %c1_24 = arith.constant 1 : index
    %c0_25 = arith.constant 0 : index
    %c0_26 = arith.constant 0 : index
    %26 = vector.load %arg4[%c1_24, %c0_25, %c0_26] : memref<9x128x128xbf16, #tpu.memory_space<vmem>>, vector<1x128x128xbf16>
    %27 = vector.shape_cast %26 : vector<1x128x128xbf16> to vector<128x128xbf16>
    %cst_27 = arith.constant dense<0.000000e+00> : vector<256x128xf32>
    %28 = tpu.matmul %25, %27, %cst_27 {dimension_numbers = #tpu.dot_dimension_numbers<[1], [0], [0], [1], [0, 0, 1, 1], [], []>} : vector<256x128xbf16>, vector<128x128xbf16>, vector<256x128xf32> -> vector<256x128xf32>
    %29 = arith.addf %22, %28 : vector<256x128xf32>
    %c0_28 = arith.constant 0 : index
    %c2 = arith.constant 2 : index
    %c0_29 = arith.constant 0 : index
    %30 = vector.load %arg8[%c0_28, %c2, %c0_29] : memref<18x18x128xf32, #tpu.memory_space<vmem>>, vector<16x16x128xf32>
    %31 = vector.shape_cast %30 : vector<16x16x128xf32> to vector<256x128xf32>
    %32 = arith.truncf %31 : vector<256x128xf32> to vector<256x128xbf16>
    %c2_30 = arith.constant 2 : index
    %c0_31 = arith.constant 0 : index
    %c0_32 = arith.constant 0 : index
    %33 = vector.load %arg4[%c2_30, %c0_31, %c0_32] : memref<9x128x128xbf16, #tpu.memory_space<vmem>>, vector<1x128x128xbf16>
    %34 = vector.shape_cast %33 : vector<1x128x128xbf16> to vector<128x128xbf16>
    %cst_33 = arith.constant dense<0.000000e+00> : vector<256x128xf32>
    %35 = tpu.matmul %32, %34, %cst_33 {dimension_numbers = #tpu.dot_dimension_numbers<[1], [0], [0], [1], [0, 0, 1, 1], [], []>} : vector<256x128xbf16>, vector<128x128xbf16>, vector<256x128xf32> -> vector<256x128xf32>
    %36 = arith.addf %29, %35 : vector<256x128xf32>
    %c1_34 = arith.constant 1 : index
    %c0_35 = arith.constant 0 : index
    %c0_36 = arith.constant 0 : index
    %37 = vector.load %arg8[%c1_34, %c0_35, %c0_36] : memref<18x18x128xf32, #tpu.memory_space<vmem>>, vector<16x16x128xf32>
    %38 = vector.shape_cast %37 : vector<16x16x128xf32> to vector<256x128xf32>
    %39 = arith.truncf %38 : vector<256x128xf32> to vector<256x128xbf16>
    %c3 = arith.constant 3 : index
    %c0_37 = arith.constant 0 : index
    %c0_38 = arith.constant 0 : index
    %40 = vector.load %arg4[%c3, %c0_37, %c0_38] : memref<9x128x128xbf16, #tpu.memory_space<vmem>>, vector<1x128x128xbf16>
    %41 = vector.shape_cast %40 : vector<1x128x128xbf16> to vector<128x128xbf16>
    %cst_39 = arith.constant dense<0.000000e+00> : vector<256x128xf32>
    %42 = tpu.matmul %39, %41, %cst_39 {dimension_numbers = #tpu.dot_dimension_numbers<[1], [0], [0], [1], [0, 0, 1, 1], [], []>} : vector<256x128xbf16>, vector<128x128xbf16>, vector<256x128xf32> -> vector<256x128xf32>
    %43 = arith.addf %36, %42 : vector<256x128xf32>
    %c1_40 = arith.constant 1 : index
    %c1_41 = arith.constant 1 : index
    %c0_42 = arith.constant 0 : index
    %44 = vector.load %arg8[%c1_40, %c1_41, %c0_42] : memref<18x18x128xf32, #tpu.memory_space<vmem>>, vector<16x16x128xf32>
    %45 = vector.shape_cast %44 : vector<16x16x128xf32> to vector<256x128xf32>
    %46 = arith.truncf %45 : vector<256x128xf32> to vector<256x128xbf16>
    %c4 = arith.constant 4 : index
    %c0_43 = arith.constant 0 : index
    %c0_44 = arith.constant 0 : index
    %47 = vector.load %arg4[%c4, %c0_43, %c0_44] : memref<9x128x128xbf16, #tpu.memory_space<vmem>>, vector<1x128x128xbf16>
    %48 = vector.shape_cast %47 : vector<1x128x128xbf16> to vector<128x128xbf16>
    %cst_45 = arith.constant dense<0.000000e+00> : vector<256x128xf32>
    %49 = tpu.matmul %46, %48, %cst_45 {dimension_numbers = #tpu.dot_dimension_numbers<[1], [0], [0], [1], [0, 0, 1, 1], [], []>} : vector<256x128xbf16>, vector<128x128xbf16>, vector<256x128xf32> -> vector<256x128xf32>
    %50 = arith.addf %43, %49 : vector<256x128xf32>
    %c1_46 = arith.constant 1 : index
    %c2_47 = arith.constant 2 : index
    %c0_48 = arith.constant 0 : index
    %51 = vector.load %arg8[%c1_46, %c2_47, %c0_48] : memref<18x18x128xf32, #tpu.memory_space<vmem>>, vector<16x16x128xf32>
    %52 = vector.shape_cast %51 : vector<16x16x128xf32> to vector<256x128xf32>
    %53 = arith.truncf %52 : vector<256x128xf32> to vector<256x128xbf16>
    %c5 = arith.constant 5 : index
    %c0_49 = arith.constant 0 : index
    %c0_50 = arith.constant 0 : index
    %54 = vector.load %arg4[%c5, %c0_49, %c0_50] : memref<9x128x128xbf16, #tpu.memory_space<vmem>>, vector<1x128x128xbf16>
    %55 = vector.shape_cast %54 : vector<1x128x128xbf16> to vector<128x128xbf16>
    %cst_51 = arith.constant dense<0.000000e+00> : vector<256x128xf32>
    %56 = tpu.matmul %53, %55, %cst_51 {dimension_numbers = #tpu.dot_dimension_numbers<[1], [0], [0], [1], [0, 0, 1, 1], [], []>} : vector<256x128xbf16>, vector<128x128xbf16>, vector<256x128xf32> -> vector<256x128xf32>
    %57 = arith.addf %50, %56 : vector<256x128xf32>
    %c2_52 = arith.constant 2 : index
    %c0_53 = arith.constant 0 : index
    %c0_54 = arith.constant 0 : index
    %58 = vector.load %arg8[%c2_52, %c0_53, %c0_54] : memref<18x18x128xf32, #tpu.memory_space<vmem>>, vector<16x16x128xf32>
    %59 = vector.shape_cast %58 : vector<16x16x128xf32> to vector<256x128xf32>
    %60 = arith.truncf %59 : vector<256x128xf32> to vector<256x128xbf16>
    %c6 = arith.constant 6 : index
    %c0_55 = arith.constant 0 : index
    %c0_56 = arith.constant 0 : index
    %61 = vector.load %arg4[%c6, %c0_55, %c0_56] : memref<9x128x128xbf16, #tpu.memory_space<vmem>>, vector<1x128x128xbf16>
    %62 = vector.shape_cast %61 : vector<1x128x128xbf16> to vector<128x128xbf16>
    %cst_57 = arith.constant dense<0.000000e+00> : vector<256x128xf32>
    %63 = tpu.matmul %60, %62, %cst_57 {dimension_numbers = #tpu.dot_dimension_numbers<[1], [0], [0], [1], [0, 0, 1, 1], [], []>} : vector<256x128xbf16>, vector<128x128xbf16>, vector<256x128xf32> -> vector<256x128xf32>
    %64 = arith.addf %57, %63 : vector<256x128xf32>
    %c2_58 = arith.constant 2 : index
    %c1_59 = arith.constant 1 : index
    %c0_60 = arith.constant 0 : index
    %65 = vector.load %arg8[%c2_58, %c1_59, %c0_60] : memref<18x18x128xf32, #tpu.memory_space<vmem>>, vector<16x16x128xf32>
    %66 = vector.shape_cast %65 : vector<16x16x128xf32> to vector<256x128xf32>
    %67 = arith.truncf %66 : vector<256x128xf32> to vector<256x128xbf16>
    %c7 = arith.constant 7 : index
    %c0_61 = arith.constant 0 : index
    %c0_62 = arith.constant 0 : index
    %68 = vector.load %arg4[%c7, %c0_61, %c0_62] : memref<9x128x128xbf16, #tpu.memory_space<vmem>>, vector<1x128x128xbf16>
    %69 = vector.shape_cast %68 : vector<1x128x128xbf16> to vector<128x128xbf16>
    %cst_63 = arith.constant dense<0.000000e+00> : vector<256x128xf32>
    %70 = tpu.matmul %67, %69, %cst_63 {dimension_numbers = #tpu.dot_dimension_numbers<[1], [0], [0], [1], [0, 0, 1, 1], [], []>} : vector<256x128xbf16>, vector<128x128xbf16>, vector<256x128xf32> -> vector<256x128xf32>
    %71 = arith.addf %64, %70 : vector<256x128xf32>
    %c2_64 = arith.constant 2 : index
    %c2_65 = arith.constant 2 : index
    %c0_66 = arith.constant 0 : index
    %72 = vector.load %arg8[%c2_64, %c2_65, %c0_66] : memref<18x18x128xf32, #tpu.memory_space<vmem>>, vector<16x16x128xf32>
    %73 = vector.shape_cast %72 : vector<16x16x128xf32> to vector<256x128xf32>
    %74 = arith.truncf %73 : vector<256x128xf32> to vector<256x128xbf16>
    %c8 = arith.constant 8 : index
    %c0_67 = arith.constant 0 : index
    %c0_68 = arith.constant 0 : index
    %75 = vector.load %arg4[%c8, %c0_67, %c0_68] : memref<9x128x128xbf16, #tpu.memory_space<vmem>>, vector<1x128x128xbf16>
    %76 = vector.shape_cast %75 : vector<1x128x128xbf16> to vector<128x128xbf16>
    %cst_69 = arith.constant dense<0.000000e+00> : vector<256x128xf32>
    %77 = tpu.matmul %74, %76, %cst_69 {dimension_numbers = #tpu.dot_dimension_numbers<[1], [0], [0], [1], [0, 0, 1, 1], [], []>} : vector<256x128xbf16>, vector<128x128xbf16>, vector<256x128xf32> -> vector<256x128xf32>
    %78 = arith.addf %71, %77 : vector<256x128xf32>
    %79 = vector.shape_cast %78 : vector<256x128xf32> to vector<16x16x128xf32>
    %c0_70 = arith.constant 0 : index
    %c0_71 = arith.constant 0 : index
    %c0_72 = arith.constant 0 : index
    %c0_73 = arith.constant 0 : index
    %80 = vector.load %arg5[%c0_70, %c0_71, %c0_72, %c0_73] : memref<1x16x16x128xf32, #tpu.memory_space<vmem>>, vector<1x16x16x128xf32>
    %81 = vector.shape_cast %80 : vector<1x16x16x128xf32> to vector<16x16x128xf32>
    %82 = vector.shape_cast %79 : vector<16x16x128xf32> to vector<1x16x16x128xf32>
    tpu.vector_store %arg5[%c0_70, %c0_71, %c0_72, %c0_73], %82 {strides = array<i32>} : memref<1x16x16x128xf32, #tpu.memory_space<vmem>>, vector<1x16x16x128xf32>,
    %cst_74 = arith.constant dense<0.000000e+00> : vector<128xf32>
    %83 = vector.multi_reduction <add>, %78, %cst_74 [0] : vector<256x128xf32> to vector<128xf32>
    %84 = vector.shape_cast %83 : vector<128xf32> to vector<1x128xf32>
    %85 = vector.shape_cast %84 : vector<1x128xf32> to vector<1x128xf32>
    %86 = vector.broadcast %85 : vector<1x128xf32> to vector<8x128xf32>
    %c0_75 = arith.constant 0 : index
    %c0_76 = arith.constant 0 : index
    %c0_77 = arith.constant 0 : index
    %87 = vector.load %arg6[%c0_75, %c0_76, %c0_77] : memref<1x8x128xf32, #tpu.memory_space<vmem>>, vector<1x8x128xf32>
    %88 = vector.shape_cast %87 : vector<1x8x128xf32> to vector<8x128xf32>
    %89 = vector.shape_cast %86 : vector<8x128xf32> to vector<1x8x128xf32>
    tpu.vector_store %arg6[%c0_75, %c0_76, %c0_77], %89 {strides = array<i32>} : memref<1x8x128xf32, #tpu.memory_space<vmem>>, vector<1x8x128xf32>,
    %90 = arith.mulf %78, %78 : vector<256x128xf32>
    %cst_78 = arith.constant dense<0.000000e+00> : vector<128xf32>
    %91 = vector.multi_reduction <add>, %90, %cst_78 [0] : vector<256x128xf32> to vector<128xf32>
    %92 = vector.shape_cast %91 : vector<128xf32> to vector<1x128xf32>
    %93 = vector.shape_cast %92 : vector<1x128xf32> to vector<1x128xf32>
    %94 = vector.broadcast %93 : vector<1x128xf32> to vector<8x128xf32>
    %c0_79 = arith.constant 0 : index
    %c0_80 = arith.constant 0 : index
    %c0_81 = arith.constant 0 : index
    %95 = vector.load %arg7[%c0_79, %c0_80, %c0_81] : memref<1x8x128xf32, #tpu.memory_space<vmem>>, vector<1x8x128xf32>
    %96 = vector.shape_cast %95 : vector<1x8x128xf32> to vector<8x128xf32>
    %97 = vector.shape_cast %94 : vector<8x128xf32> to vector<1x8x128xf32>
    tpu.vector_store %arg7[%c0_79, %c0_80, %c0_81], %97 {strides = array<i32>} : memref<1x8x128xf32, #tpu.memory_space<vmem>>, vector<1x8x128xf32>,
    return
  }
  func.func @transform_0(%arg0: i32) -> (i32, i32, i32, i32) {
    %c0_i32 = arith.constant 0 : i32
    %c0_i32_0 = arith.constant 0 : i32
    %c0_i32_1 = arith.constant 0 : i32
    %c0_i32_2 = arith.constant 0 : i32
    return %arg0, %c0_i32, %c0_i32_0, %c0_i32_1 : i32, i32, i32, i32
  }
  func.func @transform_1(%arg0: i32) -> (i32, i32) {
    %c0_i32 = arith.constant 0 : i32
    %c0_i32_0 = arith.constant 0 : i32
    %c0_i32_1 = arith.constant 0 : i32
    return %c0_i32, %c0_i32_0 : i32, i32
  }
  func.func @transform_2(%arg0: i32) -> (i32, i32) {
    %c0_i32 = arith.constant 0 : i32
    %c0_i32_0 = arith.constant 0 : i32
    %c0_i32_1 = arith.constant 0 : i32
    return %c0_i32, %c0_i32_0 : i32, i32
  }
  func.func @transform_3(%arg0: i32) -> (i32, i32, i32) {
    %c0_i32 = arith.constant 0 : i32
    %c0_i32_0 = arith.constant 0 : i32
    %c0_i32_1 = arith.constant 0 : i32
    %c0_i32_2 = arith.constant 0 : i32
    return %c0_i32, %c0_i32_0, %c0_i32_1 : i32, i32, i32
  }
  func.func @transform_4(%arg0: i32) -> (i32, i32, i32, i32) {
    %c0_i32 = arith.constant 0 : i32
    %c0_i32_0 = arith.constant 0 : i32
    %c0_i32_1 = arith.constant 0 : i32
    %c0_i32_2 = arith.constant 0 : i32
    return %arg0, %c0_i32, %c0_i32_0, %c0_i32_1 : i32, i32, i32, i32
  }
  func.func @transform_5(%arg0: i32) -> (i32, i32, i32) {
    %c0_i32 = arith.constant 0 : i32
    %c0_i32_0 = arith.constant 0 : i32
    %c0_i32_1 = arith.constant 0 : i32
    return %arg0, %c0_i32, %c0_i32_0 : i32, i32, i32
  }
  func.func @transform_6(%arg0: i32) -> (i32, i32, i32) {
    %c0_i32 = arith.constant 0 : i32
    %c0_i32_0 = arith.constant 0 : i32
    %c0_i32_1 = arith.constant 0 : i32
    return %arg0, %c0_i32, %c0_i32_0 : i32, i32, i32
  }
}

module attributes {stable_mosaic.version = 11 : i64} {
  func.func @residual_bn_relu_kernel(%arg0: i32, %arg1: memref<1x16x16x128xf32, #tpu.memory_space<vmem>>, %arg2: memref<1x16x16x128xf32, #tpu.memory_space<vmem>>, %arg3: memref<1x128xf32, #tpu.memory_space<vmem>>, %arg4: memref<1x128xf32, #tpu.memory_space<vmem>>, %arg5: memref<1x128xf32, #tpu.memory_space<vmem>>, %arg6: memref<1x128xf32, #tpu.memory_space<vmem>>, %arg7: memref<1x16x16x128xf32, #tpu.memory_space<vmem>>) attributes {dimension_semantics = [#tpu.dimension_semantics<parallel>], iteration_bounds = array<i64: 2>, scalar_prefetch = 0 : i64, scratch_operands = 0 : i64, tpu.core_type = #tpu.core_type<tc>, window_params = [{transform_indices = @transform_0, window_bounds = array<i64: 1, 16, 16, 128>}, {transform_indices = @transform_1, window_bounds = array<i64: 1, 16, 16, 128>}, {pipeline_mode = #tpu.pipeline_mode<synchronous>, transform_indices = @transform_2, window_bounds = array<i64: 1, 128>}, {pipeline_mode = #tpu.pipeline_mode<synchronous>, transform_indices = @transform_3, window_bounds = array<i64: 1, 128>}, {pipeline_mode = #tpu.pipeline_mode<synchronous>, transform_indices = @transform_4, window_bounds = array<i64: 1, 128>}, {pipeline_mode = #tpu.pipeline_mode<synchronous>, transform_indices = @transform_5, window_bounds = array<i64: 1, 128>}, {transform_indices = @transform_6, window_bounds = array<i64: 1, 16, 16, 128>}]} {
    %c0 = arith.constant 0 : index
    %c0_0 = arith.constant 0 : index
    %c0_1 = arith.constant 0 : index
    %c0_2 = arith.constant 0 : index
    %0 = vector.load %arg1[%c0, %c0_0, %c0_1, %c0_2] : memref<1x16x16x128xf32, #tpu.memory_space<vmem>>, vector<1x16x16x128xf32>
    %1 = vector.shape_cast %0 : vector<1x16x16x128xf32> to vector<16x16x128xf32>
    %c0_3 = arith.constant 0 : index
    %c0_4 = arith.constant 0 : index
    %2 = vector.load %arg3[%c0_3, %c0_4] : memref<1x128xf32, #tpu.memory_space<vmem>>, vector<1x128xf32>
    %3 = vector.shape_cast %2 : vector<1x128xf32> to vector<1x1x128xf32>
    %4 = vector.broadcast %3 : vector<1x1x128xf32> to vector<16x16x128xf32>
    %5 = arith.mulf %1, %4 : vector<16x16x128xf32>
    %c0_5 = arith.constant 0 : index
    %c0_6 = arith.constant 0 : index
    %6 = vector.load %arg4[%c0_5, %c0_6] : memref<1x128xf32, #tpu.memory_space<vmem>>, vector<1x128xf32>
    %7 = vector.shape_cast %6 : vector<1x128xf32> to vector<1x1x128xf32>
    %8 = vector.broadcast %7 : vector<1x1x128xf32> to vector<16x16x128xf32>
    %9 = arith.addf %5, %8 : vector<16x16x128xf32>
    %c0_7 = arith.constant 0 : index
    %c0_8 = arith.constant 0 : index
    %c0_9 = arith.constant 0 : index
    %c0_10 = arith.constant 0 : index
    %10 = vector.load %arg2[%c0_7, %c0_8, %c0_9, %c0_10] : memref<1x16x16x128xf32, #tpu.memory_space<vmem>>, vector<1x16x16x128xf32>
    %11 = vector.shape_cast %10 : vector<1x16x16x128xf32> to vector<16x16x128xf32>
    %c0_11 = arith.constant 0 : index
    %c0_12 = arith.constant 0 : index
    %12 = vector.load %arg5[%c0_11, %c0_12] : memref<1x128xf32, #tpu.memory_space<vmem>>, vector<1x128xf32>
    %13 = vector.shape_cast %12 : vector<1x128xf32> to vector<1x1x128xf32>
    %14 = vector.broadcast %13 : vector<1x1x128xf32> to vector<16x16x128xf32>
    %15 = arith.mulf %11, %14 : vector<16x16x128xf32>
    %c0_13 = arith.constant 0 : index
    %c0_14 = arith.constant 0 : index
    %16 = vector.load %arg6[%c0_13, %c0_14] : memref<1x128xf32, #tpu.memory_space<vmem>>, vector<1x128xf32>
    %17 = vector.shape_cast %16 : vector<1x128xf32> to vector<1x1x128xf32>
    %18 = vector.broadcast %17 : vector<1x1x128xf32> to vector<16x16x128xf32>
    %19 = arith.addf %15, %18 : vector<16x16x128xf32>
    %20 = arith.addf %9, %19 : vector<16x16x128xf32>
    %cst = arith.constant 0.000000e+00 : f32
    %21 = vector.broadcast %cst : f32 to vector<16x16x128xf32>
    %22 = arith.maximumf %20, %21 : vector<16x16x128xf32>
    %c0_15 = arith.constant 0 : index
    %c0_16 = arith.constant 0 : index
    %c0_17 = arith.constant 0 : index
    %c0_18 = arith.constant 0 : index
    %23 = vector.load %arg7[%c0_15, %c0_16, %c0_17, %c0_18] : memref<1x16x16x128xf32, #tpu.memory_space<vmem>>, vector<1x16x16x128xf32>
    %24 = vector.shape_cast %23 : vector<1x16x16x128xf32> to vector<16x16x128xf32>
    %25 = vector.shape_cast %22 : vector<16x16x128xf32> to vector<1x16x16x128xf32>
    tpu.vector_store %arg7[%c0_15, %c0_16, %c0_17, %c0_18], %25 {strides = array<i32>} : memref<1x16x16x128xf32, #tpu.memory_space<vmem>>, vector<1x16x16x128xf32>,
    return
  }
  func.func @transform_0(%arg0: i32) -> (i32, i32, i32, i32) {
    %c0_i32 = arith.constant 0 : i32
    %c0_i32_0 = arith.constant 0 : i32
    %c0_i32_1 = arith.constant 0 : i32
    %c0_i32_2 = arith.constant 0 : i32
    return %arg0, %c0_i32, %c0_i32_0, %c0_i32_1 : i32, i32, i32, i32
  }
  func.func @transform_1(%arg0: i32) -> (i32, i32, i32, i32) {
    %c0_i32 = arith.constant 0 : i32
    %c0_i32_0 = arith.constant 0 : i32
    %c0_i32_1 = arith.constant 0 : i32
    %c0_i32_2 = arith.constant 0 : i32
    return %arg0, %c0_i32, %c0_i32_0, %c0_i32_1 : i32, i32, i32, i32
  }
  func.func @transform_2(%arg0: i32) -> (i32, i32) {
    %c0_i32 = arith.constant 0 : i32
    %c0_i32_0 = arith.constant 0 : i32
    %c0_i32_1 = arith.constant 0 : i32
    return %c0_i32, %c0_i32_0 : i32, i32
  }
  func.func @transform_3(%arg0: i32) -> (i32, i32) {
    %c0_i32 = arith.constant 0 : i32
    %c0_i32_0 = arith.constant 0 : i32
    %c0_i32_1 = arith.constant 0 : i32
    return %c0_i32, %c0_i32_0 : i32, i32
  }
  func.func @transform_4(%arg0: i32) -> (i32, i32) {
    %c0_i32 = arith.constant 0 : i32
    %c0_i32_0 = arith.constant 0 : i32
    %c0_i32_1 = arith.constant 0 : i32
    return %c0_i32, %c0_i32_0 : i32, i32
  }
  func.func @transform_5(%arg0: i32) -> (i32, i32) {
    %c0_i32 = arith.constant 0 : i32
    %c0_i32_0 = arith.constant 0 : i32
    %c0_i32_1 = arith.constant 0 : i32
    return %c0_i32, %c0_i32_0 : i32, i32
  }
  func.func @transform_6(%arg0: i32) -> (i32, i32, i32, i32) {
    %c0_i32 = arith.constant 0 : i32
    %c0_i32_0 = arith.constant 0 : i32
    %c0_i32_1 = arith.constant 0 : i32
    %c0_i32_2 = arith.constant 0 : i32
    return %arg0, %c0_i32, %c0_i32_0, %c0_i32_1 : i32, i32, i32, i32
  }
}

module attributes {stable_mosaic.version = 11 : i64} {
  func.func @project_downsample_kernel(%arg0: i32, %arg1: memref<1x16x16x128xf32, #tpu.memory_space<vmem>>, %arg2: memref<1x16x16x128xbf16, #tpu.memory_space<vmem>>, %arg3: memref<1x128xf32, #tpu.memory_space<vmem>>, %arg4: memref<1x128xf32, #tpu.memory_space<vmem>>, %arg5: memref<128x128xbf16, #tpu.memory_space<vmem>>, %arg6: memref<128x128xbf16, #tpu.memory_space<vmem>>, %arg7: memref<1x16x16x128xf32, #tpu.memory_space<vmem>>, %arg8: memref<1x16x16x128xf32, #tpu.memory_space<vmem>>, %arg9: memref<1x8x128xf32, #tpu.memory_space<vmem>>, %arg10: memref<1x8x128xf32, #tpu.memory_space<vmem>>, %arg11: memref<1x8x128xf32, #tpu.memory_space<vmem>>, %arg12: memref<1x8x128xf32, #tpu.memory_space<vmem>>) attributes {dimension_semantics = [#tpu.dimension_semantics<parallel>], iteration_bounds = array<i64: 2>, scalar_prefetch = 0 : i64, scratch_operands = 0 : i64, tpu.core_type = #tpu.core_type<tc>, window_params = [{transform_indices = @transform_0, window_bounds = array<i64: 1, 16, 16, 128>}, {transform_indices = @transform_1, window_bounds = array<i64: 1, 16, 16, 128>}, {pipeline_mode = #tpu.pipeline_mode<synchronous>, transform_indices = @transform_2, window_bounds = array<i64: 1, 128>}, {pipeline_mode = #tpu.pipeline_mode<synchronous>, transform_indices = @transform_3, window_bounds = array<i64: 1, 128>}, {pipeline_mode = #tpu.pipeline_mode<synchronous>, transform_indices = @transform_4, window_bounds = array<i64: 128, 128>}, {pipeline_mode = #tpu.pipeline_mode<synchronous>, transform_indices = @transform_5, window_bounds = array<i64: 128, 128>}, {transform_indices = @transform_6, window_bounds = array<i64: 1, 16, 16, 128>}, {transform_indices = @transform_7, window_bounds = array<i64: 1, 16, 16, 128>}, {transform_indices = @transform_8, window_bounds = array<i64: 1, 8, 128>}, {transform_indices = @transform_9, window_bounds = array<i64: 1, 8, 128>}, {transform_indices = @transform_10, window_bounds = array<i64: 1, 8, 128>}, {transform_indices = @transform_11, window_bounds = array<i64: 1, 8, 128>}]} {
    %c0 = arith.constant 0 : index
    %c0_0 = arith.constant 0 : index
    %c0_1 = arith.constant 0 : index
    %c0_2 = arith.constant 0 : index
    %0 = vector.load %arg1[%c0, %c0_0, %c0_1, %c0_2] : memref<1x16x16x128xf32, #tpu.memory_space<vmem>>, vector<1x16x16x128xf32>
    %1 = vector.shape_cast %0 : vector<1x16x16x128xf32> to vector<16x16x128xf32>
    %c0_3 = arith.constant 0 : index
    %c0_4 = arith.constant 0 : index
    %2 = vector.load %arg3[%c0_3, %c0_4] : memref<1x128xf32, #tpu.memory_space<vmem>>, vector<1x128xf32>
    %3 = vector.shape_cast %2 : vector<1x128xf32> to vector<1x1x128xf32>
    %4 = vector.broadcast %3 : vector<1x1x128xf32> to vector<16x16x128xf32>
    %5 = arith.mulf %1, %4 : vector<16x16x128xf32>
    %c0_5 = arith.constant 0 : index
    %c0_6 = arith.constant 0 : index
    %6 = vector.load %arg4[%c0_5, %c0_6] : memref<1x128xf32, #tpu.memory_space<vmem>>, vector<1x128xf32>
    %7 = vector.shape_cast %6 : vector<1x128xf32> to vector<1x1x128xf32>
    %8 = vector.broadcast %7 : vector<1x1x128xf32> to vector<16x16x128xf32>
    %9 = arith.addf %5, %8 : vector<16x16x128xf32>
    %cst = arith.constant 0.000000e+00 : f32
    %10 = vector.broadcast %cst : f32 to vector<16x16x128xf32>
    %11 = arith.maximumf %9, %10 : vector<16x16x128xf32>
    %12 = vector.shape_cast %11 : vector<16x16x128xf32> to vector<256x128xf32>
    %13 = arith.truncf %12 : vector<256x128xf32> to vector<256x128xbf16>
    %c0_7 = arith.constant 0 : index
    %c0_8 = arith.constant 0 : index
    %14 = vector.load %arg5[%c0_7, %c0_8] : memref<128x128xbf16, #tpu.memory_space<vmem>>, vector<128x128xbf16>
    %cst_9 = arith.constant dense<0.000000e+00> : vector<256x128xf32>
    %15 = tpu.matmul %13, %14, %cst_9 {dimension_numbers = #tpu.dot_dimension_numbers<[1], [0], [0], [1], [0, 0, 1, 1], [], []>} : vector<256x128xbf16>, vector<128x128xbf16>, vector<256x128xf32> -> vector<256x128xf32>
    %c0_10 = arith.constant 0 : index
    %c0_11 = arith.constant 0 : index
    %c0_12 = arith.constant 0 : index
    %c0_13 = arith.constant 0 : index
    %16 = vector.load %arg2[%c0_10, %c0_11, %c0_12, %c0_13] : memref<1x16x16x128xbf16, #tpu.memory_space<vmem>>, vector<1x16x16x128xbf16>
    %17 = vector.shape_cast %16 : vector<1x16x16x128xbf16> to vector<16x16x128xbf16>
    %18 = vector.shape_cast %17 : vector<16x16x128xbf16> to vector<256x128xbf16>
    %c0_14 = arith.constant 0 : index
    %c0_15 = arith.constant 0 : index
    %19 = vector.load %arg6[%c0_14, %c0_15] : memref<128x128xbf16, #tpu.memory_space<vmem>>, vector<128x128xbf16>
    %cst_16 = arith.constant dense<0.000000e+00> : vector<256x128xf32>
    %20 = tpu.matmul %18, %19, %cst_16 {dimension_numbers = #tpu.dot_dimension_numbers<[1], [0], [0], [1], [0, 0, 1, 1], [], []>} : vector<256x128xbf16>, vector<128x128xbf16>, vector<256x128xf32> -> vector<256x128xf32>
    %21 = vector.shape_cast %15 : vector<256x128xf32> to vector<16x16x128xf32>
    %c0_17 = arith.constant 0 : index
    %c0_18 = arith.constant 0 : index
    %c0_19 = arith.constant 0 : index
    %c0_20 = arith.constant 0 : index
    %22 = vector.load %arg7[%c0_17, %c0_18, %c0_19, %c0_20] : memref<1x16x16x128xf32, #tpu.memory_space<vmem>>, vector<1x16x16x128xf32>
    %23 = vector.shape_cast %22 : vector<1x16x16x128xf32> to vector<16x16x128xf32>
    %24 = vector.shape_cast %21 : vector<16x16x128xf32> to vector<1x16x16x128xf32>
    tpu.vector_store %arg7[%c0_17, %c0_18, %c0_19, %c0_20], %24 {strides = array<i32>} : memref<1x16x16x128xf32, #tpu.memory_space<vmem>>, vector<1x16x16x128xf32>,
    %25 = vector.shape_cast %20 : vector<256x128xf32> to vector<16x16x128xf32>
    %c0_21 = arith.constant 0 : index
    %c0_22 = arith.constant 0 : index
    %c0_23 = arith.constant 0 : index
    %c0_24 = arith.constant 0 : index
    %26 = vector.load %arg8[%c0_21, %c0_22, %c0_23, %c0_24] : memref<1x16x16x128xf32, #tpu.memory_space<vmem>>, vector<1x16x16x128xf32>
    %27 = vector.shape_cast %26 : vector<1x16x16x128xf32> to vector<16x16x128xf32>
    %28 = vector.shape_cast %25 : vector<16x16x128xf32> to vector<1x16x16x128xf32>
    tpu.vector_store %arg8[%c0_21, %c0_22, %c0_23, %c0_24], %28 {strides = array<i32>} : memref<1x16x16x128xf32, #tpu.memory_space<vmem>>, vector<1x16x16x128xf32>,
    %cst_25 = arith.constant dense<0.000000e+00> : vector<128xf32>
    %29 = vector.multi_reduction <add>, %15, %cst_25 [0] : vector<256x128xf32> to vector<128xf32>
    %30 = vector.shape_cast %29 : vector<128xf32> to vector<1x128xf32>
    %31 = vector.shape_cast %30 : vector<1x128xf32> to vector<1x128xf32>
    %32 = vector.broadcast %31 : vector<1x128xf32> to vector<8x128xf32>
    %c0_26 = arith.constant 0 : index
    %c0_27 = arith.constant 0 : index
    %c0_28 = arith.constant 0 : index
    %33 = vector.load %arg9[%c0_26, %c0_27, %c0_28] : memref<1x8x128xf32, #tpu.memory_space<vmem>>, vector<1x8x128xf32>
    %34 = vector.shape_cast %33 : vector<1x8x128xf32> to vector<8x128xf32>
    %35 = vector.shape_cast %32 : vector<8x128xf32> to vector<1x8x128xf32>
    tpu.vector_store %arg9[%c0_26, %c0_27, %c0_28], %35 {strides = array<i32>} : memref<1x8x128xf32, #tpu.memory_space<vmem>>, vector<1x8x128xf32>,
    %36 = arith.mulf %15, %15 : vector<256x128xf32>
    %cst_29 = arith.constant dense<0.000000e+00> : vector<128xf32>
    %37 = vector.multi_reduction <add>, %36, %cst_29 [0] : vector<256x128xf32> to vector<128xf32>
    %38 = vector.shape_cast %37 : vector<128xf32> to vector<1x128xf32>
    %39 = vector.shape_cast %38 : vector<1x128xf32> to vector<1x128xf32>
    %40 = vector.broadcast %39 : vector<1x128xf32> to vector<8x128xf32>
    %c0_30 = arith.constant 0 : index
    %c0_31 = arith.constant 0 : index
    %c0_32 = arith.constant 0 : index
    %41 = vector.load %arg10[%c0_30, %c0_31, %c0_32] : memref<1x8x128xf32, #tpu.memory_space<vmem>>, vector<1x8x128xf32>
    %42 = vector.shape_cast %41 : vector<1x8x128xf32> to vector<8x128xf32>
    %43 = vector.shape_cast %40 : vector<8x128xf32> to vector<1x8x128xf32>
    tpu.vector_store %arg10[%c0_30, %c0_31, %c0_32], %43 {strides = array<i32>} : memref<1x8x128xf32, #tpu.memory_space<vmem>>, vector<1x8x128xf32>,
    %cst_33 = arith.constant dense<0.000000e+00> : vector<128xf32>
    %44 = vector.multi_reduction <add>, %20, %cst_33 [0] : vector<256x128xf32> to vector<128xf32>
    %45 = vector.shape_cast %44 : vector<128xf32> to vector<1x128xf32>
    %46 = vector.shape_cast %45 : vector<1x128xf32> to vector<1x128xf32>
    %47 = vector.broadcast %46 : vector<1x128xf32> to vector<8x128xf32>
    %c0_34 = arith.constant 0 : index
    %c0_35 = arith.constant 0 : index
    %c0_36 = arith.constant 0 : index
    %48 = vector.load %arg11[%c0_34, %c0_35, %c0_36] : memref<1x8x128xf32, #tpu.memory_space<vmem>>, vector<1x8x128xf32>
    %49 = vector.shape_cast %48 : vector<1x8x128xf32> to vector<8x128xf32>
    %50 = vector.shape_cast %47 : vector<8x128xf32> to vector<1x8x128xf32>
    tpu.vector_store %arg11[%c0_34, %c0_35, %c0_36], %50 {strides = array<i32>} : memref<1x8x128xf32, #tpu.memory_space<vmem>>, vector<1x8x128xf32>,
    %51 = arith.mulf %20, %20 : vector<256x128xf32>
    %cst_37 = arith.constant dense<0.000000e+00> : vector<128xf32>
    %52 = vector.multi_reduction <add>, %51, %cst_37 [0] : vector<256x128xf32> to vector<128xf32>
    %53 = vector.shape_cast %52 : vector<128xf32> to vector<1x128xf32>
    %54 = vector.shape_cast %53 : vector<1x128xf32> to vector<1x128xf32>
    %55 = vector.broadcast %54 : vector<1x128xf32> to vector<8x128xf32>
    %c0_38 = arith.constant 0 : index
    %c0_39 = arith.constant 0 : index
    %c0_40 = arith.constant 0 : index
    %56 = vector.load %arg12[%c0_38, %c0_39, %c0_40] : memref<1x8x128xf32, #tpu.memory_space<vmem>>, vector<1x8x128xf32>
    %57 = vector.shape_cast %56 : vector<1x8x128xf32> to vector<8x128xf32>
    %58 = vector.shape_cast %55 : vector<8x128xf32> to vector<1x8x128xf32>
    tpu.vector_store %arg12[%c0_38, %c0_39, %c0_40], %58 {strides = array<i32>} : memref<1x8x128xf32, #tpu.memory_space<vmem>>, vector<1x8x128xf32>,
    return
  }
  func.func @transform_0(%arg0: i32) -> (i32, i32, i32, i32) {
    %c0_i32 = arith.constant 0 : i32
    %c0_i32_0 = arith.constant 0 : i32
    %c0_i32_1 = arith.constant 0 : i32
    %c0_i32_2 = arith.constant 0 : i32
    return %arg0, %c0_i32, %c0_i32_0, %c0_i32_1 : i32, i32, i32, i32
  }
  func.func @transform_1(%arg0: i32) -> (i32, i32, i32, i32) {
    %c0_i32 = arith.constant 0 : i32
    %c0_i32_0 = arith.constant 0 : i32
    %c0_i32_1 = arith.constant 0 : i32
    %c0_i32_2 = arith.constant 0 : i32
    return %arg0, %c0_i32, %c0_i32_0, %c0_i32_1 : i32, i32, i32, i32
  }
  func.func @transform_2(%arg0: i32) -> (i32, i32) {
    %c0_i32 = arith.constant 0 : i32
    %c0_i32_0 = arith.constant 0 : i32
    %c0_i32_1 = arith.constant 0 : i32
    return %c0_i32, %c0_i32_0 : i32, i32
  }
  func.func @transform_3(%arg0: i32) -> (i32, i32) {
    %c0_i32 = arith.constant 0 : i32
    %c0_i32_0 = arith.constant 0 : i32
    %c0_i32_1 = arith.constant 0 : i32
    return %c0_i32, %c0_i32_0 : i32, i32
  }
  func.func @transform_4(%arg0: i32) -> (i32, i32) {
    %c0_i32 = arith.constant 0 : i32
    %c0_i32_0 = arith.constant 0 : i32
    %c0_i32_1 = arith.constant 0 : i32
    return %c0_i32, %c0_i32_0 : i32, i32
  }
  func.func @transform_5(%arg0: i32) -> (i32, i32) {
    %c0_i32 = arith.constant 0 : i32
    %c0_i32_0 = arith.constant 0 : i32
    %c0_i32_1 = arith.constant 0 : i32
    return %c0_i32, %c0_i32_0 : i32, i32
  }
  func.func @transform_6(%arg0: i32) -> (i32, i32, i32, i32) {
    %c0_i32 = arith.constant 0 : i32
    %c0_i32_0 = arith.constant 0 : i32
    %c0_i32_1 = arith.constant 0 : i32
    %c0_i32_2 = arith.constant 0 : i32
    return %arg0, %c0_i32, %c0_i32_0, %c0_i32_1 : i32, i32, i32, i32
  }
  func.func @transform_7(%arg0: i32) -> (i32, i32, i32, i32) {
    %c0_i32 = arith.constant 0 : i32
    %c0_i32_0 = arith.constant 0 : i32
    %c0_i32_1 = arith.constant 0 : i32
    %c0_i32_2 = arith.constant 0 : i32
    return %arg0, %c0_i32, %c0_i32_0, %c0_i32_1 : i32, i32, i32, i32
  }
  func.func @transform_8(%arg0: i32) -> (i32, i32, i32) {
    %c0_i32 = arith.constant 0 : i32
    %c0_i32_0 = arith.constant 0 : i32
    %c0_i32_1 = arith.constant 0 : i32
    return %arg0, %c0_i32, %c0_i32_0 : i32, i32, i32
  }
  func.func @transform_9(%arg0: i32) -> (i32, i32, i32) {
    %c0_i32 = arith.constant 0 : i32
    %c0_i32_0 = arith.constant 0 : i32
    %c0_i32_1 = arith.constant 0 : i32
    return %arg0, %c0_i32, %c0_i32_0 : i32, i32, i32
  }
  func.func @transform_10(%arg0: i32) -> (i32, i32, i32) {
    %c0_i32 = arith.constant 0 : i32
    %c0_i32_0 = arith.constant 0 : i32
    %c0_i32_1 = arith.constant 0 : i32
    return %arg0, %c0_i32, %c0_i32_0 : i32, i32, i32
  }
  func.func @transform_11(%arg0: i32) -> (i32, i32, i32) {
    %c0_i32 = arith.constant 0 : i32
    %c0_i32_0 = arith.constant 0 : i32
    %c0_i32_1 = arith.constant 0 : i32
    return %arg0, %c0_i32, %c0_i32_0 : i32, i32, i32
  }
}

</mosaic_0001>

<llo_original>
// kernel: bottleneck_forward.4
$region0: #{bottleneck_forward.4}
  #allocation0 [shape = 'u32[]', space=smem, size = 0x4, offset = 0x4, fixed_abs, tag = 'smem constant byte address 0x4 - core index']
  #allocation1 [shape = 'u32[144,128]{1,0:T(1,128)}', space=vmem, size = 0x12000, scoped, tag = 'internal scratch']
  %s0 = inlined_call_operand.vmem [shape: bf16[2,16,16,128], index: 0, kind: input, shape index: {}]
  %s1 = inlined_call_operand.vmem [shape: bf16[128,128], index: 1, kind: input, shape index: {}]
  %s2 = inlined_call_operand.vmem [shape: f32[2,16,16,128], index: 2, kind: output, shape index: {0}]
  %s3 = inlined_call_operand.vmem [shape: f32[2,8,128], index: 3, kind: output, shape index: {1}]
  %s4 = inlined_call_operand.vmem [shape: f32[2,8,128], index: 4, kind: output, shape index: {2}]
  %5 = xla_tuple %s2, %s3, %s4
  %s6 = sld [smem:[#allocation0]]
  $region57: #{bottleneck_forward.4} parent=0
    _
  %s8 = ssub.s32 1, %s6
  %s9 = scalar_select 0, %s8, %s6
  loop: start=0, step=1, limit=4
  $region2: #{bottleneck_forward.4} parent=0 // loop_pre_header
    _
  $region3: #{bottleneck_forward.4} parent=0 // loop_header
    %s11 = sphi 0, %s15
    %p12 = scmp.ge.s32.totalorder %s11, 4
    %s21 = sphi 0, %s23
    %s24 = sphi 0, %s21
    %s25 = sphi 0, %s24
    %s41 = sphi 0, %s25
    %s45 = sphi 0, %s45
    %s47 = sphi 0, %s45
    %s48 = sphi 0, %s47
    %s62 = sphi 0, %s48
    %s68 = sphi 0, %s70
    %s71 = sphi 0, %s68
    %s72 = sphi 0, %s71
    %s88 = sphi 0, %s72
    %s94 = sphi 0, %s96
    %s97 = sphi 0, %s94
    %s98 = sphi 0, %s97
    %s114 = sphi 0, %s98
    %s120 = sphi 0, %s122
    %s123 = sphi 0, %s120
    %s124 = sphi 0, %s123
    %s140 = sphi 0, %s124
  $region4: #{bottleneck_forward.4} parent=0 // loop_header_branch
    %14 = sbr.rel (%p12) target = $region8
  $region5: #{bottleneck_forward.4} parent=0 // loop_body
    %s16 = ssub.s32 %s11, 1
    %s17 = ssub.s32 %s11, 2
    %s18 = sadd.s32 %s11, 1
    %s19 = ssub.s32 %s11, %s18
    %p20 = scmp.eq.s32.totalorder %s19, 0
    %s22 = sadd.s32 %s21, 1
    %s23 = scalar_select %p20, %s21, %s22
    %p26 = pneg %p20
    %p27 = scmp.eq.s32.totalorder %s11, 1
    %p28 = por %p26, %p27
    %p29 = scmp.ne.s32.totalorder %s21, %s24
    %p30 = scmp.eq.s32.totalorder %s11, 0
    %p31 = por %p29, %p30
    %p32 = scmp.ne.s32.totalorder %s21, %s24
    %p33 = scmp.eq.s32.totalorder %s16, 1
    %p34 = por %p32, %p33
    %p35 = scmp.ne.s32.totalorder %s24, %s25
    %p36 = scmp.eq.s32.totalorder %s16, 0
    %p37 = por %p35, %p36
    %p38 = scmp.ne.s32.totalorder %s24, %s25
    %p39 = scmp.eq.s32.totalorder %s17, 1
    %p40 = por %p38, %p39
    %p42 = scmp.ne.s32.totalorder %s25, %s41
    %p43 = scmp.eq.s32.totalorder %s17, 0
    %p44 = por %p42, %p43
    %s46 = sadd.s32 %s45, 1
    %p49 = scmp.eq.s32.totalorder %s11, 1
    %p50 = scmp.ne.s32.totalorder %s45, %s47
    %p51 = scmp.eq.s32.totalorder %s11, 0
    %p52 = por %p50, %p51
    %p53 = scmp.ne.s32.totalorder %s45, %s47
    %p54 = scmp.eq.s32.totalorder %s16, 1
    %p55 = por %p53, %p54
    %p56 = scmp.ne.s32.totalorder %s47, %s48
    %p57 = scmp.eq.s32.totalorder %s16, 0
    %p58 = por %p56, %p57
    %p59 = scmp.ne.s32.totalorder %s47, %s48
    %p60 = scmp.eq.s32.totalorder %s17, 1
    %p61 = por %p59, %p60
    %p63 = scmp.ne.s32.totalorder %s48, %s62
    %p64 = scmp.eq.s32.totalorder %s17, 0
    %p65 = por %p63, %p64
    %s66 = ssub.s32 %s11, %s18
    %p67 = scmp.eq.s32.totalorder %s66, 0
    %s69 = sadd.s32 %s68, 1
    %s70 = scalar_select %p67, %s68, %s69
    %p73 = pneg %p67
    %p74 = scmp.eq.s32.totalorder %s11, 1
    %p75 = por %p73, %p74
    %p76 = scmp.ne.s32.totalorder %s68, %s71
    %p77 = scmp.eq.s32.totalorder %s11, 0
    %p78 = por %p76, %p77
    %p79 = scmp.ne.s32.totalorder %s68, %s71
    %p80 = scmp.eq.s32.totalorder %s16, 1
    %p81 = por %p79, %p80
    %p82 = scmp.ne.s32.totalorder %s71, %s72
    %p83 = scmp.eq.s32.totalorder %s16, 0
    %p84 = por %p82, %p83
    %p85 = scmp.ne.s32.totalorder %s71, %s72
    %p86 = scmp.eq.s32.totalorder %s17, 1
    %p87 = por %p85, %p86
    %p89 = scmp.ne.s32.totalorder %s72, %s88
    %p90 = scmp.eq.s32.totalorder %s17, 0
    %p91 = por %p89, %p90
    %s92 = ssub.s32 %s11, %s18
    %p93 = scmp.eq.s32.totalorder %s92, 0
    %s95 = sadd.s32 %s94, 1
    %s96 = scalar_select %p93, %s94, %s95
    %p99 = pneg %p93
    %p100 = scmp.eq.s32.totalorder %s11, 1
    %p101 = por %p99, %p100
    %p102 = scmp.ne.s32.totalorder %s94, %s97
    %p103 = scmp.eq.s32.totalorder %s11, 0
    %p104 = por %p102, %p103
    %p105 = scmp.ne.s32.totalorder %s94, %s97
    %p106 = scmp.eq.s32.totalorder %s16, 1
    %p107 = por %p105, %p106
    %p108 = scmp.ne.s32.totalorder %s97, %s98
    %p109 = scmp.eq.s32.totalorder %s16, 0
    %p110 = por %p108, %p109
    %p111 = scmp.ne.s32.totalorder %s97, %s98
    %p112 = scmp.eq.s32.totalorder %s17, 1
    %p113 = por %p111, %p112
    %p115 = scmp.ne.s32.totalorder %s98, %s114
    %p116 = scmp.eq.s32.totalorder %s17, 0
    %p117 = por %p115, %p116
    %s118 = ssub.s32 %s11, %s18
    %p119 = scmp.eq.s32.totalorder %s118, 0
    %s121 = sadd.s32 %s120, 1
    %s122 = scalar_select %p119, %s120, %s121
    %p125 = pneg %p119
    %p126 = scmp.eq.s32.totalorder %s11, 1
    %p127 = por %p125, %p126
    %p128 = scmp.ne.s32.totalorder %s120, %s123
    %p129 = scmp.eq.s32.totalorder %s11, 0
    %p130 = por %p128, %p129
    %p131 = scmp.ne.s32.totalorder %s120, %s123
    %p132 = scmp.eq.s32.totalorder %s16, 1
    %p133 = por %p131, %p132
    %p134 = scmp.ne.s32.totalorder %s123, %s124
    %p135 = scmp.eq.s32.totalorder %s16, 0
    %p136 = por %p134, %p135
    %p137 = scmp.ne.s32.totalorder %s123, %s124
    %p138 = scmp.eq.s32.totalorder %s17, 1
    %p139 = por %p137, %p138
    %p141 = scmp.ne.s32.totalorder %s124, %s140
    %p142 = scmp.eq.s32.totalorder %s17, 0
    %p143 = por %p141, %p142
    %p144 = scmp.le.s32.totalorder 1, %s11
    %p145 = scmp.lt.s32.totalorder %s11, 3
    %p146 = pnand %p144, %p145
    %p147 = pneg %p146
    // Predicated region
    $region9: #{bottleneck_forward.4} parent=5 // pred_check
      _
    $region10: #{bottleneck_forward.4} parent=5 // pred_check_branch
      %149 = sbr.rel (%p146) target = $region12
    $region11: #{bottleneck_forward.4} parent=5 // pred_region
      %s150 = ssub.s32 %s11, 1
      // Predicated region
      $region13: #{bottleneck_forward.4} parent=11 // pred_check
        %p151 = pneg %p58
      $region14: #{bottleneck_forward.4} parent=11 // pred_check_branch
        %153 = sbr.rel (%p151) target = $region16
      $region15: #{bottleneck_forward.4} parent=11 // pred_region
        _
      $region16: #{bottleneck_forward.4} parent=11 // pred_fallthru
        _
    $region12: #{bottleneck_forward.4} parent=5 // pred_fallthru
      _
    %p154 = scmp.lt.s32.totalorder %s11, 2
    // Predicated region
    $region17: #{bottleneck_forward.4} parent=5 // pred_check
      %p155 = pneg %p154
    $region18: #{bottleneck_forward.4} parent=5 // pred_check_branch
      %157 = sbr.rel (%p155) target = $region20
    $region19: #{bottleneck_forward.4} parent=5 // pred_region
      // Predicated region
      $region21: #{bottleneck_forward.4} parent=19 // pred_check
        %p158 = pneg %p31
      $region22: #{bottleneck_forward.4} parent=19 // pred_check_branch
        %160 = sbr.rel (%p158) target = $region24
      $region23: #{bottleneck_forward.4} parent=19 // pred_region
        %p161 = scmp.lt.s32.totalorder %s11, 1
        %s162 = scalar_select %p161, %s11, 1
        %s163 = smul.addr %s162, 32
        %s164 = smul.addr %s163, 4
        %s165 = scalar_lea.vmem %s0, %s164
      $region24: #{bottleneck_forward.4} parent=19 // pred_fallthru
        _
    $region20: #{bottleneck_forward.4} parent=5 // pred_fallthru
      _
    %p166 = scmp.le.s32.totalorder 1, %s11
    %p167 = scmp.lt.s32.totalorder %s11, 3
    %p168 = pnand %p166, %p167
    %p169 = pneg %p168
    // Predicated region
    $region25: #{bottleneck_forward.4} parent=5 // pred_check
      _
    $region26: #{bottleneck_forward.4} parent=5 // pred_check_branch
      %171 = sbr.rel (%p168) target = $region28
    $region27: #{bottleneck_forward.4} parent=5 // pred_region
      %s172 = ssub.s32 %s11, 1
      %p173 = scmp.lt.s32.totalorder %s16, 1
      %s174 = scalar_select %p173, %s16, 1
      %s175 = smul.addr %s174, 32
      %s176 = smul.addr %s175, 4
      %s177 = scalar_lea.vmem %s0, %s176
      %p178 = pneg %p37
      %p179 = pneg %p34
      %p180 = pneg %p58
      %p181 = pneg %p55
      %p182 = pneg %p84
      %p183 = pneg %p81
      %p184 = scmp.lt.s32.totalorder %s16, 1
      %s185 = scalar_select %p184, %s16, 1
      %s186 = smul.addr %s185, 32
      %s187 = smul.addr %s186, 8
      %s188 = scalar_lea.vmem %s2, %s187
      %p189 = pneg %p110
      %p190 = pneg %p107
      %p191 = scmp.lt.s32.totalorder %s16, 1
      %s192 = scalar_select %p191, %s16, 1
      %s193 = smul.addr %s192, 8
      %s194 = scalar_lea.vmem %s3, %s193
      %p195 = pneg %p136
      %p196 = pneg %p133
      %p197 = scmp.lt.s32.totalorder %s16, 1
      %s198 = scalar_select %p197, %s16, 1
      %s199 = smul.addr %s198, 8
      %s200 = scalar_lea.vmem %s4, %s199
      %p201 = scmp.lt.s32.totalorder %s16, 1
      %s202 = scalar_select %p201, %s16, 1
      %s203 = smul.addr %s202, 32
      %s204 = smul.addr %s203, 4
      %s205 = scalar_lea.vmem %s0, %s204
      %p206 = scmp.lt.s32.totalorder %s16, 1
      %s207 = scalar_select %p206, %s16, 1
      %s208 = smul.addr %s207, 32
      %s209 = smul.addr %s208, 8
      %s210 = scalar_lea.vmem %s2, %s209
      %p211 = scmp.lt.s32.totalorder %s16, 1
      %s212 = scalar_select %p211, %s16, 1
      %s213 = smul.addr %s212, 8
      %s214 = scalar_lea.vmem %s3, %s213
      %p215 = scmp.lt.s32.totalorder %s16, 1
      %s216 = scalar_select %p215, %s16, 1
      %s217 = smul.addr %s216, 8
      %s218 = scalar_lea.vmem %s4, %s217
      %v220 = vld [vmem:[%s205] sm:$0xf]
      %v221 = vld [vmem:[%s205 + $0x4] sm:$0xf]
      %v222 = vld [vmem:[%s205 + $0x8] sm:$0xf]
      %v223 = vld [vmem:[%s205 + $0xc] sm:$0xf]
      %v224 = vld [vmem:[%s205 + $0x10] sm:$0xf]
      %v225 = vld [vmem:[%s205 + $0x14] sm:$0xf]
      %v226 = vld [vmem:[%s205 + $0x18] sm:$0xf]
      %v227 = vld [vmem:[%s205 + $0x1c] sm:$0xf]
      %v228 = vld [vmem:[%s205 + $0x20] sm:$0xf]
      %v229 = vld [vmem:[%s205 + $0x24] sm:$0xf]
      %v230 = vld [vmem:[%s205 + $0x28] sm:$0xf]
      %v231 = vld [vmem:[%s205 + $0x2c] sm:$0xf]
      %v232 = vld [vmem:[%s205 + $0x30] sm:$0xf]
      %v233 = vld [vmem:[%s205 + $0x34] sm:$0xf]
      %v234 = vld [vmem:[%s205 + $0x38] sm:$0xf]
      %v235 = vld [vmem:[%s205 + $0x3c] sm:$0xf]
      %v236 = vld [vmem:[%s205 + $0x40] sm:$0xf]
      %v237 = vld [vmem:[%s205 + $0x44] sm:$0xf]
      %v238 = vld [vmem:[%s205 + $0x48] sm:$0xf]
      %v239 = vld [vmem:[%s205 + $0x4c] sm:$0xf]
      %v240 = vld [vmem:[%s205 + $0x50] sm:$0xf]
      %v241 = vld [vmem:[%s205 + $0x54] sm:$0xf]
      %v242 = vld [vmem:[%s205 + $0x58] sm:$0xf]
      %v243 = vld [vmem:[%s205 + $0x5c] sm:$0xf]
      %v244 = vld [vmem:[%s205 + $0x60] sm:$0xf]
      %v245 = vld [vmem:[%s205 + $0x64] sm:$0xf]
      %v246 = vld [vmem:[%s205 + $0x68] sm:$0xf]
      %v247 = vld [vmem:[%s205 + $0x6c] sm:$0xf]
      %v248 = vld [vmem:[%s205 + $0x70] sm:$0xf]
      %v249 = vld [vmem:[%s205 + $0x74] sm:$0xf]
      %v250 = vld [vmem:[%s205 + $0x78] sm:$0xf]
      %v251 = vld [vmem:[%s205 + $0x7c] sm:$0xf]
      %v252 = vld [vmem:[%s1] sm:$0xf]
      %v253 = vld [vmem:[%s1 + $0x4] sm:$0xf]
      %v254 = vld [vmem:[%s1 + $0x8] sm:$0xf]
      %v255 = vld [vmem:[%s1 + $0xc] sm:$0xf]
      %v256 = vld [vmem:[%s1 + $0x10] sm:$0xf]
      %v257 = vld [vmem:[%s1 + $0x14] sm:$0xf]
      %v258 = vld [vmem:[%s1 + $0x18] sm:$0xf]
      %v259 = vld [vmem:[%s1 + $0x1c] sm:$0xf]
      %v260 = vld [vmem:[%s1 + $0x20] sm:$0xf]
      %v261 = vld [vmem:[%s1 + $0x24] sm:$0xf]
      %v262 = vld [vmem:[%s1 + $0x28] sm:$0xf]
      %v263 = vld [vmem:[%s1 + $0x2c] sm:$0xf]
      %v264 = vld [vmem:[%s1 + $0x30] sm:$0xf]
      %v265 = vld [vmem:[%s1 + $0x34] sm:$0xf]
      %v266 = vld [vmem:[%s1 + $0x38] sm:$0xf]
      %v267 = vld [vmem:[%s1 + $0x3c] sm:$0xf]
      %v300 = vunpack.c.l.b16 %v220
      %v301 = vunpack.c.l.b16 %v221
      %v302 = vunpack.c.l.b16 %v222
      %v303 = vunpack.c.l.b16 %v223
      %v304 = vunpack.c.l.b16 %v224
      %v305 = vunpack.c.l.b16 %v225
      %v306 = vunpack.c.l.b16 %v226
      %v307 = vunpack.c.l.b16 %v227
      %v308 = vunpack.c.l.b16 %v228
      %v309 = vunpack.c.l.b16 %v229
      %v310 = vunpack.c.l.b16 %v230
      %v311 = vunpack.c.l.b16 %v231
      %v312 = vunpack.c.l.b16 %v232
      %v313 = vunpack.c.l.b16 %v233
      %v314 = vunpack.c.l.b16 %v234
      %v315 = vunpack.c.l.b16 %v235
      %v316 = vunpack.c.l.b16 %v236
      %v317 = vunpack.c.l.b16 %v237
      %v318 = vunpack.c.l.b16 %v238
      %v319 = vunpack.c.l.b16 %v239
      %v320 = vunpack.c.l.b16 %v240
      %v321 = vunpack.c.l.b16 %v241
      %v322 = vunpack.c.l.b16 %v242
      %v323 = vunpack.c.l.b16 %v243
      %v324 = vunpack.c.l.b16 %v244
      %v325 = vunpack.c.l.b16 %v245
      %v326 = vunpack.c.l.b16 %v246
      %v327 = vunpack.c.l.b16 %v247
      %v328 = vunpack.c.l.b16 %v248
      %v329 = vunpack.c.l.b16 %v249
      %v330 = vunpack.c.l.b16 %v250
      %v331 = vunpack.c.l.b16 %v251
      %v332 = vpack.c.b16 %v301, %v300
      %v333 = vpack.c.b16 %v303, %v302
      %v334 = vpack.c.b16 %v305, %v304
      %v335 = vpack.c.b16 %v307, %v306
      %v336 = vpack.c.b16 %v309, %v308
      %v337 = vpack.c.b16 %v311, %v310
      %v338 = vpack.c.b16 %v313, %v312
      %v339 = vpack.c.b16 %v315, %v314
      %v340 = vpack.c.b16 %v317, %v316
      %v341 = vpack.c.b16 %v319, %v318
      %v342 = vpack.c.b16 %v321, %v320
      %v343 = vpack.c.b16 %v323, %v322
      %v344 = vpack.c.b16 %v325, %v324
      %v345 = vpack.c.b16 %v327, %v326
      %v346 = vpack.c.b16 %v329, %v328
      %v347 = vpack.c.b16 %v331, %v330
      %v380 = vunpack.c.l.b16 %v252
      %v381 = vunpack.c.l.b16 %v253
      %v382 = vunpack.c.l.b16 %v254
      %v383 = vunpack.c.l.b16 %v255
      %v384 = vunpack.c.l.b16 %v256
      %v385 = vunpack.c.l.b16 %v257
      %v386 = vunpack.c.l.b16 %v258
      %v387 = vunpack.c.l.b16 %v259
      %v388 = vunpack.c.l.b16 %v260
      %v389 = vunpack.c.l.b16 %v261
      %v390 = vunpack.c.l.b16 %v262
      %v391 = vunpack.c.l.b16 %v263
      %v392 = vunpack.c.l.b16 %v264
      %v393 = vunpack.c.l.b16 %v265
      %v394 = vunpack.c.l.b16 %v266
      %v395 = vunpack.c.l.b16 %v267
      %v396 = vpack.c.b16 %v381, %v380
      %v397 = vpack.c.b16 %v383, %v382
      %v398 = vpack.c.b16 %v385, %v384
      %v399 = vpack.c.b16 %v387, %v386
      %v400 = vpack.c.b16 %v389, %v388
      %v401 = vpack.c.b16 %v391, %v390
      %v402 = vpack.c.b16 %v393, %v392
      %v403 = vpack.c.b16 %v395, %v394
      %412 = vmatprep.subr.bf16.mxu0 0
      %413 = vmatpush1.bf16.msra.mxu0 %v396
      %414 = vmatprep.subr.bf16.mxu0 0
      %415 = vmatpush1.bf16.msra.mxu0 %v397
      %416 = vmatprep.subr.bf16.mxu0 0
      %417 = vmatpush1.bf16.msra.mxu0 %v398
      %418 = vmatprep.subr.bf16.mxu0 0
      %419 = vmatpush1.bf16.msra.mxu0 %v399
      %420 = vmatprep.subr.bf16.mxu0 0
      %421 = vmatpush1.bf16.msra.mxu0 %v400
      %422 = vmatprep.subr.bf16.mxu0 0
      %423 = vmatpush1.bf16.msra.mxu0 %v401
      %424 = vmatprep.subr.bf16.mxu0 0
      %425 = vmatpush1.bf16.msra.mxu0 %v402
      %426 = vmatprep.subr.bf16.mxu0 0
      %427 = vmatpush1.bf16.msra.mxu0 %v403
      %428 = vmatprep.subr.bf16.mxu0 0
      %429 = vmatpush1.bf16.msra.mxu0 0
      %430 = vmatprep.subr.bf16.mxu0 0
      %431 = vmatpush1.bf16.msra.mxu0 0
      %432 = vmatprep.subr.bf16.mxu0 0
      %433 = vmatpush1.bf16.msra.mxu0 0
      %434 = vmatprep.subr.bf16.mxu0 0
      %435 = vmatpush1.bf16.msra.mxu0 0
      %436 = vmatprep.subr.bf16.mxu0 0
      %437 = vmatpush1.bf16.msra.mxu0 0
      %438 = vmatprep.subr.bf16.mxu0 0
      %439 = vmatpush1.bf16.msra.mxu0 0
      %440 = vmatprep.subr.bf16.mxu0 0
      %441 = vmatpush1.bf16.msra.mxu0 0
      %442 = vmatprep.subr.bf16.mxu0 0
      %443 = vmatpush1.bf16.msra.mxu0 0
      %444 = vmatprep.mubr.bf16.mxu0 0
      %445 = vmatmul.mubr.bf16.gmra.mrb[0].mxu0 %v332
      %v446 = vpop.f32.mrb[0].mxu0
      %v447 = vadd.f32 0.0, %v446
      %v448 = vpop.f32.mrb[0].mxu0
      %v449 = vpop.f32.mrb[0].mxu0
      %v450 = vadd.f32 0.0, %v449
      %v451 = vpop.f32.mrb[0].mxu0
      %452 = vmatprep.mubr.bf16.mxu0 0
      %453 = vmatmul.mubr.bf16.gmra.mrb[0].mxu0 %v333
      %v454 = vpop.f32.mrb[0].mxu0
      %v455 = vadd.f32 0.0, %v454
      %v456 = vpop.f32.mrb[0].mxu0
      %v457 = vpop.f32.mrb[0].mxu0
      %v458 = vadd.f32 0.0, %v457
      %v459 = vpop.f32.mrb[0].mxu0
      %460 = vmatprep.mubr.bf16.mxu0 0
      %461 = vmatmul.mubr.bf16.gmra.mrb[0].mxu0 %v334
      %v462 = vpop.f32.mrb[0].mxu0
      %v463 = vadd.f32 0.0, %v462
      %v464 = vpop.f32.mrb[0].mxu0
      %v465 = vpop.f32.mrb[0].mxu0
      %v466 = vadd.f32 0.0, %v465
      %v467 = vpop.f32.mrb[0].mxu0
      %468 = vmatprep.mubr.bf16.mxu0 0
      %469 = vmatmul.mubr.bf16.gmra.mrb[0].mxu0 %v335
      %v470 = vpop.f32.mrb[0].mxu0
      %v471 = vadd.f32 0.0, %v470
      %v472 = vpop.f32.mrb[0].mxu0
      %v473 = vpop.f32.mrb[0].mxu0
      %v474 = vadd.f32 0.0, %v473
      %v475 = vpop.f32.mrb[0].mxu0
      %476 = vmatprep.mubr.bf16.mxu0 0
      %477 = vmatmul.mubr.bf16.gmra.mrb[0].mxu0 %v336
      %v478 = vpop.f32.mrb[0].mxu0
      %v479 = vadd.f32 0.0, %v478
      %v480 = vpop.f32.mrb[0].mxu0
      %v481 = vpop.f32.mrb[0].mxu0
      %v482 = vadd.f32 0.0, %v481
      %v483 = vpop.f32.mrb[0].mxu0
      %484 = vmatprep.mubr.bf16.mxu0 0
      %485 = vmatmul.mubr.bf16.gmra.mrb[0].mxu0 %v337
      %v486 = vpop.f32.mrb[0].mxu0
      %v487 = vadd.f32 0.0, %v486
      %v488 = vpop.f32.mrb[0].mxu0
      %v489 = vpop.f32.mrb[0].mxu0
      %v490 = vadd.f32 0.0, %v489
      %v491 = vpop.f32.mrb[0].mxu0
      %492 = vmatprep.mubr.bf16.mxu0 0
      %493 = vmatmul.mubr.bf16.gmra.mrb[0].mxu0 %v338
      %v494 = vpop.f32.mrb[0].mxu0
      %v495 = vadd.f32 0.0, %v494
      %v496 = vpop.f32.mrb[0].mxu0
      %v497 = vpop.f32.mrb[0].mxu0
      %v498 = vadd.f32 0.0, %v497
      %v499 = vpop.f32.mrb[0].mxu0
      %500 = vmatprep.mubr.bf16.mxu0 0
      %501 = vmatmul.mubr.bf16.gmra.mrb[0].mxu0 %v339
      %v502 = vpop.f32.mrb[0].mxu0
      %v503 = vadd.f32 0.0, %v502
      %v504 = vpop.f32.mrb[0].mxu0
      %v505 = vpop.f32.mrb[0].mxu0
      %v506 = vadd.f32 0.0, %v505
      %v507 = vpop.f32.mrb[0].mxu0
      %508 = vmatprep.mubr.bf16.mxu0 0
      %509 = vmatmul.mubr.bf16.gmra.mrb[0].mxu0 %v340
      %v510 = vpop.f32.mrb[0].mxu0
      %v511 = vadd.f32 0.0, %v510
      %v512 = vpop.f32.mrb[0].mxu0
      %v513 = vpop.f32.mrb[0].mxu0
      %v514 = vadd.f32 0.0, %v513
      %v515 = vpop.f32.mrb[0].mxu0
      %516 = vmatprep.mubr.bf16.mxu0 0
      %517 = vmatmul.mubr.bf16.gmra.mrb[0].mxu0 %v341
      %v518 = vpop.f32.mrb[0].mxu0
      %v519 = vadd.f32 0.0, %v518
      %v520 = vpop.f32.mrb[0].mxu0
      %v521 = vpop.f32.mrb[0].mxu0
      %v522 = vadd.f32 0.0, %v521
      %v523 = vpop.f32.mrb[0].mxu0
      %524 = vmatprep.mubr.bf16.mxu0 0
      %525 = vmatmul.mubr.bf16.gmra.mrb[0].mxu0 %v342
      %v526 = vpop.f32.mrb[0].mxu0
      %v527 = vadd.f32 0.0, %v526
      %v528 = vpop.f32.mrb[0].mxu0
      %v529 = vpop.f32.mrb[0].mxu0
      %v530 = vadd.f32 0.0, %v529
      %v531 = vpop.f32.mrb[0].mxu0
      %532 = vmatprep.mubr.bf16.mxu0 0
      %533 = vmatmul.mubr.bf16.gmra.mrb[0].mxu0 %v343
      %v534 = vpop.f32.mrb[0].mxu0
      %v535 = vadd.f32 0.0, %v534
      %v536 = vpop.f32.mrb[0].mxu0
      %v537 = vpop.f32.mrb[0].mxu0
      %v538 = vadd.f32 0.0, %v537
      %v539 = vpop.f32.mrb[0].mxu0
      %540 = vmatprep.mubr.bf16.mxu0 0
      %541 = vmatmul.mubr.bf16.gmra.mrb[0].mxu0 %v344
      %v542 = vpop.f32.mrb[0].mxu0
      %v543 = vadd.f32 0.0, %v542
      %v544 = vpop.f32.mrb[0].mxu0
      %v545 = vpop.f32.mrb[0].mxu0
      %v546 = vadd.f32 0.0, %v545
      %v547 = vpop.f32.mrb[0].mxu0
      %548 = vmatprep.mubr.bf16.mxu0 0
      %549 = vmatmul.mubr.bf16.gmra.mrb[0].mxu0 %v345
      %v550 = vpop.f32.mrb[0].mxu0
      %v551 = vadd.f32 0.0, %v550
      %v552 = vpop.f32.mrb[0].mxu0
      %v553 = vpop.f32.mrb[0].mxu0
      %v554 = vadd.f32 0.0, %v553
      %v555 = vpop.f32.mrb[0].mxu0
      %556 = vmatprep.mubr.bf16.mxu0 0
      %557 = vmatmul.mubr.bf16.gmra.mrb[0].mxu0 %v346
      %v558 = vpop.f32.mrb[0].mxu0
      %v559 = vadd.f32 0.0, %v558
      %v560 = vpop.f32.mrb[0].mxu0
      %v561 = vpop.f32.mrb[0].mxu0
      %v562 = vadd.f32 0.0, %v561
      %v563 = vpop.f32.mrb[0].mxu0
      %564 = vmatprep.mubr.bf16.mxu0 0
      %565 = vmatmul.mubr.bf16.gmra.mrb[0].mxu0 %v347
      %v566 = vpop.f32.mrb[0].mxu0
      %v567 = vadd.f32 0.0, %v566
      %v568 = vpop.f32.mrb[0].mxu0
      %v569 = vpop.f32.mrb[0].mxu0
      %v570 = vadd.f32 0.0, %v569
      %v571 = vpop.f32.mrb[0].mxu0
      %572 = vdwg.mxu0
      %573 = vst [vmem:[%s210] sm:$0xff] %v447
      %574 = vst [vmem:[%s210 + $0x8] sm:$0xff] %v450
      %575 = vst [vmem:[%s210 + $0x10] sm:$0xff] %v455
      %576 = vst [vmem:[%s210 + $0x18] sm:$0xff] %v458
      %577 = vst [vmem:[%s210 + $0x20] sm:$0xff] %v463
      %578 = vst [vmem:[%s210 + $0x28] sm:$0xff] %v466
      %579 = vst [vmem:[%s210 + $0x30] sm:$0xff] %v471
      %580 = vst [vmem:[%s210 + $0x38] sm:$0xff] %v474
      %581 = vst [vmem:[%s210 + $0x40] sm:$0xff] %v479
      %582 = vst [vmem:[%s210 + $0x48] sm:$0xff] %v482
      %583 = vst [vmem:[%s210 + $0x50] sm:$0xff] %v487
      %584 = vst [vmem:[%s210 + $0x58] sm:$0xff] %v490
      %585 = vst [vmem:[%s210 + $0x60] sm:$0xff] %v495
      %586 = vst [vmem:[%s210 + $0x68] sm:$0xff] %v498
      %587 = vst [vmem:[%s210 + $0x70] sm:$0xff] %v503
      %588 = vst [vmem:[%s210 + $0x78] sm:$0xff] %v506
      %589 = vst [vmem:[%s210 + $0x80] sm:$0xff] %v511
      %590 = vst [vmem:[%s210 + $0x88] sm:$0xff] %v514
      %591 = vst [vmem:[%s210 + $0x90] sm:$0xff] %v519
      %592 = vst [vmem:[%s210 + $0x98] sm:$0xff] %v522
      %593 = vst [vmem:[%s210 + $0xa0] sm:$0xff] %v527
      %594 = vst [vmem:[%s210 + $0xa8] sm:$0xff] %v530
      %595 = vst [vmem:[%s210 + $0xb0] sm:$0xff] %v535
      %596 = vst [vmem:[%s210 + $0xb8] sm:$0xff] %v538
      %597 = vst [vmem:[%s210 + $0xc0] sm:$0xff] %v543
      %598 = vst [vmem:[%s210 + $0xc8] sm:$0xff] %v546
      %599 = vst [vmem:[%s210 + $0xd0] sm:$0xff] %v551
      %600 = vst [vmem:[%s210 + $0xd8] sm:$0xff] %v554
      %601 = vst [vmem:[%s210 + $0xe0] sm:$0xff] %v559
      %602 = vst [vmem:[%s210 + $0xe8] sm:$0xff] %v562
      %603 = vst [vmem:[%s210 + $0xf0] sm:$0xff] %v567
      %604 = vst [vmem:[%s210 + $0xf8] sm:$0xff] %v570
      %v605 = vadd.f32 %v447, %v450
      %v606 = vadd.f32 %v605, %v455
      %v607 = vadd.f32 %v606, %v458
      %v608 = vadd.f32 %v607, %v463
      %v609 = vadd.f32 %v608, %v466
      %v610 = vadd.f32 %v609, %v471
      %v611 = vadd.f32 %v610, %v474
      %v612 = vadd.f32 %v611, %v479
      %v613 = vadd.f32 %v612, %v482
      %v614 = vadd.f32 %v613, %v487
      %v615 = vadd.f32 %v614, %v490
      %v616 = vadd.f32 %v615, %v495
      %v617 = vadd.f32 %v616, %v498
      %v618 = vadd.f32 %v617, %v503
      %v619 = vadd.f32 %v618, %v506
      %v620 = vadd.f32 %v619, %v511
      %v621 = vadd.f32 %v620, %v514
      %v622 = vadd.f32 %v621, %v519
      %v623 = vadd.f32 %v622, %v522
      %v624 = vadd.f32 %v623, %v527
      %v625 = vadd.f32 %v624, %v530
      %v626 = vadd.f32 %v625, %v535
      %v627 = vadd.f32 %v626, %v538
      %v628 = vadd.f32 %v627, %v543
      %v629 = vadd.f32 %v628, %v546
      %v630 = vadd.f32 %v629, %v551
      %v631 = vadd.f32 %v630, %v554
      %v632 = vadd.f32 %v631, %v559
      %v633 = vadd.f32 %v632, %v562
      %v634 = vadd.f32 %v633, %v567
      %v635 = vadd.f32 %v634, %v570
      %v636 = vrot.slane %v635, 4
      %v637 = vadd.f32 %v635, %v636
      %v638 = vrot.slane %v637, 2
      %v639 = vadd.f32 %v637, %v638
      %v640 = vrot.slane %v639, 1
      %v641 = vadd.f32 %v639, %v640
      %642 = vst [vmem:[%s214] sm:$0xff] %v641
      %v643 = vmul.f32 %v447, %v447
      %v644 = vmul.f32 %v450, %v450
      %v645 = vmul.f32 %v455, %v455
      %v646 = vmul.f32 %v458, %v458
      %v647 = vmul.f32 %v463, %v463
      %v648 = vmul.f32 %v466, %v466
      %v649 = vmul.f32 %v471, %v471
      %v650 = vmul.f32 %v474, %v474
      %v651 = vmul.f32 %v479, %v479
      %v652 = vmul.f32 %v482, %v482
      %v653 = vmul.f32 %v487, %v487
      %v654 = vmul.f32 %v490, %v490
      %v655 = vmul.f32 %v495, %v495
      %v656 = vmul.f32 %v498, %v498
      %v657 = vmul.f32 %v503, %v503
      %v658 = vmul.f32 %v506, %v506
      %v659 = vmul.f32 %v511, %v511
      %v660 = vmul.f32 %v514, %v514
      %v661 = vmul.f32 %v519, %v519
      %v662 = vmul.f32 %v522, %v522
      %v663 = vmul.f32 %v527, %v527
      %v664 = vmul.f32 %v530, %v530
      %v665 = vmul.f32 %v535, %v535
      %v666 = vmul.f32 %v538, %v538
      %v667 = vmul.f32 %v543, %v543
      %v668 = vmul.f32 %v546, %v546
      %v669 = vmul.f32 %v551, %v551
      %v670 = vmul.f32 %v554, %v554
      %v671 = vmul.f32 %v559, %v559
      %v672 = vmul.f32 %v562, %v562
      %v673 = vmul.f32 %v567, %v567
      %v674 = vmul.f32 %v570, %v570
      %v675 = vadd.f32 %v643, %v644
      %v676 = vadd.f32 %v675, %v645
      %v677 = vadd.f32 %v676, %v646
      %v678 = vadd.f32 %v677, %v647
      %v679 = vadd.f32 %v678, %v648
      %v680 = vadd.f32 %v679, %v649
      %v681 = vadd.f32 %v680, %v650
      %v682 = vadd.f32 %v681, %v651
      %v683 = vadd.f32 %v682, %v652
      %v684 = vadd.f32 %v683, %v653
      %v685 = vadd.f32 %v684, %v654
      %v686 = vadd.f32 %v685, %v655
      %v687 = vadd.f32 %v686, %v656
      %v688 = vadd.f32 %v687, %v657
      %v689 = vadd.f32 %v688, %v658
      %v690 = vadd.f32 %v689, %v659
      %v691 = vadd.f32 %v690, %v660
      %v692 = vadd.f32 %v691, %v661
      %v693 = vadd.f32 %v692, %v662
      %v694 = vadd.f32 %v693, %v663
      %v695 = vadd.f32 %v694, %v664
      %v696 = vadd.f32 %v695, %v665
      %v697 = vadd.f32 %v696, %v666
      %v698 = vadd.f32 %v697, %v667
      %v699 = vadd.f32 %v698, %v668
      %v700 = vadd.f32 %v699, %v669
      %v701 = vadd.f32 %v700, %v670
      %v702 = vadd.f32 %v701, %v671
      %v703 = vadd.f32 %v702, %v672
      %v704 = vadd.f32 %v703, %v673
      %v705 = vadd.f32 %v704, %v674
      %v706 = vrot.slane %v705, 4
      %v707 = vadd.f32 %v705, %v706
      %v708 = vrot.slane %v707, 2
      %v709 = vadd.f32 %v707, %v708
      %v710 = vrot.slane %v709, 1
      %v711 = vadd.f32 %v709, %v710
      %712 = vst [vmem:[%s218] sm:$0xff] %v711
      %p713 = scmp.lt.s32.totalorder %s16, 1
      %s714 = scalar_select %p713, %s16, 1
      %s715 = smul.addr %s714, 32
      %s716 = smul.addr %s715, 8
      %s717 = scalar_lea.vmem %s2, %s716
      %p718 = scmp.lt.s32.totalorder %s16, 1
      %s719 = scalar_select %p718, %s16, 1
      %s720 = smul.addr %s719, 8
      %s721 = scalar_lea.vmem %s3, %s720
      %p722 = scmp.lt.s32.totalorder %s16, 1
      %s723 = scalar_select %p722, %s16, 1
      %s724 = smul.addr %s723, 8
      %s725 = scalar_lea.vmem %s4, %s724
      // Predicated region
      $region29: #{bottleneck_forward.4} parent=27 // pred_check
        %p726 = pneg %p81
      $region30: #{bottleneck_forward.4} parent=27 // pred_check_branch
        %728 = sbr.rel (%p726) target = $region32
      $region31: #{bottleneck_forward.4} parent=27 // pred_region
        _
      $region32: #{bottleneck_forward.4} parent=27 // pred_fallthru
        _
      // Predicated region
      $region33: #{bottleneck_forward.4} parent=27 // pred_check
        %p729 = pneg %p107
      $region34: #{bottleneck_forward.4} parent=27 // pred_check_branch
        %731 = sbr.rel (%p729) target = $region36
      $region35: #{bottleneck_forward.4} parent=27 // pred_region
        _
      $region36: #{bottleneck_forward.4} parent=27 // pred_fallthru
        _
      // Predicated region
      $region37: #{bottleneck_forward.4} parent=27 // pred_check
        %p732 = pneg %p133
      $region38: #{bottleneck_forward.4} parent=27 // pred_check_branch
        %734 = sbr.rel (%p732) target = $region40
      $region39: #{bottleneck_forward.4} parent=27 // pred_region
        _
      $region40: #{bottleneck_forward.4} parent=27 // pred_fallthru
        _
    $region28: #{bottleneck_forward.4} parent=5 // pred_fallthru
      _
    %p735 = scmp.le.s32.totalorder 2, %s11
    // Predicated region
    $region41: #{bottleneck_forward.4} parent=5 // pred_check
      %p736 = pneg %p735
    $region42: #{bottleneck_forward.4} parent=5 // pred_check_branch
      %738 = sbr.rel (%p736) target = $region44
    $region43: #{bottleneck_forward.4} parent=5 // pred_region
      %s739 = ssub.s32 %s11, 2
      // Predicated region
      $region45: #{bottleneck_forward.4} parent=43 // pred_check
        %p740 = pneg %p87
      $region46: #{bottleneck_forward.4} parent=43 // pred_check_branch
        %742 = sbr.rel (%p740) target = $region48
      $region47: #{bottleneck_forward.4} parent=43 // pred_region
        %p743 = scmp.lt.s32.totalorder %s17, 1
        %s744 = scalar_select %p743, %s17, 1
        %s745 = smul.addr %s744, 32
        %s746 = smul.addr %s745, 8
        %s747 = scalar_lea.vmem %s2, %s746
      $region48: #{bottleneck_forward.4} parent=43 // pred_fallthru
        _
      // Predicated region
      $region49: #{bottleneck_forward.4} parent=43 // pred_check
        %p748 = pneg %p113
      $region50: #{bottleneck_forward.4} parent=43 // pred_check_branch
        %750 = sbr.rel (%p748) target = $region52
      $region51: #{bottleneck_forward.4} parent=43 // pred_region
        %p751 = scmp.lt.s32.totalorder %s17, 1
        %s752 = scalar_select %p751, %s17, 1
        %s753 = smul.addr %s752, 8
        %s754 = scalar_lea.vmem %s3, %s753
      $region52: #{bottleneck_forward.4} parent=43 // pred_fallthru
        _
      // Predicated region
      $region53: #{bottleneck_forward.4} parent=43 // pred_check
        %p755 = pneg %p139
      $region54: #{bottleneck_forward.4} parent=43 // pred_check_branch
        %757 = sbr.rel (%p755) target = $region56
      $region55: #{bottleneck_forward.4} parent=43 // pred_region
        %p758 = scmp.lt.s32.totalorder %s17, 1
        %s759 = scalar_select %p758, %s17, 1
        %s760 = smul.addr %s759, 8
        %s761 = scalar_lea.vmem %s4, %s760
      $region56: #{bottleneck_forward.4} parent=43 // pred_fallthru
        _
    $region44: #{bottleneck_forward.4} parent=5 // pred_fallthru
      _
  $region6: #{bottleneck_forward.4} parent=0 // loop_footer
    %s15 = sadd.s32 1, %s11
  $region7: #{bottleneck_forward.4} parent=0 // loop_footer_branch
    %10 = sbr.rel target = $region3
  $region8: #{bottleneck_forward.4} parent=0 // loop_exit
    _

// kernel: bottleneck_forward.7
$region0: #{bottleneck_forward.7}
  #allocation0 [shape = 'u32[]', space=smem, size = 0x4, offset = 0x4, fixed_abs, tag = 'smem constant byte address 0x4 - core index']
  #allocation1 [shape = 'u32[144,128]{1,0:T(1,128)}', space=vmem, size = 0x12000, scoped, tag = 'internal scratch']
  %s0 = inlined_call_operand.vmem [shape: f32[2,16,16,128], index: 0, kind: input, shape index: {}, may-alias: {0,6}]
  %s1 = inlined_call_operand.vmem [shape: f32[2,16,16,128], index: 1, kind: input, shape index: {}]
  %s2 = inlined_call_operand.vmem [shape: f32[1,128], index: 2, kind: input, shape index: {}]
  %s3 = inlined_call_operand.vmem [shape: f32[1,128], index: 3, kind: input, shape index: {}]
  %s4 = inlined_call_operand.vmem [shape: f32[1,128], index: 4, kind: input, shape index: {}]
  %s5 = inlined_call_operand.vmem [shape: f32[1,128], index: 5, kind: input, shape index: {}]
  %s6 = inlined_call_operand.vmem [shape: f32[2,16,16,128], index: 6, kind: output, shape index: {}, may-alias: {0,6}]
  %s7 = sld [smem:[#allocation0]]
  $region57: #{bottleneck_forward.7} parent=0
    _
  %s9 = ssub.s32 1, %s7
  %s10 = scalar_select 0, %s9, %s7
  loop: start=0, step=1, limit=4
  $region2: #{bottleneck_forward.7} parent=0 // loop_pre_header
    _
  $region3: #{bottleneck_forward.7} parent=0 // loop_header
    %s12 = sphi 0, %s16
    %p13 = scmp.ge.s32.totalorder %s12, 4
    %s22 = sphi 0, %s24
    %s25 = sphi 0, %s22
    %s26 = sphi 0, %s25
    %s42 = sphi 0, %s26
    %s48 = sphi 0, %s50
    %s51 = sphi 0, %s48
    %s52 = sphi 0, %s51
    %s68 = sphi 0, %s52
    %s72 = sphi 0, %s72
    %s74 = sphi 0, %s72
    %s75 = sphi 0, %s74
    %s89 = sphi 0, %s75
    %s93 = sphi 0, %s93
    %s95 = sphi 0, %s93
    %s96 = sphi 0, %s95
    %s110 = sphi 0, %s96
    %s114 = sphi 0, %s114
    %s116 = sphi 0, %s114
    %s117 = sphi 0, %s116
    %s131 = sphi 0, %s117
    %s135 = sphi 0, %s135
    %s137 = sphi 0, %s135
    %s138 = sphi 0, %s137
    %s152 = sphi 0, %s138
    %s158 = sphi 0, %s160
    %s161 = sphi 0, %s158
    %s162 = sphi 0, %s161
    %s178 = sphi 0, %s162
  $region4: #{bottleneck_forward.7} parent=0 // loop_header_branch
    %15 = sbr.rel (%p13) target = $region8
  $region5: #{bottleneck_forward.7} parent=0 // loop_body
    %s17 = ssub.s32 %s12, 1
    %s18 = ssub.s32 %s12, 2
    %s19 = sadd.s32 %s12, 1
    %s20 = ssub.s32 %s12, %s19
    %p21 = scmp.eq.s32.totalorder %s20, 0
    %s23 = sadd.s32 %s22, 1
    %s24 = scalar_select %p21, %s22, %s23
    %p27 = pneg %p21
    %p28 = scmp.eq.s32.totalorder %s12, 1
    %p29 = por %p27, %p28
    %p30 = scmp.ne.s32.totalorder %s22, %s25
    %p31 = scmp.eq.s32.totalorder %s12, 0
    %p32 = por %p30, %p31
    %p33 = scmp.ne.s32.totalorder %s22, %s25
    %p34 = scmp.eq.s32.totalorder %s17, 1
    %p35 = por %p33, %p34
    %p36 = scmp.ne.s32.totalorder %s25, %s26
    %p37 = scmp.eq.s32.totalorder %s17, 0
    %p38 = por %p36, %p37
    %p39 = scmp.ne.s32.totalorder %s25, %s26
    %p40 = scmp.eq.s32.totalorder %s18, 1
    %p41 = por %p39, %p40
    %p43 = scmp.ne.s32.totalorder %s26, %s42
    %p44 = scmp.eq.s32.totalorder %s18, 0
    %p45 = por %p43, %p44
    %s46 = ssub.s32 %s12, %s19
    %p47 = scmp.eq.s32.totalorder %s46, 0
    %s49 = sadd.s32 %s48, 1
    %s50 = scalar_select %p47, %s48, %s49
    %p53 = pneg %p47
    %p54 = scmp.eq.s32.totalorder %s12, 1
    %p55 = por %p53, %p54
    %p56 = scmp.ne.s32.totalorder %s48, %s51
    %p57 = scmp.eq.s32.totalorder %s12, 0
    %p58 = por %p56, %p57
    %p59 = scmp.ne.s32.totalorder %s48, %s51
    %p60 = scmp.eq.s32.totalorder %s17, 1
    %p61 = por %p59, %p60
    %p62 = scmp.ne.s32.totalorder %s51, %s52
    %p63 = scmp.eq.s32.totalorder %s17, 0
    %p64 = por %p62, %p63
    %p65 = scmp.ne.s32.totalorder %s51, %s52
    %p66 = scmp.eq.s32.totalorder %s18, 1
    %p67 = por %p65, %p66
    %p69 = scmp.ne.s32.totalorder %s52, %s68
    %p70 = scmp.eq.s32.totalorder %s18, 0
    %p71 = por %p69, %p70
    %s73 = sadd.s32 %s72, 1
    %p76 = scmp.eq.s32.totalorder %s12, 1
    %p77 = scmp.ne.s32.totalorder %s72, %s74
    %p78 = scmp.eq.s32.totalorder %s12, 0
    %p79 = por %p77, %p78
    %p80 = scmp.ne.s32.totalorder %s72, %s74
    %p81 = scmp.eq.s32.totalorder %s17, 1
    %p82 = por %p80, %p81
    %p83 = scmp.ne.s32.totalorder %s74, %s75
    %p84 = scmp.eq.s32.totalorder %s17, 0
    %p85 = por %p83, %p84
    %p86 = scmp.ne.s32.totalorder %s74, %s75
    %p87 = scmp.eq.s32.totalorder %s18, 1
    %p88 = por %p86, %p87
    %p90 = scmp.ne.s32.totalorder %s75, %s89
    %p91 = scmp.eq.s32.totalorder %s18, 0
    %p92 = por %p90, %p91
    %s94 = sadd.s32 %s93, 1
    %p97 = scmp.eq.s32.totalorder %s12, 1
    %p98 = scmp.ne.s32.totalorder %s93, %s95
    %p99 = scmp.eq.s32.totalorder %s12, 0
    %p100 = por %p98, %p99
    %p101 = scmp.ne.s32.totalorder %s93, %s95
    %p102 = scmp.eq.s32.totalorder %s17, 1
    %p103 = por %p101, %p102
    %p104 = scmp.ne.s32.totalorder %s95, %s96
    %p105 = scmp.eq.s32.totalorder %s17, 0
    %p106 = por %p104, %p105
    %p107 = scmp.ne.s32.totalorder %s95, %s96
    %p108 = scmp.eq.s32.totalorder %s18, 1
    %p109 = por %p107, %p108
    %p111 = scmp.ne.s32.totalorder %s96, %s110
    %p112 = scmp.eq.s32.totalorder %s18, 0
    %p113 = por %p111, %p112
    %s115 = sadd.s32 %s114, 1
    %p118 = scmp.eq.s32.totalorder %s12, 1
    %p119 = scmp.ne.s32.totalorder %s114, %s116
    %p120 = scmp.eq.s32.totalorder %s12, 0
    %p121 = por %p119, %p120
    %p122 = scmp.ne.s32.totalorder %s114, %s116
    %p123 = scmp.eq.s32.totalorder %s17, 1
    %p124 = por %p122, %p123
    %p125 = scmp.ne.s32.totalorder %s116, %s117
    %p126 = scmp.eq.s32.totalorder %s17, 0
    %p127 = por %p125, %p126
    %p128 = scmp.ne.s32.totalorder %s116, %s117
    %p129 = scmp.eq.s32.totalorder %s18, 1
    %p130 = por %p128, %p129
    %p132 = scmp.ne.s32.totalorder %s117, %s131
    %p133 = scmp.eq.s32.totalorder %s18, 0
    %p134 = por %p132, %p133
    %s136 = sadd.s32 %s135, 1
    %p139 = scmp.eq.s32.totalorder %s12, 1
    %p140 = scmp.ne.s32.totalorder %s135, %s137
    %p141 = scmp.eq.s32.totalorder %s12, 0
    %p142 = por %p140, %p141
    %p143 = scmp.ne.s32.totalorder %s135, %s137
    %p144 = scmp.eq.s32.totalorder %s17, 1
    %p145 = por %p143, %p144
    %p146 = scmp.ne.s32.totalorder %s137, %s138
    %p147 = scmp.eq.s32.totalorder %s17, 0
    %p148 = por %p146, %p147
    %p149 = scmp.ne.s32.totalorder %s137, %s138
    %p150 = scmp.eq.s32.totalorder %s18, 1
    %p151 = por %p149, %p150
    %p153 = scmp.ne.s32.totalorder %s138, %s152
    %p154 = scmp.eq.s32.totalorder %s18, 0
    %p155 = por %p153, %p154
    %s156 = ssub.s32 %s12, %s19
    %p157 = scmp.eq.s32.totalorder %s156, 0
    %s159 = sadd.s32 %s158, 1
    %s160 = scalar_select %p157, %s158, %s159
    %p163 = pneg %p157
    %p164 = scmp.eq.s32.totalorder %s12, 1
    %p165 = por %p163, %p164
    %p166 = scmp.ne.s32.totalorder %s158, %s161
    %p167 = scmp.eq.s32.totalorder %s12, 0
    %p168 = por %p166, %p167
    %p169 = scmp.ne.s32.totalorder %s158, %s161
    %p170 = scmp.eq.s32.totalorder %s17, 1
    %p171 = por %p169, %p170
    %p172 = scmp.ne.s32.totalorder %s161, %s162
    %p173 = scmp.eq.s32.totalorder %s17, 0
    %p174 = por %p172, %p173
    %p175 = scmp.ne.s32.totalorder %s161, %s162
    %p176 = scmp.eq.s32.totalorder %s18, 1
    %p177 = por %p175, %p176
    %p179 = scmp.ne.s32.totalorder %s162, %s178
    %p180 = scmp.eq.s32.totalorder %s18, 0
    %p181 = por %p179, %p180
    %p182 = scmp.le.s32.totalorder 1, %s12
    %p183 = scmp.lt.s32.totalorder %s12, 3
    %p184 = pnand %p182, %p183
    %p185 = pneg %p184
    // Predicated region
    $region9: #{bottleneck_forward.7} parent=5 // pred_check
      _
    $region10: #{bottleneck_forward.7} parent=5 // pred_check_branch
      %187 = sbr.rel (%p184) target = $region12
    $region11: #{bottleneck_forward.7} parent=5 // pred_region
      %s188 = ssub.s32 %s12, 1
      // Predicated region
      $region13: #{bottleneck_forward.7} parent=11 // pred_check
        %p189 = pneg %p85
      $region14: #{bottleneck_forward.7} parent=11 // pred_check_branch
        %191 = sbr.rel (%p189) target = $region16
      $region15: #{bottleneck_forward.7} parent=11 // pred_region
        _
      $region16: #{bottleneck_forward.7} parent=11 // pred_fallthru
        _
      // Predicated region
      $region17: #{bottleneck_forward.7} parent=11 // pred_check
        %p192 = pneg %p106
      $region18: #{bottleneck_forward.7} parent=11 // pred_check_branch
        %194 = sbr.rel (%p192) target = $region20
      $region19: #{bottleneck_forward.7} parent=11 // pred_region
        _
      $region20: #{bottleneck_forward.7} parent=11 // pred_fallthru
        _
      // Predicated region
      $region21: #{bottleneck_forward.7} parent=11 // pred_check
        %p195 = pneg %p127
      $region22: #{bottleneck_forward.7} parent=11 // pred_check_branch
        %197 = sbr.rel (%p195) target = $region24
      $region23: #{bottleneck_forward.7} parent=11 // pred_region
        _
      $region24: #{bottleneck_forward.7} parent=11 // pred_fallthru
        _
      // Predicated region
      $region25: #{bottleneck_forward.7} parent=11 // pred_check
        %p198 = pneg %p148
      $region26: #{bottleneck_forward.7} parent=11 // pred_check_branch
        %200 = sbr.rel (%p198) target = $region28
      $region27: #{bottleneck_forward.7} parent=11 // pred_region
        _
      $region28: #{bottleneck_forward.7} parent=11 // pred_fallthru
        _
    $region12: #{bottleneck_forward.7} parent=5 // pred_fallthru
      _
    %p201 = scmp.lt.s32.totalorder %s12, 2
    // Predicated region
    $region29: #{bottleneck_forward.7} parent=5 // pred_check
      %p202 = pneg %p201
    $region30: #{bottleneck_forward.7} parent=5 // pred_check_branch
      %204 = sbr.rel (%p202) target = $region32
    $region31: #{bottleneck_forward.7} parent=5 // pred_region
      // Predicated region
      $region33: #{bottleneck_forward.7} parent=31 // pred_check
        %p205 = pneg %p32
      $region34: #{bottleneck_forward.7} parent=31 // pred_check_branch
        %207 = sbr.rel (%p205) target = $region36
      $region35: #{bottleneck_forward.7} parent=31 // pred_region
        %p208 = scmp.lt.s32.totalorder %s12, 1
        %s209 = scalar_select %p208, %s12, 1
        %s210 = smul.addr %s209, 32
        %s211 = smul.addr %s210, 8
        %s212 = scalar_lea.vmem %s0, %s211
      $region36: #{bottleneck_forward.7} parent=31 // pred_fallthru
        _
      // Predicated region
      $region37: #{bottleneck_forward.7} parent=31 // pred_check
        %p213 = pneg %p58
      $region38: #{bottleneck_forward.7} parent=31 // pred_check_branch
        %215 = sbr.rel (%p213) target = $region40
      $region39: #{bottleneck_forward.7} parent=31 // pred_region
        %p216 = scmp.lt.s32.totalorder %s12, 1
        %s217 = scalar_select %p216, %s12, 1
        %s218 = smul.addr %s217, 32
        %s219 = smul.addr %s218, 8
        %s220 = scalar_lea.vmem %s1, %s219
      $region40: #{bottleneck_forward.7} parent=31 // pred_fallthru
        _
    $region32: #{bottleneck_forward.7} parent=5 // pred_fallthru
      _
    %p221 = scmp.le.s32.totalorder 1, %s12
    %p222 = scmp.lt.s32.totalorder %s12, 3
    %p223 = pnand %p221, %p222
    %p224 = pneg %p223
    // Predicated region
    $region41: #{bottleneck_forward.7} parent=5 // pred_check
      _
    $region42: #{bottleneck_forward.7} parent=5 // pred_check_branch
      %226 = sbr.rel (%p223) target = $region44
    $region43: #{bottleneck_forward.7} parent=5 // pred_region
      %s227 = ssub.s32 %s12, 1
      %p228 = scmp.lt.s32.totalorder %s17, 1
      %s229 = scalar_select %p228, %s17, 1
      %s230 = smul.addr %s229, 32
      %s231 = smul.addr %s230, 8
      %s232 = scalar_lea.vmem %s0, %s231
      %p233 = pneg %p38
      %p234 = pneg %p35
      %p235 = scmp.lt.s32.totalorder %s17, 1
      %s236 = scalar_select %p235, %s17, 1
      %s237 = smul.addr %s236, 32
      %s238 = smul.addr %s237, 8
      %s239 = scalar_lea.vmem %s1, %s238
      %p240 = pneg %p64
      %p241 = pneg %p61
      %p242 = pneg %p85
      %p243 = pneg %p82
      %p244 = pneg %p106
      %p245 = pneg %p103
      %p246 = pneg %p127
      %p247 = pneg %p124
      %p248 = pneg %p148
      %p249 = pneg %p145
      %p250 = pneg %p174
      %p251 = pneg %p171
      %p252 = scmp.lt.s32.totalorder %s17, 1
      %s253 = scalar_select %p252, %s17, 1
      %s254 = smul.addr %s253, 32
      %s255 = smul.addr %s254, 8
      %s256 = scalar_lea.vmem %s6, %s255
      %p257 = scmp.lt.s32.totalorder %s17, 1
      %s258 = scalar_select %p257, %s17, 1
      %s259 = smul.addr %s258, 32
      %s260 = smul.addr %s259, 8
      %s261 = scalar_lea.vmem %s0, %s260
      %p262 = scmp.lt.s32.totalorder %s17, 1
      %s263 = scalar_select %p262, %s17, 1
      %s264 = smul.addr %s263, 32
      %s265 = smul.addr %s264, 8
      %s266 = scalar_lea.vmem %s1, %s265
      %p267 = scmp.lt.s32.totalorder %s17, 1
      %s268 = scalar_select %p267, %s17, 1
      %s269 = smul.addr %s268, 32
      %s270 = smul.addr %s269, 8
      %s271 = scalar_lea.vmem %s6, %s270
      %v272 = vld [vmem:[%s261] sm:$0xff]
      %v273 = vld [vmem:[%s261 + $0x8] sm:$0xff]
      %v274 = vld [vmem:[%s261 + $0x10] sm:$0xff]
      %v275 = vld [vmem:[%s261 + $0x18] sm:$0xff]
      %v276 = vld [vmem:[%s261 + $0x20] sm:$0xff]
      %v277 = vld [vmem:[%s261 + $0x28] sm:$0xff]
      %v278 = vld [vmem:[%s261 + $0x30] sm:$0xff]
      %v279 = vld [vmem:[%s261 + $0x38] sm:$0xff]
      %v280 = vld [vmem:[%s261 + $0x40] sm:$0xff]
      %v281 = vld [vmem:[%s261 + $0x48] sm:$0xff]
      %v282 = vld [vmem:[%s261 + $0x50] sm:$0xff]
      %v283 = vld [vmem:[%s261 + $0x58] sm:$0xff]
      %v284 = vld [vmem:[%s261 + $0x60] sm:$0xff]
      %v285 = vld [vmem:[%s261 + $0x68] sm:$0xff]
      %v286 = vld [vmem:[%s261 + $0x70] sm:$0xff]
      %v287 = vld [vmem:[%s261 + $0x78] sm:$0xff]
      %v288 = vld [vmem:[%s261 + $0x80] sm:$0xff]
      %v289 = vld [vmem:[%s261 + $0x88] sm:$0xff]
      %v290 = vld [vmem:[%s261 + $0x90] sm:$0xff]
      %v291 = vld [vmem:[%s261 + $0x98] sm:$0xff]
      %v292 = vld [vmem:[%s261 + $0xa0] sm:$0xff]
      %v293 = vld [vmem:[%s261 + $0xa8] sm:$0xff]
      %v294 = vld [vmem:[%s261 + $0xb0] sm:$0xff]
      %v295 = vld [vmem:[%s261 + $0xb8] sm:$0xff]
      %v296 = vld [vmem:[%s261 + $0xc0] sm:$0xff]
      %v297 = vld [vmem:[%s261 + $0xc8] sm:$0xff]
      %v298 = vld [vmem:[%s261 + $0xd0] sm:$0xff]
      %v299 = vld [vmem:[%s261 + $0xd8] sm:$0xff]
      %v300 = vld [vmem:[%s261 + $0xe0] sm:$0xff]
      %v301 = vld [vmem:[%s261 + $0xe8] sm:$0xff]
      %v302 = vld [vmem:[%s261 + $0xf0] sm:$0xff]
      %v303 = vld [vmem:[%s261 + $0xf8] sm:$0xff]
      %v304 = vld [vmem:[%s2] sm:$0x1]
      %v306 = vlaneseq
      %v307 = vshrl.u32 %v306, 7
      %v308 = vsub.s32 0, %v307
      %v309 = vrot.slane %v304, %v308
      %v311 = vmul.f32 %v272, %v309
      %v312 = vmul.f32 %v273, %v309
      %v313 = vmul.f32 %v274, %v309
      %v314 = vmul.f32 %v275, %v309
      %v315 = vmul.f32 %v276, %v309
      %v316 = vmul.f32 %v277, %v309
      %v317 = vmul.f32 %v278, %v309
      %v318 = vmul.f32 %v279, %v309
      %v319 = vmul.f32 %v280, %v309
      %v320 = vmul.f32 %v281, %v309
      %v321 = vmul.f32 %v282, %v309
      %v322 = vmul.f32 %v283, %v309
      %v323 = vmul.f32 %v284, %v309
      %v324 = vmul.f32 %v285, %v309
      %v325 = vmul.f32 %v286, %v309
      %v326 = vmul.f32 %v287, %v309
      %v327 = vmul.f32 %v288, %v309
      %v328 = vmul.f32 %v289, %v309
      %v329 = vmul.f32 %v290, %v309
      %v330 = vmul.f32 %v291, %v309
      %v331 = vmul.f32 %v292, %v309
      %v332 = vmul.f32 %v293, %v309
      %v333 = vmul.f32 %v294, %v309
      %v334 = vmul.f32 %v295, %v309
      %v335 = vmul.f32 %v296, %v309
      %v336 = vmul.f32 %v297, %v309
      %v337 = vmul.f32 %v298, %v309
      %v338 = vmul.f32 %v299, %v309
      %v339 = vmul.f32 %v300, %v309
      %v340 = vmul.f32 %v301, %v309
      %v341 = vmul.f32 %v302, %v309
      %v342 = vmul.f32 %v303, %v309
      %v343 = vld [vmem:[%s3] sm:$0x1]
      %v345 = vlaneseq
      %v346 = vshrl.u32 %v345, 7
      %v347 = vsub.s32 0, %v346
      %v348 = vrot.slane %v343, %v347
      %v350 = vadd.f32 %v311, %v348
      %v351 = vadd.f32 %v312, %v348
      %v352 = vadd.f32 %v313, %v348
      %v353 = vadd.f32 %v314, %v348
      %v354 = vadd.f32 %v315, %v348
      %v355 = vadd.f32 %v316, %v348
      %v356 = vadd.f32 %v317, %v348
      %v357 = vadd.f32 %v318, %v348
      %v358 = vadd.f32 %v319, %v348
      %v359 = vadd.f32 %v320, %v348
      %v360 = vadd.f32 %v321, %v348
      %v361 = vadd.f32 %v322, %v348
      %v362 = vadd.f32 %v323, %v348
      %v363 = vadd.f32 %v324, %v348
      %v364 = vadd.f32 %v325, %v348
      %v365 = vadd.f32 %v326, %v348
      %v366 = vadd.f32 %v327, %v348
      %v367 = vadd.f32 %v328, %v348
      %v368 = vadd.f32 %v329, %v348
      %v369 = vadd.f32 %v330, %v348
      %v370 = vadd.f32 %v331, %v348
      %v371 = vadd.f32 %v332, %v348
      %v372 = vadd.f32 %v333, %v348
      %v373 = vadd.f32 %v334, %v348
      %v374 = vadd.f32 %v335, %v348
      %v375 = vadd.f32 %v336, %v348
      %v376 = vadd.f32 %v337, %v348
      %v377 = vadd.f32 %v338, %v348
      %v378 = vadd.f32 %v339, %v348
      %v379 = vadd.f32 %v340, %v348
      %v380 = vadd.f32 %v341, %v348
      %v381 = vadd.f32 %v342, %v348
      %v382 = vld [vmem:[%s266] sm:$0xff]
      %v383 = vld [vmem:[%s266 + $0x8] sm:$0xff]
      %v384 = vld [vmem:[%s266 + $0x10] sm:$0xff]
      %v385 = vld [vmem:[%s266 + $0x18] sm:$0xff]
      %v386 = vld [vmem:[%s266 + $0x20] sm:$0xff]
      %v387 = vld [vmem:[%s266 + $0x28] sm:$0xff]
      %v388 = vld [vmem:[%s266 + $0x30] sm:$0xff]
      %v389 = vld [vmem:[%s266 + $0x38] sm:$0xff]
      %v390 = vld [vmem:[%s266 + $0x40] sm:$0xff]
      %v391 = vld [vmem:[%s266 + $0x48] sm:$0xff]
      %v392 = vld [vmem:[%s266 + $0x50] sm:$0xff]
      %v393 = vld [vmem:[%s266 + $0x58] sm:$0xff]
      %v394 = vld [vmem:[%s266 + $0x60] sm:$0xff]
      %v395 = vld [vmem:[%s266 + $0x68] sm:$0xff]
      %v396 = vld [vmem:[%s266 + $0x70] sm:$0xff]
      %v397 = vld [vmem:[%s266 + $0x78] sm:$0xff]
      %v398 = vld [vmem:[%s266 + $0x80] sm:$0xff]
      %v399 = vld [vmem:[%s266 + $0x88] sm:$0xff]
      %v400 = vld [vmem:[%s266 + $0x90] sm:$0xff]
      %v401 = vld [vmem:[%s266 + $0x98] sm:$0xff]
      %v402 = vld [vmem:[%s266 + $0xa0] sm:$0xff]
      %v403 = vld [vmem:[%s266 + $0xa8] sm:$0xff]
      %v404 = vld [vmem:[%s266 + $0xb0] sm:$0xff]
      %v405 = vld [vmem:[%s266 + $0xb8] sm:$0xff]
      %v406 = vld [vmem:[%s266 + $0xc0] sm:$0xff]
      %v407 = vld [vmem:[%s266 + $0xc8] sm:$0xff]
      %v408 = vld [vmem:[%s266 + $0xd0] sm:$0xff]
      %v409 = vld [vmem:[%s266 + $0xd8] sm:$0xff]
      %v410 = vld [vmem:[%s266 + $0xe0] sm:$0xff]
      %v411 = vld [vmem:[%s266 + $0xe8] sm:$0xff]
      %v412 = vld [vmem:[%s266 + $0xf0] sm:$0xff]
      %v413 = vld [vmem:[%s266 + $0xf8] sm:$0xff]
      %v414 = vld [vmem:[%s4] sm:$0x1]
      %v416 = vlaneseq
      %v417 = vshrl.u32 %v416, 7
      %v418 = vsub.s32 0, %v417
      %v419 = vrot.slane %v414, %v418
      %v421 = vmul.f32 %v382, %v419
      %v422 = vmul.f32 %v383, %v419
      %v423 = vmul.f32 %v384, %v419
      %v424 = vmul.f32 %v385, %v419
      %v425 = vmul.f32 %v386, %v419
      %v426 = vmul.f32 %v387, %v419
      %v427 = vmul.f32 %v388, %v419
      %v428 = vmul.f32 %v389, %v419
      %v429 = vmul.f32 %v390, %v419
      %v430 = vmul.f32 %v391, %v419
      %v431 = vmul.f32 %v392, %v419
      %v432 = vmul.f32 %v393, %v419
      %v433 = vmul.f32 %v394, %v419
      %v434 = vmul.f32 %v395, %v419
      %v435 = vmul.f32 %v396, %v419
      %v436 = vmul.f32 %v397, %v419
      %v437 = vmul.f32 %v398, %v419
      %v438 = vmul.f32 %v399, %v419
      %v439 = vmul.f32 %v400, %v419
      %v440 = vmul.f32 %v401, %v419
      %v441 = vmul.f32 %v402, %v419
      %v442 = vmul.f32 %v403, %v419
      %v443 = vmul.f32 %v404, %v419
      %v444 = vmul.f32 %v405, %v419
      %v445 = vmul.f32 %v406, %v419
      %v446 = vmul.f32 %v407, %v419
      %v447 = vmul.f32 %v408, %v419
      %v448 = vmul.f32 %v409, %v419
      %v449 = vmul.f32 %v410, %v419
      %v450 = vmul.f32 %v411, %v419
      %v451 = vmul.f32 %v412, %v419
      %v452 = vmul.f32 %v413, %v419
      %v453 = vld [vmem:[%s5] sm:$0x1]
      %v455 = vlaneseq
      %v456 = vshrl.u32 %v455, 7
      %v457 = vsub.s32 0, %v456
      %v458 = vrot.slane %v453, %v457
      %v460 = vadd.f32 %v421, %v458
      %v461 = vadd.f32 %v422, %v458
      %v462 = vadd.f32 %v423, %v458
      %v463 = vadd.f32 %v424, %v458
      %v464 = vadd.f32 %v425, %v458
      %v465 = vadd.f32 %v426, %v458
      %v466 = vadd.f32 %v427, %v458
      %v467 = vadd.f32 %v428, %v458
      %v468 = vadd.f32 %v429, %v458
      %v469 = vadd.f32 %v430, %v458
      %v470 = vadd.f32 %v431, %v458
      %v471 = vadd.f32 %v432, %v458
      %v472 = vadd.f32 %v433, %v458
      %v473 = vadd.f32 %v434, %v458
      %v474 = vadd.f32 %v435, %v458
      %v475 = vadd.f32 %v436, %v458
      %v476 = vadd.f32 %v437, %v458
      %v477 = vadd.f32 %v438, %v458
      %v478 = vadd.f32 %v439, %v458
      %v479 = vadd.f32 %v440, %v458
      %v480 = vadd.f32 %v441, %v458
      %v481 = vadd.f32 %v442, %v458
      %v482 = vadd.f32 %v443, %v458
      %v483 = vadd.f32 %v444, %v458
      %v484 = vadd.f32 %v445, %v458
      %v485 = vadd.f32 %v446, %v458
      %v486 = vadd.f32 %v447, %v458
      %v487 = vadd.f32 %v448, %v458
      %v488 = vadd.f32 %v449, %v458
      %v489 = vadd.f32 %v450, %v458
      %v490 = vadd.f32 %v451, %v458
      %v491 = vadd.f32 %v452, %v458
      %v492 = vadd.f32 %v350, %v460
      %v493 = vadd.f32 %v351, %v461
      %v494 = vadd.f32 %v352, %v462
      %v495 = vadd.f32 %v353, %v463
      %v496 = vadd.f32 %v354, %v464
      %v497 = vadd.f32 %v355, %v465
      %v498 = vadd.f32 %v356, %v466
      %v499 = vadd.f32 %v357, %v467
      %v500 = vadd.f32 %v358, %v468
      %v501 = vadd.f32 %v359, %v469
      %v502 = vadd.f32 %v360, %v470
      %v503 = vadd.f32 %v361, %v471
      %v504 = vadd.f32 %v362, %v472
      %v505 = vadd.f32 %v363, %v473
      %v506 = vadd.f32 %v364, %v474
      %v507 = vadd.f32 %v365, %v475
      %v508 = vadd.f32 %v366, %v476
      %v509 = vadd.f32 %v367, %v477
      %v510 = vadd.f32 %v368, %v478
      %v511 = vadd.f32 %v369, %v479
      %v512 = vadd.f32 %v370, %v480
      %v513 = vadd.f32 %v371, %v481
      %v514 = vadd.f32 %v372, %v482
      %v515 = vadd.f32 %v373, %v483
      %v516 = vadd.f32 %v374, %v484
      %v517 = vadd.f32 %v375, %v485
      %v518 = vadd.f32 %v376, %v486
      %v519 = vadd.f32 %v377, %v487
      %v520 = vadd.f32 %v378, %v488
      %v521 = vadd.f32 %v379, %v489
      %v522 = vadd.f32 %v380, %v490
      %v523 = vadd.f32 %v381, %v491
      %v524 = vmax.f32 %v492, 0.0
      %v525 = vmax.f32 %v493, 0.0
      %v526 = vmax.f32 %v494, 0.0
      %v527 = vmax.f32 %v495, 0.0
      %v528 = vmax.f32 %v496, 0.0
      %v529 = vmax.f32 %v497, 0.0
      %v530 = vmax.f32 %v498, 0.0
      %v531 = vmax.f32 %v499, 0.0
      %v532 = vmax.f32 %v500, 0.0
      %v533 = vmax.f32 %v501, 0.0
      %v534 = vmax.f32 %v502, 0.0
      %v535 = vmax.f32 %v503, 0.0
      %v536 = vmax.f32 %v504, 0.0
      %v537 = vmax.f32 %v505, 0.0
      %v538 = vmax.f32 %v506, 0.0
      %v539 = vmax.f32 %v507, 0.0
      %v540 = vmax.f32 %v508, 0.0
      %v541 = vmax.f32 %v509, 0.0
      %v542 = vmax.f32 %v510, 0.0
      %v543 = vmax.f32 %v511, 0.0
      %v544 = vmax.f32 %v512, 0.0
      %v545 = vmax.f32 %v513, 0.0
      %v546 = vmax.f32 %v514, 0.0
      %v547 = vmax.f32 %v515, 0.0
      %v548 = vmax.f32 %v516, 0.0
      %v549 = vmax.f32 %v517, 0.0
      %v550 = vmax.f32 %v518, 0.0
      %v551 = vmax.f32 %v519, 0.0
      %v552 = vmax.f32 %v520, 0.0
      %v553 = vmax.f32 %v521, 0.0
      %v554 = vmax.f32 %v522, 0.0
      %v555 = vmax.f32 %v523, 0.0
      %556 = vst [vmem:[%s271] sm:$0xff] %v524
      %557 = vst [vmem:[%s271 + $0x8] sm:$0xff] %v525
      %558 = vst [vmem:[%s271 + $0x10] sm:$0xff] %v526
      %559 = vst [vmem:[%s271 + $0x18] sm:$0xff] %v527
      %560 = vst [vmem:[%s271 + $0x20] sm:$0xff] %v528
      %561 = vst [vmem:[%s271 + $0x28] sm:$0xff] %v529
      %562 = vst [vmem:[%s271 + $0x30] sm:$0xff] %v530
      %563 = vst [vmem:[%s271 + $0x38] sm:$0xff] %v531
      %564 = vst [vmem:[%s271 + $0x40] sm:$0xff] %v532
      %565 = vst [vmem:[%s271 + $0x48] sm:$0xff] %v533
      %566 = vst [vmem:[%s271 + $0x50] sm:$0xff] %v534
      %567 = vst [vmem:[%s271 + $0x58] sm:$0xff] %v535
      %568 = vst [vmem:[%s271 + $0x60] sm:$0xff] %v536
      %569 = vst [vmem:[%s271 + $0x68] sm:$0xff] %v537
      %570 = vst [vmem:[%s271 + $0x70] sm:$0xff] %v538
      %571 = vst [vmem:[%s271 + $0x78] sm:$0xff] %v539
      %572 = vst [vmem:[%s271 + $0x80] sm:$0xff] %v540
      %573 = vst [vmem:[%s271 + $0x88] sm:$0xff] %v541
      %574 = vst [vmem:[%s271 + $0x90] sm:$0xff] %v542
      %575 = vst [vmem:[%s271 + $0x98] sm:$0xff] %v543
      %576 = vst [vmem:[%s271 + $0xa0] sm:$0xff] %v544
      %577 = vst [vmem:[%s271 + $0xa8] sm:$0xff] %v545
      %578 = vst [vmem:[%s271 + $0xb0] sm:$0xff] %v546
      %579 = vst [vmem:[%s271 + $0xb8] sm:$0xff] %v547
      %580 = vst [vmem:[%s271 + $0xc0] sm:$0xff] %v548
      %581 = vst [vmem:[%s271 + $0xc8] sm:$0xff] %v549
      %582 = vst [vmem:[%s271 + $0xd0] sm:$0xff] %v550
      %583 = vst [vmem:[%s271 + $0xd8] sm:$0xff] %v551
      %584 = vst [vmem:[%s271 + $0xe0] sm:$0xff] %v552
      %585 = vst [vmem:[%s271 + $0xe8] sm:$0xff] %v553
      %586 = vst [vmem:[%s271 + $0xf0] sm:$0xff] %v554
      %587 = vst [vmem:[%s271 + $0xf8] sm:$0xff] %v555
      %p588 = scmp.lt.s32.totalorder %s17, 1
      %s589 = scalar_select %p588, %s17, 1
      %s590 = smul.addr %s589, 32
      %s591 = smul.addr %s590, 8
      %s592 = scalar_lea.vmem %s6, %s591
      // Predicated region
      $region45: #{bottleneck_forward.7} parent=43 // pred_check
        %p593 = pneg %p171
      $region46: #{bottleneck_forward.7} parent=43 // pred_check_branch
        %595 = sbr.rel (%p593) target = $region48
      $region47: #{bottleneck_forward.7} parent=43 // pred_region
        _
      $region48: #{bottleneck_forward.7} parent=43 // pred_fallthru
        _
    $region44: #{bottleneck_forward.7} parent=5 // pred_fallthru
      _
    %p596 = scmp.le.s32.totalorder 2, %s12
    // Predicated region
    $region49: #{bottleneck_forward.7} parent=5 // pred_check
      %p597 = pneg %p596
    $region50: #{bottleneck_forward.7} parent=5 // pred_check_branch
      %599 = sbr.rel (%p597) target = $region52
    $region51: #{bottleneck_forward.7} parent=5 // pred_region
      %s600 = ssub.s32 %s12, 2
      // Predicated region
      $region53: #{bottleneck_forward.7} parent=51 // pred_check
        %p601 = pneg %p177
      $region54: #{bottleneck_forward.7} parent=51 // pred_check_branch
        %603 = sbr.rel (%p601) target = $region56
      $region55: #{bottleneck_forward.7} parent=51 // pred_region
        %p604 = scmp.lt.s32.totalorder %s18, 1
        %s605 = scalar_select %p604, %s18, 1
        %s606 = smul.addr %s605, 32
        %s607 = smul.addr %s606, 8
        %s608 = scalar_lea.vmem %s6, %s607
      $region56: #{bottleneck_forward.7} parent=51 // pred_fallthru
        _
    $region52: #{bottleneck_forward.7} parent=5 // pred_fallthru
      _
  $region6: #{bottleneck_forward.7} parent=0 // loop_footer
    %s16 = sadd.s32 1, %s12
  $region7: #{bottleneck_forward.7} parent=0 // loop_footer_branch
    %11 = sbr.rel target = $region3
  $region8: #{bottleneck_forward.7} parent=0 // loop_exit
    _

// kernel: bottleneck_forward.6
$region0: #{bottleneck_forward.6}
  #allocation0 [shape = 'u32[]', space=smem, size = 0x4, offset = 0x4, fixed_abs, tag = 'smem constant byte address 0x4 - core index']
  #allocation1 [shape = 'u32[144,128]{1,0:T(1,128)}', space=vmem, size = 0x12000, scoped, tag = 'internal scratch']
  %s0 = inlined_call_operand.vmem [shape: f32[2,16,16,128], index: 0, kind: input, shape index: {}]
  %s1 = inlined_call_operand.vmem [shape: bf16[2,16,16,128], index: 1, kind: input, shape index: {}]
  %s2 = inlined_call_operand.vmem [shape: f32[1,128], index: 2, kind: input, shape index: {}]
  %s3 = inlined_call_operand.vmem [shape: f32[1,128], index: 3, kind: input, shape index: {}]
  %s4 = inlined_call_operand.vmem [shape: bf16[128,128], index: 4, kind: input, shape index: {}]
  %s5 = inlined_call_operand.vmem [shape: bf16[128,128], index: 5, kind: input, shape index: {}]
  %s6 = inlined_call_operand.vmem [shape: f32[2,16,16,128], index: 6, kind: output, shape index: {0}]
  %s7 = inlined_call_operand.vmem [shape: f32[2,16,16,128], index: 7, kind: output, shape index: {1}]
  %s8 = inlined_call_operand.vmem [shape: f32[2,8,128], index: 8, kind: output, shape index: {2}]
  %s9 = inlined_call_operand.vmem [shape: f32[2,8,128], index: 9, kind: output, shape index: {3}]
  %s10 = inlined_call_operand.vmem [shape: f32[2,8,128], index: 10, kind: output, shape index: {4}]
  %s11 = inlined_call_operand.vmem [shape: f32[2,8,128], index: 11, kind: output, shape index: {5}]
  %12 = xla_tuple %s6, %s7, %s8, %s9, %s10, %s11
  %s13 = sld [smem:[#allocation0]]
  $region97: #{bottleneck_forward.6} parent=0
    _
  %s15 = ssub.s32 1, %s13
  %s16 = scalar_select 0, %s15, %s13
  loop: start=0, step=1, limit=4
  $region2: #{bottleneck_forward.6} parent=0 // loop_pre_header
    _
  $region3: #{bottleneck_forward.6} parent=0 // loop_header
    %s18 = sphi 0, %s22
    %p19 = scmp.ge.s32.totalorder %s18, 4
    %s28 = sphi 0, %s30
    %s31 = sphi 0, %s28
    %s32 = sphi 0, %s31
    %s48 = sphi 0, %s32
    %s54 = sphi 0, %s56
    %s57 = sphi 0, %s54
    %s58 = sphi 0, %s57
    %s74 = sphi 0, %s58
    %s78 = sphi 0, %s78
    %s80 = sphi 0, %s78
    %s81 = sphi 0, %s80
    %s95 = sphi 0, %s81
    %s99 = sphi 0, %s99
    %s101 = sphi 0, %s99
    %s102 = sphi 0, %s101
    %s116 = sphi 0, %s102
    %s120 = sphi 0, %s120
    %s122 = sphi 0, %s120
    %s123 = sphi 0, %s122
    %s137 = sphi 0, %s123
    %s141 = sphi 0, %s141
    %s143 = sphi 0, %s141
    %s144 = sphi 0, %s143
    %s158 = sphi 0, %s144
    %s164 = sphi 0, %s166
    %s167 = sphi 0, %s164
    %s168 = sphi 0, %s167
    %s184 = sphi 0, %s168
    %s190 = sphi 0, %s192
    %s193 = sphi 0, %s190
    %s194 = sphi 0, %s193
    %s210 = sphi 0, %s194
    %s216 = sphi 0, %s218
    %s219 = sphi 0, %s216
    %s220 = sphi 0, %s219
    %s236 = sphi 0, %s220
    %s242 = sphi 0, %s244
    %s245 = sphi 0, %s242
    %s246 = sphi 0, %s245
    %s262 = sphi 0, %s246
    %s268 = sphi 0, %s270
    %s271 = sphi 0, %s268
    %s272 = sphi 0, %s271
    %s288 = sphi 0, %s272
    %s294 = sphi 0, %s296
    %s297 = sphi 0, %s294
    %s298 = sphi 0, %s297
    %s314 = sphi 0, %s298
  $region4: #{bottleneck_forward.6} parent=0 // loop_header_branch
    %21 = sbr.rel (%p19) target = $region8
  $region5: #{bottleneck_forward.6} parent=0 // loop_body
    %s23 = ssub.s32 %s18, 1
    %s24 = ssub.s32 %s18, 2
    %s25 = sadd.s32 %s18, 1
    %s26 = ssub.s32 %s18, %s25
    %p27 = scmp.eq.s32.totalorder %s26, 0
    %s29 = sadd.s32 %s28, 1
    %s30 = scalar_select %p27, %s28, %s29
    %p33 = pneg %p27
    %p34 = scmp.eq.s32.totalorder %s18, 1
    %p35 = por %p33, %p34
    %p36 = scmp.ne.s32.totalorder %s28, %s31
    %p37 = scmp.eq.s32.totalorder %s18, 0
    %p38 = por %p36, %p37
    %p39 = scmp.ne.s32.totalorder %s28, %s31
    %p40 = scmp.eq.s32.totalorder %s23, 1
    %p41 = por %p39, %p40
    %p42 = scmp.ne.s32.totalorder %s31, %s32
    %p43 = scmp.eq.s32.totalorder %s23, 0
    %p44 = por %p42, %p43
    %p45 = scmp.ne.s32.totalorder %s31, %s32
    %p46 = scmp.eq.s32.totalorder %s24, 1
    %p47 = por %p45, %p46
    %p49 = scmp.ne.s32.totalorder %s32, %s48
    %p50 = scmp.eq.s32.totalorder %s24, 0
    %p51 = por %p49, %p50
    %s52 = ssub.s32 %s18, %s25
    %p53 = scmp.eq.s32.totalorder %s52, 0
    %s55 = sadd.s32 %s54, 1
    %s56 = scalar_select %p53, %s54, %s55
    %p59 = pneg %p53
    %p60 = scmp.eq.s32.totalorder %s18, 1
    %p61 = por %p59, %p60
    %p62 = scmp.ne.s32.totalorder %s54, %s57
    %p63 = scmp.eq.s32.totalorder %s18, 0
    %p64 = por %p62, %p63
    %p65 = scmp.ne.s32.totalorder %s54, %s57
    %p66 = scmp.eq.s32.totalorder %s23, 1
    %p67 = por %p65, %p66
    %p68 = scmp.ne.s32.totalorder %s57, %s58
    %p69 = scmp.eq.s32.totalorder %s23, 0
    %p70 = por %p68, %p69
    %p71 = scmp.ne.s32.totalorder %s57, %s58
    %p72 = scmp.eq.s32.totalorder %s24, 1
    %p73 = por %p71, %p72
    %p75 = scmp.ne.s32.totalorder %s58, %s74
    %p76 = scmp.eq.s32.totalorder %s24, 0
    %p77 = por %p75, %p76
    %s79 = sadd.s32 %s78, 1
    %p82 = scmp.eq.s32.totalorder %s18, 1
    %p83 = scmp.ne.s32.totalorder %s78, %s80
    %p84 = scmp.eq.s32.totalorder %s18, 0
    %p85 = por %p83, %p84
    %p86 = scmp.ne.s32.totalorder %s78, %s80
    %p87 = scmp.eq.s32.totalorder %s23, 1
    %p88 = por %p86, %p87
    %p89 = scmp.ne.s32.totalorder %s80, %s81
    %p90 = scmp.eq.s32.totalorder %s23, 0
    %p91 = por %p89, %p90
    %p92 = scmp.ne.s32.totalorder %s80, %s81
    %p93 = scmp.eq.s32.totalorder %s24, 1
    %p94 = por %p92, %p93
    %p96 = scmp.ne.s32.totalorder %s81, %s95
    %p97 = scmp.eq.s32.totalorder %s24, 0
    %p98 = por %p96, %p97
    %s100 = sadd.s32 %s99, 1
    %p103 = scmp.eq.s32.totalorder %s18, 1
    %p104 = scmp.ne.s32.totalorder %s99, %s101
    %p105 = scmp.eq.s32.totalorder %s18, 0
    %p106 = por %p104, %p105
    %p107 = scmp.ne.s32.totalorder %s99, %s101
    %p108 = scmp.eq.s32.totalorder %s23, 1
    %p109 = por %p107, %p108
    %p110 = scmp.ne.s32.totalorder %s101, %s102
    %p111 = scmp.eq.s32.totalorder %s23, 0
    %p112 = por %p110, %p111
    %p113 = scmp.ne.s32.totalorder %s101, %s102
    %p114 = scmp.eq.s32.totalorder %s24, 1
    %p115 = por %p113, %p114
    %p117 = scmp.ne.s32.totalorder %s102, %s116
    %p118 = scmp.eq.s32.totalorder %s24, 0
    %p119 = por %p117, %p118
    %s121 = sadd.s32 %s120, 1
    %p124 = scmp.eq.s32.totalorder %s18, 1
    %p125 = scmp.ne.s32.totalorder %s120, %s122
    %p126 = scmp.eq.s32.totalorder %s18, 0
    %p127 = por %p125, %p126
    %p128 = scmp.ne.s32.totalorder %s120, %s122
    %p129 = scmp.eq.s32.totalorder %s23, 1
    %p130 = por %p128, %p129
    %p131 = scmp.ne.s32.totalorder %s122, %s123
    %p132 = scmp.eq.s32.totalorder %s23, 0
    %p133 = por %p131, %p132
    %p134 = scmp.ne.s32.totalorder %s122, %s123
    %p135 = scmp.eq.s32.totalorder %s24, 1
    %p136 = por %p134, %p135
    %p138 = scmp.ne.s32.totalorder %s123, %s137
    %p139 = scmp.eq.s32.totalorder %s24, 0
    %p140 = por %p138, %p139
    %s142 = sadd.s32 %s141, 1
    %p145 = scmp.eq.s32.totalorder %s18, 1
    %p146 = scmp.ne.s32.totalorder %s141, %s143
    %p147 = scmp.eq.s32.totalorder %s18, 0
    %p148 = por %p146, %p147
    %p149 = scmp.ne.s32.totalorder %s141, %s143
    %p150 = scmp.eq.s32.totalorder %s23, 1
    %p151 = por %p149, %p150
    %p152 = scmp.ne.s32.totalorder %s143, %s144
    %p153 = scmp.eq.s32.totalorder %s23, 0
    %p154 = por %p152, %p153
    %p155 = scmp.ne.s32.totalorder %s143, %s144
    %p156 = scmp.eq.s32.totalorder %s24, 1
    %p157 = por %p155, %p156
    %p159 = scmp.ne.s32.totalorder %s144, %s158
    %p160 = scmp.eq.s32.totalorder %s24, 0
    %p161 = por %p159, %p160
    %s162 = ssub.s32 %s18, %s25
    %p163 = scmp.eq.s32.totalorder %s162, 0
    %s165 = sadd.s32 %s164, 1
    %s166 = scalar_select %p163, %s164, %s165
    %p169 = pneg %p163
    %p170 = scmp.eq.s32.totalorder %s18, 1
    %p171 = por %p169, %p170
    %p172 = scmp.ne.s32.totalorder %s164, %s167
    %p173 = scmp.eq.s32.totalorder %s18, 0
    %p174 = por %p172, %p173
    %p175 = scmp.ne.s32.totalorder %s164, %s167
    %p176 = scmp.eq.s32.totalorder %s23, 1
    %p177 = por %p175, %p176
    %p178 = scmp.ne.s32.totalorder %s167, %s168
    %p179 = scmp.eq.s32.totalorder %s23, 0
    %p180 = por %p178, %p179
    %p181 = scmp.ne.s32.totalorder %s167, %s168
    %p182 = scmp.eq.s32.totalorder %s24, 1
    %p183 = por %p181, %p182
    %p185 = scmp.ne.s32.totalorder %s168, %s184
    %p186 = scmp.eq.s32.totalorder %s24, 0
    %p187 = por %p185, %p186
    %s188 = ssub.s32 %s18, %s25
    %p189 = scmp.eq.s32.totalorder %s188, 0
    %s191 = sadd.s32 %s190, 1
    %s192 = scalar_select %p189, %s190, %s191
    %p195 = pneg %p189
    %p196 = scmp.eq.s32.totalorder %s18, 1
    %p197 = por %p195, %p196
    %p198 = scmp.ne.s32.totalorder %s190, %s193
    %p199 = scmp.eq.s32.totalorder %s18, 0
    %p200 = por %p198, %p199
    %p201 = scmp.ne.s32.totalorder %s190, %s193
    %p202 = scmp.eq.s32.totalorder %s23, 1
    %p203 = por %p201, %p202
    %p204 = scmp.ne.s32.totalorder %s193, %s194
    %p205 = scmp.eq.s32.totalorder %s23, 0
    %p206 = por %p204, %p205
    %p207 = scmp.ne.s32.totalorder %s193, %s194
    %p208 = scmp.eq.s32.totalorder %s24, 1
    %p209 = por %p207, %p208
    %p211 = scmp.ne.s32.totalorder %s194, %s210
    %p212 = scmp.eq.s32.totalorder %s24, 0
    %p213 = por %p211, %p212
    %s214 = ssub.s32 %s18, %s25
    %p215 = scmp.eq.s32.totalorder %s214, 0
    %s217 = sadd.s32 %s216, 1
    %s218 = scalar_select %p215, %s216, %s217
    %p221 = pneg %p215
    %p222 = scmp.eq.s32.totalorder %s18, 1
    %p223 = por %p221, %p222
    %p224 = scmp.ne.s32.totalorder %s216, %s219
    %p225 = scmp.eq.s32.totalorder %s18, 0
    %p226 = por %p224, %p225
    %p227 = scmp.ne.s32.totalorder %s216, %s219
    %p228 = scmp.eq.s32.totalorder %s23, 1
    %p229 = por %p227, %p228
    %p230 = scmp.ne.s32.totalorder %s219, %s220
    %p231 = scmp.eq.s32.totalorder %s23, 0
    %p232 = por %p230, %p231
    %p233 = scmp.ne.s32.totalorder %s219, %s220
    %p234 = scmp.eq.s32.totalorder %s24, 1
    %p235 = por %p233, %p234
    %p237 = scmp.ne.s32.totalorder %s220, %s236
    %p238 = scmp.eq.s32.totalorder %s24, 0
    %p239 = por %p237, %p238
    %s240 = ssub.s32 %s18, %s25
    %p241 = scmp.eq.s32.totalorder %s240, 0
    %s243 = sadd.s32 %s242, 1
    %s244 = scalar_select %p241, %s242, %s243
    %p247 = pneg %p241
    %p248 = scmp.eq.s32.totalorder %s18, 1
    %p249 = por %p247, %p248
    %p250 = scmp.ne.s32.totalorder %s242, %s245
    %p251 = scmp.eq.s32.totalorder %s18, 0
    %p252 = por %p250, %p251
    %p253 = scmp.ne.s32.totalorder %s242, %s245
    %p254 = scmp.eq.s32.totalorder %s23, 1
    %p255 = por %p253, %p254
    %p256 = scmp.ne.s32.totalorder %s245, %s246
    %p257 = scmp.eq.s32.totalorder %s23, 0
    %p258 = por %p256, %p257
    %p259 = scmp.ne.s32.totalorder %s245, %s246
    %p260 = scmp.eq.s32.totalorder %s24, 1
    %p261 = por %p259, %p260
    %p263 = scmp.ne.s32.totalorder %s246, %s262
    %p264 = scmp.eq.s32.totalorder %s24, 0
    %p265 = por %p263, %p264
    %s266 = ssub.s32 %s18, %s25
    %p267 = scmp.eq.s32.totalorder %s266, 0
    %s269 = sadd.s32 %s268, 1
    %s270 = scalar_select %p267, %s268, %s269
    %p273 = pneg %p267
    %p274 = scmp.eq.s32.totalorder %s18, 1
    %p275 = por %p273, %p274
    %p276 = scmp.ne.s32.totalorder %s268, %s271
    %p277 = scmp.eq.s32.totalorder %s18, 0
    %p278 = por %p276, %p277
    %p279 = scmp.ne.s32.totalorder %s268, %s271
    %p280 = scmp.eq.s32.totalorder %s23, 1
    %p281 = por %p279, %p280
    %p282 = scmp.ne.s32.totalorder %s271, %s272
    %p283 = scmp.eq.s32.totalorder %s23, 0
    %p284 = por %p282, %p283
    %p285 = scmp.ne.s32.totalorder %s271, %s272
    %p286 = scmp.eq.s32.totalorder %s24, 1
    %p287 = por %p285, %p286
    %p289 = scmp.ne.s32.totalorder %s272, %s288
    %p290 = scmp.eq.s32.totalorder %s24, 0
    %p291 = por %p289, %p290
    %s292 = ssub.s32 %s18, %s25
    %p293 = scmp.eq.s32.totalorder %s292, 0
    %s295 = sadd.s32 %s294, 1
    %s296 = scalar_select %p293, %s294, %s295
    %p299 = pneg %p293
    %p300 = scmp.eq.s32.totalorder %s18, 1
    %p301 = por %p299, %p300
    %p302 = scmp.ne.s32.totalorder %s294, %s297
    %p303 = scmp.eq.s32.totalorder %s18, 0
    %p304 = por %p302, %p303
    %p305 = scmp.ne.s32.totalorder %s294, %s297
    %p306 = scmp.eq.s32.totalorder %s23, 1
    %p307 = por %p305, %p306
    %p308 = scmp.ne.s32.totalorder %s297, %s298
    %p309 = scmp.eq.s32.totalorder %s23, 0
    %p310 = por %p308, %p309
    %p311 = scmp.ne.s32.totalorder %s297, %s298
    %p312 = scmp.eq.s32.totalorder %s24, 1
    %p313 = por %p311, %p312
    %p315 = scmp.ne.s32.totalorder %s298, %s314
    %p316 = scmp.eq.s32.totalorder %s24, 0
    %p317 = por %p315, %p316
    %p318 = scmp.le.s32.totalorder 1, %s18
    %p319 = scmp.lt.s32.totalorder %s18, 3
    %p320 = pnand %p318, %p319
    %p321 = pneg %p320
    // Predicated region
    $region9: #{bottleneck_forward.6} parent=5 // pred_check
      _
    $region10: #{bottleneck_forward.6} parent=5 // pred_check_branch
      %323 = sbr.rel (%p320) target = $region12
    $region11: #{bottleneck_forward.6} parent=5 // pred_region
      %s324 = ssub.s32 %s18, 1
      // Predicated region
      $region13: #{bottleneck_forward.6} parent=11 // pred_check
        %p325 = pneg %p91
      $region14: #{bottleneck_forward.6} parent=11 // pred_check_branch
        %327 = sbr.rel (%p325) target = $region16
      $region15: #{bottleneck_forward.6} parent=11 // pred_region
        _
      $region16: #{bottleneck_forward.6} parent=11 // pred_fallthru
        _
      // Predicated region
      $region17: #{bottleneck_forward.6} parent=11 // pred_check
        %p328 = pneg %p112
      $region18: #{bottleneck_forward.6} parent=11 // pred_check_branch
        %330 = sbr.rel (%p328) target = $region20
      $region19: #{bottleneck_forward.6} parent=11 // pred_region
        _
      $region20: #{bottleneck_forward.6} parent=11 // pred_fallthru
        _
      // Predicated region
      $region21: #{bottleneck_forward.6} parent=11 // pred_check
        %p331 = pneg %p133
      $region22: #{bottleneck_forward.6} parent=11 // pred_check_branch
        %333 = sbr.rel (%p331) target = $region24
      $region23: #{bottleneck_forward.6} parent=11 // pred_region
        _
      $region24: #{bottleneck_forward.6} parent=11 // pred_fallthru
        _
      // Predicated region
      $region25: #{bottleneck_forward.6} parent=11 // pred_check
        %p334 = pneg %p154
      $region26: #{bottleneck_forward.6} parent=11 // pred_check_branch
        %336 = sbr.rel (%p334) target = $region28
      $region27: #{bottleneck_forward.6} parent=11 // pred_region
        _
      $region28: #{bottleneck_forward.6} parent=11 // pred_fallthru
        _
    $region12: #{bottleneck_forward.6} parent=5 // pred_fallthru
      _
    %p337 = scmp.lt.s32.totalorder %s18, 2
    // Predicated region
    $region29: #{bottleneck_forward.6} parent=5 // pred_check
      %p338 = pneg %p337
    $region30: #{bottleneck_forward.6} parent=5 // pred_check_branch
      %340 = sbr.rel (%p338) target = $region32
    $region31: #{bottleneck_forward.6} parent=5 // pred_region
      // Predicated region
      $region33: #{bottleneck_forward.6} parent=31 // pred_check
        %p341 = pneg %p38
      $region34: #{bottleneck_forward.6} parent=31 // pred_check_branch
        %343 = sbr.rel (%p341) target = $region36
      $region35: #{bottleneck_forward.6} parent=31 // pred_region
        %p344 = scmp.lt.s32.totalorder %s18, 1
        %s345 = scalar_select %p344, %s18, 1
        %s346 = smul.addr %s345, 32
        %s347 = smul.addr %s346, 8
        %s348 = scalar_lea.vmem %s0, %s347
      $region36: #{bottleneck_forward.6} parent=31 // pred_fallthru
        _
      // Predicated region
      $region37: #{bottleneck_forward.6} parent=31 // pred_check
        %p349 = pneg %p64
      $region38: #{bottleneck_forward.6} parent=31 // pred_check_branch
        %351 = sbr.rel (%p349) target = $region40
      $region39: #{bottleneck_forward.6} parent=31 // pred_region
        %p352 = scmp.lt.s32.totalorder %s18, 1
        %s353 = scalar_select %p352, %s18, 1
        %s354 = smul.addr %s353, 32
        %s355 = smul.addr %s354, 4
        %s356 = scalar_lea.vmem %s1, %s355
      $region40: #{bottleneck_forward.6} parent=31 // pred_fallthru
        _
    $region32: #{bottleneck_forward.6} parent=5 // pred_fallthru
      _
    %p357 = scmp.le.s32.totalorder 1, %s18
    %p358 = scmp.lt.s32.totalorder %s18, 3
    %p359 = pnand %p357, %p358
    %p360 = pneg %p359
    // Predicated region
    $region41: #{bottleneck_forward.6} parent=5 // pred_check
      _
    $region42: #{bottleneck_forward.6} parent=5 // pred_check_branch
      %362 = sbr.rel (%p359) target = $region44
    $region43: #{bottleneck_forward.6} parent=5 // pred_region
      %s363 = ssub.s32 %s18, 1
      %p364 = scmp.lt.s32.totalorder %s23, 1
      %s365 = scalar_select %p364, %s23, 1
      %s366 = smul.addr %s365, 32
      %s367 = smul.addr %s366, 8
      %s368 = scalar_lea.vmem %s0, %s367
      %p369 = pneg %p44
      %p370 = pneg %p41
      %p371 = scmp.lt.s32.totalorder %s23, 1
      %s372 = scalar_select %p371, %s23, 1
      %s373 = smul.addr %s372, 32
      %s374 = smul.addr %s373, 4
      %s375 = scalar_lea.vmem %s1, %s374
      %p376 = pneg %p70
      %p377 = pneg %p67
      %p378 = pneg %p91
      %p379 = pneg %p88
      %p380 = pneg %p112
      %p381 = pneg %p109
      %p382 = pneg %p133
      %p383 = pneg %p130
      %p384 = pneg %p154
      %p385 = pneg %p151
      %p386 = pneg %p180
      %p387 = pneg %p177
      %p388 = scmp.lt.s32.totalorder %s23, 1
      %s389 = scalar_select %p388, %s23, 1
      %s390 = smul.addr %s389, 32
      %s391 = smul.addr %s390, 8
      %s392 = scalar_lea.vmem %s6, %s391
      %p393 = pneg %p206
      %p394 = pneg %p203
      %p395 = scmp.lt.s32.totalorder %s23, 1
      %s396 = scalar_select %p395, %s23, 1
      %s397 = smul.addr %s396, 32
      %s398 = smul.addr %s397, 8
      %s399 = scalar_lea.vmem %s7, %s398
      %p400 = pneg %p232
      %p401 = pneg %p229
      %p402 = scmp.lt.s32.totalorder %s23, 1
      %s403 = scalar_select %p402, %s23, 1
      %s404 = smul.addr %s403, 8
      %s405 = scalar_lea.vmem %s8, %s404
      %p406 = pneg %p258
      %p407 = pneg %p255
      %p408 = scmp.lt.s32.totalorder %s23, 1
      %s409 = scalar_select %p408, %s23, 1
      %s410 = smul.addr %s409, 8
      %s411 = scalar_lea.vmem %s9, %s410
      %p412 = pneg %p284
      %p413 = pneg %p281
      %p414 = scmp.lt.s32.totalorder %s23, 1
      %s415 = scalar_select %p414, %s23, 1
      %s416 = smul.addr %s415, 8
      %s417 = scalar_lea.vmem %s10, %s416
      %p418 = pneg %p310
      %p419 = pneg %p307
      %p420 = scmp.lt.s32.totalorder %s23, 1
      %s421 = scalar_select %p420, %s23, 1
      %s422 = smul.addr %s421, 8
      %s423 = scalar_lea.vmem %s11, %s422
      %p424 = scmp.lt.s32.totalorder %s23, 1
      %s425 = scalar_select %p424, %s23, 1
      %s426 = smul.addr %s425, 32
      %s427 = smul.addr %s426, 8
      %s428 = scalar_lea.vmem %s0, %s427
      %p429 = scmp.lt.s32.totalorder %s23, 1
      %s430 = scalar_select %p429, %s23, 1
      %s431 = smul.addr %s430, 32
      %s432 = smul.addr %s431, 4
      %s433 = scalar_lea.vmem %s1, %s432
      %p434 = scmp.lt.s32.totalorder %s23, 1
      %s435 = scalar_select %p434, %s23, 1
      %s436 = smul.addr %s435, 32
      %s437 = smul.addr %s436, 8
      %s438 = scalar_lea.vmem %s6, %s437
      %p439 = scmp.lt.s32.totalorder %s23, 1
      %s440 = scalar_select %p439, %s23, 1
      %s441 = smul.addr %s440, 32
      %s442 = smul.addr %s441, 8
      %s443 = scalar_lea.vmem %s7, %s442
      %p444 = scmp.lt.s32.totalorder %s23, 1
      %s445 = scalar_select %p444, %s23, 1
      %s446 = smul.addr %s445, 8
      %s447 = scalar_lea.vmem %s8, %s446
      %p448 = scmp.lt.s32.totalorder %s23, 1
      %s449 = scalar_select %p448, %s23, 1
      %s450 = smul.addr %s449, 8
      %s451 = scalar_lea.vmem %s9, %s450
      %p452 = scmp.lt.s32.totalorder %s23, 1
      %s453 = scalar_select %p452, %s23, 1
      %s454 = smul.addr %s453, 8
      %s455 = scalar_lea.vmem %s10, %s454
      %p456 = scmp.lt.s32.totalorder %s23, 1
      %s457 = scalar_select %p456, %s23, 1
      %s458 = smul.addr %s457, 8
      %s459 = scalar_lea.vmem %s11, %s458
      %v461 = vld [vmem:[%s428] sm:$0xff]
      %v462 = vld [vmem:[%s428 + $0x8] sm:$0xff]
      %v463 = vld [vmem:[%s428 + $0x10] sm:$0xff]
      %v464 = vld [vmem:[%s428 + $0x18] sm:$0xff]
      %v465 = vld [vmem:[%s428 + $0x20] sm:$0xff]
      %v466 = vld [vmem:[%s428 + $0x28] sm:$0xff]
      %v467 = vld [vmem:[%s428 + $0x30] sm:$0xff]
      %v468 = vld [vmem:[%s428 + $0x38] sm:$0xff]
      %v469 = vld [vmem:[%s428 + $0x40] sm:$0xff]
      %v470 = vld [vmem:[%s428 + $0x48] sm:$0xff]
      %v471 = vld [vmem:[%s428 + $0x50] sm:$0xff]
      %v472 = vld [vmem:[%s428 + $0x58] sm:$0xff]
      %v473 = vld [vmem:[%s428 + $0x60] sm:$0xff]
      %v474 = vld [vmem:[%s428 + $0x68] sm:$0xff]
      %v475 = vld [vmem:[%s428 + $0x70] sm:$0xff]
      %v476 = vld [vmem:[%s428 + $0x78] sm:$0xff]
      %v477 = vld [vmem:[%s428 + $0x80] sm:$0xff]
      %v478 = vld [vmem:[%s428 + $0x88] sm:$0xff]
      %v479 = vld [vmem:[%s428 + $0x90] sm:$0xff]
      %v480 = vld [vmem:[%s428 + $0x98] sm:$0xff]
      %v481 = vld [vmem:[%s428 + $0xa0] sm:$0xff]
      %v482 = vld [vmem:[%s428 + $0xa8] sm:$0xff]
      %v483 = vld [vmem:[%s428 + $0xb0] sm:$0xff]
      %v484 = vld [vmem:[%s428 + $0xb8] sm:$0xff]
      %v485 = vld [vmem:[%s428 + $0xc0] sm:$0xff]
      %v486 = vld [vmem:[%s428 + $0xc8] sm:$0xff]
      %v487 = vld [vmem:[%s428 + $0xd0] sm:$0xff]
      %v488 = vld [vmem:[%s428 + $0xd8] sm:$0xff]
      %v489 = vld [vmem:[%s428 + $0xe0] sm:$0xff]
      %v490 = vld [vmem:[%s428 + $0xe8] sm:$0xff]
      %v491 = vld [vmem:[%s428 + $0xf0] sm:$0xff]
      %v492 = vld [vmem:[%s428 + $0xf8] sm:$0xff]
      %v493 = vld [vmem:[%s2] sm:$0x1]
      %v495 = vlaneseq
      %v496 = vshrl.u32 %v495, 7
      %v497 = vsub.s32 0, %v496
      %v498 = vrot.slane %v493, %v497
      %v500 = vmul.f32 %v461, %v498
      %v501 = vmul.f32 %v462, %v498
      %v502 = vmul.f32 %v463, %v498
      %v503 = vmul.f32 %v464, %v498
      %v504 = vmul.f32 %v465, %v498
      %v505 = vmul.f32 %v466, %v498
      %v506 = vmul.f32 %v467, %v498
      %v507 = vmul.f32 %v468, %v498
      %v508 = vmul.f32 %v469, %v498
      %v509 = vmul.f32 %v470, %v498
      %v510 = vmul.f32 %v471, %v498
      %v511 = vmul.f32 %v472, %v498
      %v512 = vmul.f32 %v473, %v498
      %v513 = vmul.f32 %v474, %v498
      %v514 = vmul.f32 %v475, %v498
      %v515 = vmul.f32 %v476, %v498
      %v516 = vmul.f32 %v477, %v498
      %v517 = vmul.f32 %v478, %v498
      %v518 = vmul.f32 %v479, %v498
      %v519 = vmul.f32 %v480, %v498
      %v520 = vmul.f32 %v481, %v498
      %v521 = vmul.f32 %v482, %v498
      %v522 = vmul.f32 %v483, %v498
      %v523 = vmul.f32 %v484, %v498
      %v524 = vmul.f32 %v485, %v498
      %v525 = vmul.f32 %v486, %v498
      %v526 = vmul.f32 %v487, %v498
      %v527 = vmul.f32 %v488, %v498
      %v528 = vmul.f32 %v489, %v498
      %v529 = vmul.f32 %v490, %v498
      %v530 = vmul.f32 %v491, %v498
      %v531 = vmul.f32 %v492, %v498
      %v532 = vld [vmem:[%s3] sm:$0x1]
      %v534 = vlaneseq
      %v535 = vshrl.u32 %v534, 7
      %v536 = vsub.s32 0, %v535
      %v537 = vrot.slane %v532, %v536
      %v539 = vadd.f32 %v500, %v537
      %v540 = vadd.f32 %v501, %v537
      %v541 = vadd.f32 %v502, %v537
      %v542 = vadd.f32 %v503, %v537
      %v543 = vadd.f32 %v504, %v537
      %v544 = vadd.f32 %v505, %v537
      %v545 = vadd.f32 %v506, %v537
      %v546 = vadd.f32 %v507, %v537
      %v547 = vadd.f32 %v508, %v537
      %v548 = vadd.f32 %v509, %v537
      %v549 = vadd.f32 %v510, %v537
      %v550 = vadd.f32 %v511, %v537
      %v551 = vadd.f32 %v512, %v537
      %v552 = vadd.f32 %v513, %v537
      %v553 = vadd.f32 %v514, %v537
      %v554 = vadd.f32 %v515, %v537
      %v555 = vadd.f32 %v516, %v537
      %v556 = vadd.f32 %v517, %v537
      %v557 = vadd.f32 %v518, %v537
      %v558 = vadd.f32 %v519, %v537
      %v559 = vadd.f32 %v520, %v537
      %v560 = vadd.f32 %v521, %v537
      %v561 = vadd.f32 %v522, %v537
      %v562 = vadd.f32 %v523, %v537
      %v563 = vadd.f32 %v524, %v537
      %v564 = vadd.f32 %v525, %v537
      %v565 = vadd.f32 %v526, %v537
      %v566 = vadd.f32 %v527, %v537
      %v567 = vadd.f32 %v528, %v537
      %v568 = vadd.f32 %v529, %v537
      %v569 = vadd.f32 %v530, %v537
      %v570 = vadd.f32 %v531, %v537
      %v571 = vmax.f32 %v539, 0.0
      %v572 = vmax.f32 %v540, 0.0
      %v573 = vmax.f32 %v541, 0.0
      %v574 = vmax.f32 %v542, 0.0
      %v575 = vmax.f32 %v543, 0.0
      %v576 = vmax.f32 %v544, 0.0
      %v577 = vmax.f32 %v545, 0.0
      %v578 = vmax.f32 %v546, 0.0
      %v579 = vmax.f32 %v547, 0.0
      %v580 = vmax.f32 %v548, 0.0
      %v581 = vmax.f32 %v549, 0.0
      %v582 = vmax.f32 %v550, 0.0
      %v583 = vmax.f32 %v551, 0.0
      %v584 = vmax.f32 %v552, 0.0
      %v585 = vmax.f32 %v553, 0.0
      %v586 = vmax.f32 %v554, 0.0
      %v587 = vmax.f32 %v555, 0.0
      %v588 = vmax.f32 %v556, 0.0
      %v589 = vmax.f32 %v557, 0.0
      %v590 = vmax.f32 %v558, 0.0
      %v591 = vmax.f32 %v559, 0.0
      %v592 = vmax.f32 %v560, 0.0
      %v593 = vmax.f32 %v561, 0.0
      %v594 = vmax.f32 %v562, 0.0
      %v595 = vmax.f32 %v563, 0.0
      %v596 = vmax.f32 %v564, 0.0
      %v597 = vmax.f32 %v565, 0.0
      %v598 = vmax.f32 %v566, 0.0
      %v599 = vmax.f32 %v567, 0.0
      %v600 = vmax.f32 %v568, 0.0
      %v601 = vmax.f32 %v569, 0.0
      %v602 = vmax.f32 %v570, 0.0
      %v603 = vpack.c.bf16 %v572, %v571
      %v604 = vpack.c.bf16 %v574, %v573
      %v605 = vpack.c.bf16 %v576, %v575
      %v606 = vpack.c.bf16 %v578, %v577
      %v607 = vpack.c.bf16 %v580, %v579
      %v608 = vpack.c.bf16 %v582, %v581
      %v609 = vpack.c.bf16 %v584, %v583
      %v610 = vpack.c.bf16 %v586, %v585
      %v611 = vpack.c.bf16 %v588, %v587
      %v612 = vpack.c.bf16 %v590, %v589
      %v613 = vpack.c.bf16 %v592, %v591
      %v614 = vpack.c.bf16 %v594, %v593
      %v615 = vpack.c.bf16 %v596, %v595
      %v616 = vpack.c.bf16 %v598, %v597
      %v617 = vpack.c.bf16 %v600, %v599
      %v618 = vpack.c.bf16 %v602, %v601
      %v619 = vld [vmem:[%s4] sm:$0xf]
      %v620 = vld [vmem:[%s4 + $0x4] sm:$0xf]
      %v621 = vld [vmem:[%s4 + $0x8] sm:$0xf]
      %v622 = vld [vmem:[%s4 + $0xc] sm:$0xf]
      %v623 = vld [vmem:[%s4 + $0x10] sm:$0xf]
      %v624 = vld [vmem:[%s4 + $0x14] sm:$0xf]
      %v625 = vld [vmem:[%s4 + $0x18] sm:$0xf]
      %v626 = vld [vmem:[%s4 + $0x1c] sm:$0xf]
      %v627 = vld [vmem:[%s4 + $0x20] sm:$0xf]
      %v628 = vld [vmem:[%s4 + $0x24] sm:$0xf]
      %v629 = vld [vmem:[%s4 + $0x28] sm:$0xf]
      %v630 = vld [vmem:[%s4 + $0x2c] sm:$0xf]
      %v631 = vld [vmem:[%s4 + $0x30] sm:$0xf]
      %v632 = vld [vmem:[%s4 + $0x34] sm:$0xf]
      %v633 = vld [vmem:[%s4 + $0x38] sm:$0xf]
      %v634 = vld [vmem:[%s4 + $0x3c] sm:$0xf]
      %v651 = vunpack.c.l.b16 %v619
      %v652 = vunpack.c.l.b16 %v620
      %v653 = vunpack.c.l.b16 %v621
      %v654 = vunpack.c.l.b16 %v622
      %v655 = vunpack.c.l.b16 %v623
      %v656 = vunpack.c.l.b16 %v624
      %v657 = vunpack.c.l.b16 %v625
      %v658 = vunpack.c.l.b16 %v626
      %v659 = vunpack.c.l.b16 %v627
      %v660 = vunpack.c.l.b16 %v628
      %v661 = vunpack.c.l.b16 %v629
      %v662 = vunpack.c.l.b16 %v630
      %v663 = vunpack.c.l.b16 %v631
      %v664 = vunpack.c.l.b16 %v632
      %v665 = vunpack.c.l.b16 %v633
      %v666 = vunpack.c.l.b16 %v634
      %v667 = vpack.c.b16 %v652, %v651
      %v668 = vpack.c.b16 %v654, %v653
      %v669 = vpack.c.b16 %v656, %v655
      %v670 = vpack.c.b16 %v658, %v657
      %v671 = vpack.c.b16 %v660, %v659
      %v672 = vpack.c.b16 %v662, %v661
      %v673 = vpack.c.b16 %v664, %v663
      %v674 = vpack.c.b16 %v666, %v665
      %683 = vmatprep.subr.bf16.mxu0 0
      %684 = vmatpush1.bf16.msra.mxu0 %v667
      %685 = vmatprep.subr.bf16.mxu0 0
      %686 = vmatpush1.bf16.msra.mxu0 %v668
      %687 = vmatprep.subr.bf16.mxu0 0
      %688 = vmatpush1.bf16.msra.mxu0 %v669
      %689 = vmatprep.subr.bf16.mxu0 0
      %690 = vmatpush1.bf16.msra.mxu0 %v670
      %691 = vmatprep.subr.bf16.mxu0 0
      %692 = vmatpush1.bf16.msra.mxu0 %v671
      %693 = vmatprep.subr.bf16.mxu0 0
      %694 = vmatpush1.bf16.msra.mxu0 %v672
      %695 = vmatprep.subr.bf16.mxu0 0
      %696 = vmatpush1.bf16.msra.mxu0 %v673
      %697 = vmatprep.subr.bf16.mxu0 0
      %698 = vmatpush1.bf16.msra.mxu0 %v674
      %699 = vmatprep.subr.bf16.mxu0 0
      %700 = vmatpush1.bf16.msra.mxu0 0
      %701 = vmatprep.subr.bf16.mxu0 0
      %702 = vmatpush1.bf16.msra.mxu0 0
      %703 = vmatprep.subr.bf16.mxu0 0
      %704 = vmatpush1.bf16.msra.mxu0 0
      %705 = vmatprep.subr.bf16.mxu0 0
      %706 = vmatpush1.bf16.msra.mxu0 0
      %707 = vmatprep.subr.bf16.mxu0 0
      %708 = vmatpush1.bf16.msra.mxu0 0
      %709 = vmatprep.subr.bf16.mxu0 0
      %710 = vmatpush1.bf16.msra.mxu0 0
      %711 = vmatprep.subr.bf16.mxu0 0
      %712 = vmatpush1.bf16.msra.mxu0 0
      %713 = vmatprep.subr.bf16.mxu0 0
      %714 = vmatpush1.bf16.msra.mxu0 0
      %715 = vmatprep.mubr.bf16.mxu0 0
      %716 = vmatmul.mubr.bf16.gmra.mrb[0].mxu0 %v603
      %v717 = vpop.f32.mrb[0].mxu0
      %v718 = vadd.f32 0.0, %v717
      %v719 = vpop.f32.mrb[0].mxu0
      %v720 = vpop.f32.mrb[0].mxu0
      %v721 = vadd.f32 0.0, %v720
      %v722 = vpop.f32.mrb[0].mxu0
      %723 = vmatprep.mubr.bf16.mxu0 0
      %724 = vmatmul.mubr.bf16.gmra.mrb[0].mxu0 %v604
      %v725 = vpop.f32.mrb[0].mxu0
      %v726 = vadd.f32 0.0, %v725
      %v727 = vpop.f32.mrb[0].mxu0
      %v728 = vpop.f32.mrb[0].mxu0
      %v729 = vadd.f32 0.0, %v728
      %v730 = vpop.f32.mrb[0].mxu0
      %731 = vmatprep.mubr.bf16.mxu0 0
      %732 = vmatmul.mubr.bf16.gmra.mrb[0].mxu0 %v605
      %v733 = vpop.f32.mrb[0].mxu0
      %v734 = vadd.f32 0.0, %v733
      %v735 = vpop.f32.mrb[0].mxu0
      %v736 = vpop.f32.mrb[0].mxu0
      %v737 = vadd.f32 0.0, %v736
      %v738 = vpop.f32.mrb[0].mxu0
      %739 = vmatprep.mubr.bf16.mxu0 0
      %740 = vmatmul.mubr.bf16.gmra.mrb[0].mxu0 %v606
      %v741 = vpop.f32.mrb[0].mxu0
      %v742 = vadd.f32 0.0, %v741
      %v743 = vpop.f32.mrb[0].mxu0
      %v744 = vpop.f32.mrb[0].mxu0
      %v745 = vadd.f32 0.0, %v744
      %v746 = vpop.f32.mrb[0].mxu0
      %747 = vmatprep.mubr.bf16.mxu0 0
      %748 = vmatmul.mubr.bf16.gmra.mrb[0].mxu0 %v607
      %v749 = vpop.f32.mrb[0].mxu0
      %v750 = vadd.f32 0.0, %v749
      %v751 = vpop.f32.mrb[0].mxu0
      %v752 = vpop.f32.mrb[0].mxu0
      %v753 = vadd.f32 0.0, %v752
      %v754 = vpop.f32.mrb[0].mxu0
      %755 = vmatprep.mubr.bf16.mxu0 0
      %756 = vmatmul.mubr.bf16.gmra.mrb[0].mxu0 %v608
      %v757 = vpop.f32.mrb[0].mxu0
      %v758 = vadd.f32 0.0, %v757
      %v759 = vpop.f32.mrb[0].mxu0
      %v760 = vpop.f32.mrb[0].mxu0
      %v761 = vadd.f32 0.0, %v760
      %v762 = vpop.f32.mrb[0].mxu0
      %763 = vmatprep.mubr.bf16.mxu0 0
      %764 = vmatmul.mubr.bf16.gmra.mrb[0].mxu0 %v609
      %v765 = vpop.f32.mrb[0].mxu0
      %v766 = vadd.f32 0.0, %v765
      %v767 = vpop.f32.mrb[0].mxu0
      %v768 = vpop.f32.mrb[0].mxu0
      %v769 = vadd.f32 0.0, %v768
      %v770 = vpop.f32.mrb[0].mxu0
      %771 = vmatprep.mubr.bf16.mxu0 0
      %772 = vmatmul.mubr.bf16.gmra.mrb[0].mxu0 %v610
      %v773 = vpop.f32.mrb[0].mxu0
      %v774 = vadd.f32 0.0, %v773
      %v775 = vpop.f32.mrb[0].mxu0
      %v776 = vpop.f32.mrb[0].mxu0
      %v777 = vadd.f32 0.0, %v776
      %v778 = vpop.f32.mrb[0].mxu0
      %779 = vmatprep.mubr.bf16.mxu0 0
      %780 = vmatmul.mubr.bf16.gmra.mrb[0].mxu0 %v611
      %v781 = vpop.f32.mrb[0].mxu0
      %v782 = vadd.f32 0.0, %v781
      %v783 = vpop.f32.mrb[0].mxu0
      %v784 = vpop.f32.mrb[0].mxu0
      %v785 = vadd.f32 0.0, %v784
      %v786 = vpop.f32.mrb[0].mxu0
      %787 = vmatprep.mubr.bf16.mxu0 0
      %788 = vmatmul.mubr.bf16.gmra.mrb[0].mxu0 %v612
      %v789 = vpop.f32.mrb[0].mxu0
      %v790 = vadd.f32 0.0, %v789
      %v791 = vpop.f32.mrb[0].mxu0
      %v792 = vpop.f32.mrb[0].mxu0
      %v793 = vadd.f32 0.0, %v792
      %v794 = vpop.f32.mrb[0].mxu0
      %795 = vmatprep.mubr.bf16.mxu0 0
      %796 = vmatmul.mubr.bf16.gmra.mrb[0].mxu0 %v613
      %v797 = vpop.f32.mrb[0].mxu0
      %v798 = vadd.f32 0.0, %v797
      %v799 = vpop.f32.mrb[0].mxu0
      %v800 = vpop.f32.mrb[0].mxu0
      %v801 = vadd.f32 0.0, %v800
      %v802 = vpop.f32.mrb[0].mxu0
      %803 = vmatprep.mubr.bf16.mxu0 0
      %804 = vmatmul.mubr.bf16.gmra.mrb[0].mxu0 %v614
      %v805 = vpop.f32.mrb[0].mxu0
      %v806 = vadd.f32 0.0, %v805
      %v807 = vpop.f32.mrb[0].mxu0
      %v808 = vpop.f32.mrb[0].mxu0
      %v809 = vadd.f32 0.0, %v808
      %v810 = vpop.f32.mrb[0].mxu0
      %811 = vmatprep.mubr.bf16.mxu0 0
      %812 = vmatmul.mubr.bf16.gmra.mrb[0].mxu0 %v615
      %v813 = vpop.f32.mrb[0].mxu0
      %v814 = vadd.f32 0.0, %v813
      %v815 = vpop.f32.mrb[0].mxu0
      %v816 = vpop.f32.mrb[0].mxu0
      %v817 = vadd.f32 0.0, %v816
      %v818 = vpop.f32.mrb[0].mxu0
      %819 = vmatprep.mubr.bf16.mxu0 0
      %820 = vmatmul.mubr.bf16.gmra.mrb[0].mxu0 %v616
      %v821 = vpop.f32.mrb[0].mxu0
      %v822 = vadd.f32 0.0, %v821
      %v823 = vpop.f32.mrb[0].mxu0
      %v824 = vpop.f32.mrb[0].mxu0
      %v825 = vadd.f32 0.0, %v824
      %v826 = vpop.f32.mrb[0].mxu0
      %827 = vmatprep.mubr.bf16.mxu0 0
      %828 = vmatmul.mubr.bf16.gmra.mrb[0].mxu0 %v617
      %v829 = vpop.f32.mrb[0].mxu0
      %v830 = vadd.f32 0.0, %v829
      %v831 = vpop.f32.mrb[0].mxu0
      %v832 = vpop.f32.mrb[0].mxu0
      %v833 = vadd.f32 0.0, %v832
      %v834 = vpop.f32.mrb[0].mxu0
      %835 = vmatprep.mubr.bf16.mxu0 0
      %836 = vmatmul.mubr.bf16.gmra.mrb[0].mxu0 %v618
      %v837 = vpop.f32.mrb[0].mxu0
      %v838 = vadd.f32 0.0, %v837
      %v839 = vpop.f32.mrb[0].mxu0
      %v840 = vpop.f32.mrb[0].mxu0
      %v841 = vadd.f32 0.0, %v840
      %v842 = vpop.f32.mrb[0].mxu0
      %843 = vdwg.mxu0
      %v844 = vld [vmem:[%s433] sm:$0xf]
      %v845 = vld [vmem:[%s433 + $0x4] sm:$0xf]
      %v846 = vld [vmem:[%s433 + $0x8] sm:$0xf]
      %v847 = vld [vmem:[%s433 + $0xc] sm:$0xf]
      %v848 = vld [vmem:[%s433 + $0x10] sm:$0xf]
      %v849 = vld [vmem:[%s433 + $0x14] sm:$0xf]
      %v850 = vld [vmem:[%s433 + $0x18] sm:$0xf]
      %v851 = vld [vmem:[%s433 + $0x1c] sm:$0xf]
      %v852 = vld [vmem:[%s433 + $0x20] sm:$0xf]
      %v853 = vld [vmem:[%s433 + $0x24] sm:$0xf]
      %v854 = vld [vmem:[%s433 + $0x28] sm:$0xf]
      %v855 = vld [vmem:[%s433 + $0x2c] sm:$0xf]
      %v856 = vld [vmem:[%s433 + $0x30] sm:$0xf]
      %v857 = vld [vmem:[%s433 + $0x34] sm:$0xf]
      %v858 = vld [vmem:[%s433 + $0x38] sm:$0xf]
      %v859 = vld [vmem:[%s433 + $0x3c] sm:$0xf]
      %v860 = vld [vmem:[%s433 + $0x40] sm:$0xf]
      %v861 = vld [vmem:[%s433 + $0x44] sm:$0xf]
      %v862 = vld [vmem:[%s433 + $0x48] sm:$0xf]
      %v863 = vld [vmem:[%s433 + $0x4c] sm:$0xf]
      %v864 = vld [vmem:[%s433 + $0x50] sm:$0xf]
      %v865 = vld [vmem:[%s433 + $0x54] sm:$0xf]
      %v866 = vld [vmem:[%s433 + $0x58] sm:$0xf]
      %v867 = vld [vmem:[%s433 + $0x5c] sm:$0xf]
      %v868 = vld [vmem:[%s433 + $0x60] sm:$0xf]
      %v869 = vld [vmem:[%s433 + $0x64] sm:$0xf]
      %v870 = vld [vmem:[%s433 + $0x68] sm:$0xf]
      %v871 = vld [vmem:[%s433 + $0x6c] sm:$0xf]
      %v872 = vld [vmem:[%s433 + $0x70] sm:$0xf]
      %v873 = vld [vmem:[%s433 + $0x74] sm:$0xf]
      %v874 = vld [vmem:[%s433 + $0x78] sm:$0xf]
      %v875 = vld [vmem:[%s433 + $0x7c] sm:$0xf]
      %v876 = vld [vmem:[%s5] sm:$0xf]
      %v877 = vld [vmem:[%s5 + $0x4] sm:$0xf]
      %v878 = vld [vmem:[%s5 + $0x8] sm:$0xf]
      %v879 = vld [vmem:[%s5 + $0xc] sm:$0xf]
      %v880 = vld [vmem:[%s5 + $0x10] sm:$0xf]
      %v881 = vld [vmem:[%s5 + $0x14] sm:$0xf]
      %v882 = vld [vmem:[%s5 + $0x18] sm:$0xf]
      %v883 = vld [vmem:[%s5 + $0x1c] sm:$0xf]
      %v884 = vld [vmem:[%s5 + $0x20] sm:$0xf]
      %v885 = vld [vmem:[%s5 + $0x24] sm:$0xf]
      %v886 = vld [vmem:[%s5 + $0x28] sm:$0xf]
      %v887 = vld [vmem:[%s5 + $0x2c] sm:$0xf]
      %v888 = vld [vmem:[%s5 + $0x30] sm:$0xf]
      %v889 = vld [vmem:[%s5 + $0x34] sm:$0xf]
      %v890 = vld [vmem:[%s5 + $0x38] sm:$0xf]
      %v891 = vld [vmem:[%s5 + $0x3c] sm:$0xf]
      %v924 = vunpack.c.l.b16 %v844
      %v925 = vunpack.c.l.b16 %v845
      %v926 = vunpack.c.l.b16 %v846
      %v927 = vunpack.c.l.b16 %v847
      %v928 = vunpack.c.l.b16 %v848
      %v929 = vunpack.c.l.b16 %v849
      %v930 = vunpack.c.l.b16 %v850
      %v931 = vunpack.c.l.b16 %v851
      %v932 = vunpack.c.l.b16 %v852
      %v933 = vunpack.c.l.b16 %v853
      %v934 = vunpack.c.l.b16 %v854
      %v935 = vunpack.c.l.b16 %v855
      %v936 = vunpack.c.l.b16 %v856
      %v937 = vunpack.c.l.b16 %v857
      %v938 = vunpack.c.l.b16 %v858
      %v939 = vunpack.c.l.b16 %v859
      %v940 = vunpack.c.l.b16 %v860
      %v941 = vunpack.c.l.b16 %v861
      %v942 = vunpack.c.l.b16 %v862
      %v943 = vunpack.c.l.b16 %v863
      %v944 = vunpack.c.l.b16 %v864
      %v945 = vunpack.c.l.b16 %v865
      %v946 = vunpack.c.l.b16 %v866
      %v947 = vunpack.c.l.b16 %v867
      %v948 = vunpack.c.l.b16 %v868
      %v949 = vunpack.c.l.b16 %v869
      %v950 = vunpack.c.l.b16 %v870
      %v951 = vunpack.c.l.b16 %v871
      %v952 = vunpack.c.l.b16 %v872
      %v953 = vunpack.c.l.b16 %v873
      %v954 = vunpack.c.l.b16 %v874
      %v955 = vunpack.c.l.b16 %v875
      %v956 = vpack.c.b16 %v925, %v924
      %v957 = vpack.c.b16 %v927, %v926
      %v958 = vpack.c.b16 %v929, %v928
      %v959 = vpack.c.b16 %v931, %v930
      %v960 = vpack.c.b16 %v933, %v932
      %v961 = vpack.c.b16 %v935, %v934
      %v962 = vpack.c.b16 %v937, %v936
      %v963 = vpack.c.b16 %v939, %v938
      %v964 = vpack.c.b16 %v941, %v940
      %v965 = vpack.c.b16 %v943, %v942
      %v966 = vpack.c.b16 %v945, %v944
      %v967 = vpack.c.b16 %v947, %v946
      %v968 = vpack.c.b16 %v949, %v948
      %v969 = vpack.c.b16 %v951, %v950
      %v970 = vpack.c.b16 %v953, %v952
      %v971 = vpack.c.b16 %v955, %v954
      %v1004 = vunpack.c.l.b16 %v876
      %v1005 = vunpack.c.l.b16 %v877
      %v1006 = vunpack.c.l.b16 %v878
      %v1007 = vunpack.c.l.b16 %v879
      %v1008 = vunpack.c.l.b16 %v880
      %v1009 = vunpack.c.l.b16 %v881
      %v1010 = vunpack.c.l.b16 %v882
      %v1011 = vunpack.c.l.b16 %v883
      %v1012 = vunpack.c.l.b16 %v884
      %v1013 = vunpack.c.l.b16 %v885
      %v1014 = vunpack.c.l.b16 %v886
      %v1015 = vunpack.c.l.b16 %v887
      %v1016 = vunpack.c.l.b16 %v888
      %v1017 = vunpack.c.l.b16 %v889
      %v1018 = vunpack.c.l.b16 %v890
      %v1019 = vunpack.c.l.b16 %v891
      %v1020 = vpack.c.b16 %v1005, %v1004
      %v1021 = vpack.c.b16 %v1007, %v1006
      %v1022 = vpack.c.b16 %v1009, %v1008
      %v1023 = vpack.c.b16 %v1011, %v1010
      %v1024 = vpack.c.b16 %v1013, %v1012
      %v1025 = vpack.c.b16 %v1015, %v1014
      %v1026 = vpack.c.b16 %v1017, %v1016
      %v1027 = vpack.c.b16 %v1019, %v1018
      %1036 = vmatprep.subr.bf16.mxu0 0
      %1037 = vmatpush1.bf16.msra.mxu0 %v1020
      %1038 = vmatprep.subr.bf16.mxu0 0
      %1039 = vmatpush1.bf16.msra.mxu0 %v1021
      %1040 = vmatprep.subr.bf16.mxu0 0
      %1041 = vmatpush1.bf16.msra.mxu0 %v1022
      %1042 = vmatprep.subr.bf16.mxu0 0
      %1043 = vmatpush1.bf16.msra.mxu0 %v1023
      %1044 = vmatprep.subr.bf16.mxu0 0
      %1045 = vmatpush1.bf16.msra.mxu0 %v1024
      %1046 = vmatprep.subr.bf16.mxu0 0
      %1047 = vmatpush1.bf16.msra.mxu0 %v1025
      %1048 = vmatprep.subr.bf16.mxu0 0
      %1049 = vmatpush1.bf16.msra.mxu0 %v1026
      %1050 = vmatprep.subr.bf16.mxu0 0
      %1051 = vmatpush1.bf16.msra.mxu0 %v1027
      %1052 = vmatprep.subr.bf16.mxu0 0
      %1053 = vmatpush1.bf16.msra.mxu0 0
      %1054 = vmatprep.subr.bf16.mxu0 0
      %1055 = vmatpush1.bf16.msra.mxu0 0
      %1056 = vmatprep.subr.bf16.mxu0 0
      %1057 = vmatpush1.bf16.msra.mxu0 0
      %1058 = vmatprep.subr.bf16.mxu0 0
      %1059 = vmatpush1.bf16.msra.mxu0 0
      %1060 = vmatprep.subr.bf16.mxu0 0
      %1061 = vmatpush1.bf16.msra.mxu0 0
      %1062 = vmatprep.subr.bf16.mxu0 0
      %1063 = vmatpush1.bf16.msra.mxu0 0
      %1064 = vmatprep.subr.bf16.mxu0 0
      %1065 = vmatpush1.bf16.msra.mxu0 0
      %1066 = vmatprep.subr.bf16.mxu0 0
      %1067 = vmatpush1.bf16.msra.mxu0 0
      %1068 = vmatprep.mubr.bf16.mxu0 0
      %1069 = vmatmul.mubr.bf16.gmra.mrb[0].mxu0 %v956
      %v1070 = vpop.f32.mrb[0].mxu0
      %v1071 = vadd.f32 0.0, %v1070
      %v1072 = vpop.f32.mrb[0].mxu0
      %v1073 = vpop.f32.mrb[0].mxu0
      %v1074 = vadd.f32 0.0, %v1073
      %v1075 = vpop.f32.mrb[0].mxu0
      %1076 = vmatprep.mubr.bf16.mxu0 0
      %1077 = vmatmul.mubr.bf16.gmra.mrb[0].mxu0 %v957
      %v1078 = vpop.f32.mrb[0].mxu0
      %v1079 = vadd.f32 0.0, %v1078
      %v1080 = vpop.f32.mrb[0].mxu0
      %v1081 = vpop.f32.mrb[0].mxu0
      %v1082 = vadd.f32 0.0, %v1081
      %v1083 = vpop.f32.mrb[0].mxu0
      %1084 = vmatprep.mubr.bf16.mxu0 0
      %1085 = vmatmul.mubr.bf16.gmra.mrb[0].mxu0 %v958
      %v1086 = vpop.f32.mrb[0].mxu0
      %v1087 = vadd.f32 0.0, %v1086
      %v1088 = vpop.f32.mrb[0].mxu0
      %v1089 = vpop.f32.mrb[0].mxu0
      %v1090 = vadd.f32 0.0, %v1089
      %v1091 = vpop.f32.mrb[0].mxu0
      %1092 = vmatprep.mubr.bf16.mxu0 0
      %1093 = vmatmul.mubr.bf16.gmra.mrb[0].mxu0 %v959
      %v1094 = vpop.f32.mrb[0].mxu0
      %v1095 = vadd.f32 0.0, %v1094
      %v1096 = vpop.f32.mrb[0].mxu0
      %v1097 = vpop.f32.mrb[0].mxu0
      %v1098 = vadd.f32 0.0, %v1097
      %v1099 = vpop.f32.mrb[0].mxu0
      %1100 = vmatprep.mubr.bf16.mxu0 0
      %1101 = vmatmul.mubr.bf16.gmra.mrb[0].mxu0 %v960
      %v1102 = vpop.f32.mrb[0].mxu0
      %v1103 = vadd.f32 0.0, %v1102
      %v1104 = vpop.f32.mrb[0].mxu0
      %v1105 = vpop.f32.mrb[0].mxu0
      %v1106 = vadd.f32 0.0, %v1105
      %v1107 = vpop.f32.mrb[0].mxu0
      %1108 = vmatprep.mubr.bf16.mxu0 0
      %1109 = vmatmul.mubr.bf16.gmra.mrb[0].mxu0 %v961
      %v1110 = vpop.f32.mrb[0].mxu0
      %v1111 = vadd.f32 0.0, %v1110
      %v1112 = vpop.f32.mrb[0].mxu0
      %v1113 = vpop.f32.mrb[0].mxu0
      %v1114 = vadd.f32 0.0, %v1113
      %v1115 = vpop.f32.mrb[0].mxu0
      %1116 = vmatprep.mubr.bf16.mxu0 0
      %1117 = vmatmul.mubr.bf16.gmra.mrb[0].mxu0 %v962
      %v1118 = vpop.f32.mrb[0].mxu0
      %v1119 = vadd.f32 0.0, %v1118
      %v1120 = vpop.f32.mrb[0].mxu0
      %v1121 = vpop.f32.mrb[0].mxu0
      %v1122 = vadd.f32 0.0, %v1121
      %v1123 = vpop.f32.mrb[0].mxu0
      %1124 = vmatprep.mubr.bf16.mxu0 0
      %1125 = vmatmul.mubr.bf16.gmra.mrb[0].mxu0 %v963
      %v1126 = vpop.f32.mrb[0].mxu0
      %v1127 = vadd.f32 0.0, %v1126
      %v1128 = vpop.f32.mrb[0].mxu0
      %v1129 = vpop.f32.mrb[0].mxu0
      %v1130 = vadd.f32 0.0, %v1129
      %v1131 = vpop.f32.mrb[0].mxu0
      %1132 = vmatprep.mubr.bf16.mxu0 0
      %1133 = vmatmul.mubr.bf16.gmra.mrb[0].mxu0 %v964
      %v1134 = vpop.f32.mrb[0].mxu0
      %v1135 = vadd.f32 0.0, %v1134
      %v1136 = vpop.f32.mrb[0].mxu0
      %v1137 = vpop.f32.mrb[0].mxu0
      %v1138 = vadd.f32 0.0, %v1137
      %v1139 = vpop.f32.mrb[0].mxu0
      %1140 = vmatprep.mubr.bf16.mxu0 0
      %1141 = vmatmul.mubr.bf16.gmra.mrb[0].mxu0 %v965
      %v1142 = vpop.f32.mrb[0].mxu0
      %v1143 = vadd.f32 0.0, %v1142
      %v1144 = vpop.f32.mrb[0].mxu0
      %v1145 = vpop.f32.mrb[0].mxu0
      %v1146 = vadd.f32 0.0, %v1145
      %v1147 = vpop.f32.mrb[0].mxu0
      %1148 = vmatprep.mubr.bf16.mxu0 0
      %1149 = vmatmul.mubr.bf16.gmra.mrb[0].mxu0 %v966
      %v1150 = vpop.f32.mrb[0].mxu0
      %v1151 = vadd.f32 0.0, %v1150
      %v1152 = vpop.f32.mrb[0].mxu0
      %v1153 = vpop.f32.mrb[0].mxu0
      %v1154 = vadd.f32 0.0, %v1153
      %v1155 = vpop.f32.mrb[0].mxu0
      %1156 = vmatprep.mubr.bf16.mxu0 0
      %1157 = vmatmul.mubr.bf16.gmra.mrb[0].mxu0 %v967
      %v1158 = vpop.f32.mrb[0].mxu0
      %v1159 = vadd.f32 0.0, %v1158
      %v1160 = vpop.f32.mrb[0].mxu0
      %v1161 = vpop.f32.mrb[0].mxu0
      %v1162 = vadd.f32 0.0, %v1161
      %v1163 = vpop.f32.mrb[0].mxu0
      %1164 = vmatprep.mubr.bf16.mxu0 0
      %1165 = vmatmul.mubr.bf16.gmra.mrb[0].mxu0 %v968
      %v1166 = vpop.f32.mrb[0].mxu0
      %v1167 = vadd.f32 0.0, %v1166
      %v1168 = vpop.f32.mrb[0].mxu0
      %v1169 = vpop.f32.mrb[0].mxu0
      %v1170 = vadd.f32 0.0, %v1169
      %v1171 = vpop.f32.mrb[0].mxu0
      %1172 = vmatprep.mubr.bf16.mxu0 0
      %1173 = vmatmul.mubr.bf16.gmra.mrb[0].mxu0 %v969
      %v1174 = vpop.f32.mrb[0].mxu0
      %v1175 = vadd.f32 0.0, %v1174
      %v1176 = vpop.f32.mrb[0].mxu0
      %v1177 = vpop.f32.mrb[0].mxu0
      %v1178 = vadd.f32 0.0, %v1177
      %v1179 = vpop.f32.mrb[0].mxu0
      %1180 = vmatprep.mubr.bf16.mxu0 0
      %1181 = vmatmul.mubr.bf16.gmra.mrb[0].mxu0 %v970
      %v1182 = vpop.f32.mrb[0].mxu0
      %v1183 = vadd.f32 0.0, %v1182
      %v1184 = vpop.f32.mrb[0].mxu0
      %v1185 = vpop.f32.mrb[0].mxu0
      %v1186 = vadd.f32 0.0, %v1185
      %v1187 = vpop.f32.mrb[0].mxu0
      %1188 = vmatprep.mubr.bf16.mxu0 0
      %1189 = vmatmul.mubr.bf16.gmra.mrb[0].mxu0 %v971
      %v1190 = vpop.f32.mrb[0].mxu0
      %v1191 = vadd.f32 0.0, %v1190
      %v1192 = vpop.f32.mrb[0].mxu0
      %v1193 = vpop.f32.mrb[0].mxu0
      %v1194 = vadd.f32 0.0, %v1193
      %v1195 = vpop.f32.mrb[0].mxu0
      %1196 = vdwg.mxu0
      %1197 = vst [vmem:[%s438] sm:$0xff] %v718
      %1198 = vst [vmem:[%s438 + $0x8] sm:$0xff] %v721
      %1199 = vst [vmem:[%s438 + $0x10] sm:$0xff] %v726
      %1200 = vst [vmem:[%s438 + $0x18] sm:$0xff] %v729
      %1201 = vst [vmem:[%s438 + $0x20] sm:$0xff] %v734
      %1202 = vst [vmem:[%s438 + $0x28] sm:$0xff] %v737
      %1203 = vst [vmem:[%s438 + $0x30] sm:$0xff] %v742
      %1204 = vst [vmem:[%s438 + $0x38] sm:$0xff] %v745
      %1205 = vst [vmem:[%s438 + $0x40] sm:$0xff] %v750
      %1206 = vst [vmem:[%s438 + $0x48] sm:$0xff] %v753
      %1207 = vst [vmem:[%s438 + $0x50] sm:$0xff] %v758
      %1208 = vst [vmem:[%s438 + $0x58] sm:$0xff] %v761
      %1209 = vst [vmem:[%s438 + $0x60] sm:$0xff] %v766
      %1210 = vst [vmem:[%s438 + $0x68] sm:$0xff] %v769
      %1211 = vst [vmem:[%s438 + $0x70] sm:$0xff] %v774
      %1212 = vst [vmem:[%s438 + $0x78] sm:$0xff] %v777
      %1213 = vst [vmem:[%s438 + $0x80] sm:$0xff] %v782
      %1214 = vst [vmem:[%s438 + $0x88] sm:$0xff] %v785
      %1215 = vst [vmem:[%s438 + $0x90] sm:$0xff] %v790
      %1216 = vst [vmem:[%s438 + $0x98] sm:$0xff] %v793
      %1217 = vst [vmem:[%s438 + $0xa0] sm:$0xff] %v798
      %1218 = vst [vmem:[%s438 + $0xa8] sm:$0xff] %v801
      %1219 = vst [vmem:[%s438 + $0xb0] sm:$0xff] %v806
      %1220 = vst [vmem:[%s438 + $0xb8] sm:$0xff] %v809
      %1221 = vst [vmem:[%s438 + $0xc0] sm:$0xff] %v814
      %1222 = vst [vmem:[%s438 + $0xc8] sm:$0xff] %v817
      %1223 = vst [vmem:[%s438 + $0xd0] sm:$0xff] %v822
      %1224 = vst [vmem:[%s438 + $0xd8] sm:$0xff] %v825
      %1225 = vst [vmem:[%s438 + $0xe0] sm:$0xff] %v830
      %1226 = vst [vmem:[%s438 + $0xe8] sm:$0xff] %v833
      %1227 = vst [vmem:[%s438 + $0xf0] sm:$0xff] %v838
      %1228 = vst [vmem:[%s438 + $0xf8] sm:$0xff] %v841
      %1229 = vst [vmem:[%s443] sm:$0xff] %v1071
      %1230 = vst [vmem:[%s443 + $0x8] sm:$0xff] %v1074
      %1231 = vst [vmem:[%s443 + $0x10] sm:$0xff] %v1079
      %1232 = vst [vmem:[%s443 + $0x18] sm:$0xff] %v1082
      %1233 = vst [vmem:[%s443 + $0x20] sm:$0xff] %v1087
      %1234 = vst [vmem:[%s443 + $0x28] sm:$0xff] %v1090
      %1235 = vst [vmem:[%s443 + $0x30] sm:$0xff] %v1095
      %1236 = vst [vmem:[%s443 + $0x38] sm:$0xff] %v1098
      %1237 = vst [vmem:[%s443 + $0x40] sm:$0xff] %v1103
      %1238 = vst [vmem:[%s443 + $0x48] sm:$0xff] %v1106
      %1239 = vst [vmem:[%s443 + $0x50] sm:$0xff] %v1111
      %1240 = vst [vmem:[%s443 + $0x58] sm:$0xff] %v1114
      %1241 = vst [vmem:[%s443 + $0x60] sm:$0xff] %v1119
      %1242 = vst [vmem:[%s443 + $0x68] sm:$0xff] %v1122
      %1243 = vst [vmem:[%s443 + $0x70] sm:$0xff] %v1127
      %1244 = vst [vmem:[%s443 + $0x78] sm:$0xff] %v1130
      %1245 = vst [vmem:[%s443 + $0x80] sm:$0xff] %v1135
      %1246 = vst [vmem:[%s443 + $0x88] sm:$0xff] %v1138
      %1247 = vst [vmem:[%s443 + $0x90] sm:$0xff] %v1143
      %1248 = vst [vmem:[%s443 + $0x98] sm:$0xff] %v1146
      %1249 = vst [vmem:[%s443 + $0xa0] sm:$0xff] %v1151
      %1250 = vst [vmem:[%s443 + $0xa8] sm:$0xff] %v1154
      %1251 = vst [vmem:[%s443 + $0xb0] sm:$0xff] %v1159
      %1252 = vst [vmem:[%s443 + $0xb8] sm:$0xff] %v1162
      %1253 = vst [vmem:[%s443 + $0xc0] sm:$0xff] %v1167
      %1254 = vst [vmem:[%s443 + $0xc8] sm:$0xff] %v1170
      %1255 = vst [vmem:[%s443 + $0xd0] sm:$0xff] %v1175
      %1256 = vst [vmem:[%s443 + $0xd8] sm:$0xff] %v1178
      %1257 = vst [vmem:[%s443 + $0xe0] sm:$0xff] %v1183
      %1258 = vst [vmem:[%s443 + $0xe8] sm:$0xff] %v1186
      %1259 = vst [vmem:[%s443 + $0xf0] sm:$0xff] %v1191
      %1260 = vst [vmem:[%s443 + $0xf8] sm:$0xff] %v1194
      %v1261 = vadd.f32 %v718, %v721
      %v1262 = vadd.f32 %v1261, %v726
      %v1263 = vadd.f32 %v1262, %v729
      %v1264 = vadd.f32 %v1263, %v734
      %v1265 = vadd.f32 %v1264, %v737
      %v1266 = vadd.f32 %v1265, %v742
      %v1267 = vadd.f32 %v1266, %v745
      %v1268 = vadd.f32 %v1267, %v750
      %v1269 = vadd.f32 %v1268, %v753
      %v1270 = vadd.f32 %v1269, %v758
      %v1271 = vadd.f32 %v1270, %v761
      %v1272 = vadd.f32 %v1271, %v766
      %v1273 = vadd.f32 %v1272, %v769
      %v1274 = vadd.f32 %v1273, %v774
      %v1275 = vadd.f32 %v1274, %v777
      %v1276 = vadd.f32 %v1275, %v782
      %v1277 = vadd.f32 %v1276, %v785
      %v1278 = vadd.f32 %v1277, %v790
      %v1279 = vadd.f32 %v1278, %v793
      %v1280 = vadd.f32 %v1279, %v798
      %v1281 = vadd.f32 %v1280, %v801
      %v1282 = vadd.f32 %v1281, %v806
      %v1283 = vadd.f32 %v1282, %v809
      %v1284 = vadd.f32 %v1283, %v814
      %v1285 = vadd.f32 %v1284, %v817
      %v1286 = vadd.f32 %v1285, %v822
      %v1287 = vadd.f32 %v1286, %v825
      %v1288 = vadd.f32 %v1287, %v830
      %v1289 = vadd.f32 %v1288, %v833
      %v1290 = vadd.f32 %v1289, %v838
      %v1291 = vadd.f32 %v1290, %v841
      %v1292 = vrot.slane %v1291, 4
      %v1293 = vadd.f32 %v1291, %v1292
      %v1294 = vrot.slane %v1293, 2
      %v1295 = vadd.f32 %v1293, %v1294
      %v1296 = vrot.slane %v1295, 1
      %v1297 = vadd.f32 %v1295, %v1296
      %1298 = vst [vmem:[%s447] sm:$0xff] %v1297
      %v1299 = vmul.f32 %v718, %v718
      %v1300 = vmul.f32 %v721, %v721
      %v1301 = vmul.f32 %v726, %v726
      %v1302 = vmul.f32 %v729, %v729
      %v1303 = vmul.f32 %v734, %v734
      %v1304 = vmul.f32 %v737, %v737
      %v1305 = vmul.f32 %v742, %v742
      %v1306 = vmul.f32 %v745, %v745
      %v1307 = vmul.f32 %v750, %v750
      %v1308 = vmul.f32 %v753, %v753
      %v1309 = vmul.f32 %v758, %v758
      %v1310 = vmul.f32 %v761, %v761
      %v1311 = vmul.f32 %v766, %v766
      %v1312 = vmul.f32 %v769, %v769
      %v1313 = vmul.f32 %v774, %v774
      %v1314 = vmul.f32 %v777, %v777
      %v1315 = vmul.f32 %v782, %v782
      %v1316 = vmul.f32 %v785, %v785
      %v1317 = vmul.f32 %v790, %v790
      %v1318 = vmul.f32 %v793, %v793
      %v1319 = vmul.f32 %v798, %v798
      %v1320 = vmul.f32 %v801, %v801
      %v1321 = vmul.f32 %v806, %v806
      %v1322 = vmul.f32 %v809, %v809
      %v1323 = vmul.f32 %v814, %v814
      %v1324 = vmul.f32 %v817, %v817
      %v1325 = vmul.f32 %v822, %v822
      %v1326 = vmul.f32 %v825, %v825
      %v1327 = vmul.f32 %v830, %v830
      %v1328 = vmul.f32 %v833, %v833
      %v1329 = vmul.f32 %v838, %v838
      %v1330 = vmul.f32 %v841, %v841
      %v1331 = vadd.f32 %v1299, %v1300
      %v1332 = vadd.f32 %v1331, %v1301
      %v1333 = vadd.f32 %v1332, %v1302
      %v1334 = vadd.f32 %v1333, %v1303
      %v1335 = vadd.f32 %v1334, %v1304
      %v1336 = vadd.f32 %v1335, %v1305
      %v1337 = vadd.f32 %v1336, %v1306
      %v1338 = vadd.f32 %v1337, %v1307
      %v1339 = vadd.f32 %v1338, %v1308
      %v1340 = vadd.f32 %v1339, %v1309
      %v1341 = vadd.f32 %v1340, %v1310
      %v1342 = vadd.f32 %v1341, %v1311
      %v1343 = vadd.f32 %v1342, %v1312
      %v1344 = vadd.f32 %v1343, %v1313
      %v1345 = vadd.f32 %v1344, %v1314
      %v1346 = vadd.f32 %v1345, %v1315
      %v1347 = vadd.f32 %v1346, %v1316
      %v1348 = vadd.f32 %v1347, %v1317
      %v1349 = vadd.f32 %v1348, %v1318
      %v1350 = vadd.f32 %v1349, %v1319
      %v1351 = vadd.f32 %v1350, %v1320
      %v1352 = vadd.f32 %v1351, %v1321
      %v1353 = vadd.f32 %v1352, %v1322
      %v1354 = vadd.f32 %v1353, %v1323
      %v1355 = vadd.f32 %v1354, %v1324
      %v1356 = vadd.f32 %v1355, %v1325
      %v1357 = vadd.f32 %v1356, %v1326
      %v1358 = vadd.f32 %v1357, %v1327
      %v1359 = vadd.f32 %v1358, %v1328
      %v1360 = vadd.f32 %v1359, %v1329
      %v1361 = vadd.f32 %v1360, %v1330
      %v1362 = vrot.slane %v1361, 4
      %v1363 = vadd.f32 %v1361, %v1362
      %v1364 = vrot.slane %v1363, 2
      %v1365 = vadd.f32 %v1363, %v1364
      %v1366 = vrot.slane %v1365, 1
      %v1367 = vadd.f32 %v1365, %v1366
      %1368 = vst [vmem:[%s451] sm:$0xff] %v1367
      %v1369 = vadd.f32 %v1071, %v1074
      %v1370 = vadd.f32 %v1369, %v1079
      %v1371 = vadd.f32 %v1370, %v1082
      %v1372 = vadd.f32 %v1371, %v1087
      %v1373 = vadd.f32 %v1372, %v1090
      %v1374 = vadd.f32 %v1373, %v1095
      %v1375 = vadd.f32 %v1374, %v1098
      %v1376 = vadd.f32 %v1375, %v1103
      %v1377 = vadd.f32 %v1376, %v1106
      %v1378 = vadd.f32 %v1377, %v1111
      %v1379 = vadd.f32 %v1378, %v1114
      %v1380 = vadd.f32 %v1379, %v1119
      %v1381 = vadd.f32 %v1380, %v1122
      %v1382 = vadd.f32 %v1381, %v1127
      %v1383 = vadd.f32 %v1382, %v1130
      %v1384 = vadd.f32 %v1383, %v1135
      %v1385 = vadd.f32 %v1384, %v1138
      %v1386 = vadd.f32 %v1385, %v1143
      %v1387 = vadd.f32 %v1386, %v1146
      %v1388 = vadd.f32 %v1387, %v1151
      %v1389 = vadd.f32 %v1388, %v1154
      %v1390 = vadd.f32 %v1389, %v1159
      %v1391 = vadd.f32 %v1390, %v1162
      %v1392 = vadd.f32 %v1391, %v1167
      %v1393 = vadd.f32 %v1392, %v1170
      %v1394 = vadd.f32 %v1393, %v1175
      %v1395 = vadd.f32 %v1394, %v1178
      %v1396 = vadd.f32 %v1395, %v1183
      %v1397 = vadd.f32 %v1396, %v1186
      %v1398 = vadd.f32 %v1397, %v1191
      %v1399 = vadd.f32 %v1398, %v1194
      %v1400 = vrot.slane %v1399, 4
      %v1401 = vadd.f32 %v1399, %v1400
      %v1402 = vrot.slane %v1401, 2
      %v1403 = vadd.f32 %v1401, %v1402
      %v1404 = vrot.slane %v1403, 1
      %v1405 = vadd.f32 %v1403, %v1404
      %1406 = vst [vmem:[%s455] sm:$0xff] %v1405
      %v1407 = vmul.f32 %v1071, %v1071
      %v1408 = vmul.f32 %v1074, %v1074
      %v1409 = vmul.f32 %v1079, %v1079
      %v1410 = vmul.f32 %v1082, %v1082
      %v1411 = vmul.f32 %v1087, %v1087
      %v1412 = vmul.f32 %v1090, %v1090
      %v1413 = vmul.f32 %v1095, %v1095
      %v1414 = vmul.f32 %v1098, %v1098
      %v1415 = vmul.f32 %v1103, %v1103
      %v1416 = vmul.f32 %v1106, %v1106
      %v1417 = vmul.f32 %v1111, %v1111
      %v1418 = vmul.f32 %v1114, %v1114
      %v1419 = vmul.f32 %v1119, %v1119
      %v1420 = vmul.f32 %v1122, %v1122
      %v1421 = vmul.f32 %v1127, %v1127
      %v1422 = vmul.f32 %v1130, %v1130
      %v1423 = vmul.f32 %v1135, %v1135
      %v1424 = vmul.f32 %v1138, %v1138
      %v1425 = vmul.f32 %v1143, %v1143
      %v1426 = vmul.f32 %v1146, %v1146
      %v1427 = vmul.f32 %v1151, %v1151
      %v1428 = vmul.f32 %v1154, %v1154
      %v1429 = vmul.f32 %v1159, %v1159
      %v1430 = vmul.f32 %v1162, %v1162
      %v1431 = vmul.f32 %v1167, %v1167
      %v1432 = vmul.f32 %v1170, %v1170
      %v1433 = vmul.f32 %v1175, %v1175
      %v1434 = vmul.f32 %v1178, %v1178
      %v1435 = vmul.f32 %v1183, %v1183
      %v1436 = vmul.f32 %v1186, %v1186
      %v1437 = vmul.f32 %v1191, %v1191
      %v1438 = vmul.f32 %v1194, %v1194
      %v1439 = vadd.f32 %v1407, %v1408
      %v1440 = vadd.f32 %v1439, %v1409
      %v1441 = vadd.f32 %v1440, %v1410
      %v1442 = vadd.f32 %v1441, %v1411
      %v1443 = vadd.f32 %v1442, %v1412
      %v1444 = vadd.f32 %v1443, %v1413
      %v1445 = vadd.f32 %v1444, %v1414
      %v1446 = vadd.f32 %v1445, %v1415
      %v1447 = vadd.f32 %v1446, %v1416
      %v1448 = vadd.f32 %v1447, %v1417
      %v1449 = vadd.f32 %v1448, %v1418
      %v1450 = vadd.f32 %v1449, %v1419
      %v1451 = vadd.f32 %v1450, %v1420
      %v1452 = vadd.f32 %v1451, %v1421
      %v1453 = vadd.f32 %v1452, %v1422
      %v1454 = vadd.f32 %v1453, %v1423
      %v1455 = vadd.f32 %v1454, %v1424
      %v1456 = vadd.f32 %v1455, %v1425
      %v1457 = vadd.f32 %v1456, %v1426
      %v1458 = vadd.f32 %v1457, %v1427
      %v1459 = vadd.f32 %v1458, %v1428
      %v1460 = vadd.f32 %v1459, %v1429
      %v1461 = vadd.f32 %v1460, %v1430
      %v1462 = vadd.f32 %v1461, %v1431
      %v1463 = vadd.f32 %v1462, %v1432
      %v1464 = vadd.f32 %v1463, %v1433
      %v1465 = vadd.f32 %v1464, %v1434
      %v1466 = vadd.f32 %v1465, %v1435
      %v1467 = vadd.f32 %v1466, %v1436
      %v1468 = vadd.f32 %v1467, %v1437
      %v1469 = vadd.f32 %v1468, %v1438
      %v1470 = vrot.slane %v1469, 4
      %v1471 = vadd.f32 %v1469, %v1470
      %v1472 = vrot.slane %v1471, 2
      %v1473 = vadd.f32 %v1471, %v1472
      %v1474 = vrot.slane %v1473, 1
      %v1475 = vadd.f32 %v1473, %v1474
      %1476 = vst [vmem:[%s459] sm:$0xff] %v1475
      %p1477 = scmp.lt.s32.totalorder %s23, 1
      %s1478 = scalar_select %p1477, %s23, 1
      %s1479 = smul.addr %s1478, 32
      %s1480 = smul.addr %s1479, 8
      %s1481 = scalar_lea.vmem %s6, %s1480
      %p1482 = scmp.lt.s32.totalorder %s23, 1
      %s1483 = scalar_select %p1482, %s23, 1
      %s1484 = smul.addr %s1483, 32
      %s1485 = smul.addr %s1484, 8
      %s1486 = scalar_lea.vmem %s7, %s1485
      %p1487 = scmp.lt.s32.totalorder %s23, 1
      %s1488 = scalar_select %p1487, %s23, 1
      %s1489 = smul.addr %s1488, 8
      %s1490 = scalar_lea.vmem %s8, %s1489
      %p1491 = scmp.lt.s32.totalorder %s23, 1
      %s1492 = scalar_select %p1491, %s23, 1
      %s1493 = smul.addr %s1492, 8
      %s1494 = scalar_lea.vmem %s9, %s1493
      %p1495 = scmp.lt.s32.totalorder %s23, 1
      %s1496 = scalar_select %p1495, %s23, 1
      %s1497 = smul.addr %s1496, 8
      %s1498 = scalar_lea.vmem %s10, %s1497
      %p1499 = scmp.lt.s32.totalorder %s23, 1
      %s1500 = scalar_select %p1499, %s23, 1
      %s1501 = smul.addr %s1500, 8
      %s1502 = scalar_lea.vmem %s11, %s1501
      // Predicated region
      $region45: #{bottleneck_forward.6} parent=43 // pred_check
        %p1503 = pneg %p177
      $region46: #{bottleneck_forward.6} parent=43 // pred_check_branch
        %1505 = sbr.rel (%p1503) target = $region48
      $region47: #{bottleneck_forward.6} parent=43 // pred_region
        _
      $region48: #{bottleneck_forward.6} parent=43 // pred_fallthru
        _
      // Predicated region
      $region49: #{bottleneck_forward.6} parent=43 // pred_check
        %p1506 = pneg %p203
      $region50: #{bottleneck_forward.6} parent=43 // pred_check_branch
        %1508 = sbr.rel (%p1506) target = $region52
      $region51: #{bottleneck_forward.6} parent=43 // pred_region
        _
      $region52: #{bottleneck_forward.6} parent=43 // pred_fallthru
        _
      // Predicated region
      $region53: #{bottleneck_forward.6} parent=43 // pred_check
        %p1509 = pneg %p229
      $region54: #{bottleneck_forward.6} parent=43 // pred_check_branch
        %1511 = sbr.rel (%p1509) target = $region56
      $region55: #{bottleneck_forward.6} parent=43 // pred_region
        _
      $region56: #{bottleneck_forward.6} parent=43 // pred_fallthru
        _
      // Predicated region
      $region57: #{bottleneck_forward.6} parent=43 // pred_check
        %p1512 = pneg %p255
      $region58: #{bottleneck_forward.6} parent=43 // pred_check_branch
        %1514 = sbr.rel (%p1512) target = $region60
      $region59: #{bottleneck_forward.6} parent=43 // pred_region
        _
      $region60: #{bottleneck_forward.6} parent=43 // pred_fallthru
        _
      // Predicated region
      $region61: #{bottleneck_forward.6} parent=43 // pred_check
        %p1515 = pneg %p281
      $region62: #{bottleneck_forward.6} parent=43 // pred_check_branch
        %1517 = sbr.rel (%p1515) target = $region64
      $region63: #{bottleneck_forward.6} parent=43 // pred_region
        _
      $region64: #{bottleneck_forward.6} parent=43 // pred_fallthru
        _
      // Predicated region
      $region65: #{bottleneck_forward.6} parent=43 // pred_check
        %p1518 = pneg %p307
      $region66: #{bottleneck_forward.6} parent=43 // pred_check_branch
        %1520 = sbr.rel (%p1518) target = $region68
      $region67: #{bottleneck_forward.6} parent=43 // pred_region
        _
      $region68: #{bottleneck_forward.6} parent=43 // pred_fallthru
        _
    $region44: #{bottleneck_forward.6} parent=5 // pred_fallthru
      _
    %p1521 = scmp.le.s32.totalorder 2, %s18
    // Predicated region
    $region69: #{bottleneck_forward.6} parent=5 // pred_check
      %p1522 = pneg %p1521
    $region70: #{bottleneck_forward.6} parent=5 // pred_check_branch
      %1524 = sbr.rel (%p1522) target = $region72
    $region71: #{bottleneck_forward.6} parent=5 // pred_region
      %s1525 = ssub.s32 %s18, 2
      // Predicated region
      $region73: #{bottleneck_forward.6} parent=71 // pred_check
        %p1526 = pneg %p183
      $region74: #{bottleneck_forward.6} parent=71 // pred_check_branch
        %1528 = sbr.rel (%p1526) target = $region76
      $region75: #{bottleneck_forward.6} parent=71 // pred_region
        %p1529 = scmp.lt.s32.totalorder %s24, 1
        %s1530 = scalar_select %p1529, %s24, 1
        %s1531 = smul.addr %s1530, 32
        %s1532 = smul.addr %s1531, 8
        %s1533 = scalar_lea.vmem %s6, %s1532
      $region76: #{bottleneck_forward.6} parent=71 // pred_fallthru
        _
      // Predicated region
      $region77: #{bottleneck_forward.6} parent=71 // pred_check
        %p1534 = pneg %p209
      $region78: #{bottleneck_forward.6} parent=71 // pred_check_branch
        %1536 = sbr.rel (%p1534) target = $region80
      $region79: #{bottleneck_forward.6} parent=71 // pred_region
        %p1537 = scmp.lt.s32.totalorder %s24, 1
        %s1538 = scalar_select %p1537, %s24, 1
        %s1539 = smul.addr %s1538, 32
        %s1540 = smul.addr %s1539, 8
        %s1541 = scalar_lea.vmem %s7, %s1540
      $region80: #{bottleneck_forward.6} parent=71 // pred_fallthru
        _
      // Predicated region
      $region81: #{bottleneck_forward.6} parent=71 // pred_check
        %p1542 = pneg %p235
      $region82: #{bottleneck_forward.6} parent=71 // pred_check_branch
        %1544 = sbr.rel (%p1542) target = $region84
      $region83: #{bottleneck_forward.6} parent=71 // pred_region
        %p1545 = scmp.lt.s32.totalorder %s24, 1
        %s1546 = scalar_select %p1545, %s24, 1
        %s1547 = smul.addr %s1546, 8
        %s1548 = scalar_lea.vmem %s8, %s1547
      $region84: #{bottleneck_forward.6} parent=71 // pred_fallthru
        _
      // Predicated region
      $region85: #{bottleneck_forward.6} parent=71 // pred_check
        %p1549 = pneg %p261
      $region86: #{bottleneck_forward.6} parent=71 // pred_check_branch
        %1551 = sbr.rel (%p1549) target = $region88
      $region87: #{bottleneck_forward.6} parent=71 // pred_region
        %p1552 = scmp.lt.s32.totalorder %s24, 1
        %s1553 = scalar_select %p1552, %s24, 1
        %s1554 = smul.addr %s1553, 8
        %s1555 = scalar_lea.vmem %s9, %s1554
      $region88: #{bottleneck_forward.6} parent=71 // pred_fallthru
        _
      // Predicated region
      $region89: #{bottleneck_forward.6} parent=71 // pred_check
        %p1556 = pneg %p287
      $region90: #{bottleneck_forward.6} parent=71 // pred_check_branch
        %1558 = sbr.rel (%p1556) target = $region92
      $region91: #{bottleneck_forward.6} parent=71 // pred_region
        %p1559 = scmp.lt.s32.totalorder %s24, 1
        %s1560 = scalar_select %p1559, %s24, 1
        %s1561 = smul.addr %s1560, 8
        %s1562 = scalar_lea.vmem %s10, %s1561
      $region92: #{bottleneck_forward.6} parent=71 // pred_fallthru
        _
      // Predicated region
      $region93: #{bottleneck_forward.6} parent=71 // pred_check
        %p1563 = pneg %p313
      $region94: #{bottleneck_forward.6} parent=71 // pred_check_branch
        %1565 = sbr.rel (%p1563) target = $region96
      $region95: #{bottleneck_forward.6} parent=71 // pred_region
        %p1566 = scmp.lt.s32.totalorder %s24, 1
        %s1567 = scalar_select %p1566, %s24, 1
        %s1568 = smul.addr %s1567, 8
        %s1569 = scalar_lea.vmem %s11, %s1568
      $region96: #{bottleneck_forward.6} parent=71 // pred_fallthru
        _
    $region72: #{bottleneck_forward.6} parent=5 // pred_fallthru
      _
  $region6: #{bottleneck_forward.6} parent=0 // loop_footer
    %s22 = sadd.s32 1, %s18
  $region7: #{bottleneck_forward.6} parent=0 // loop_footer_branch
    %17 = sbr.rel target = $region3
  $region8: #{bottleneck_forward.6} parent=0 // loop_exit
    _

// kernel: bottleneck_forward.5
$region0: #{bottleneck_forward.5}
  #allocation0 [shape = 'u32[]', space=smem, size = 0x4, offset = 0x4, fixed_abs, tag = 'smem constant byte address 0x4 - core index']
  #allocation1 [shape = 'u32[144,128]{1,0:T(1,128)}', space=vmem, size = 0x12000, scoped, tag = 'internal scratch']
  #allocation2 [shape = 'f32[18,18,128]{2,1,0:T(8,128)}', space=vmem, size = 0x36000, scoped, tag = 'scratch operand']
  %s0 = inlined_call_operand.vmem [shape: f32[2,16,16,128], index: 0, kind: input, shape index: {}]
  %s1 = inlined_call_operand.vmem [shape: f32[1,128], index: 1, kind: input, shape index: {}]
  %s2 = inlined_call_operand.vmem [shape: f32[1,128], index: 2, kind: input, shape index: {}]
  %s3 = inlined_call_operand.vmem [shape: bf16[9,128,128], index: 3, kind: input, shape index: {}]
  %s4 = inlined_call_operand.vmem [shape: f32[2,16,16,128], index: 4, kind: output, shape index: {0}]
  %s5 = inlined_call_operand.vmem [shape: f32[2,8,128], index: 5, kind: output, shape index: {1}]
  %s6 = inlined_call_operand.vmem [shape: f32[2,8,128], index: 6, kind: output, shape index: {2}]
  %7 = xla_tuple %s4, %s5, %s6
  %s8 = sld [smem:[#allocation0]]
  $region65: #{bottleneck_forward.5} parent=0
    _
  %s10 = ssub.s32 1, %s8
  %s11 = scalar_select 0, %s10, %s8
  loop: start=0, step=1, limit=4
  $region2: #{bottleneck_forward.5} parent=0 // loop_pre_header
    _
  $region3: #{bottleneck_forward.5} parent=0 // loop_header
    %s13 = sphi 0, %s17
    %p14 = scmp.ge.s32.totalorder %s13, 4
    %s23 = sphi 0, %s25
    %s26 = sphi 0, %s23
    %s27 = sphi 0, %s26
    %s43 = sphi 0, %s27
    %s47 = sphi 0, %s47
    %s49 = sphi 0, %s47
    %s50 = sphi 0, %s49
    %s64 = sphi 0, %s50
    %s68 = sphi 0, %s68
    %s70 = sphi 0, %s68
    %s71 = sphi 0, %s70
    %s85 = sphi 0, %s71
    %s89 = sphi 0, %s89
    %s91 = sphi 0, %s89
    %s92 = sphi 0, %s91
    %s106 = sphi 0, %s92
    %s112 = sphi 0, %s114
    %s115 = sphi 0, %s112
    %s116 = sphi 0, %s115
    %s132 = sphi 0, %s116
    %s138 = sphi 0, %s140
    %s141 = sphi 0, %s138
    %s142 = sphi 0, %s141
    %s158 = sphi 0, %s142
    %s164 = sphi 0, %s166
    %s167 = sphi 0, %s164
    %s168 = sphi 0, %s167
    %s184 = sphi 0, %s168
  $region4: #{bottleneck_forward.5} parent=0 // loop_header_branch
    %16 = sbr.rel (%p14) target = $region8
  $region5: #{bottleneck_forward.5} parent=0 // loop_body
    %s18 = ssub.s32 %s13, 1
    %s19 = ssub.s32 %s13, 2
    %s20 = sadd.s32 %s13, 1
    %s21 = ssub.s32 %s13, %s20
    %p22 = scmp.eq.s32.totalorder %s21, 0
    %s24 = sadd.s32 %s23, 1
    %s25 = scalar_select %p22, %s23, %s24
    %p28 = pneg %p22
    %p29 = scmp.eq.s32.totalorder %s13, 1
    %p30 = por %p28, %p29
    %p31 = scmp.ne.s32.totalorder %s23, %s26
    %p32 = scmp.eq.s32.totalorder %s13, 0
    %p33 = por %p31, %p32
    %p34 = scmp.ne.s32.totalorder %s23, %s26
    %p35 = scmp.eq.s32.totalorder %s18, 1
    %p36 = por %p34, %p35
    %p37 = scmp.ne.s32.totalorder %s26, %s27
    %p38 = scmp.eq.s32.totalorder %s18, 0
    %p39 = por %p37, %p38
    %p40 = scmp.ne.s32.totalorder %s26, %s27
    %p41 = scmp.eq.s32.totalorder %s19, 1
    %p42 = por %p40, %p41
    %p44 = scmp.ne.s32.totalorder %s27, %s43
    %p45 = scmp.eq.s32.totalorder %s19, 0
    %p46 = por %p44, %p45
    %s48 = sadd.s32 %s47, 1
    %p51 = scmp.eq.s32.totalorder %s13, 1
    %p52 = scmp.ne.s32.totalorder %s47, %s49
    %p53 = scmp.eq.s32.totalorder %s13, 0
    %p54 = por %p52, %p53
    %p55 = scmp.ne.s32.totalorder %s47, %s49
    %p56 = scmp.eq.s32.totalorder %s18, 1
    %p57 = por %p55, %p56
    %p58 = scmp.ne.s32.totalorder %s49, %s50
    %p59 = scmp.eq.s32.totalorder %s18, 0
    %p60 = por %p58, %p59
    %p61 = scmp.ne.s32.totalorder %s49, %s50
    %p62 = scmp.eq.s32.totalorder %s19, 1
    %p63 = por %p61, %p62
    %p65 = scmp.ne.s32.totalorder %s50, %s64
    %p66 = scmp.eq.s32.totalorder %s19, 0
    %p67 = por %p65, %p66
    %s69 = sadd.s32 %s68, 1
    %p72 = scmp.eq.s32.totalorder %s13, 1
    %p73 = scmp.ne.s32.totalorder %s68, %s70
    %p74 = scmp.eq.s32.totalorder %s13, 0
    %p75 = por %p73, %p74
    %p76 = scmp.ne.s32.totalorder %s68, %s70
    %p77 = scmp.eq.s32.totalorder %s18, 1
    %p78 = por %p76, %p77
    %p79 = scmp.ne.s32.totalorder %s70, %s71
    %p80 = scmp.eq.s32.totalorder %s18, 0
    %p81 = por %p79, %p80
    %p82 = scmp.ne.s32.totalorder %s70, %s71
    %p83 = scmp.eq.s32.totalorder %s19, 1
    %p84 = por %p82, %p83
    %p86 = scmp.ne.s32.totalorder %s71, %s85
    %p87 = scmp.eq.s32.totalorder %s19, 0
    %p88 = por %p86, %p87
    %s90 = sadd.s32 %s89, 1
    %p93 = scmp.eq.s32.totalorder %s13, 1
    %p94 = scmp.ne.s32.totalorder %s89, %s91
    %p95 = scmp.eq.s32.totalorder %s13, 0
    %p96 = por %p94, %p95
    %p97 = scmp.ne.s32.totalorder %s89, %s91
    %p98 = scmp.eq.s32.totalorder %s18, 1
    %p99 = por %p97, %p98
    %p100 = scmp.ne.s32.totalorder %s91, %s92
    %p101 = scmp.eq.s32.totalorder %s18, 0
    %p102 = por %p100, %p101
    %p103 = scmp.ne.s32.totalorder %s91, %s92
    %p104 = scmp.eq.s32.totalorder %s19, 1
    %p105 = por %p103, %p104
    %p107 = scmp.ne.s32.totalorder %s92, %s106
    %p108 = scmp.eq.s32.totalorder %s19, 0
    %p109 = por %p107, %p108
    %s110 = ssub.s32 %s13, %s20
    %p111 = scmp.eq.s32.totalorder %s110, 0
    %s113 = sadd.s32 %s112, 1
    %s114 = scalar_select %p111, %s112, %s113
    %p117 = pneg %p111
    %p118 = scmp.eq.s32.totalorder %s13, 1
    %p119 = por %p117, %p118
    %p120 = scmp.ne.s32.totalorder %s112, %s115
    %p121 = scmp.eq.s32.totalorder %s13, 0
    %p122 = por %p120, %p121
    %p123 = scmp.ne.s32.totalorder %s112, %s115
    %p124 = scmp.eq.s32.totalorder %s18, 1
    %p125 = por %p123, %p124
    %p126 = scmp.ne.s32.totalorder %s115, %s116
    %p127 = scmp.eq.s32.totalorder %s18, 0
    %p128 = por %p126, %p127
    %p129 = scmp.ne.s32.totalorder %s115, %s116
    %p130 = scmp.eq.s32.totalorder %s19, 1
    %p131 = por %p129, %p130
    %p133 = scmp.ne.s32.totalorder %s116, %s132
    %p134 = scmp.eq.s32.totalorder %s19, 0
    %p135 = por %p133, %p134
    %s136 = ssub.s32 %s13, %s20
    %p137 = scmp.eq.s32.totalorder %s136, 0
    %s139 = sadd.s32 %s138, 1
    %s140 = scalar_select %p137, %s138, %s139
    %p143 = pneg %p137
    %p144 = scmp.eq.s32.totalorder %s13, 1
    %p145 = por %p143, %p144
    %p146 = scmp.ne.s32.totalorder %s138, %s141
    %p147 = scmp.eq.s32.totalorder %s13, 0
    %p148 = por %p146, %p147
    %p149 = scmp.ne.s32.totalorder %s138, %s141
    %p150 = scmp.eq.s32.totalorder %s18, 1
    %p151 = por %p149, %p150
    %p152 = scmp.ne.s32.totalorder %s141, %s142
    %p153 = scmp.eq.s32.totalorder %s18, 0
    %p154 = por %p152, %p153
    %p155 = scmp.ne.s32.totalorder %s141, %s142
    %p156 = scmp.eq.s32.totalorder %s19, 1
    %p157 = por %p155, %p156
    %p159 = scmp.ne.s32.totalorder %s142, %s158
    %p160 = scmp.eq.s32.totalorder %s19, 0
    %p161 = por %p159, %p160
    %s162 = ssub.s32 %s13, %s20
    %p163 = scmp.eq.s32.totalorder %s162, 0
    %s165 = sadd.s32 %s164, 1
    %s166 = scalar_select %p163, %s164, %s165
    %p169 = pneg %p163
    %p170 = scmp.eq.s32.totalorder %s13, 1
    %p171 = por %p169, %p170
    %p172 = scmp.ne.s32.totalorder %s164, %s167
    %p173 = scmp.eq.s32.totalorder %s13, 0
    %p174 = por %p172, %p173
    %p175 = scmp.ne.s32.totalorder %s164, %s167
    %p176 = scmp.eq.s32.totalorder %s18, 1
    %p177 = por %p175, %p176
    %p178 = scmp.ne.s32.totalorder %s167, %s168
    %p179 = scmp.eq.s32.totalorder %s18, 0
    %p180 = por %p178, %p179
    %p181 = scmp.ne.s32.totalorder %s167, %s168
    %p182 = scmp.eq.s32.totalorder %s19, 1
    %p183 = por %p181, %p182
    %p185 = scmp.ne.s32.totalorder %s168, %s184
    %p186 = scmp.eq.s32.totalorder %s19, 0
    %p187 = por %p185, %p186
    %p188 = scmp.le.s32.totalorder 1, %s13
    %p189 = scmp.lt.s32.totalorder %s13, 3
    %p190 = pnand %p188, %p189
    %p191 = pneg %p190
    // Predicated region
    $region9: #{bottleneck_forward.5} parent=5 // pred_check
      _
    $region10: #{bottleneck_forward.5} parent=5 // pred_check_branch
      %193 = sbr.rel (%p190) target = $region12
    $region11: #{bottleneck_forward.5} parent=5 // pred_region
      %s194 = ssub.s32 %s13, 1
      // Predicated region
      $region13: #{bottleneck_forward.5} parent=11 // pred_check
        %p195 = pneg %p60
      $region14: #{bottleneck_forward.5} parent=11 // pred_check_branch
        %197 = sbr.rel (%p195) target = $region16
      $region15: #{bottleneck_forward.5} parent=11 // pred_region
        _
      $region16: #{bottleneck_forward.5} parent=11 // pred_fallthru
        _
      // Predicated region
      $region17: #{bottleneck_forward.5} parent=11 // pred_check
        %p198 = pneg %p81
      $region18: #{bottleneck_forward.5} parent=11 // pred_check_branch
        %200 = sbr.rel (%p198) target = $region20
      $region19: #{bottleneck_forward.5} parent=11 // pred_region
        _
      $region20: #{bottleneck_forward.5} parent=11 // pred_fallthru
        _
      // Predicated region
      $region21: #{bottleneck_forward.5} parent=11 // pred_check
        %p201 = pneg %p102
      $region22: #{bottleneck_forward.5} parent=11 // pred_check_branch
        %203 = sbr.rel (%p201) target = $region24
      $region23: #{bottleneck_forward.5} parent=11 // pred_region
        _
      $region24: #{bottleneck_forward.5} parent=11 // pred_fallthru
        _
    $region12: #{bottleneck_forward.5} parent=5 // pred_fallthru
      _
    %p204 = scmp.lt.s32.totalorder %s13, 2
    // Predicated region
    $region25: #{bottleneck_forward.5} parent=5 // pred_check
      %p205 = pneg %p204
    $region26: #{bottleneck_forward.5} parent=5 // pred_check_branch
      %207 = sbr.rel (%p205) target = $region28
    $region27: #{bottleneck_forward.5} parent=5 // pred_region
      // Predicated region
      $region29: #{bottleneck_forward.5} parent=27 // pred_check
        %p208 = pneg %p33
      $region30: #{bottleneck_forward.5} parent=27 // pred_check_branch
        %210 = sbr.rel (%p208) target = $region32
      $region31: #{bottleneck_forward.5} parent=27 // pred_region
        %p211 = scmp.lt.s32.totalorder %s13, 1
        %s212 = scalar_select %p211, %s13, 1
        %s213 = smul.addr %s212, 32
        %s214 = smul.addr %s213, 8
        %s215 = scalar_lea.vmem %s0, %s214
      $region32: #{bottleneck_forward.5} parent=27 // pred_fallthru
        _
    $region28: #{bottleneck_forward.5} parent=5 // pred_fallthru
      _
    %p216 = scmp.le.s32.totalorder 1, %s13
    %p217 = scmp.lt.s32.totalorder %s13, 3
    %p218 = pnand %p216, %p217
    %p219 = pneg %p218
    // Predicated region
    $region33: #{bottleneck_forward.5} parent=5 // pred_check
      _
    $region34: #{bottleneck_forward.5} parent=5 // pred_check_branch
      %221 = sbr.rel (%p218) target = $region36
    $region35: #{bottleneck_forward.5} parent=5 // pred_region
      %s222 = ssub.s32 %s13, 1
      %p223 = scmp.lt.s32.totalorder %s18, 1
      %s224 = scalar_select %p223, %s18, 1
      %s225 = smul.addr %s224, 32
      %s226 = smul.addr %s225, 8
      %s227 = scalar_lea.vmem %s0, %s226
      %p228 = pneg %p39
      %p229 = pneg %p36
      %p230 = pneg %p60
      %p231 = pneg %p57
      %p232 = pneg %p81
      %p233 = pneg %p78
      %p234 = pneg %p102
      %p235 = pneg %p99
      %p236 = pneg %p128
      %p237 = pneg %p125
      %p238 = scmp.lt.s32.totalorder %s18, 1
      %s239 = scalar_select %p238, %s18, 1
      %s240 = smul.addr %s239, 32
      %s241 = smul.addr %s240, 8
      %s242 = scalar_lea.vmem %s4, %s241
      %p243 = pneg %p154
      %p244 = pneg %p151
      %p245 = scmp.lt.s32.totalorder %s18, 1
      %s246 = scalar_select %p245, %s18, 1
      %s247 = smul.addr %s246, 8
      %s248 = scalar_lea.vmem %s5, %s247
      %p249 = pneg %p180
      %p250 = pneg %p177
      %p251 = scmp.lt.s32.totalorder %s18, 1
      %s252 = scalar_select %p251, %s18, 1
      %s253 = smul.addr %s252, 8
      %s254 = scalar_lea.vmem %s6, %s253
      %p255 = scmp.lt.s32.totalorder %s18, 1
      %s256 = scalar_select %p255, %s18, 1
      %s257 = smul.addr %s256, 32
      %s258 = smul.addr %s257, 8
      %s259 = scalar_lea.vmem %s0, %s258
      %p260 = scmp.lt.s32.totalorder %s18, 1
      %s261 = scalar_select %p260, %s18, 1
      %s262 = smul.addr %s261, 32
      %s263 = smul.addr %s262, 8
      %s264 = scalar_lea.vmem %s4, %s263
      %p265 = scmp.lt.s32.totalorder %s18, 1
      %s266 = scalar_select %p265, %s18, 1
      %s267 = smul.addr %s266, 8
      %s268 = scalar_lea.vmem %s5, %s267
      %p269 = scmp.lt.s32.totalorder %s18, 1
      %s270 = scalar_select %p269, %s18, 1
      %s271 = smul.addr %s270, 8
      %s272 = scalar_lea.vmem %s6, %s271
      %274 = vst [vmem:[#allocation2] sm:$0xff] 0.0
      %275 = vst [vmem:[#allocation2 + $0x8] sm:$0xff] 0.0
      %276 = vst [vmem:[#allocation2 + $0x10] sm:$0x3] 0.0
      %277 = vst [vmem:[#allocation2 + $0x18] sm:$0xff] 0.0
      %278 = vst [vmem:[#allocation2 + $0x20] sm:$0xff] 0.0
      %279 = vst [vmem:[#allocation2 + $0x28] sm:$0x3] 0.0
      %280 = vst [vmem:[#allocation2 + $0x30] sm:$0xff] 0.0
      %281 = vst [vmem:[#allocation2 + $0x38] sm:$0xff] 0.0
      %282 = vst [vmem:[#allocation2 + $0x40] sm:$0x3] 0.0
      %283 = vst [vmem:[#allocation2 + $0x48] sm:$0xff] 0.0
      %284 = vst [vmem:[#allocation2 + $0x50] sm:$0xff] 0.0
      %285 = vst [vmem:[#allocation2 + $0x58] sm:$0x3] 0.0
      %286 = vst [vmem:[#allocation2 + $0x60] sm:$0xff] 0.0
      %287 = vst [vmem:[#allocation2 + $0x68] sm:$0xff] 0.0
      %288 = vst [vmem:[#allocation2 + $0x70] sm:$0x3] 0.0
      %289 = vst [vmem:[#allocation2 + $0x78] sm:$0xff] 0.0
      %290 = vst [vmem:[#allocation2 + $0x80] sm:$0xff] 0.0
      %291 = vst [vmem:[#allocation2 + $0x88] sm:$0x3] 0.0
      %292 = vst [vmem:[#allocation2 + $0x90] sm:$0xff] 0.0
      %293 = vst [vmem:[#allocation2 + $0x98] sm:$0xff] 0.0
      %294 = vst [vmem:[#allocation2 + $0xa0] sm:$0x3] 0.0
      %295 = vst [vmem:[#allocation2 + $0xa8] sm:$0xff] 0.0
      %296 = vst [vmem:[#allocation2 + $0xb0] sm:$0xff] 0.0
      %297 = vst [vmem:[#allocation2 + $0xb8] sm:$0x3] 0.0
      %298 = vst [vmem:[#allocation2 + $0xc0] sm:$0xff] 0.0
      %299 = vst [vmem:[#allocation2 + $0xc8] sm:$0xff] 0.0
      %300 = vst [vmem:[#allocation2 + $0xd0] sm:$0x3] 0.0
      %301 = vst [vmem:[#allocation2 + $0xd8] sm:$0xff] 0.0
      %302 = vst [vmem:[#allocation2 + $0xe0] sm:$0xff] 0.0
      %303 = vst [vmem:[#allocation2 + $0xe8] sm:$0x3] 0.0
      %304 = vst [vmem:[#allocation2 + $0xf0] sm:$0xff] 0.0
      %305 = vst [vmem:[#allocation2 + $0xf8] sm:$0xff] 0.0
      %306 = vst [vmem:[#allocation2 + $0x100] sm:$0x3] 0.0
      %307 = vst [vmem:[#allocation2 + $0x108] sm:$0xff] 0.0
      %308 = vst [vmem:[#allocation2 + $0x110] sm:$0xff] 0.0
      %309 = vst [vmem:[#allocation2 + $0x118] sm:$0x3] 0.0
      %310 = vst [vmem:[#allocation2 + $0x120] sm:$0xff] 0.0
      %311 = vst [vmem:[#allocation2 + $0x128] sm:$0xff] 0.0
      %312 = vst [vmem:[#allocation2 + $0x130] sm:$0x3] 0.0
      %313 = vst [vmem:[#allocation2 + $0x138] sm:$0xff] 0.0
      %314 = vst [vmem:[#allocation2 + $0x140] sm:$0xff] 0.0
      %315 = vst [vmem:[#allocation2 + $0x148] sm:$0x3] 0.0
      %316 = vst [vmem:[#allocation2 + $0x150] sm:$0xff] 0.0
      %317 = vst [vmem:[#allocation2 + $0x158] sm:$0xff] 0.0
      %318 = vst [vmem:[#allocation2 + $0x160] sm:$0x3] 0.0
      %319 = vst [vmem:[#allocation2 + $0x168] sm:$0xff] 0.0
      %320 = vst [vmem:[#allocation2 + $0x170] sm:$0xff] 0.0
      %321 = vst [vmem:[#allocation2 + $0x178] sm:$0x3] 0.0
      %322 = vst [vmem:[#allocation2 + $0x180] sm:$0xff] 0.0
      %323 = vst [vmem:[#allocation2 + $0x188] sm:$0xff] 0.0
      %324 = vst [vmem:[#allocation2 + $0x190] sm:$0x3] 0.0
      %325 = vst [vmem:[#allocation2 + $0x198] sm:$0xff] 0.0
      %326 = vst [vmem:[#allocation2 + $0x1a0] sm:$0xff] 0.0
      %327 = vst [vmem:[#allocation2 + $0x1a8] sm:$0x3] 0.0
      %v328 = vld [vmem:[%s259] sm:$0xff]
      %v329 = vld [vmem:[%s259 + $0x8] sm:$0xff]
      %v330 = vld [vmem:[%s259 + $0x10] sm:$0xff]
      %v331 = vld [vmem:[%s259 + $0x18] sm:$0xff]
      %v332 = vld [vmem:[%s259 + $0x20] sm:$0xff]
      %v333 = vld [vmem:[%s259 + $0x28] sm:$0xff]
      %v334 = vld [vmem:[%s259 + $0x30] sm:$0xff]
      %v335 = vld [vmem:[%s259 + $0x38] sm:$0xff]
      %v336 = vld [vmem:[%s259 + $0x40] sm:$0xff]
      %v337 = vld [vmem:[%s259 + $0x48] sm:$0xff]
      %v338 = vld [vmem:[%s259 + $0x50] sm:$0xff]
      %v339 = vld [vmem:[%s259 + $0x58] sm:$0xff]
      %v340 = vld [vmem:[%s259 + $0x60] sm:$0xff]
      %v341 = vld [vmem:[%s259 + $0x68] sm:$0xff]
      %v342 = vld [vmem:[%s259 + $0x70] sm:$0xff]
      %v343 = vld [vmem:[%s259 + $0x78] sm:$0xff]
      %v344 = vld [vmem:[%s259 + $0x80] sm:$0xff]
      %v345 = vld [vmem:[%s259 + $0x88] sm:$0xff]
      %v346 = vld [vmem:[%s259 + $0x90] sm:$0xff]
      %v347 = vld [vmem:[%s259 + $0x98] sm:$0xff]
      %v348 = vld [vmem:[%s259 + $0xa0] sm:$0xff]
      %v349 = vld [vmem:[%s259 + $0xa8] sm:$0xff]
      %v350 = vld [vmem:[%s259 + $0xb0] sm:$0xff]
      %v351 = vld [vmem:[%s259 + $0xb8] sm:$0xff]
      %v352 = vld [vmem:[%s259 + $0xc0] sm:$0xff]
      %v353 = vld [vmem:[%s259 + $0xc8] sm:$0xff]
      %v354 = vld [vmem:[%s259 + $0xd0] sm:$0xff]
      %v355 = vld [vmem:[%s259 + $0xd8] sm:$0xff]
      %v356 = vld [vmem:[%s259 + $0xe0] sm:$0xff]
      %v357 = vld [vmem:[%s259 + $0xe8] sm:$0xff]
      %v358 = vld [vmem:[%s259 + $0xf0] sm:$0xff]
      %v359 = vld [vmem:[%s259 + $0xf8] sm:$0xff]
      %v360 = vld [vmem:[%s1] sm:$0x1]
      %v362 = vlaneseq
      %v363 = vshrl.u32 %v362, 7
      %v364 = vsub.s32 0, %v363
      %v365 = vrot.slane %v360, %v364
      %v367 = vmul.f32 %v328, %v365
      %v368 = vmul.f32 %v329, %v365
      %v369 = vmul.f32 %v330, %v365
      %v370 = vmul.f32 %v331, %v365
      %v371 = vmul.f32 %v332, %v365
      %v372 = vmul.f32 %v333, %v365
      %v373 = vmul.f32 %v334, %v365
      %v374 = vmul.f32 %v335, %v365
      %v375 = vmul.f32 %v336, %v365
      %v376 = vmul.f32 %v337, %v365
      %v377 = vmul.f32 %v338, %v365
      %v378 = vmul.f32 %v339, %v365
      %v379 = vmul.f32 %v340, %v365
      %v380 = vmul.f32 %v341, %v365
      %v381 = vmul.f32 %v342, %v365
      %v382 = vmul.f32 %v343, %v365
      %v383 = vmul.f32 %v344, %v365
      %v384 = vmul.f32 %v345, %v365
      %v385 = vmul.f32 %v346, %v365
      %v386 = vmul.f32 %v347, %v365
      %v387 = vmul.f32 %v348, %v365
      %v388 = vmul.f32 %v349, %v365
      %v389 = vmul.f32 %v350, %v365
      %v390 = vmul.f32 %v351, %v365
      %v391 = vmul.f32 %v352, %v365
      %v392 = vmul.f32 %v353, %v365
      %v393 = vmul.f32 %v354, %v365
      %v394 = vmul.f32 %v355, %v365
      %v395 = vmul.f32 %v356, %v365
      %v396 = vmul.f32 %v357, %v365
      %v397 = vmul.f32 %v358, %v365
      %v398 = vmul.f32 %v359, %v365
      %v399 = vld [vmem:[%s2] sm:$0x1]
      %v401 = vlaneseq
      %v402 = vshrl.u32 %v401, 7
      %v403 = vsub.s32 0, %v402
      %v404 = vrot.slane %v399, %v403
      %v406 = vadd.f32 %v367, %v404
      %v407 = vadd.f32 %v368, %v404
      %v408 = vadd.f32 %v369, %v404
      %v409 = vadd.f32 %v370, %v404
      %v410 = vadd.f32 %v371, %v404
      %v411 = vadd.f32 %v372, %v404
      %v412 = vadd.f32 %v373, %v404
      %v413 = vadd.f32 %v374, %v404
      %v414 = vadd.f32 %v375, %v404
      %v415 = vadd.f32 %v376, %v404
      %v416 = vadd.f32 %v377, %v404
      %v417 = vadd.f32 %v378, %v404
      %v418 = vadd.f32 %v379, %v404
      %v419 = vadd.f32 %v380, %v404
      %v420 = vadd.f32 %v381, %v404
      %v421 = vadd.f32 %v382, %v404
      %v422 = vadd.f32 %v383, %v404
      %v423 = vadd.f32 %v384, %v404
      %v424 = vadd.f32 %v385, %v404
      %v425 = vadd.f32 %v386, %v404
      %v426 = vadd.f32 %v387, %v404
      %v427 = vadd.f32 %v388, %v404
      %v428 = vadd.f32 %v389, %v404
      %v429 = vadd.f32 %v390, %v404
      %v430 = vadd.f32 %v391, %v404
      %v431 = vadd.f32 %v392, %v404
      %v432 = vadd.f32 %v393, %v404
      %v433 = vadd.f32 %v394, %v404
      %v434 = vadd.f32 %v395, %v404
      %v435 = vadd.f32 %v396, %v404
      %v436 = vadd.f32 %v397, %v404
      %v437 = vadd.f32 %v398, %v404
      %v438 = vmax.f32 %v406, 0.0
      %v439 = vmax.f32 %v407, 0.0
      %v440 = vmax.f32 %v408, 0.0
      %v441 = vmax.f32 %v409, 0.0
      %v442 = vmax.f32 %v410, 0.0
      %v443 = vmax.f32 %v411, 0.0
      %v444 = vmax.f32 %v412, 0.0
      %v445 = vmax.f32 %v413, 0.0
      %v446 = vmax.f32 %v414, 0.0
      %v447 = vmax.f32 %v415, 0.0
      %v448 = vmax.f32 %v416, 0.0
      %v449 = vmax.f32 %v417, 0.0
      %v450 = vmax.f32 %v418, 0.0
      %v451 = vmax.f32 %v419, 0.0
      %v452 = vmax.f32 %v420, 0.0
      %v453 = vmax.f32 %v421, 0.0
      %v454 = vmax.f32 %v422, 0.0
      %v455 = vmax.f32 %v423, 0.0
      %v456 = vmax.f32 %v424, 0.0
      %v457 = vmax.f32 %v425, 0.0
      %v458 = vmax.f32 %v426, 0.0
      %v459 = vmax.f32 %v427, 0.0
      %v460 = vmax.f32 %v428, 0.0
      %v461 = vmax.f32 %v429, 0.0
      %v462 = vmax.f32 %v430, 0.0
      %v463 = vmax.f32 %v431, 0.0
      %v464 = vmax.f32 %v432, 0.0
      %v465 = vmax.f32 %v433, 0.0
      %v466 = vmax.f32 %v434, 0.0
      %v467 = vmax.f32 %v435, 0.0
      %v468 = vmax.f32 %v436, 0.0
      %v469 = vmax.f32 %v437, 0.0
      %s470 = scalar_lea.vmem [#allocation2], 24
      %471 = vst [vmem:[%s470 + $0x1] sm:$0xff] %v438
      %472 = vst [vmem:[%s470 + $0x9] sm:$0xff] %v439
      %473 = vst [vmem:[%s470 + $0x19] sm:$0xff] %v440
      %474 = vst [vmem:[%s470 + $0x21] sm:$0xff] %v441
      %475 = vst [vmem:[%s470 + $0x31] sm:$0xff] %v442
      %476 = vst [vmem:[%s470 + $0x39] sm:$0xff] %v443
      %477 = vst [vmem:[%s470 + $0x49] sm:$0xff] %v444
      %478 = vst [vmem:[%s470 + $0x51] sm:$0xff] %v445
      %479 = vst [vmem:[%s470 + $0x61] sm:$0xff] %v446
      %480 = vst [vmem:[%s470 + $0x69] sm:$0xff] %v447
      %481 = vst [vmem:[%s470 + $0x79] sm:$0xff] %v448
      %482 = vst [vmem:[%s470 + $0x81] sm:$0xff] %v449
      %483 = vst [vmem:[%s470 + $0x91] sm:$0xff] %v450
      %484 = vst [vmem:[%s470 + $0x99] sm:$0xff] %v451
      %485 = vst [vmem:[%s470 + $0xa9] sm:$0xff] %v452
      %486 = vst [vmem:[%s470 + $0xb1] sm:$0xff] %v453
      %487 = vst [vmem:[%s470 + $0xc1] sm:$0xff] %v454
      %488 = vst [vmem:[%s470 + $0xc9] sm:$0xff] %v455
      %489 = vst [vmem:[%s470 + $0xd9] sm:$0xff] %v456
      %490 = vst [vmem:[%s470 + $0xe1] sm:$0xff] %v457
      %491 = vst [vmem:[%s470 + $0xf1] sm:$0xff] %v458
      %492 = vst [vmem:[%s470 + $0xf9] sm:$0xff] %v459
      %493 = vst [vmem:[%s470 + $0x109] sm:$0xff] %v460
      %494 = vst [vmem:[%s470 + $0x111] sm:$0xff] %v461
      %495 = vst [vmem:[%s470 + $0x121] sm:$0xff] %v462
      %496 = vst [vmem:[%s470 + $0x129] sm:$0xff] %v463
      %497 = vst [vmem:[%s470 + $0x139] sm:$0xff] %v464
      %498 = vst [vmem:[%s470 + $0x141] sm:$0xff] %v465
      %499 = vst [vmem:[%s470 + $0x151] sm:$0xff] %v466
      %500 = vst [vmem:[%s470 + $0x159] sm:$0xff] %v467
      %501 = vst [vmem:[%s470 + $0x169] sm:$0xff] %v468
      %502 = vst [vmem:[%s470 + $0x171] sm:$0xff] %v469
      %v503 = vld [vmem:[#allocation2] sm:$0xff]
      %v504 = vld [vmem:[#allocation2 + $0x8] sm:$0xff]
      %v505 = vld [vmem:[#allocation2 + $0x18] sm:$0xff]
      %v506 = vld [vmem:[#allocation2 + $0x20] sm:$0xff]
      %v507 = vld [vmem:[#allocation2 + $0x30] sm:$0xff]
      %v508 = vld [vmem:[#allocation2 + $0x38] sm:$0xff]
      %v509 = vld [vmem:[#allocation2 + $0x48] sm:$0xff]
      %v510 = vld [vmem:[#allocation2 + $0x50] sm:$0xff]
      %v511 = vld [vmem:[#allocation2 + $0x60] sm:$0xff]
      %v512 = vld [vmem:[#allocation2 + $0x68] sm:$0xff]
      %v513 = vld [vmem:[#allocation2 + $0x78] sm:$0xff]
      %v514 = vld [vmem:[#allocation2 + $0x80] sm:$0xff]
      %v515 = vld [vmem:[#allocation2 + $0x90] sm:$0xff]
      %v516 = vld [vmem:[#allocation2 + $0x98] sm:$0xff]
      %v517 = vld [vmem:[#allocation2 + $0xa8] sm:$0xff]
      %v518 = vld [vmem:[#allocation2 + $0xb0] sm:$0xff]
      %v519 = vld [vmem:[#allocation2 + $0xc0] sm:$0xff]
      %v520 = vld [vmem:[#allocation2 + $0xc8] sm:$0xff]
      %v521 = vld [vmem:[#allocation2 + $0xd8] sm:$0xff]
      %v522 = vld [vmem:[#allocation2 + $0xe0] sm:$0xff]
      %v523 = vld [vmem:[#allocation2 + $0xf0] sm:$0xff]
      %v524 = vld [vmem:[#allocation2 + $0xf8] sm:$0xff]
      %v525 = vld [vmem:[#allocation2 + $0x108] sm:$0xff]
      %v526 = vld [vmem:[#allocation2 + $0x110] sm:$0xff]
      %v527 = vld [vmem:[#allocation2 + $0x120] sm:$0xff]
      %v528 = vld [vmem:[#allocation2 + $0x128] sm:$0xff]
      %v529 = vld [vmem:[#allocation2 + $0x138] sm:$0xff]
      %v530 = vld [vmem:[#allocation2 + $0x140] sm:$0xff]
      %v531 = vld [vmem:[#allocation2 + $0x150] sm:$0xff]
      %v532 = vld [vmem:[#allocation2 + $0x158] sm:$0xff]
      %v533 = vld [vmem:[#allocation2 + $0x168] sm:$0xff]
      %v534 = vld [vmem:[#allocation2 + $0x170] sm:$0xff]
      %v535 = vpack.c.bf16 %v504, %v503
      %v536 = vpack.c.bf16 %v506, %v505
      %v537 = vpack.c.bf16 %v508, %v507
      %v538 = vpack.c.bf16 %v510, %v509
      %v539 = vpack.c.bf16 %v512, %v511
      %v540 = vpack.c.bf16 %v514, %v513
      %v541 = vpack.c.bf16 %v516, %v515
      %v542 = vpack.c.bf16 %v518, %v517
      %v543 = vpack.c.bf16 %v520, %v519
      %v544 = vpack.c.bf16 %v522, %v521
      %v545 = vpack.c.bf16 %v524, %v523
      %v546 = vpack.c.bf16 %v526, %v525
      %v547 = vpack.c.bf16 %v528, %v527
      %v548 = vpack.c.bf16 %v530, %v529
      %v549 = vpack.c.bf16 %v532, %v531
      %v550 = vpack.c.bf16 %v534, %v533
      %v551 = vld [vmem:[%s3] sm:$0xf]
      %v552 = vld [vmem:[%s3 + $0x4] sm:$0xf]
      %v553 = vld [vmem:[%s3 + $0x8] sm:$0xf]
      %v554 = vld [vmem:[%s3 + $0xc] sm:$0xf]
      %v555 = vld [vmem:[%s3 + $0x10] sm:$0xf]
      %v556 = vld [vmem:[%s3 + $0x14] sm:$0xf]
      %v557 = vld [vmem:[%s3 + $0x18] sm:$0xf]
      %v558 = vld [vmem:[%s3 + $0x1c] sm:$0xf]
      %v559 = vld [vmem:[%s3 + $0x20] sm:$0xf]
      %v560 = vld [vmem:[%s3 + $0x24] sm:$0xf]
      %v561 = vld [vmem:[%s3 + $0x28] sm:$0xf]
      %v562 = vld [vmem:[%s3 + $0x2c] sm:$0xf]
      %v563 = vld [vmem:[%s3 + $0x30] sm:$0xf]
      %v564 = vld [vmem:[%s3 + $0x34] sm:$0xf]
      %v565 = vld [vmem:[%s3 + $0x38] sm:$0xf]
      %v566 = vld [vmem:[%s3 + $0x3c] sm:$0xf]
      %v567 = vld [vmem:[#allocation2 + $0x1] sm:$0xff]
      %v568 = vld [vmem:[#allocation2 + $0x9] sm:$0xff]
      %v569 = vld [vmem:[#allocation2 + $0x19] sm:$0xff]
      %v570 = vld [vmem:[#allocation2 + $0x21] sm:$0xff]
      %v571 = vld [vmem:[#allocation2 + $0x31] sm:$0xff]
      %v572 = vld [vmem:[#allocation2 + $0x39] sm:$0xff]
      %v573 = vld [vmem:[#allocation2 + $0x49] sm:$0xff]
      %v574 = vld [vmem:[#allocation2 + $0x51] sm:$0xff]
      %v575 = vld [vmem:[#allocation2 + $0x61] sm:$0xff]
      %v576 = vld [vmem:[#allocation2 + $0x69] sm:$0xff]
      %v577 = vld [vmem:[#allocation2 + $0x79] sm:$0xff]
      %v578 = vld [vmem:[#allocation2 + $0x81] sm:$0xff]
      %v579 = vld [vmem:[#allocation2 + $0x91] sm:$0xff]
      %v580 = vld [vmem:[#allocation2 + $0x99] sm:$0xff]
      %v581 = vld [vmem:[#allocation2 + $0xa9] sm:$0xff]
      %v582 = vld [vmem:[#allocation2 + $0xb1] sm:$0xff]
      %v583 = vld [vmem:[#allocation2 + $0xc1] sm:$0xff]
      %v584 = vld [vmem:[#allocation2 + $0xc9] sm:$0xff]
      %v585 = vld [vmem:[#allocation2 + $0xd9] sm:$0xff]
      %v586 = vld [vmem:[#allocation2 + $0xe1] sm:$0xff]
      %v587 = vld [vmem:[#allocation2 + $0xf1] sm:$0xff]
      %v588 = vld [vmem:[#allocation2 + $0xf9] sm:$0xff]
      %v589 = vld [vmem:[#allocation2 + $0x109] sm:$0xff]
      %v590 = vld [vmem:[#allocation2 + $0x111] sm:$0xff]
      %v591 = vld [vmem:[#allocation2 + $0x121] sm:$0xff]
      %v592 = vld [vmem:[#allocation2 + $0x129] sm:$0xff]
      %v593 = vld [vmem:[#allocation2 + $0x139] sm:$0xff]
      %v594 = vld [vmem:[#allocation2 + $0x141] sm:$0xff]
      %v595 = vld [vmem:[#allocation2 + $0x151] sm:$0xff]
      %v596 = vld [vmem:[#allocation2 + $0x159] sm:$0xff]
      %v597 = vld [vmem:[#allocation2 + $0x169] sm:$0xff]
      %v598 = vld [vmem:[#allocation2 + $0x171] sm:$0xff]
      %v599 = vpack.c.bf16 %v568, %v567
      %v600 = vpack.c.bf16 %v570, %v569
      %v601 = vpack.c.bf16 %v572, %v571
      %v602 = vpack.c.bf16 %v574, %v573
      %v603 = vpack.c.bf16 %v576, %v575
      %v604 = vpack.c.bf16 %v578, %v577
      %v605 = vpack.c.bf16 %v580, %v579
      %v606 = vpack.c.bf16 %v582, %v581
      %v607 = vpack.c.bf16 %v584, %v583
      %v608 = vpack.c.bf16 %v586, %v585
      %v609 = vpack.c.bf16 %v588, %v587
      %v610 = vpack.c.bf16 %v590, %v589
      %v611 = vpack.c.bf16 %v592, %v591
      %v612 = vpack.c.bf16 %v594, %v593
      %v613 = vpack.c.bf16 %v596, %v595
      %v614 = vpack.c.bf16 %v598, %v597
      %s615 = scalar_lea.vmem %s3, 64
      %v616 = vld [vmem:[%s615] sm:$0xf]
      %v617 = vld [vmem:[%s615 + $0x4] sm:$0xf]
      %v618 = vld [vmem:[%s615 + $0x8] sm:$0xf]
      %v619 = vld [vmem:[%s615 + $0xc] sm:$0xf]
      %v620 = vld [vmem:[%s615 + $0x10] sm:$0xf]
      %v621 = vld [vmem:[%s615 + $0x14] sm:$0xf]
      %v622 = vld [vmem:[%s615 + $0x18] sm:$0xf]
      %v623 = vld [vmem:[%s615 + $0x1c] sm:$0xf]
      %v624 = vld [vmem:[%s615 + $0x20] sm:$0xf]
      %v625 = vld [vmem:[%s615 + $0x24] sm:$0xf]
      %v626 = vld [vmem:[%s615 + $0x28] sm:$0xf]
      %v627 = vld [vmem:[%s615 + $0x2c] sm:$0xf]
      %v628 = vld [vmem:[%s615 + $0x30] sm:$0xf]
      %v629 = vld [vmem:[%s615 + $0x34] sm:$0xf]
      %v630 = vld [vmem:[%s615 + $0x38] sm:$0xf]
      %v631 = vld [vmem:[%s615 + $0x3c] sm:$0xf]
      %v648 = vunpack.c.l.b16 %v616
      %v649 = vunpack.c.l.b16 %v617
      %v650 = vunpack.c.l.b16 %v618
      %v651 = vunpack.c.l.b16 %v619
      %v652 = vunpack.c.l.b16 %v620
      %v653 = vunpack.c.l.b16 %v621
      %v654 = vunpack.c.l.b16 %v622
      %v655 = vunpack.c.l.b16 %v623
      %v656 = vunpack.c.l.b16 %v624
      %v657 = vunpack.c.l.b16 %v625
      %v658 = vunpack.c.l.b16 %v626
      %v659 = vunpack.c.l.b16 %v627
      %v660 = vunpack.c.l.b16 %v628
      %v661 = vunpack.c.l.b16 %v629
      %v662 = vunpack.c.l.b16 %v630
      %v663 = vunpack.c.l.b16 %v631
      %v664 = vpack.c.b16 %v649, %v648
      %v665 = vpack.c.b16 %v651, %v650
      %v666 = vpack.c.b16 %v653, %v652
      %v667 = vpack.c.b16 %v655, %v654
      %v668 = vpack.c.b16 %v657, %v656
      %v669 = vpack.c.b16 %v659, %v658
      %v670 = vpack.c.b16 %v661, %v660
      %v671 = vpack.c.b16 %v663, %v662
      %680 = vmatprep.subr.bf16.mxu0 0
      %681 = vmatpush1.bf16.msra.mxu0 %v664
      %682 = vmatprep.subr.bf16.mxu0 0
      %683 = vmatpush1.bf16.msra.mxu0 %v665
      %684 = vmatprep.subr.bf16.mxu0 0
      %685 = vmatpush1.bf16.msra.mxu0 %v666
      %686 = vmatprep.subr.bf16.mxu0 0
      %687 = vmatpush1.bf16.msra.mxu0 %v667
      %688 = vmatprep.subr.bf16.mxu0 0
      %689 = vmatpush1.bf16.msra.mxu0 %v668
      %690 = vmatprep.subr.bf16.mxu0 0
      %691 = vmatpush1.bf16.msra.mxu0 %v669
      %692 = vmatprep.subr.bf16.mxu0 0
      %693 = vmatpush1.bf16.msra.mxu0 %v670
      %694 = vmatprep.subr.bf16.mxu0 0
      %695 = vmatpush1.bf16.msra.mxu0 %v671
      %696 = vmatprep.subr.bf16.mxu0 0
      %697 = vmatpush1.bf16.msra.mxu0 0
      %698 = vmatprep.subr.bf16.mxu0 0
      %699 = vmatpush1.bf16.msra.mxu0 0
      %700 = vmatprep.subr.bf16.mxu0 0
      %701 = vmatpush1.bf16.msra.mxu0 0
      %702 = vmatprep.subr.bf16.mxu0 0
      %703 = vmatpush1.bf16.msra.mxu0 0
      %704 = vmatprep.subr.bf16.mxu0 0
      %705 = vmatpush1.bf16.msra.mxu0 0
      %706 = vmatprep.subr.bf16.mxu0 0
      %707 = vmatpush1.bf16.msra.mxu0 0
      %708 = vmatprep.subr.bf16.mxu0 0
      %709 = vmatpush1.bf16.msra.mxu0 0
      %710 = vmatprep.subr.bf16.mxu0 0
      %711 = vmatpush1.bf16.msra.mxu0 0
      %712 = vmatprep.mubr.bf16.mxu0 0
      %713 = vmatmul.mubr.bf16.gmra.mrb[0].mxu0 %v599
      %v714 = vpop.f32.mrb[0].mxu0
      %v715 = vadd.f32 0.0, %v714
      %v716 = vpop.f32.mrb[0].mxu0
      %v717 = vpop.f32.mrb[0].mxu0
      %v718 = vadd.f32 0.0, %v717
      %v719 = vpop.f32.mrb[0].mxu0
      %720 = vmatprep.mubr.bf16.mxu0 0
      %721 = vmatmul.mubr.bf16.gmra.mrb[0].mxu0 %v600
      %v722 = vpop.f32.mrb[0].mxu0
      %v723 = vadd.f32 0.0, %v722
      %v724 = vpop.f32.mrb[0].mxu0
      %v725 = vpop.f32.mrb[0].mxu0
      %v726 = vadd.f32 0.0, %v725
      %v727 = vpop.f32.mrb[0].mxu0
      %728 = vmatprep.mubr.bf16.mxu0 0
      %729 = vmatmul.mubr.bf16.gmra.mrb[0].mxu0 %v601
      %v730 = vpop.f32.mrb[0].mxu0
      %v731 = vadd.f32 0.0, %v730
      %v732 = vpop.f32.mrb[0].mxu0
      %v733 = vpop.f32.mrb[0].mxu0
      %v734 = vadd.f32 0.0, %v733
      %v735 = vpop.f32.mrb[0].mxu0
      %736 = vmatprep.mubr.bf16.mxu0 0
      %737 = vmatmul.mubr.bf16.gmra.mrb[0].mxu0 %v602
      %v738 = vpop.f32.mrb[0].mxu0
      %v739 = vadd.f32 0.0, %v738
      %v740 = vpop.f32.mrb[0].mxu0
      %v741 = vpop.f32.mrb[0].mxu0
      %v742 = vadd.f32 0.0, %v741
      %v743 = vpop.f32.mrb[0].mxu0
      %744 = vmatprep.mubr.bf16.mxu0 0
      %745 = vmatmul.mubr.bf16.gmra.mrb[0].mxu0 %v603
      %v746 = vpop.f32.mrb[0].mxu0
      %v747 = vadd.f32 0.0, %v746
      %v748 = vpop.f32.mrb[0].mxu0
      %v749 = vpop.f32.mrb[0].mxu0
      %v750 = vadd.f32 0.0, %v749
      %v751 = vpop.f32.mrb[0].mxu0
      %752 = vmatprep.mubr.bf16.mxu0 0
      %753 = vmatmul.mubr.bf16.gmra.mrb[0].mxu0 %v604
      %v754 = vpop.f32.mrb[0].mxu0
      %v755 = vadd.f32 0.0, %v754
      %v756 = vpop.f32.mrb[0].mxu0
      %v757 = vpop.f32.mrb[0].mxu0
      %v758 = vadd.f32 0.0, %v757
      %v759 = vpop.f32.mrb[0].mxu0
      %760 = vmatprep.mubr.bf16.mxu0 0
      %761 = vmatmul.mubr.bf16.gmra.mrb[0].mxu0 %v605
      %v762 = vpop.f32.mrb[0].mxu0
      %v763 = vadd.f32 0.0, %v762
      %v764 = vpop.f32.mrb[0].mxu0
      %v765 = vpop.f32.mrb[0].mxu0
      %v766 = vadd.f32 0.0, %v765
      %v767 = vpop.f32.mrb[0].mxu0
      %768 = vmatprep.mubr.bf16.mxu0 0
      %769 = vmatmul.mubr.bf16.gmra.mrb[0].mxu0 %v606
      %v770 = vpop.f32.mrb[0].mxu0
      %v771 = vadd.f32 0.0, %v770
      %v772 = vpop.f32.mrb[0].mxu0
      %v773 = vpop.f32.mrb[0].mxu0
      %v774 = vadd.f32 0.0, %v773
      %v775 = vpop.f32.mrb[0].mxu0
      %776 = vmatprep.mubr.bf16.mxu0 0
      %777 = vmatmul.mubr.bf16.gmra.mrb[0].mxu0 %v607
      %v778 = vpop.f32.mrb[0].mxu0
      %v779 = vadd.f32 0.0, %v778
      %v780 = vpop.f32.mrb[0].mxu0
      %v781 = vpop.f32.mrb[0].mxu0
      %v782 = vadd.f32 0.0, %v781
      %v783 = vpop.f32.mrb[0].mxu0
      %784 = vmatprep.mubr.bf16.mxu0 0
      %785 = vmatmul.mubr.bf16.gmra.mrb[0].mxu0 %v608
      %v786 = vpop.f32.mrb[0].mxu0
      %v787 = vadd.f32 0.0, %v786
      %v788 = vpop.f32.mrb[0].mxu0
      %v789 = vpop.f32.mrb[0].mxu0
      %v790 = vadd.f32 0.0, %v789
      %v791 = vpop.f32.mrb[0].mxu0
      %792 = vmatprep.mubr.bf16.mxu0 0
      %793 = vmatmul.mubr.bf16.gmra.mrb[0].mxu0 %v609
      %v794 = vpop.f32.mrb[0].mxu0
      %v795 = vadd.f32 0.0, %v794
      %v796 = vpop.f32.mrb[0].mxu0
      %v797 = vpop.f32.mrb[0].mxu0
      %v798 = vadd.f32 0.0, %v797
      %v799 = vpop.f32.mrb[0].mxu0
      %800 = vmatprep.mubr.bf16.mxu0 0
      %801 = vmatmul.mubr.bf16.gmra.mrb[0].mxu0 %v610
      %v802 = vpop.f32.mrb[0].mxu0
      %v803 = vadd.f32 0.0, %v802
      %v804 = vpop.f32.mrb[0].mxu0
      %v805 = vpop.f32.mrb[0].mxu0
      %v806 = vadd.f32 0.0, %v805
      %v807 = vpop.f32.mrb[0].mxu0
      %808 = vmatprep.mubr.bf16.mxu0 0
      %809 = vmatmul.mubr.bf16.gmra.mrb[0].mxu0 %v611
      %v810 = vpop.f32.mrb[0].mxu0
      %v811 = vadd.f32 0.0, %v810
      %v812 = vpop.f32.mrb[0].mxu0
      %v813 = vpop.f32.mrb[0].mxu0
      %v814 = vadd.f32 0.0, %v813
      %v815 = vpop.f32.mrb[0].mxu0
      %816 = vmatprep.mubr.bf16.mxu0 0
      %817 = vmatmul.mubr.bf16.gmra.mrb[0].mxu0 %v612
      %v818 = vpop.f32.mrb[0].mxu0
      %v819 = vadd.f32 0.0, %v818
      %v820 = vpop.f32.mrb[0].mxu0
      %v821 = vpop.f32.mrb[0].mxu0
      %v822 = vadd.f32 0.0, %v821
      %v823 = vpop.f32.mrb[0].mxu0
      %824 = vmatprep.mubr.bf16.mxu0 0
      %825 = vmatmul.mubr.bf16.gmra.mrb[0].mxu0 %v613
      %v826 = vpop.f32.mrb[0].mxu0
      %v827 = vadd.f32 0.0, %v826
      %v828 = vpop.f32.mrb[0].mxu0
      %v829 = vpop.f32.mrb[0].mxu0
      %v830 = vadd.f32 0.0, %v829
      %v831 = vpop.f32.mrb[0].mxu0
      %832 = vmatprep.mubr.bf16.mxu0 0
      %833 = vmatmul.mubr.bf16.gmra.mrb[0].mxu0 %v614
      %v834 = vpop.f32.mrb[0].mxu0
      %v835 = vadd.f32 0.0, %v834
      %v836 = vpop.f32.mrb[0].mxu0
      %v837 = vpop.f32.mrb[0].mxu0
      %v838 = vadd.f32 0.0, %v837
      %v839 = vpop.f32.mrb[0].mxu0
      %840 = vdwg.mxu0
      %v857 = vunpack.c.l.b16 %v551
      %v858 = vunpack.c.l.b16 %v552
      %v859 = vunpack.c.l.b16 %v553
      %v860 = vunpack.c.l.b16 %v554
      %v861 = vunpack.c.l.b16 %v555
      %v862 = vunpack.c.l.b16 %v556
      %v863 = vunpack.c.l.b16 %v557
      %v864 = vunpack.c.l.b16 %v558
      %v865 = vunpack.c.l.b16 %v559
      %v866 = vunpack.c.l.b16 %v560
      %v867 = vunpack.c.l.b16 %v561
      %v868 = vunpack.c.l.b16 %v562
      %v869 = vunpack.c.l.b16 %v563
      %v870 = vunpack.c.l.b16 %v564
      %v871 = vunpack.c.l.b16 %v565
      %v872 = vunpack.c.l.b16 %v566
      %v873 = vpack.c.b16 %v858, %v857
      %v874 = vpack.c.b16 %v860, %v859
      %v875 = vpack.c.b16 %v862, %v861
      %v876 = vpack.c.b16 %v864, %v863
      %v877 = vpack.c.b16 %v866, %v865
      %v878 = vpack.c.b16 %v868, %v867
      %v879 = vpack.c.b16 %v870, %v869
      %v880 = vpack.c.b16 %v872, %v871
      %889 = vmatprep.subr.bf16.mxu0 0
      %890 = vmatpush1.bf16.msra.mxu0 %v873
      %891 = vmatprep.subr.bf16.mxu0 0
      %892 = vmatpush1.bf16.msra.mxu0 %v874
      %893 = vmatprep.subr.bf16.mxu0 0
      %894 = vmatpush1.bf16.msra.mxu0 %v875
      %895 = vmatprep.subr.bf16.mxu0 0
      %896 = vmatpush1.bf16.msra.mxu0 %v876
      %897 = vmatprep.subr.bf16.mxu0 0
      %898 = vmatpush1.bf16.msra.mxu0 %v877
      %899 = vmatprep.subr.bf16.mxu0 0
      %900 = vmatpush1.bf16.msra.mxu0 %v878
      %901 = vmatprep.subr.bf16.mxu0 0
      %902 = vmatpush1.bf16.msra.mxu0 %v879
      %903 = vmatprep.subr.bf16.mxu0 0
      %904 = vmatpush1.bf16.msra.mxu0 %v880
      %905 = vmatprep.subr.bf16.mxu0 0
      %906 = vmatpush1.bf16.msra.mxu0 0
      %907 = vmatprep.subr.bf16.mxu0 0
      %908 = vmatpush1.bf16.msra.mxu0 0
      %909 = vmatprep.subr.bf16.mxu0 0
      %910 = vmatpush1.bf16.msra.mxu0 0
      %911 = vmatprep.subr.bf16.mxu0 0
      %912 = vmatpush1.bf16.msra.mxu0 0
      %913 = vmatprep.subr.bf16.mxu0 0
      %914 = vmatpush1.bf16.msra.mxu0 0
      %915 = vmatprep.subr.bf16.mxu0 0
      %916 = vmatpush1.bf16.msra.mxu0 0
      %917 = vmatprep.subr.bf16.mxu0 0
      %918 = vmatpush1.bf16.msra.mxu0 0
      %919 = vmatprep.subr.bf16.mxu0 0
      %920 = vmatpush1.bf16.msra.mxu0 0
      %921 = vmatprep.mubr.bf16.mxu0 0
      %922 = vmatmul.mubr.bf16.gmra.mrb[0].mxu0 %v535
      %v923 = vpop.f32.mrb[0].mxu0
      %v924 = vadd.f32 %v715, %v923
      %v925 = vpop.f32.mrb[0].mxu0
      %v926 = vpop.f32.mrb[0].mxu0
      %v927 = vadd.f32 %v718, %v926
      %v928 = vpop.f32.mrb[0].mxu0
      %929 = vmatprep.mubr.bf16.mxu0 0
      %930 = vmatmul.mubr.bf16.gmra.mrb[0].mxu0 %v536
      %v931 = vpop.f32.mrb[0].mxu0
      %v932 = vadd.f32 %v723, %v931
      %v933 = vpop.f32.mrb[0].mxu0
      %v934 = vpop.f32.mrb[0].mxu0
      %v935 = vadd.f32 %v726, %v934
      %v936 = vpop.f32.mrb[0].mxu0
      %937 = vmatprep.mubr.bf16.mxu0 0
      %938 = vmatmul.mubr.bf16.gmra.mrb[0].mxu0 %v537
      %v939 = vpop.f32.mrb[0].mxu0
      %v940 = vadd.f32 %v731, %v939
      %v941 = vpop.f32.mrb[0].mxu0
      %v942 = vpop.f32.mrb[0].mxu0
      %v943 = vadd.f32 %v734, %v942
      %v944 = vpop.f32.mrb[0].mxu0
      %945 = vmatprep.mubr.bf16.mxu0 0
      %946 = vmatmul.mubr.bf16.gmra.mrb[0].mxu0 %v538
      %v947 = vpop.f32.mrb[0].mxu0
      %v948 = vadd.f32 %v739, %v947
      %v949 = vpop.f32.mrb[0].mxu0
      %v950 = vpop.f32.mrb[0].mxu0
      %v951 = vadd.f32 %v742, %v950
      %v952 = vpop.f32.mrb[0].mxu0
      %953 = vmatprep.mubr.bf16.mxu0 0
      %954 = vmatmul.mubr.bf16.gmra.mrb[0].mxu0 %v539
      %v955 = vpop.f32.mrb[0].mxu0
      %v956 = vadd.f32 %v747, %v955
      %v957 = vpop.f32.mrb[0].mxu0
      %v958 = vpop.f32.mrb[0].mxu0
      %v959 = vadd.f32 %v750, %v958
      %v960 = vpop.f32.mrb[0].mxu0
      %961 = vmatprep.mubr.bf16.mxu0 0
      %962 = vmatmul.mubr.bf16.gmra.mrb[0].mxu0 %v540
      %v963 = vpop.f32.mrb[0].mxu0
      %v964 = vadd.f32 %v755, %v963
      %v965 = vpop.f32.mrb[0].mxu0
      %v966 = vpop.f32.mrb[0].mxu0
      %v967 = vadd.f32 %v758, %v966
      %v968 = vpop.f32.mrb[0].mxu0
      %969 = vmatprep.mubr.bf16.mxu0 0
      %970 = vmatmul.mubr.bf16.gmra.mrb[0].mxu0 %v541
      %v971 = vpop.f32.mrb[0].mxu0
      %v972 = vadd.f32 %v763, %v971
      %v973 = vpop.f32.mrb[0].mxu0
      %v974 = vpop.f32.mrb[0].mxu0
      %v975 = vadd.f32 %v766, %v974
      %v976 = vpop.f32.mrb[0].mxu0
      %977 = vmatprep.mubr.bf16.mxu0 0
      %978 = vmatmul.mubr.bf16.gmra.mrb[0].mxu0 %v542
      %v979 = vpop.f32.mrb[0].mxu0
      %v980 = vadd.f32 %v771, %v979
      %v981 = vpop.f32.mrb[0].mxu0
      %v982 = vpop.f32.mrb[0].mxu0
      %v983 = vadd.f32 %v774, %v982
      %v984 = vpop.f32.mrb[0].mxu0
      %985 = vmatprep.mubr.bf16.mxu0 0
      %986 = vmatmul.mubr.bf16.gmra.mrb[0].mxu0 %v543
      %v987 = vpop.f32.mrb[0].mxu0
      %v988 = vadd.f32 %v779, %v987
      %v989 = vpop.f32.mrb[0].mxu0
      %v990 = vpop.f32.mrb[0].mxu0
      %v991 = vadd.f32 %v782, %v990
      %v992 = vpop.f32.mrb[0].mxu0
      %993 = vmatprep.mubr.bf16.mxu0 0
      %994 = vmatmul.mubr.bf16.gmra.mrb[0].mxu0 %v544
      %v995 = vpop.f32.mrb[0].mxu0
      %v996 = vadd.f32 %v787, %v995
      %v997 = vpop.f32.mrb[0].mxu0
      %v998 = vpop.f32.mrb[0].mxu0
      %v999 = vadd.f32 %v790, %v998
      %v1000 = vpop.f32.mrb[0].mxu0
      %1001 = vmatprep.mubr.bf16.mxu0 0
      %1002 = vmatmul.mubr.bf16.gmra.mrb[0].mxu0 %v545
      %v1003 = vpop.f32.mrb[0].mxu0
      %v1004 = vadd.f32 %v795, %v1003
      %v1005 = vpop.f32.mrb[0].mxu0
      %v1006 = vpop.f32.mrb[0].mxu0
      %v1007 = vadd.f32 %v798, %v1006
      %v1008 = vpop.f32.mrb[0].mxu0
      %1009 = vmatprep.mubr.bf16.mxu0 0
      %1010 = vmatmul.mubr.bf16.gmra.mrb[0].mxu0 %v546
      %v1011 = vpop.f32.mrb[0].mxu0
      %v1012 = vadd.f32 %v803, %v1011
      %v1013 = vpop.f32.mrb[0].mxu0
      %v1014 = vpop.f32.mrb[0].mxu0
      %v1015 = vadd.f32 %v806, %v1014
      %v1016 = vpop.f32.mrb[0].mxu0
      %1017 = vmatprep.mubr.bf16.mxu0 0
      %1018 = vmatmul.mubr.bf16.gmra.mrb[0].mxu0 %v547
      %v1019 = vpop.f32.mrb[0].mxu0
      %v1020 = vadd.f32 %v811, %v1019
      %v1021 = vpop.f32.mrb[0].mxu0
      %v1022 = vpop.f32.mrb[0].mxu0
      %v1023 = vadd.f32 %v814, %v1022
      %v1024 = vpop.f32.mrb[0].mxu0
      %1025 = vmatprep.mubr.bf16.mxu0 0
      %1026 = vmatmul.mubr.bf16.gmra.mrb[0].mxu0 %v548
      %v1027 = vpop.f32.mrb[0].mxu0
      %v1028 = vadd.f32 %v819, %v1027
      %v1029 = vpop.f32.mrb[0].mxu0
      %v1030 = vpop.f32.mrb[0].mxu0
      %v1031 = vadd.f32 %v822, %v1030
      %v1032 = vpop.f32.mrb[0].mxu0
      %1033 = vmatprep.mubr.bf16.mxu0 0
      %1034 = vmatmul.mubr.bf16.gmra.mrb[0].mxu0 %v549
      %v1035 = vpop.f32.mrb[0].mxu0
      %v1036 = vadd.f32 %v827, %v1035
      %v1037 = vpop.f32.mrb[0].mxu0
      %v1038 = vpop.f32.mrb[0].mxu0
      %v1039 = vadd.f32 %v830, %v1038
      %v1040 = vpop.f32.mrb[0].mxu0
      %1041 = vmatprep.mubr.bf16.mxu0 0
      %1042 = vmatmul.mubr.bf16.gmra.mrb[0].mxu0 %v550
      %v1043 = vpop.f32.mrb[0].mxu0
      %v1044 = vadd.f32 %v835, %v1043
      %v1045 = vpop.f32.mrb[0].mxu0
      %v1046 = vpop.f32.mrb[0].mxu0
      %v1047 = vadd.f32 %v838, %v1046
      %v1048 = vpop.f32.mrb[0].mxu0
      %1049 = vdwg.mxu0
      %v1050 = vld [vmem:[#allocation2 + $0x2] sm:$0xff]
      %v1051 = vld [vmem:[#allocation2 + $0xa] sm:$0xff]
      %v1052 = vld [vmem:[#allocation2 + $0x1a] sm:$0xff]
      %v1053 = vld [vmem:[#allocation2 + $0x22] sm:$0xff]
      %v1054 = vld [vmem:[#allocation2 + $0x32] sm:$0xff]
      %v1055 = vld [vmem:[#allocation2 + $0x3a] sm:$0xff]
      %v1056 = vld [vmem:[#allocation2 + $0x4a] sm:$0xff]
      %v1057 = vld [vmem:[#allocation2 + $0x52] sm:$0xff]
      %v1058 = vld [vmem:[#allocation2 + $0x62] sm:$0xff]
      %v1059 = vld [vmem:[#allocation2 + $0x6a] sm:$0xff]
      %v1060 = vld [vmem:[#allocation2 + $0x7a] sm:$0xff]
      %v1061 = vld [vmem:[#allocation2 + $0x82] sm:$0xff]
      %v1062 = vld [vmem:[#allocation2 + $0x92] sm:$0xff]
      %v1063 = vld [vmem:[#allocation2 + $0x9a] sm:$0xff]
      %v1064 = vld [vmem:[#allocation2 + $0xaa] sm:$0xff]
      %v1065 = vld [vmem:[#allocation2 + $0xb2] sm:$0xff]
      %v1066 = vld [vmem:[#allocation2 + $0xc2] sm:$0xff]
      %v1067 = vld [vmem:[#allocation2 + $0xca] sm:$0xff]
      %v1068 = vld [vmem:[#allocation2 + $0xda] sm:$0xff]
      %v1069 = vld [vmem:[#allocation2 + $0xe2] sm:$0xff]
      %v1070 = vld [vmem:[#allocation2 + $0xf2] sm:$0xff]
      %v1071 = vld [vmem:[#allocation2 + $0xfa] sm:$0xff]
      %v1072 = vld [vmem:[#allocation2 + $0x10a] sm:$0xff]
      %v1073 = vld [vmem:[#allocation2 + $0x112] sm:$0xff]
      %v1074 = vld [vmem:[#allocation2 + $0x122] sm:$0xff]
      %v1075 = vld [vmem:[#allocation2 + $0x12a] sm:$0xff]
      %v1076 = vld [vmem:[#allocation2 + $0x13a] sm:$0xff]
      %v1077 = vld [vmem:[#allocation2 + $0x142] sm:$0xff]
      %v1078 = vld [vmem:[#allocation2 + $0x152] sm:$0xff]
      %v1079 = vld [vmem:[#allocation2 + $0x15a] sm:$0xff]
      %v1080 = vld [vmem:[#allocation2 + $0x16a] sm:$0xff]
      %v1081 = vld [vmem:[#allocation2 + $0x172] sm:$0xff]
      %v1082 = vpack.c.bf16 %v1051, %v1050
      %v1083 = vpack.c.bf16 %v1053, %v1052
      %v1084 = vpack.c.bf16 %v1055, %v1054
      %v1085 = vpack.c.bf16 %v1057, %v1056
      %v1086 = vpack.c.bf16 %v1059, %v1058
      %v1087 = vpack.c.bf16 %v1061, %v1060
      %v1088 = vpack.c.bf16 %v1063, %v1062
      %v1089 = vpack.c.bf16 %v1065, %v1064
      %v1090 = vpack.c.bf16 %v1067, %v1066
      %v1091 = vpack.c.bf16 %v1069, %v1068
      %v1092 = vpack.c.bf16 %v1071, %v1070
      %v1093 = vpack.c.bf16 %v1073, %v1072
      %v1094 = vpack.c.bf16 %v1075, %v1074
      %v1095 = vpack.c.bf16 %v1077, %v1076
      %v1096 = vpack.c.bf16 %v1079, %v1078
      %v1097 = vpack.c.bf16 %v1081, %v1080
      %s1098 = scalar_lea.vmem %s3, 128
      %v1099 = vld [vmem:[%s1098] sm:$0xf]
      %v1100 = vld [vmem:[%s1098 + $0x4] sm:$0xf]
      %v1101 = vld [vmem:[%s1098 + $0x8] sm:$0xf]
      %v1102 = vld [vmem:[%s1098 + $0xc] sm:$0xf]
      %v1103 = vld [vmem:[%s1098 + $0x10] sm:$0xf]
      %v1104 = vld [vmem:[%s1098 + $0x14] sm:$0xf]
      %v1105 = vld [vmem:[%s1098 + $0x18] sm:$0xf]
      %v1106 = vld [vmem:[%s1098 + $0x1c] sm:$0xf]
      %v1107 = vld [vmem:[%s1098 + $0x20] sm:$0xf]
      %v1108 = vld [vmem:[%s1098 + $0x24] sm:$0xf]
      %v1109 = vld [vmem:[%s1098 + $0x28] sm:$0xf]
      %v1110 = vld [vmem:[%s1098 + $0x2c] sm:$0xf]
      %v1111 = vld [vmem:[%s1098 + $0x30] sm:$0xf]
      %v1112 = vld [vmem:[%s1098 + $0x34] sm:$0xf]
      %v1113 = vld [vmem:[%s1098 + $0x38] sm:$0xf]
      %v1114 = vld [vmem:[%s1098 + $0x3c] sm:$0xf]
      %v1131 = vunpack.c.l.b16 %v1099
      %v1132 = vunpack.c.l.b16 %v1100
      %v1133 = vunpack.c.l.b16 %v1101
      %v1134 = vunpack.c.l.b16 %v1102
      %v1135 = vunpack.c.l.b16 %v1103
      %v1136 = vunpack.c.l.b16 %v1104
      %v1137 = vunpack.c.l.b16 %v1105
      %v1138 = vunpack.c.l.b16 %v1106
      %v1139 = vunpack.c.l.b16 %v1107
      %v1140 = vunpack.c.l.b16 %v1108
      %v1141 = vunpack.c.l.b16 %v1109
      %v1142 = vunpack.c.l.b16 %v1110
      %v1143 = vunpack.c.l.b16 %v1111
      %v1144 = vunpack.c.l.b16 %v1112
      %v1145 = vunpack.c.l.b16 %v1113
      %v1146 = vunpack.c.l.b16 %v1114
      %v1147 = vpack.c.b16 %v1132, %v1131
      %v1148 = vpack.c.b16 %v1134, %v1133
      %v1149 = vpack.c.b16 %v1136, %v1135
      %v1150 = vpack.c.b16 %v1138, %v1137
      %v1151 = vpack.c.b16 %v1140, %v1139
      %v1152 = vpack.c.b16 %v1142, %v1141
      %v1153 = vpack.c.b16 %v1144, %v1143
      %v1154 = vpack.c.b16 %v1146, %v1145
      %1163 = vmatprep.subr.bf16.mxu0 0
      %1164 = vmatpush1.bf16.msra.mxu0 %v1147
      %1165 = vmatprep.subr.bf16.mxu0 0
      %1166 = vmatpush1.bf16.msra.mxu0 %v1148
      %1167 = vmatprep.subr.bf16.mxu0 0
      %1168 = vmatpush1.bf16.msra.mxu0 %v1149
      %1169 = vmatprep.subr.bf16.mxu0 0
      %1170 = vmatpush1.bf16.msra.mxu0 %v1150
      %1171 = vmatprep.subr.bf16.mxu0 0
      %1172 = vmatpush1.bf16.msra.mxu0 %v1151
      %1173 = vmatprep.subr.bf16.mxu0 0
      %1174 = vmatpush1.bf16.msra.mxu0 %v1152
      %1175 = vmatprep.subr.bf16.mxu0 0
      %1176 = vmatpush1.bf16.msra.mxu0 %v1153
      %1177 = vmatprep.subr.bf16.mxu0 0
      %1178 = vmatpush1.bf16.msra.mxu0 %v1154
      %1179 = vmatprep.subr.bf16.mxu0 0
      %1180 = vmatpush1.bf16.msra.mxu0 0
      %1181 = vmatprep.subr.bf16.mxu0 0
      %1182 = vmatpush1.bf16.msra.mxu0 0
      %1183 = vmatprep.subr.bf16.mxu0 0
      %1184 = vmatpush1.bf16.msra.mxu0 0
      %1185 = vmatprep.subr.bf16.mxu0 0
      %1186 = vmatpush1.bf16.msra.mxu0 0
      %1187 = vmatprep.subr.bf16.mxu0 0
      %1188 = vmatpush1.bf16.msra.mxu0 0
      %1189 = vmatprep.subr.bf16.mxu0 0
      %1190 = vmatpush1.bf16.msra.mxu0 0
      %1191 = vmatprep.subr.bf16.mxu0 0
      %1192 = vmatpush1.bf16.msra.mxu0 0
      %1193 = vmatprep.subr.bf16.mxu0 0
      %1194 = vmatpush1.bf16.msra.mxu0 0
      %1195 = vmatprep.mubr.bf16.mxu0 0
      %1196 = vmatmul.mubr.bf16.gmra.mrb[0].mxu0 %v1082
      %v1197 = vpop.f32.mrb[0].mxu0
      %v1198 = vadd.f32 0.0, %v1197
      %v1199 = vpop.f32.mrb[0].mxu0
      %v1200 = vpop.f32.mrb[0].mxu0
      %v1201 = vadd.f32 0.0, %v1200
      %v1202 = vpop.f32.mrb[0].mxu0
      %1203 = vmatprep.mubr.bf16.mxu0 0
      %1204 = vmatmul.mubr.bf16.gmra.mrb[0].mxu0 %v1083
      %v1205 = vpop.f32.mrb[0].mxu0
      %v1206 = vadd.f32 0.0, %v1205
      %v1207 = vpop.f32.mrb[0].mxu0
      %v1208 = vpop.f32.mrb[0].mxu0
      %v1209 = vadd.f32 0.0, %v1208
      %v1210 = vpop.f32.mrb[0].mxu0
      %1211 = vmatprep.mubr.bf16.mxu0 0
      %1212 = vmatmul.mubr.bf16.gmra.mrb[0].mxu0 %v1084
      %v1213 = vpop.f32.mrb[0].mxu0
      %v1214 = vadd.f32 0.0, %v1213
      %v1215 = vpop.f32.mrb[0].mxu0
      %v1216 = vpop.f32.mrb[0].mxu0
      %v1217 = vadd.f32 0.0, %v1216
      %v1218 = vpop.f32.mrb[0].mxu0
      %1219 = vmatprep.mubr.bf16.mxu0 0
      %1220 = vmatmul.mubr.bf16.gmra.mrb[0].mxu0 %v1085
      %v1221 = vpop.f32.mrb[0].mxu0
      %v1222 = vadd.f32 0.0, %v1221
      %v1223 = vpop.f32.mrb[0].mxu0
      %v1224 = vpop.f32.mrb[0].mxu0
      %v1225 = vadd.f32 0.0, %v1224
      %v1226 = vpop.f32.mrb[0].mxu0
      %1227 = vmatprep.mubr.bf16.mxu0 0
      %1228 = vmatmul.mubr.bf16.gmra.mrb[0].mxu0 %v1086
      %v1229 = vpop.f32.mrb[0].mxu0
      %v1230 = vadd.f32 0.0, %v1229
      %v1231 = vpop.f32.mrb[0].mxu0
      %v1232 = vpop.f32.mrb[0].mxu0
      %v1233 = vadd.f32 0.0, %v1232
      %v1234 = vpop.f32.mrb[0].mxu0
      %1235 = vmatprep.mubr.bf16.mxu0 0
      %1236 = vmatmul.mubr.bf16.gmra.mrb[0].mxu0 %v1087
      %v1237 = vpop.f32.mrb[0].mxu0
      %v1238 = vadd.f32 0.0, %v1237
      %v1239 = vpop.f32.mrb[0].mxu0
      %v1240 = vpop.f32.mrb[0].mxu0
      %v1241 = vadd.f32 0.0, %v1240
      %v1242 = vpop.f32.mrb[0].mxu0
      %1243 = vmatprep.mubr.bf16.mxu0 0
      %1244 = vmatmul.mubr.bf16.gmra.mrb[0].mxu0 %v1088
      %v1245 = vpop.f32.mrb[0].mxu0
      %v1246 = vadd.f32 0.0, %v1245
      %v1247 = vpop.f32.mrb[0].mxu0
      %v1248 = vpop.f32.mrb[0].mxu0
      %v1249 = vadd.f32 0.0, %v1248
      %v1250 = vpop.f32.mrb[0].mxu0
      %1251 = vmatprep.mubr.bf16.mxu0 0
      %1252 = vmatmul.mubr.bf16.gmra.mrb[0].mxu0 %v1089
      %v1253 = vpop.f32.mrb[0].mxu0
      %v1254 = vadd.f32 0.0, %v1253
      %v1255 = vpop.f32.mrb[0].mxu0
      %v1256 = vpop.f32.mrb[0].mxu0
      %v1257 = vadd.f32 0.0, %v1256
      %v1258 = vpop.f32.mrb[0].mxu0
      %1259 = vmatprep.mubr.bf16.mxu0 0
      %1260 = vmatmul.mubr.bf16.gmra.mrb[0].mxu0 %v1090
      %v1261 = vpop.f32.mrb[0].mxu0
      %v1262 = vadd.f32 0.0, %v1261
      %v1263 = vpop.f32.mrb[0].mxu0
      %v1264 = vpop.f32.mrb[0].mxu0
      %v1265 = vadd.f32 0.0, %v1264
      %v1266 = vpop.f32.mrb[0].mxu0
      %1267 = vmatprep.mubr.bf16.mxu0 0
      %1268 = vmatmul.mubr.bf16.gmra.mrb[0].mxu0 %v1091
      %v1269 = vpop.f32.mrb[0].mxu0
      %v1270 = vadd.f32 0.0, %v1269
      %v1271 = vpop.f32.mrb[0].mxu0
      %v1272 = vpop.f32.mrb[0].mxu0
      %v1273 = vadd.f32 0.0, %v1272
      %v1274 = vpop.f32.mrb[0].mxu0
      %1275 = vmatprep.mubr.bf16.mxu0 0
      %1276 = vmatmul.mubr.bf16.gmra.mrb[0].mxu0 %v1092
      %v1277 = vpop.f32.mrb[0].mxu0
      %v1278 = vadd.f32 0.0, %v1277
      %v1279 = vpop.f32.mrb[0].mxu0
      %v1280 = vpop.f32.mrb[0].mxu0
      %v1281 = vadd.f32 0.0, %v1280
      %v1282 = vpop.f32.mrb[0].mxu0
      %1283 = vmatprep.mubr.bf16.mxu0 0
      %1284 = vmatmul.mubr.bf16.gmra.mrb[0].mxu0 %v1093
      %v1285 = vpop.f32.mrb[0].mxu0
      %v1286 = vadd.f32 0.0, %v1285
      %v1287 = vpop.f32.mrb[0].mxu0
      %v1288 = vpop.f32.mrb[0].mxu0
      %v1289 = vadd.f32 0.0, %v1288
      %v1290 = vpop.f32.mrb[0].mxu0
      %1291 = vmatprep.mubr.bf16.mxu0 0
      %1292 = vmatmul.mubr.bf16.gmra.mrb[0].mxu0 %v1094
      %v1293 = vpop.f32.mrb[0].mxu0
      %v1294 = vadd.f32 0.0, %v1293
      %v1295 = vpop.f32.mrb[0].mxu0
      %v1296 = vpop.f32.mrb[0].mxu0
      %v1297 = vadd.f32 0.0, %v1296
      %v1298 = vpop.f32.mrb[0].mxu0
      %1299 = vmatprep.mubr.bf16.mxu0 0
      %1300 = vmatmul.mubr.bf16.gmra.mrb[0].mxu0 %v1095
      %v1301 = vpop.f32.mrb[0].mxu0
      %v1302 = vadd.f32 0.0, %v1301
      %v1303 = vpop.f32.mrb[0].mxu0
      %v1304 = vpop.f32.mrb[0].mxu0
      %v1305 = vadd.f32 0.0, %v1304
      %v1306 = vpop.f32.mrb[0].mxu0
      %1307 = vmatprep.mubr.bf16.mxu0 0
      %1308 = vmatmul.mubr.bf16.gmra.mrb[0].mxu0 %v1096
      %v1309 = vpop.f32.mrb[0].mxu0
      %v1310 = vadd.f32 0.0, %v1309
      %v1311 = vpop.f32.mrb[0].mxu0
      %v1312 = vpop.f32.mrb[0].mxu0
      %v1313 = vadd.f32 0.0, %v1312
      %v1314 = vpop.f32.mrb[0].mxu0
      %1315 = vmatprep.mubr.bf16.mxu0 0
      %1316 = vmatmul.mubr.bf16.gmra.mrb[0].mxu0 %v1097
      %v1317 = vpop.f32.mrb[0].mxu0
      %v1318 = vadd.f32 0.0, %v1317
      %v1319 = vpop.f32.mrb[0].mxu0
      %v1320 = vpop.f32.mrb[0].mxu0
      %v1321 = vadd.f32 0.0, %v1320
      %v1322 = vpop.f32.mrb[0].mxu0
      %1323 = vdwg.mxu0
      %v1324 = vadd.f32 %v924, %v1198
      %v1325 = vadd.f32 %v927, %v1201
      %v1326 = vadd.f32 %v932, %v1206
      %v1327 = vadd.f32 %v935, %v1209
      %v1328 = vadd.f32 %v940, %v1214
      %v1329 = vadd.f32 %v943, %v1217
      %v1330 = vadd.f32 %v948, %v1222
      %v1331 = vadd.f32 %v951, %v1225
      %v1332 = vadd.f32 %v956, %v1230
      %v1333 = vadd.f32 %v959, %v1233
      %v1334 = vadd.f32 %v964, %v1238
      %v1335 = vadd.f32 %v967, %v1241
      %v1336 = vadd.f32 %v972, %v1246
      %v1337 = vadd.f32 %v975, %v1249
      %v1338 = vadd.f32 %v980, %v1254
      %v1339 = vadd.f32 %v983, %v1257
      %v1340 = vadd.f32 %v988, %v1262
      %v1341 = vadd.f32 %v991, %v1265
      %v1342 = vadd.f32 %v996, %v1270
      %v1343 = vadd.f32 %v999, %v1273
      %v1344 = vadd.f32 %v1004, %v1278
      %v1345 = vadd.f32 %v1007, %v1281
      %v1346 = vadd.f32 %v1012, %v1286
      %v1347 = vadd.f32 %v1015, %v1289
      %v1348 = vadd.f32 %v1020, %v1294
      %v1349 = vadd.f32 %v1023, %v1297
      %v1350 = vadd.f32 %v1028, %v1302
      %v1351 = vadd.f32 %v1031, %v1305
      %v1352 = vadd.f32 %v1036, %v1310
      %v1353 = vadd.f32 %v1039, %v1313
      %v1354 = vadd.f32 %v1044, %v1318
      %v1355 = vadd.f32 %v1047, %v1321
      %v1356 = vld [vmem:[%s470] sm:$0xff]
      %v1357 = vld [vmem:[%s470 + $0x8] sm:$0xff]
      %v1358 = vld [vmem:[%s470 + $0x18] sm:$0xff]
      %v1359 = vld [vmem:[%s470 + $0x20] sm:$0xff]
      %v1360 = vld [vmem:[%s470 + $0x30] sm:$0xff]
      %v1361 = vld [vmem:[%s470 + $0x38] sm:$0xff]
      %v1362 = vld [vmem:[%s470 + $0x48] sm:$0xff]
      %v1363 = vld [vmem:[%s470 + $0x50] sm:$0xff]
      %v1364 = vld [vmem:[%s470 + $0x60] sm:$0xff]
      %v1365 = vld [vmem:[%s470 + $0x68] sm:$0xff]
      %v1366 = vld [vmem:[%s470 + $0x78] sm:$0xff]
      %v1367 = vld [vmem:[%s470 + $0x80] sm:$0xff]
      %v1368 = vld [vmem:[%s470 + $0x90] sm:$0xff]
      %v1369 = vld [vmem:[%s470 + $0x98] sm:$0xff]
      %v1370 = vld [vmem:[%s470 + $0xa8] sm:$0xff]
      %v1371 = vld [vmem:[%s470 + $0xb0] sm:$0xff]
      %v1372 = vld [vmem:[%s470 + $0xc0] sm:$0xff]
      %v1373 = vld [vmem:[%s470 + $0xc8] sm:$0xff]
      %v1374 = vld [vmem:[%s470 + $0xd8] sm:$0xff]
      %v1375 = vld [vmem:[%s470 + $0xe0] sm:$0xff]
      %v1376 = vld [vmem:[%s470 + $0xf0] sm:$0xff]
      %v1377 = vld [vmem:[%s470 + $0xf8] sm:$0xff]
      %v1378 = vld [vmem:[%s470 + $0x108] sm:$0xff]
      %v1379 = vld [vmem:[%s470 + $0x110] sm:$0xff]
      %v1380 = vld [vmem:[%s470 + $0x120] sm:$0xff]
      %v1381 = vld [vmem:[%s470 + $0x128] sm:$0xff]
      %v1382 = vld [vmem:[%s470 + $0x138] sm:$0xff]
      %v1383 = vld [vmem:[%s470 + $0x140] sm:$0xff]
      %v1384 = vld [vmem:[%s470 + $0x150] sm:$0xff]
      %v1385 = vld [vmem:[%s470 + $0x158] sm:$0xff]
      %v1386 = vld [vmem:[%s470 + $0x168] sm:$0xff]
      %v1387 = vld [vmem:[%s470 + $0x170] sm:$0xff]
      %v1388 = vpack.c.bf16 %v1357, %v1356
      %v1389 = vpack.c.bf16 %v1359, %v1358
      %v1390 = vpack.c.bf16 %v1361, %v1360
      %v1391 = vpack.c.bf16 %v1363, %v1362
      %v1392 = vpack.c.bf16 %v1365, %v1364
      %v1393 = vpack.c.bf16 %v1367, %v1366
      %v1394 = vpack.c.bf16 %v1369, %v1368
      %v1395 = vpack.c.bf16 %v1371, %v1370
      %v1396 = vpack.c.bf16 %v1373, %v1372
      %v1397 = vpack.c.bf16 %v1375, %v1374
      %v1398 = vpack.c.bf16 %v1377, %v1376
      %v1399 = vpack.c.bf16 %v1379, %v1378
      %v1400 = vpack.c.bf16 %v1381, %v1380
      %v1401 = vpack.c.bf16 %v1383, %v1382
      %v1402 = vpack.c.bf16 %v1385, %v1384
      %v1403 = vpack.c.bf16 %v1387, %v1386
      %s1404 = scalar_lea.vmem %s3, 192
      %v1405 = vld [vmem:[%s1404] sm:$0xf]
      %v1406 = vld [vmem:[%s1404 + $0x4] sm:$0xf]
      %v1407 = vld [vmem:[%s1404 + $0x8] sm:$0xf]
      %v1408 = vld [vmem:[%s1404 + $0xc] sm:$0xf]
      %v1409 = vld [vmem:[%s1404 + $0x10] sm:$0xf]
      %v1410 = vld [vmem:[%s1404 + $0x14] sm:$0xf]
      %v1411 = vld [vmem:[%s1404 + $0x18] sm:$0xf]
      %v1412 = vld [vmem:[%s1404 + $0x1c] sm:$0xf]
      %v1413 = vld [vmem:[%s1404 + $0x20] sm:$0xf]
      %v1414 = vld [vmem:[%s1404 + $0x24] sm:$0xf]
      %v1415 = vld [vmem:[%s1404 + $0x28] sm:$0xf]
      %v1416 = vld [vmem:[%s1404 + $0x2c] sm:$0xf]
      %v1417 = vld [vmem:[%s1404 + $0x30] sm:$0xf]
      %v1418 = vld [vmem:[%s1404 + $0x34] sm:$0xf]
      %v1419 = vld [vmem:[%s1404 + $0x38] sm:$0xf]
      %v1420 = vld [vmem:[%s1404 + $0x3c] sm:$0xf]
      %v1437 = vunpack.c.l.b16 %v1405
      %v1438 = vunpack.c.l.b16 %v1406
      %v1439 = vunpack.c.l.b16 %v1407
      %v1440 = vunpack.c.l.b16 %v1408
      %v1441 = vunpack.c.l.b16 %v1409
      %v1442 = vunpack.c.l.b16 %v1410
      %v1443 = vunpack.c.l.b16 %v1411
      %v1444 = vunpack.c.l.b16 %v1412
      %v1445 = vunpack.c.l.b16 %v1413
      %v1446 = vunpack.c.l.b16 %v1414
      %v1447 = vunpack.c.l.b16 %v1415
      %v1448 = vunpack.c.l.b16 %v1416
      %v1449 = vunpack.c.l.b16 %v1417
      %v1450 = vunpack.c.l.b16 %v1418
      %v1451 = vunpack.c.l.b16 %v1419
      %v1452 = vunpack.c.l.b16 %v1420
      %v1453 = vpack.c.b16 %v1438, %v1437
      %v1454 = vpack.c.b16 %v1440, %v1439
      %v1455 = vpack.c.b16 %v1442, %v1441
      %v1456 = vpack.c.b16 %v1444, %v1443
      %v1457 = vpack.c.b16 %v1446, %v1445
      %v1458 = vpack.c.b16 %v1448, %v1447
      %v1459 = vpack.c.b16 %v1450, %v1449
      %v1460 = vpack.c.b16 %v1452, %v1451
      %1469 = vmatprep.subr.bf16.mxu0 0
      %1470 = vmatpush1.bf16.msra.mxu0 %v1453
      %1471 = vmatprep.subr.bf16.mxu0 0
      %1472 = vmatpush1.bf16.msra.mxu0 %v1454
      %1473 = vmatprep.subr.bf16.mxu0 0
      %1474 = vmatpush1.bf16.msra.mxu0 %v1455
      %1475 = vmatprep.subr.bf16.mxu0 0
      %1476 = vmatpush1.bf16.msra.mxu0 %v1456
      %1477 = vmatprep.subr.bf16.mxu0 0
      %1478 = vmatpush1.bf16.msra.mxu0 %v1457
      %1479 = vmatprep.subr.bf16.mxu0 0
      %1480 = vmatpush1.bf16.msra.mxu0 %v1458
      %1481 = vmatprep.subr.bf16.mxu0 0
      %1482 = vmatpush1.bf16.msra.mxu0 %v1459
      %1483 = vmatprep.subr.bf16.mxu0 0
      %1484 = vmatpush1.bf16.msra.mxu0 %v1460
      %1485 = vmatprep.subr.bf16.mxu0 0
      %1486 = vmatpush1.bf16.msra.mxu0 0
      %1487 = vmatprep.subr.bf16.mxu0 0
      %1488 = vmatpush1.bf16.msra.mxu0 0
      %1489 = vmatprep.subr.bf16.mxu0 0
      %1490 = vmatpush1.bf16.msra.mxu0 0
      %1491 = vmatprep.subr.bf16.mxu0 0
      %1492 = vmatpush1.bf16.msra.mxu0 0
      %1493 = vmatprep.subr.bf16.mxu0 0
      %1494 = vmatpush1.bf16.msra.mxu0 0
      %1495 = vmatprep.subr.bf16.mxu0 0
      %1496 = vmatpush1.bf16.msra.mxu0 0
      %1497 = vmatprep.subr.bf16.mxu0 0
      %1498 = vmatpush1.bf16.msra.mxu0 0
      %1499 = vmatprep.subr.bf16.mxu0 0
      %1500 = vmatpush1.bf16.msra.mxu0 0
      %1501 = vmatprep.mubr.bf16.mxu0 0
      %1502 = vmatmul.mubr.bf16.gmra.mrb[0].mxu0 %v1388
      %v1503 = vpop.f32.mrb[0].mxu0
      %v1504 = vadd.f32 0.0, %v1503
      %v1505 = vpop.f32.mrb[0].mxu0
      %v1506 = vpop.f32.mrb[0].mxu0
      %v1507 = vadd.f32 0.0, %v1506
      %v1508 = vpop.f32.mrb[0].mxu0
      %1509 = vmatprep.mubr.bf16.mxu0 0
      %1510 = vmatmul.mubr.bf16.gmra.mrb[0].mxu0 %v1389
      %v1511 = vpop.f32.mrb[0].mxu0
      %v1512 = vadd.f32 0.0, %v1511
      %v1513 = vpop.f32.mrb[0].mxu0
      %v1514 = vpop.f32.mrb[0].mxu0
      %v1515 = vadd.f32 0.0, %v1514
      %v1516 = vpop.f32.mrb[0].mxu0
      %1517 = vmatprep.mubr.bf16.mxu0 0
      %1518 = vmatmul.mubr.bf16.gmra.mrb[0].mxu0 %v1390
      %v1519 = vpop.f32.mrb[0].mxu0
      %v1520 = vadd.f32 0.0, %v1519
      %v1521 = vpop.f32.mrb[0].mxu0
      %v1522 = vpop.f32.mrb[0].mxu0
      %v1523 = vadd.f32 0.0, %v1522
      %v1524 = vpop.f32.mrb[0].mxu0
      %1525 = vmatprep.mubr.bf16.mxu0 0
      %1526 = vmatmul.mubr.bf16.gmra.mrb[0].mxu0 %v1391
      %v1527 = vpop.f32.mrb[0].mxu0
      %v1528 = vadd.f32 0.0, %v1527
      %v1529 = vpop.f32.mrb[0].mxu0
      %v1530 = vpop.f32.mrb[0].mxu0
      %v1531 = vadd.f32 0.0, %v1530
      %v1532 = vpop.f32.mrb[0].mxu0
      %1533 = vmatprep.mubr.bf16.mxu0 0
      %1534 = vmatmul.mubr.bf16.gmra.mrb[0].mxu0 %v1392
      %v1535 = vpop.f32.mrb[0].mxu0
      %v1536 = vadd.f32 0.0, %v1535
      %v1537 = vpop.f32.mrb[0].mxu0
      %v1538 = vpop.f32.mrb[0].mxu0
      %v1539 = vadd.f32 0.0, %v1538
      %v1540 = vpop.f32.mrb[0].mxu0
      %1541 = vmatprep.mubr.bf16.mxu0 0
      %1542 = vmatmul.mubr.bf16.gmra.mrb[0].mxu0 %v1393
      %v1543 = vpop.f32.mrb[0].mxu0
      %v1544 = vadd.f32 0.0, %v1543
      %v1545 = vpop.f32.mrb[0].mxu0
      %v1546 = vpop.f32.mrb[0].mxu0
      %v1547 = vadd.f32 0.0, %v1546
      %v1548 = vpop.f32.mrb[0].mxu0
      %1549 = vmatprep.mubr.bf16.mxu0 0
      %1550 = vmatmul.mubr.bf16.gmra.mrb[0].mxu0 %v1394
      %v1551 = vpop.f32.mrb[0].mxu0
      %v1552 = vadd.f32 0.0, %v1551
      %v1553 = vpop.f32.mrb[0].mxu0
      %v1554 = vpop.f32.mrb[0].mxu0
      %v1555 = vadd.f32 0.0, %v1554
      %v1556 = vpop.f32.mrb[0].mxu0
      %1557 = vmatprep.mubr.bf16.mxu0 0
      %1558 = vmatmul.mubr.bf16.gmra.mrb[0].mxu0 %v1395
      %v1559 = vpop.f32.mrb[0].mxu0
      %v1560 = vadd.f32 0.0, %v1559
      %v1561 = vpop.f32.mrb[0].mxu0
      %v1562 = vpop.f32.mrb[0].mxu0
      %v1563 = vadd.f32 0.0, %v1562
      %v1564 = vpop.f32.mrb[0].mxu0
      %1565 = vmatprep.mubr.bf16.mxu0 0
      %1566 = vmatmul.mubr.bf16.gmra.mrb[0].mxu0 %v1396
      %v1567 = vpop.f32.mrb[0].mxu0
      %v1568 = vadd.f32 0.0, %v1567
      %v1569 = vpop.f32.mrb[0].mxu0
      %v1570 = vpop.f32.mrb[0].mxu0
      %v1571 = vadd.f32 0.0, %v1570
      %v1572 = vpop.f32.mrb[0].mxu0
      %1573 = vmatprep.mubr.bf16.mxu0 0
      %1574 = vmatmul.mubr.bf16.gmra.mrb[0].mxu0 %v1397
      %v1575 = vpop.f32.mrb[0].mxu0
      %v1576 = vadd.f32 0.0, %v1575
      %v1577 = vpop.f32.mrb[0].mxu0
      %v1578 = vpop.f32.mrb[0].mxu0
      %v1579 = vadd.f32 0.0, %v1578
      %v1580 = vpop.f32.mrb[0].mxu0
      %1581 = vmatprep.mubr.bf16.mxu0 0
      %1582 = vmatmul.mubr.bf16.gmra.mrb[0].mxu0 %v1398
      %v1583 = vpop.f32.mrb[0].mxu0
      %v1584 = vadd.f32 0.0, %v1583
      %v1585 = vpop.f32.mrb[0].mxu0
      %v1586 = vpop.f32.mrb[0].mxu0
      %v1587 = vadd.f32 0.0, %v1586
      %v1588 = vpop.f32.mrb[0].mxu0
      %1589 = vmatprep.mubr.bf16.mxu0 0
      %1590 = vmatmul.mubr.bf16.gmra.mrb[0].mxu0 %v1399
      %v1591 = vpop.f32.mrb[0].mxu0
      %v1592 = vadd.f32 0.0, %v1591
      %v1593 = vpop.f32.mrb[0].mxu0
      %v1594 = vpop.f32.mrb[0].mxu0
      %v1595 = vadd.f32 0.0, %v1594
      %v1596 = vpop.f32.mrb[0].mxu0
      %1597 = vmatprep.mubr.bf16.mxu0 0
      %1598 = vmatmul.mubr.bf16.gmra.mrb[0].mxu0 %v1400
      %v1599 = vpop.f32.mrb[0].mxu0
      %v1600 = vadd.f32 0.0, %v1599
      %v1601 = vpop.f32.mrb[0].mxu0
      %v1602 = vpop.f32.mrb[0].mxu0
      %v1603 = vadd.f32 0.0, %v1602
      %v1604 = vpop.f32.mrb[0].mxu0
      %1605 = vmatprep.mubr.bf16.mxu0 0
      %1606 = vmatmul.mubr.bf16.gmra.mrb[0].mxu0 %v1401
      %v1607 = vpop.f32.mrb[0].mxu0
      %v1608 = vadd.f32 0.0, %v1607
      %v1609 = vpop.f32.mrb[0].mxu0
      %v1610 = vpop.f32.mrb[0].mxu0
      %v1611 = vadd.f32 0.0, %v1610
      %v1612 = vpop.f32.mrb[0].mxu0
      %1613 = vmatprep.mubr.bf16.mxu0 0
      %1614 = vmatmul.mubr.bf16.gmra.mrb[0].mxu0 %v1402
      %v1615 = vpop.f32.mrb[0].mxu0
      %v1616 = vadd.f32 0.0, %v1615
      %v1617 = vpop.f32.mrb[0].mxu0
      %v1618 = vpop.f32.mrb[0].mxu0
      %v1619 = vadd.f32 0.0, %v1618
      %v1620 = vpop.f32.mrb[0].mxu0
      %1621 = vmatprep.mubr.bf16.mxu0 0
      %1622 = vmatmul.mubr.bf16.gmra.mrb[0].mxu0 %v1403
      %v1623 = vpop.f32.mrb[0].mxu0
      %v1624 = vadd.f32 0.0, %v1623
      %v1625 = vpop.f32.mrb[0].mxu0
      %v1626 = vpop.f32.mrb[0].mxu0
      %v1627 = vadd.f32 0.0, %v1626
      %v1628 = vpop.f32.mrb[0].mxu0
      %1629 = vdwg.mxu0
      %v1630 = vadd.f32 %v1324, %v1504
      %v1631 = vadd.f32 %v1325, %v1507
      %v1632 = vadd.f32 %v1326, %v1512
      %v1633 = vadd.f32 %v1327, %v1515
      %v1634 = vadd.f32 %v1328, %v1520
      %v1635 = vadd.f32 %v1329, %v1523
      %v1636 = vadd.f32 %v1330, %v1528
      %v1637 = vadd.f32 %v1331, %v1531
      %v1638 = vadd.f32 %v1332, %v1536
      %v1639 = vadd.f32 %v1333, %v1539
      %v1640 = vadd.f32 %v1334, %v1544
      %v1641 = vadd.f32 %v1335, %v1547
      %v1642 = vadd.f32 %v1336, %v1552
      %v1643 = vadd.f32 %v1337, %v1555
      %v1644 = vadd.f32 %v1338, %v1560
      %v1645 = vadd.f32 %v1339, %v1563
      %v1646 = vadd.f32 %v1340, %v1568
      %v1647 = vadd.f32 %v1341, %v1571
      %v1648 = vadd.f32 %v1342, %v1576
      %v1649 = vadd.f32 %v1343, %v1579
      %v1650 = vadd.f32 %v1344, %v1584
      %v1651 = vadd.f32 %v1345, %v1587
      %v1652 = vadd.f32 %v1346, %v1592
      %v1653 = vadd.f32 %v1347, %v1595
      %v1654 = vadd.f32 %v1348, %v1600
      %v1655 = vadd.f32 %v1349, %v1603
      %v1656 = vadd.f32 %v1350, %v1608
      %v1657 = vadd.f32 %v1351, %v1611
      %v1658 = vadd.f32 %v1352, %v1616
      %v1659 = vadd.f32 %v1353, %v1619
      %v1660 = vadd.f32 %v1354, %v1624
      %v1661 = vadd.f32 %v1355, %v1627
      %v1662 = vld [vmem:[%s470 + $0x1] sm:$0xff]
      %v1663 = vld [vmem:[%s470 + $0x9] sm:$0xff]
      %v1664 = vld [vmem:[%s470 + $0x19] sm:$0xff]
      %v1665 = vld [vmem:[%s470 + $0x21] sm:$0xff]
      %v1666 = vld [vmem:[%s470 + $0x31] sm:$0xff]
      %v1667 = vld [vmem:[%s470 + $0x39] sm:$0xff]
      %v1668 = vld [vmem:[%s470 + $0x49] sm:$0xff]
      %v1669 = vld [vmem:[%s470 + $0x51] sm:$0xff]
      %v1670 = vld [vmem:[%s470 + $0x61] sm:$0xff]
      %v1671 = vld [vmem:[%s470 + $0x69] sm:$0xff]
      %v1672 = vld [vmem:[%s470 + $0x79] sm:$0xff]
      %v1673 = vld [vmem:[%s470 + $0x81] sm:$0xff]
      %v1674 = vld [vmem:[%s470 + $0x91] sm:$0xff]
      %v1675 = vld [vmem:[%s470 + $0x99] sm:$0xff]
      %v1676 = vld [vmem:[%s470 + $0xa9] sm:$0xff]
      %v1677 = vld [vmem:[%s470 + $0xb1] sm:$0xff]
      %v1678 = vld [vmem:[%s470 + $0xc1] sm:$0xff]
      %v1679 = vld [vmem:[%s470 + $0xc9] sm:$0xff]
      %v1680 = vld [vmem:[%s470 + $0xd9] sm:$0xff]
      %v1681 = vld [vmem:[%s470 + $0xe1] sm:$0xff]
      %v1682 = vld [vmem:[%s470 + $0xf1] sm:$0xff]
      %v1683 = vld [vmem:[%s470 + $0xf9] sm:$0xff]
      %v1684 = vld [vmem:[%s470 + $0x109] sm:$0xff]
      %v1685 = vld [vmem:[%s470 + $0x111] sm:$0xff]
      %v1686 = vld [vmem:[%s470 + $0x121] sm:$0xff]
      %v1687 = vld [vmem:[%s470 + $0x129] sm:$0xff]
      %v1688 = vld [vmem:[%s470 + $0x139] sm:$0xff]
      %v1689 = vld [vmem:[%s470 + $0x141] sm:$0xff]
      %v1690 = vld [vmem:[%s470 + $0x151] sm:$0xff]
      %v1691 = vld [vmem:[%s470 + $0x159] sm:$0xff]
      %v1692 = vld [vmem:[%s470 + $0x169] sm:$0xff]
      %v1693 = vld [vmem:[%s470 + $0x171] sm:$0xff]
      %v1694 = vpack.c.bf16 %v1663, %v1662
      %v1695 = vpack.c.bf16 %v1665, %v1664
      %v1696 = vpack.c.bf16 %v1667, %v1666
      %v1697 = vpack.c.bf16 %v1669, %v1668
      %v1698 = vpack.c.bf16 %v1671, %v1670
      %v1699 = vpack.c.bf16 %v1673, %v1672
      %v1700 = vpack.c.bf16 %v1675, %v1674
      %v1701 = vpack.c.bf16 %v1677, %v1676
      %v1702 = vpack.c.bf16 %v1679, %v1678
      %v1703 = vpack.c.bf16 %v1681, %v1680
      %v1704 = vpack.c.bf16 %v1683, %v1682
      %v1705 = vpack.c.bf16 %v1685, %v1684
      %v1706 = vpack.c.bf16 %v1687, %v1686
      %v1707 = vpack.c.bf16 %v1689, %v1688
      %v1708 = vpack.c.bf16 %v1691, %v1690
      %v1709 = vpack.c.bf16 %v1693, %v1692
      %s1710 = scalar_lea.vmem %s3, 256
      %v1711 = vld [vmem:[%s1710] sm:$0xf]
      %v1712 = vld [vmem:[%s1710 + $0x4] sm:$0xf]
      %v1713 = vld [vmem:[%s1710 + $0x8] sm:$0xf]
      %v1714 = vld [vmem:[%s1710 + $0xc] sm:$0xf]
      %v1715 = vld [vmem:[%s1710 + $0x10] sm:$0xf]
      %v1716 = vld [vmem:[%s1710 + $0x14] sm:$0xf]
      %v1717 = vld [vmem:[%s1710 + $0x18] sm:$0xf]
      %v1718 = vld [vmem:[%s1710 + $0x1c] sm:$0xf]
      %v1719 = vld [vmem:[%s1710 + $0x20] sm:$0xf]
      %v1720 = vld [vmem:[%s1710 + $0x24] sm:$0xf]
      %v1721 = vld [vmem:[%s1710 + $0x28] sm:$0xf]
      %v1722 = vld [vmem:[%s1710 + $0x2c] sm:$0xf]
      %v1723 = vld [vmem:[%s1710 + $0x30] sm:$0xf]
      %v1724 = vld [vmem:[%s1710 + $0x34] sm:$0xf]
      %v1725 = vld [vmem:[%s1710 + $0x38] sm:$0xf]
      %v1726 = vld [vmem:[%s1710 + $0x3c] sm:$0xf]
      %v1743 = vunpack.c.l.b16 %v1711
      %v1744 = vunpack.c.l.b16 %v1712
      %v1745 = vunpack.c.l.b16 %v1713
      %v1746 = vunpack.c.l.b16 %v1714
      %v1747 = vunpack.c.l.b16 %v1715
      %v1748 = vunpack.c.l.b16 %v1716
      %v1749 = vunpack.c.l.b16 %v1717
      %v1750 = vunpack.c.l.b16 %v1718
      %v1751 = vunpack.c.l.b16 %v1719
      %v1752 = vunpack.c.l.b16 %v1720
      %v1753 = vunpack.c.l.b16 %v1721
      %v1754 = vunpack.c.l.b16 %v1722
      %v1755 = vunpack.c.l.b16 %v1723
      %v1756 = vunpack.c.l.b16 %v1724
      %v1757 = vunpack.c.l.b16 %v1725
      %v1758 = vunpack.c.l.b16 %v1726
      %v1759 = vpack.c.b16 %v1744, %v1743
      %v1760 = vpack.c.b16 %v1746, %v1745
      %v1761 = vpack.c.b16 %v1748, %v1747
      %v1762 = vpack.c.b16 %v1750, %v1749
      %v1763 = vpack.c.b16 %v1752, %v1751
      %v1764 = vpack.c.b16 %v1754, %v1753
      %v1765 = vpack.c.b16 %v1756, %v1755
      %v1766 = vpack.c.b16 %v1758, %v1757
      %1775 = vmatprep.subr.bf16.mxu0 0
      %1776 = vmatpush1.bf16.msra.mxu0 %v1759
      %1777 = vmatprep.subr.bf16.mxu0 0
      %1778 = vmatpush1.bf16.msra.mxu0 %v1760
      %1779 = vmatprep.subr.bf16.mxu0 0
      %1780 = vmatpush1.bf16.msra.mxu0 %v1761
      %1781 = vmatprep.subr.bf16.mxu0 0
      %1782 = vmatpush1.bf16.msra.mxu0 %v1762
      %1783 = vmatprep.subr.bf16.mxu0 0
      %1784 = vmatpush1.bf16.msra.mxu0 %v1763
      %1785 = vmatprep.subr.bf16.mxu0 0
      %1786 = vmatpush1.bf16.msra.mxu0 %v1764
      %1787 = vmatprep.subr.bf16.mxu0 0
      %1788 = vmatpush1.bf16.msra.mxu0 %v1765
      %1789 = vmatprep.subr.bf16.mxu0 0
      %1790 = vmatpush1.bf16.msra.mxu0 %v1766
      %1791 = vmatprep.subr.bf16.mxu0 0
      %1792 = vmatpush1.bf16.msra.mxu0 0
      %1793 = vmatprep.subr.bf16.mxu0 0
      %1794 = vmatpush1.bf16.msra.mxu0 0
      %1795 = vmatprep.subr.bf16.mxu0 0
      %1796 = vmatpush1.bf16.msra.mxu0 0
      %1797 = vmatprep.subr.bf16.mxu0 0
      %1798 = vmatpush1.bf16.msra.mxu0 0
      %1799 = vmatprep.subr.bf16.mxu0 0
      %1800 = vmatpush1.bf16.msra.mxu0 0
      %1801 = vmatprep.subr.bf16.mxu0 0
      %1802 = vmatpush1.bf16.msra.mxu0 0
      %1803 = vmatprep.subr.bf16.mxu0 0
      %1804 = vmatpush1.bf16.msra.mxu0 0
      %1805 = vmatprep.subr.bf16.mxu0 0
      %1806 = vmatpush1.bf16.msra.mxu0 0
      %1807 = vmatprep.mubr.bf16.mxu0 0
      %1808 = vmatmul.mubr.bf16.gmra.mrb[0].mxu0 %v1694
      %v1809 = vpop.f32.mrb[0].mxu0
      %v1810 = vadd.f32 0.0, %v1809
      %v1811 = vpop.f32.mrb[0].mxu0
      %v1812 = vpop.f32.mrb[0].mxu0
      %v1813 = vadd.f32 0.0, %v1812
      %v1814 = vpop.f32.mrb[0].mxu0
      %1815 = vmatprep.mubr.bf16.mxu0 0
      %1816 = vmatmul.mubr.bf16.gmra.mrb[0].mxu0 %v1695
      %v1817 = vpop.f32.mrb[0].mxu0
      %v1818 = vadd.f32 0.0, %v1817
      %v1819 = vpop.f32.mrb[0].mxu0
      %v1820 = vpop.f32.mrb[0].mxu0
      %v1821 = vadd.f32 0.0, %v1820
      %v1822 = vpop.f32.mrb[0].mxu0
      %1823 = vmatprep.mubr.bf16.mxu0 0
      %1824 = vmatmul.mubr.bf16.gmra.mrb[0].mxu0 %v1696
      %v1825 = vpop.f32.mrb[0].mxu0
      %v1826 = vadd.f32 0.0, %v1825
      %v1827 = vpop.f32.mrb[0].mxu0
      %v1828 = vpop.f32.mrb[0].mxu0
      %v1829 = vadd.f32 0.0, %v1828
      %v1830 = vpop.f32.mrb[0].mxu0
      %1831 = vmatprep.mubr.bf16.mxu0 0
      %1832 = vmatmul.mubr.bf16.gmra.mrb[0].mxu0 %v1697
      %v1833 = vpop.f32.mrb[0].mxu0
      %v1834 = vadd.f32 0.0, %v1833
      %v1835 = vpop.f32.mrb[0].mxu0
      %v1836 = vpop.f32.mrb[0].mxu0
      %v1837 = vadd.f32 0.0, %v1836
      %v1838 = vpop.f32.mrb[0].mxu0
      %1839 = vmatprep.mubr.bf16.mxu0 0
      %1840 = vmatmul.mubr.bf16.gmra.mrb[0].mxu0 %v1698
      %v1841 = vpop.f32.mrb[0].mxu0
      %v1842 = vadd.f32 0.0, %v1841
      %v1843 = vpop.f32.mrb[0].mxu0
      %v1844 = vpop.f32.mrb[0].mxu0
      %v1845 = vadd.f32 0.0, %v1844
      %v1846 = vpop.f32.mrb[0].mxu0
      %1847 = vmatprep.mubr.bf16.mxu0 0
      %1848 = vmatmul.mubr.bf16.gmra.mrb[0].mxu0 %v1699
      %v1849 = vpop.f32.mrb[0].mxu0
      %v1850 = vadd.f32 0.0, %v1849
      %v1851 = vpop.f32.mrb[0].mxu0
      %v1852 = vpop.f32.mrb[0].mxu0
      %v1853 = vadd.f32 0.0, %v1852
      %v1854 = vpop.f32.mrb[0].mxu0
      %1855 = vmatprep.mubr.bf16.mxu0 0
      %1856 = vmatmul.mubr.bf16.gmra.mrb[0].mxu0 %v1700
      %v1857 = vpop.f32.mrb[0].mxu0
      %v1858 = vadd.f32 0.0, %v1857
      %v1859 = vpop.f32.mrb[0].mxu0
      %v1860 = vpop.f32.mrb[0].mxu0
      %v1861 = vadd.f32 0.0, %v1860
      %v1862 = vpop.f32.mrb[0].mxu0
      %1863 = vmatprep.mubr.bf16.mxu0 0
      %1864 = vmatmul.mubr.bf16.gmra.mrb[0].mxu0 %v1701
      %v1865 = vpop.f32.mrb[0].mxu0
      %v1866 = vadd.f32 0.0, %v1865
      %v1867 = vpop.f32.mrb[0].mxu0
      %v1868 = vpop.f32.mrb[0].mxu0
      %v1869 = vadd.f32 0.0, %v1868
      %v1870 = vpop.f32.mrb[0].mxu0
      %1871 = vmatprep.mubr.bf16.mxu0 0
      %1872 = vmatmul.mubr.bf16.gmra.mrb[0].mxu0 %v1702
      %v1873 = vpop.f32.mrb[0].mxu0
      %v1874 = vadd.f32 0.0, %v1873
      %v1875 = vpop.f32.mrb[0].mxu0
      %v1876 = vpop.f32.mrb[0].mxu0
      %v1877 = vadd.f32 0.0, %v1876
      %v1878 = vpop.f32.mrb[0].mxu0
      %1879 = vmatprep.mubr.bf16.mxu0 0
      %1880 = vmatmul.mubr.bf16.gmra.mrb[0].mxu0 %v1703
      %v1881 = vpop.f32.mrb[0].mxu0
      %v1882 = vadd.f32 0.0, %v1881
      %v1883 = vpop.f32.mrb[0].mxu0
      %v1884 = vpop.f32.mrb[0].mxu0
      %v1885 = vadd.f32 0.0, %v1884
      %v1886 = vpop.f32.mrb[0].mxu0
      %1887 = vmatprep.mubr.bf16.mxu0 0
      %1888 = vmatmul.mubr.bf16.gmra.mrb[0].mxu0 %v1704
      %v1889 = vpop.f32.mrb[0].mxu0
      %v1890 = vadd.f32 0.0, %v1889
      %v1891 = vpop.f32.mrb[0].mxu0
      %v1892 = vpop.f32.mrb[0].mxu0
      %v1893 = vadd.f32 0.0, %v1892
      %v1894 = vpop.f32.mrb[0].mxu0
      %1895 = vmatprep.mubr.bf16.mxu0 0
      %1896 = vmatmul.mubr.bf16.gmra.mrb[0].mxu0 %v1705
      %v1897 = vpop.f32.mrb[0].mxu0
      %v1898 = vadd.f32 0.0, %v1897
      %v1899 = vpop.f32.mrb[0].mxu0
      %v1900 = vpop.f32.mrb[0].mxu0
      %v1901 = vadd.f32 0.0, %v1900
      %v1902 = vpop.f32.mrb[0].mxu0
      %1903 = vmatprep.mubr.bf16.mxu0 0
      %1904 = vmatmul.mubr.bf16.gmra.mrb[0].mxu0 %v1706
      %v1905 = vpop.f32.mrb[0].mxu0
      %v1906 = vadd.f32 0.0, %v1905
      %v1907 = vpop.f32.mrb[0].mxu0
      %v1908 = vpop.f32.mrb[0].mxu0
      %v1909 = vadd.f32 0.0, %v1908
      %v1910 = vpop.f32.mrb[0].mxu0
      %1911 = vmatprep.mubr.bf16.mxu0 0
      %1912 = vmatmul.mubr.bf16.gmra.mrb[0].mxu0 %v1707
      %v1913 = vpop.f32.mrb[0].mxu0
      %v1914 = vadd.f32 0.0, %v1913
      %v1915 = vpop.f32.mrb[0].mxu0
      %v1916 = vpop.f32.mrb[0].mxu0
      %v1917 = vadd.f32 0.0, %v1916
      %v1918 = vpop.f32.mrb[0].mxu0
      %1919 = vmatprep.mubr.bf16.mxu0 0
      %1920 = vmatmul.mubr.bf16.gmra.mrb[0].mxu0 %v1708
      %v1921 = vpop.f32.mrb[0].mxu0
      %v1922 = vadd.f32 0.0, %v1921
      %v1923 = vpop.f32.mrb[0].mxu0
      %v1924 = vpop.f32.mrb[0].mxu0
      %v1925 = vadd.f32 0.0, %v1924
      %v1926 = vpop.f32.mrb[0].mxu0
      %1927 = vmatprep.mubr.bf16.mxu0 0
      %1928 = vmatmul.mubr.bf16.gmra.mrb[0].mxu0 %v1709
      %v1929 = vpop.f32.mrb[0].mxu0
      %v1930 = vadd.f32 0.0, %v1929
      %v1931 = vpop.f32.mrb[0].mxu0
      %v1932 = vpop.f32.mrb[0].mxu0
      %v1933 = vadd.f32 0.0, %v1932
      %v1934 = vpop.f32.mrb[0].mxu0
      %1935 = vdwg.mxu0
      %v1936 = vadd.f32 %v1630, %v1810
      %v1937 = vadd.f32 %v1631, %v1813
      %v1938 = vadd.f32 %v1632, %v1818
      %v1939 = vadd.f32 %v1633, %v1821
      %v1940 = vadd.f32 %v1634, %v1826
      %v1941 = vadd.f32 %v1635, %v1829
      %v1942 = vadd.f32 %v1636, %v1834
      %v1943 = vadd.f32 %v1637, %v1837
      %v1944 = vadd.f32 %v1638, %v1842
      %v1945 = vadd.f32 %v1639, %v1845
      %v1946 = vadd.f32 %v1640, %v1850
      %v1947 = vadd.f32 %v1641, %v1853
      %v1948 = vadd.f32 %v1642, %v1858
      %v1949 = vadd.f32 %v1643, %v1861
      %v1950 = vadd.f32 %v1644, %v1866
      %v1951 = vadd.f32 %v1645, %v1869
      %v1952 = vadd.f32 %v1646, %v1874
      %v1953 = vadd.f32 %v1647, %v1877
      %v1954 = vadd.f32 %v1648, %v1882
      %v1955 = vadd.f32 %v1649, %v1885
      %v1956 = vadd.f32 %v1650, %v1890
      %v1957 = vadd.f32 %v1651, %v1893
      %v1958 = vadd.f32 %v1652, %v1898
      %v1959 = vadd.f32 %v1653, %v1901
      %v1960 = vadd.f32 %v1654, %v1906
      %v1961 = vadd.f32 %v1655, %v1909
      %v1962 = vadd.f32 %v1656, %v1914
      %v1963 = vadd.f32 %v1657, %v1917
      %v1964 = vadd.f32 %v1658, %v1922
      %v1965 = vadd.f32 %v1659, %v1925
      %v1966 = vadd.f32 %v1660, %v1930
      %v1967 = vadd.f32 %v1661, %v1933
      %v1968 = vld [vmem:[%s470 + $0x2] sm:$0xff]
      %v1969 = vld [vmem:[%s470 + $0xa] sm:$0xff]
      %v1970 = vld [vmem:[%s470 + $0x1a] sm:$0xff]
      %v1971 = vld [vmem:[%s470 + $0x22] sm:$0xff]
      %v1972 = vld [vmem:[%s470 + $0x32] sm:$0xff]
      %v1973 = vld [vmem:[%s470 + $0x3a] sm:$0xff]
      %v1974 = vld [vmem:[%s470 + $0x4a] sm:$0xff]
      %v1975 = vld [vmem:[%s470 + $0x52] sm:$0xff]
      %v1976 = vld [vmem:[%s470 + $0x62] sm:$0xff]
      %v1977 = vld [vmem:[%s470 + $0x6a] sm:$0xff]
      %v1978 = vld [vmem:[%s470 + $0x7a] sm:$0xff]
      %v1979 = vld [vmem:[%s470 + $0x82] sm:$0xff]
      %v1980 = vld [vmem:[%s470 + $0x92] sm:$0xff]
      %v1981 = vld [vmem:[%s470 + $0x9a] sm:$0xff]
      %v1982 = vld [vmem:[%s470 + $0xaa] sm:$0xff]
      %v1983 = vld [vmem:[%s470 + $0xb2] sm:$0xff]
      %v1984 = vld [vmem:[%s470 + $0xc2] sm:$0xff]
      %v1985 = vld [vmem:[%s470 + $0xca] sm:$0xff]
      %v1986 = vld [vmem:[%s470 + $0xda] sm:$0xff]
      %v1987 = vld [vmem:[%s470 + $0xe2] sm:$0xff]
      %v1988 = vld [vmem:[%s470 + $0xf2] sm:$0xff]
      %v1989 = vld [vmem:[%s470 + $0xfa] sm:$0xff]
      %v1990 = vld [vmem:[%s470 + $0x10a] sm:$0xff]
      %v1991 = vld [vmem:[%s470 + $0x112] sm:$0xff]
      %v1992 = vld [vmem:[%s470 + $0x122] sm:$0xff]
      %v1993 = vld [vmem:[%s470 + $0x12a] sm:$0xff]
      %v1994 = vld [vmem:[%s470 + $0x13a] sm:$0xff]
      %v1995 = vld [vmem:[%s470 + $0x142] sm:$0xff]
      %v1996 = vld [vmem:[%s470 + $0x152] sm:$0xff]
      %v1997 = vld [vmem:[%s470 + $0x15a] sm:$0xff]
      %v1998 = vld [vmem:[%s470 + $0x16a] sm:$0xff]
      %v1999 = vld [vmem:[%s470 + $0x172] sm:$0xff]
      %v2000 = vpack.c.bf16 %v1969, %v1968
      %v2001 = vpack.c.bf16 %v1971, %v1970
      %v2002 = vpack.c.bf16 %v1973, %v1972
      %v2003 = vpack.c.bf16 %v1975, %v1974
      %v2004 = vpack.c.bf16 %v1977, %v1976
      %v2005 = vpack.c.bf16 %v1979, %v1978
      %v2006 = vpack.c.bf16 %v1981, %v1980
      %v2007 = vpack.c.bf16 %v1983, %v1982
      %v2008 = vpack.c.bf16 %v1985, %v1984
      %v2009 = vpack.c.bf16 %v1987, %v1986
      %v2010 = vpack.c.bf16 %v1989, %v1988
      %v2011 = vpack.c.bf16 %v1991, %v1990
      %v2012 = vpack.c.bf16 %v1993, %v1992
      %v2013 = vpack.c.bf16 %v1995, %v1994
      %v2014 = vpack.c.bf16 %v1997, %v1996
      %v2015 = vpack.c.bf16 %v1999, %v1998
      %s2016 = scalar_lea.vmem %s3, 320
      %v2017 = vld [vmem:[%s2016] sm:$0xf]
      %v2018 = vld [vmem:[%s2016 + $0x4] sm:$0xf]
      %v2019 = vld [vmem:[%s2016 + $0x8] sm:$0xf]
      %v2020 = vld [vmem:[%s2016 + $0xc] sm:$0xf]
      %v2021 = vld [vmem:[%s2016 + $0x10] sm:$0xf]
      %v2022 = vld [vmem:[%s2016 + $0x14] sm:$0xf]
      %v2023 = vld [vmem:[%s2016 + $0x18] sm:$0xf]
      %v2024 = vld [vmem:[%s2016 + $0x1c] sm:$0xf]
      %v2025 = vld [vmem:[%s2016 + $0x20] sm:$0xf]
      %v2026 = vld [vmem:[%s2016 + $0x24] sm:$0xf]
      %v2027 = vld [vmem:[%s2016 + $0x28] sm:$0xf]
      %v2028 = vld [vmem:[%s2016 + $0x2c] sm:$0xf]
      %v2029 = vld [vmem:[%s2016 + $0x30] sm:$0xf]
      %v2030 = vld [vmem:[%s2016 + $0x34] sm:$0xf]
      %v2031 = vld [vmem:[%s2016 + $0x38] sm:$0xf]
      %v2032 = vld [vmem:[%s2016 + $0x3c] sm:$0xf]
      %v2049 = vunpack.c.l.b16 %v2017
      %v2050 = vunpack.c.l.b16 %v2018
      %v2051 = vunpack.c.l.b16 %v2019
      %v2052 = vunpack.c.l.b16 %v2020
      %v2053 = vunpack.c.l.b16 %v2021
      %v2054 = vunpack.c.l.b16 %v2022
      %v2055 = vunpack.c.l.b16 %v2023
      %v2056 = vunpack.c.l.b16 %v2024
      %v2057 = vunpack.c.l.b16 %v2025
      %v2058 = vunpack.c.l.b16 %v2026
      %v2059 = vunpack.c.l.b16 %v2027
      %v2060 = vunpack.c.l.b16 %v2028
      %v2061 = vunpack.c.l.b16 %v2029
      %v2062 = vunpack.c.l.b16 %v2030
      %v2063 = vunpack.c.l.b16 %v2031
      %v2064 = vunpack.c.l.b16 %v2032
      %v2065 = vpack.c.b16 %v2050, %v2049
      %v2066 = vpack.c.b16 %v2052, %v2051
      %v2067 = vpack.c.b16 %v2054, %v2053
      %v2068 = vpack.c.b16 %v2056, %v2055
      %v2069 = vpack.c.b16 %v2058, %v2057
      %v2070 = vpack.c.b16 %v2060, %v2059
      %v2071 = vpack.c.b16 %v2062, %v2061
      %v2072 = vpack.c.b16 %v2064, %v2063
      %2081 = vmatprep.subr.bf16.mxu0 0
      %2082 = vmatpush1.bf16.msra.mxu0 %v2065
      %2083 = vmatprep.subr.bf16.mxu0 0
      %2084 = vmatpush1.bf16.msra.mxu0 %v2066
      %2085 = vmatprep.subr.bf16.mxu0 0
      %2086 = vmatpush1.bf16.msra.mxu0 %v2067
      %2087 = vmatprep.subr.bf16.mxu0 0
      %2088 = vmatpush1.bf16.msra.mxu0 %v2068
      %2089 = vmatprep.subr.bf16.mxu0 0
      %2090 = vmatpush1.bf16.msra.mxu0 %v2069
      %2091 = vmatprep.subr.bf16.mxu0 0
      %2092 = vmatpush1.bf16.msra.mxu0 %v2070
      %2093 = vmatprep.subr.bf16.mxu0 0
      %2094 = vmatpush1.bf16.msra.mxu0 %v2071
      %2095 = vmatprep.subr.bf16.mxu0 0
      %2096 = vmatpush1.bf16.msra.mxu0 %v2072
      %2097 = vmatprep.subr.bf16.mxu0 0
      %2098 = vmatpush1.bf16.msra.mxu0 0
      %2099 = vmatprep.subr.bf16.mxu0 0
      %2100 = vmatpush1.bf16.msra.mxu0 0
      %2101 = vmatprep.subr.bf16.mxu0 0
      %2102 = vmatpush1.bf16.msra.mxu0 0
      %2103 = vmatprep.subr.bf16.mxu0 0
      %2104 = vmatpush1.bf16.msra.mxu0 0
      %2105 = vmatprep.subr.bf16.mxu0 0
      %2106 = vmatpush1.bf16.msra.mxu0 0
      %2107 = vmatprep.subr.bf16.mxu0 0
      %2108 = vmatpush1.bf16.msra.mxu0 0
      %2109 = vmatprep.subr.bf16.mxu0 0
      %2110 = vmatpush1.bf16.msra.mxu0 0
      %2111 = vmatprep.subr.bf16.mxu0 0
      %2112 = vmatpush1.bf16.msra.mxu0 0
      %2113 = vmatprep.mubr.bf16.mxu0 0
      %2114 = vmatmul.mubr.bf16.gmra.mrb[0].mxu0 %v2000
      %v2115 = vpop.f32.mrb[0].mxu0
      %v2116 = vadd.f32 0.0, %v2115
      %v2117 = vpop.f32.mrb[0].mxu0
      %v2118 = vpop.f32.mrb[0].mxu0
      %v2119 = vadd.f32 0.0, %v2118
      %v2120 = vpop.f32.mrb[0].mxu0
      %2121 = vmatprep.mubr.bf16.mxu0 0
      %2122 = vmatmul.mubr.bf16.gmra.mrb[0].mxu0 %v2001
      %v2123 = vpop.f32.mrb[0].mxu0
      %v2124 = vadd.f32 0.0, %v2123
      %v2125 = vpop.f32.mrb[0].mxu0
      %v2126 = vpop.f32.mrb[0].mxu0
      %v2127 = vadd.f32 0.0, %v2126
      %v2128 = vpop.f32.mrb[0].mxu0
      %2129 = vmatprep.mubr.bf16.mxu0 0
      %2130 = vmatmul.mubr.bf16.gmra.mrb[0].mxu0 %v2002
      %v2131 = vpop.f32.mrb[0].mxu0
      %v2132 = vadd.f32 0.0, %v2131
      %v2133 = vpop.f32.mrb[0].mxu0
      %v2134 = vpop.f32.mrb[0].mxu0
      %v2135 = vadd.f32 0.0, %v2134
      %v2136 = vpop.f32.mrb[0].mxu0
      %2137 = vmatprep.mubr.bf16.mxu0 0
      %2138 = vmatmul.mubr.bf16.gmra.mrb[0].mxu0 %v2003
      %v2139 = vpop.f32.mrb[0].mxu0
      %v2140 = vadd.f32 0.0, %v2139
      %v2141 = vpop.f32.mrb[0].mxu0
      %v2142 = vpop.f32.mrb[0].mxu0
      %v2143 = vadd.f32 0.0, %v2142
      %v2144 = vpop.f32.mrb[0].mxu0
      %2145 = vmatprep.mubr.bf16.mxu0 0
      %2146 = vmatmul.mubr.bf16.gmra.mrb[0].mxu0 %v2004
      %v2147 = vpop.f32.mrb[0].mxu0
      %v2148 = vadd.f32 0.0, %v2147
      %v2149 = vpop.f32.mrb[0].mxu0
      %v2150 = vpop.f32.mrb[0].mxu0
      %v2151 = vadd.f32 0.0, %v2150
      %v2152 = vpop.f32.mrb[0].mxu0
      %2153 = vmatprep.mubr.bf16.mxu0 0
      %2154 = vmatmul.mubr.bf16.gmra.mrb[0].mxu0 %v2005
      %v2155 = vpop.f32.mrb[0].mxu0
      %v2156 = vadd.f32 0.0, %v2155
      %v2157 = vpop.f32.mrb[0].mxu0
      %v2158 = vpop.f32.mrb[0].mxu0
      %v2159 = vadd.f32 0.0, %v2158
      %v2160 = vpop.f32.mrb[0].mxu0
      %2161 = vmatprep.mubr.bf16.mxu0 0
      %2162 = vmatmul.mubr.bf16.gmra.mrb[0].mxu0 %v2006
      %v2163 = vpop.f32.mrb[0].mxu0
      %v2164 = vadd.f32 0.0, %v2163
      %v2165 = vpop.f32.mrb[0].mxu0
      %v2166 = vpop.f32.mrb[0].mxu0
      %v2167 = vadd.f32 0.0, %v2166
      %v2168 = vpop.f32.mrb[0].mxu0
      %2169 = vmatprep.mubr.bf16.mxu0 0
      %2170 = vmatmul.mubr.bf16.gmra.mrb[0].mxu0 %v2007
      %v2171 = vpop.f32.mrb[0].mxu0
      %v2172 = vadd.f32 0.0, %v2171
      %v2173 = vpop.f32.mrb[0].mxu0
      %v2174 = vpop.f32.mrb[0].mxu0
      %v2175 = vadd.f32 0.0, %v2174
      %v2176 = vpop.f32.mrb[0].mxu0
      %2177 = vmatprep.mubr.bf16.mxu0 0
      %2178 = vmatmul.mubr.bf16.gmra.mrb[0].mxu0 %v2008
      %v2179 = vpop.f32.mrb[0].mxu0
      %v2180 = vadd.f32 0.0, %v2179
      %v2181 = vpop.f32.mrb[0].mxu0
      %v2182 = vpop.f32.mrb[0].mxu0
      %v2183 = vadd.f32 0.0, %v2182
      %v2184 = vpop.f32.mrb[0].mxu0
      %2185 = vmatprep.mubr.bf16.mxu0 0
      %2186 = vmatmul.mubr.bf16.gmra.mrb[0].mxu0 %v2009
      %v2187 = vpop.f32.mrb[0].mxu0
      %v2188 = vadd.f32 0.0, %v2187
      %v2189 = vpop.f32.mrb[0].mxu0
      %v2190 = vpop.f32.mrb[0].mxu0
      %v2191 = vadd.f32 0.0, %v2190
      %v2192 = vpop.f32.mrb[0].mxu0
      %2193 = vmatprep.mubr.bf16.mxu0 0
      %2194 = vmatmul.mubr.bf16.gmra.mrb[0].mxu0 %v2010
      %v2195 = vpop.f32.mrb[0].mxu0
      %v2196 = vadd.f32 0.0, %v2195
      %v2197 = vpop.f32.mrb[0].mxu0
      %v2198 = vpop.f32.mrb[0].mxu0
      %v2199 = vadd.f32 0.0, %v2198
      %v2200 = vpop.f32.mrb[0].mxu0
      %2201 = vmatprep.mubr.bf16.mxu0 0
      %2202 = vmatmul.mubr.bf16.gmra.mrb[0].mxu0 %v2011
      %v2203 = vpop.f32.mrb[0].mxu0
      %v2204 = vadd.f32 0.0, %v2203
      %v2205 = vpop.f32.mrb[0].mxu0
      %v2206 = vpop.f32.mrb[0].mxu0
      %v2207 = vadd.f32 0.0, %v2206
      %v2208 = vpop.f32.mrb[0].mxu0
      %2209 = vmatprep.mubr.bf16.mxu0 0
      %2210 = vmatmul.mubr.bf16.gmra.mrb[0].mxu0 %v2012
      %v2211 = vpop.f32.mrb[0].mxu0
      %v2212 = vadd.f32 0.0, %v2211
      %v2213 = vpop.f32.mrb[0].mxu0
      %v2214 = vpop.f32.mrb[0].mxu0
      %v2215 = vadd.f32 0.0, %v2214
      %v2216 = vpop.f32.mrb[0].mxu0
      %2217 = vmatprep.mubr.bf16.mxu0 0
      %2218 = vmatmul.mubr.bf16.gmra.mrb[0].mxu0 %v2013
      %v2219 = vpop.f32.mrb[0].mxu0
      %v2220 = vadd.f32 0.0, %v2219
      %v2221 = vpop.f32.mrb[0].mxu0
      %v2222 = vpop.f32.mrb[0].mxu0
      %v2223 = vadd.f32 0.0, %v2222
      %v2224 = vpop.f32.mrb[0].mxu0
      %2225 = vmatprep.mubr.bf16.mxu0 0
      %2226 = vmatmul.mubr.bf16.gmra.mrb[0].mxu0 %v2014
      %v2227 = vpop.f32.mrb[0].mxu0
      %v2228 = vadd.f32 0.0, %v2227
      %v2229 = vpop.f32.mrb[0].mxu0
      %v2230 = vpop.f32.mrb[0].mxu0
      %v2231 = vadd.f32 0.0, %v2230
      %v2232 = vpop.f32.mrb[0].mxu0
      %2233 = vmatprep.mubr.bf16.mxu0 0
      %2234 = vmatmul.mubr.bf16.gmra.mrb[0].mxu0 %v2015
      %v2235 = vpop.f32.mrb[0].mxu0
      %v2236 = vadd.f32 0.0, %v2235
      %v2237 = vpop.f32.mrb[0].mxu0
      %v2238 = vpop.f32.mrb[0].mxu0
      %v2239 = vadd.f32 0.0, %v2238
      %v2240 = vpop.f32.mrb[0].mxu0
      %2241 = vdwg.mxu0
      %v2242 = vadd.f32 %v1936, %v2116
      %v2243 = vadd.f32 %v1937, %v2119
      %v2244 = vadd.f32 %v1938, %v2124
      %v2245 = vadd.f32 %v1939, %v2127
      %v2246 = vadd.f32 %v1940, %v2132
      %v2247 = vadd.f32 %v1941, %v2135
      %v2248 = vadd.f32 %v1942, %v2140
      %v2249 = vadd.f32 %v1943, %v2143
      %v2250 = vadd.f32 %v1944, %v2148
      %v2251 = vadd.f32 %v1945, %v2151
      %v2252 = vadd.f32 %v1946, %v2156
      %v2253 = vadd.f32 %v1947, %v2159
      %v2254 = vadd.f32 %v1948, %v2164
      %v2255 = vadd.f32 %v1949, %v2167
      %v2256 = vadd.f32 %v1950, %v2172
      %v2257 = vadd.f32 %v1951, %v2175
      %v2258 = vadd.f32 %v1952, %v2180
      %v2259 = vadd.f32 %v1953, %v2183
      %v2260 = vadd.f32 %v1954, %v2188
      %v2261 = vadd.f32 %v1955, %v2191
      %v2262 = vadd.f32 %v1956, %v2196
      %v2263 = vadd.f32 %v1957, %v2199
      %v2264 = vadd.f32 %v1958, %v2204
      %v2265 = vadd.f32 %v1959, %v2207
      %v2266 = vadd.f32 %v1960, %v2212
      %v2267 = vadd.f32 %v1961, %v2215
      %v2268 = vadd.f32 %v1962, %v2220
      %v2269 = vadd.f32 %v1963, %v2223
      %v2270 = vadd.f32 %v1964, %v2228
      %v2271 = vadd.f32 %v1965, %v2231
      %v2272 = vadd.f32 %v1966, %v2236
      %v2273 = vadd.f32 %v1967, %v2239
      %s2274 = scalar_lea.vmem [#allocation2], 48
      %v2275 = vld [vmem:[%s2274] sm:$0xff]
      %v2276 = vld [vmem:[%s2274 + $0x8] sm:$0xff]
      %v2277 = vld [vmem:[%s2274 + $0x18] sm:$0xff]
      %v2278 = vld [vmem:[%s2274 + $0x20] sm:$0xff]
      %v2279 = vld [vmem:[%s2274 + $0x30] sm:$0xff]
      %v2280 = vld [vmem:[%s2274 + $0x38] sm:$0xff]
      %v2281 = vld [vmem:[%s2274 + $0x48] sm:$0xff]
      %v2282 = vld [vmem:[%s2274 + $0x50] sm:$0xff]
      %v2283 = vld [vmem:[%s2274 + $0x60] sm:$0xff]
      %v2284 = vld [vmem:[%s2274 + $0x68] sm:$0xff]
      %v2285 = vld [vmem:[%s2274 + $0x78] sm:$0xff]
      %v2286 = vld [vmem:[%s2274 + $0x80] sm:$0xff]
      %v2287 = vld [vmem:[%s2274 + $0x90] sm:$0xff]
      %v2288 = vld [vmem:[%s2274 + $0x98] sm:$0xff]
      %v2289 = vld [vmem:[%s2274 + $0xa8] sm:$0xff]
      %v2290 = vld [vmem:[%s2274 + $0xb0] sm:$0xff]
      %v2291 = vld [vmem:[%s2274 + $0xc0] sm:$0xff]
      %v2292 = vld [vmem:[%s2274 + $0xc8] sm:$0xff]
      %v2293 = vld [vmem:[%s2274 + $0xd8] sm:$0xff]
      %v2294 = vld [vmem:[%s2274 + $0xe0] sm:$0xff]
      %v2295 = vld [vmem:[%s2274 + $0xf0] sm:$0xff]
      %v2296 = vld [vmem:[%s2274 + $0xf8] sm:$0xff]
      %v2297 = vld [vmem:[%s2274 + $0x108] sm:$0xff]
      %v2298 = vld [vmem:[%s2274 + $0x110] sm:$0xff]
      %v2299 = vld [vmem:[%s2274 + $0x120] sm:$0xff]
      %v2300 = vld [vmem:[%s2274 + $0x128] sm:$0xff]
      %v2301 = vld [vmem:[%s2274 + $0x138] sm:$0xff]
      %v2302 = vld [vmem:[%s2274 + $0x140] sm:$0xff]
      %v2303 = vld [vmem:[%s2274 + $0x150] sm:$0xff]
      %v2304 = vld [vmem:[%s2274 + $0x158] sm:$0xff]
      %v2305 = vld [vmem:[%s2274 + $0x168] sm:$0xff]
      %v2306 = vld [vmem:[%s2274 + $0x170] sm:$0xff]
      %v2307 = vpack.c.bf16 %v2276, %v2275
      %v2308 = vpack.c.bf16 %v2278, %v2277
      %v2309 = vpack.c.bf16 %v2280, %v2279
      %v2310 = vpack.c.bf16 %v2282, %v2281
      %v2311 = vpack.c.bf16 %v2284, %v2283
      %v2312 = vpack.c.bf16 %v2286, %v2285
      %v2313 = vpack.c.bf16 %v2288, %v2287
      %v2314 = vpack.c.bf16 %v2290, %v2289
      %v2315 = vpack.c.bf16 %v2292, %v2291
      %v2316 = vpack.c.bf16 %v2294, %v2293
      %v2317 = vpack.c.bf16 %v2296, %v2295
      %v2318 = vpack.c.bf16 %v2298, %v2297
      %v2319 = vpack.c.bf16 %v2300, %v2299
      %v2320 = vpack.c.bf16 %v2302, %v2301
      %v2321 = vpack.c.bf16 %v2304, %v2303
      %v2322 = vpack.c.bf16 %v2306, %v2305
      %s2323 = scalar_lea.vmem %s3, 384
      %v2324 = vld [vmem:[%s2323] sm:$0xf]
      %v2325 = vld [vmem:[%s2323 + $0x4] sm:$0xf]
      %v2326 = vld [vmem:[%s2323 + $0x8] sm:$0xf]
      %v2327 = vld [vmem:[%s2323 + $0xc] sm:$0xf]
      %v2328 = vld [vmem:[%s2323 + $0x10] sm:$0xf]
      %v2329 = vld [vmem:[%s2323 + $0x14] sm:$0xf]
      %v2330 = vld [vmem:[%s2323 + $0x18] sm:$0xf]
      %v2331 = vld [vmem:[%s2323 + $0x1c] sm:$0xf]
      %v2332 = vld [vmem:[%s2323 + $0x20] sm:$0xf]
      %v2333 = vld [vmem:[%s2323 + $0x24] sm:$0xf]
      %v2334 = vld [vmem:[%s2323 + $0x28] sm:$0xf]
      %v2335 = vld [vmem:[%s2323 + $0x2c] sm:$0xf]
      %v2336 = vld [vmem:[%s2323 + $0x30] sm:$0xf]
      %v2337 = vld [vmem:[%s2323 + $0x34] sm:$0xf]
      %v2338 = vld [vmem:[%s2323 + $0x38] sm:$0xf]
      %v2339 = vld [vmem:[%s2323 + $0x3c] sm:$0xf]
      %v2356 = vunpack.c.l.b16 %v2324
      %v2357 = vunpack.c.l.b16 %v2325
      %v2358 = vunpack.c.l.b16 %v2326
      %v2359 = vunpack.c.l.b16 %v2327
      %v2360 = vunpack.c.l.b16 %v2328
      %v2361 = vunpack.c.l.b16 %v2329
      %v2362 = vunpack.c.l.b16 %v2330
      %v2363 = vunpack.c.l.b16 %v2331
      %v2364 = vunpack.c.l.b16 %v2332
      %v2365 = vunpack.c.l.b16 %v2333
      %v2366 = vunpack.c.l.b16 %v2334
      %v2367 = vunpack.c.l.b16 %v2335
      %v2368 = vunpack.c.l.b16 %v2336
      %v2369 = vunpack.c.l.b16 %v2337
      %v2370 = vunpack.c.l.b16 %v2338
      %v2371 = vunpack.c.l.b16 %v2339
      %v2372 = vpack.c.b16 %v2357, %v2356
      %v2373 = vpack.c.b16 %v2359, %v2358
      %v2374 = vpack.c.b16 %v2361, %v2360
      %v2375 = vpack.c.b16 %v2363, %v2362
      %v2376 = vpack.c.b16 %v2365, %v2364
      %v2377 = vpack.c.b16 %v2367, %v2366
      %v2378 = vpack.c.b16 %v2369, %v2368
      %v2379 = vpack.c.b16 %v2371, %v2370
      %2388 = vmatprep.subr.bf16.mxu0 0
      %2389 = vmatpush1.bf16.msra.mxu0 %v2372
      %2390 = vmatprep.subr.bf16.mxu0 0
      %2391 = vmatpush1.bf16.msra.mxu0 %v2373
      %2392 = vmatprep.subr.bf16.mxu0 0
      %2393 = vmatpush1.bf16.msra.mxu0 %v2374
      %2394 = vmatprep.subr.bf16.mxu0 0
      %2395 = vmatpush1.bf16.msra.mxu0 %v2375
      %2396 = vmatprep.subr.bf16.mxu0 0
      %2397 = vmatpush1.bf16.msra.mxu0 %v2376
      %2398 = vmatprep.subr.bf16.mxu0 0
      %2399 = vmatpush1.bf16.msra.mxu0 %v2377
      %2400 = vmatprep.subr.bf16.mxu0 0
      %2401 = vmatpush1.bf16.msra.mxu0 %v2378
      %2402 = vmatprep.subr.bf16.mxu0 0
      %2403 = vmatpush1.bf16.msra.mxu0 %v2379
      %2404 = vmatprep.subr.bf16.mxu0 0
      %2405 = vmatpush1.bf16.msra.mxu0 0
      %2406 = vmatprep.subr.bf16.mxu0 0
      %2407 = vmatpush1.bf16.msra.mxu0 0
      %2408 = vmatprep.subr.bf16.mxu0 0
      %2409 = vmatpush1.bf16.msra.mxu0 0
      %2410 = vmatprep.subr.bf16.mxu0 0
      %2411 = vmatpush1.bf16.msra.mxu0 0
      %2412 = vmatprep.subr.bf16.mxu0 0
      %2413 = vmatpush1.bf16.msra.mxu0 0
      %2414 = vmatprep.subr.bf16.mxu0 0
      %2415 = vmatpush1.bf16.msra.mxu0 0
      %2416 = vmatprep.subr.bf16.mxu0 0
      %2417 = vmatpush1.bf16.msra.mxu0 0
      %2418 = vmatprep.subr.bf16.mxu0 0
      %2419 = vmatpush1.bf16.msra.mxu0 0
      %2420 = vmatprep.mubr.bf16.mxu0 0
      %2421 = vmatmul.mubr.bf16.gmra.mrb[0].mxu0 %v2307
      %v2422 = vpop.f32.mrb[0].mxu0
      %v2423 = vadd.f32 0.0, %v2422
      %v2424 = vpop.f32.mrb[0].mxu0
      %v2425 = vpop.f32.mrb[0].mxu0
      %v2426 = vadd.f32 0.0, %v2425
      %v2427 = vpop.f32.mrb[0].mxu0
      %2428 = vmatprep.mubr.bf16.mxu0 0
      %2429 = vmatmul.mubr.bf16.gmra.mrb[0].mxu0 %v2308
      %v2430 = vpop.f32.mrb[0].mxu0
      %v2431 = vadd.f32 0.0, %v2430
      %v2432 = vpop.f32.mrb[0].mxu0
      %v2433 = vpop.f32.mrb[0].mxu0
      %v2434 = vadd.f32 0.0, %v2433
      %v2435 = vpop.f32.mrb[0].mxu0
      %2436 = vmatprep.mubr.bf16.mxu0 0
      %2437 = vmatmul.mubr.bf16.gmra.mrb[0].mxu0 %v2309
      %v2438 = vpop.f32.mrb[0].mxu0
      %v2439 = vadd.f32 0.0, %v2438
      %v2440 = vpop.f32.mrb[0].mxu0
      %v2441 = vpop.f32.mrb[0].mxu0
      %v2442 = vadd.f32 0.0, %v2441
      %v2443 = vpop.f32.mrb[0].mxu0
      %2444 = vmatprep.mubr.bf16.mxu0 0
      %2445 = vmatmul.mubr.bf16.gmra.mrb[0].mxu0 %v2310
      %v2446 = vpop.f32.mrb[0].mxu0
      %v2447 = vadd.f32 0.0, %v2446
      %v2448 = vpop.f32.mrb[0].mxu0
      %v2449 = vpop.f32.mrb[0].mxu0
      %v2450 = vadd.f32 0.0, %v2449
      %v2451 = vpop.f32.mrb[0].mxu0
      %2452 = vmatprep.mubr.bf16.mxu0 0
      %2453 = vmatmul.mubr.bf16.gmra.mrb[0].mxu0 %v2311
      %v2454 = vpop.f32.mrb[0].mxu0
      %v2455 = vadd.f32 0.0, %v2454
      %v2456 = vpop.f32.mrb[0].mxu0
      %v2457 = vpop.f32.mrb[0].mxu0
      %v2458 = vadd.f32 0.0, %v2457
      %v2459 = vpop.f32.mrb[0].mxu0
      %2460 = vmatprep.mubr.bf16.mxu0 0
      %2461 = vmatmul.mubr.bf16.gmra.mrb[0].mxu0 %v2312
      %v2462 = vpop.f32.mrb[0].mxu0
      %v2463 = vadd.f32 0.0, %v2462
      %v2464 = vpop.f32.mrb[0].mxu0
      %v2465 = vpop.f32.mrb[0].mxu0
      %v2466 = vadd.f32 0.0, %v2465
      %v2467 = vpop.f32.mrb[0].mxu0
      %2468 = vmatprep.mubr.bf16.mxu0 0
      %2469 = vmatmul.mubr.bf16.gmra.mrb[0].mxu0 %v2313
      %v2470 = vpop.f32.mrb[0].mxu0
      %v2471 = vadd.f32 0.0, %v2470
      %v2472 = vpop.f32.mrb[0].mxu0
      %v2473 = vpop.f32.mrb[0].mxu0
      %v2474 = vadd.f32 0.0, %v2473
      %v2475 = vpop.f32.mrb[0].mxu0
      %2476 = vmatprep.mubr.bf16.mxu0 0
      %2477 = vmatmul.mubr.bf16.gmra.mrb[0].mxu0 %v2314
      %v2478 = vpop.f32.mrb[0].mxu0
      %v2479 = vadd.f32 0.0, %v2478
      %v2480 = vpop.f32.mrb[0].mxu0
      %v2481 = vpop.f32.mrb[0].mxu0
      %v2482 = vadd.f32 0.0, %v2481
      %v2483 = vpop.f32.mrb[0].mxu0
      %2484 = vmatprep.mubr.bf16.mxu0 0
      %2485 = vmatmul.mubr.bf16.gmra.mrb[0].mxu0 %v2315
      %v2486 = vpop.f32.mrb[0].mxu0
      %v2487 = vadd.f32 0.0, %v2486
      %v2488 = vpop.f32.mrb[0].mxu0
      %v2489 = vpop.f32.mrb[0].mxu0
      %v2490 = vadd.f32 0.0, %v2489
      %v2491 = vpop.f32.mrb[0].mxu0
      %2492 = vmatprep.mubr.bf16.mxu0 0
      %2493 = vmatmul.mubr.bf16.gmra.mrb[0].mxu0 %v2316
      %v2494 = vpop.f32.mrb[0].mxu0
      %v2495 = vadd.f32 0.0, %v2494
      %v2496 = vpop.f32.mrb[0].mxu0
      %v2497 = vpop.f32.mrb[0].mxu0
      %v2498 = vadd.f32 0.0, %v2497
      %v2499 = vpop.f32.mrb[0].mxu0
      %2500 = vmatprep.mubr.bf16.mxu0 0
      %2501 = vmatmul.mubr.bf16.gmra.mrb[0].mxu0 %v2317
      %v2502 = vpop.f32.mrb[0].mxu0
      %v2503 = vadd.f32 0.0, %v2502
      %v2504 = vpop.f32.mrb[0].mxu0
      %v2505 = vpop.f32.mrb[0].mxu0
      %v2506 = vadd.f32 0.0, %v2505
      %v2507 = vpop.f32.mrb[0].mxu0
      %2508 = vmatprep.mubr.bf16.mxu0 0
      %2509 = vmatmul.mubr.bf16.gmra.mrb[0].mxu0 %v2318
      %v2510 = vpop.f32.mrb[0].mxu0
      %v2511 = vadd.f32 0.0, %v2510
      %v2512 = vpop.f32.mrb[0].mxu0
      %v2513 = vpop.f32.mrb[0].mxu0
      %v2514 = vadd.f32 0.0, %v2513
      %v2515 = vpop.f32.mrb[0].mxu0
      %2516 = vmatprep.mubr.bf16.mxu0 0
      %2517 = vmatmul.mubr.bf16.gmra.mrb[0].mxu0 %v2319
      %v2518 = vpop.f32.mrb[0].mxu0
      %v2519 = vadd.f32 0.0, %v2518
      %v2520 = vpop.f32.mrb[0].mxu0
      %v2521 = vpop.f32.mrb[0].mxu0
      %v2522 = vadd.f32 0.0, %v2521
      %v2523 = vpop.f32.mrb[0].mxu0
      %2524 = vmatprep.mubr.bf16.mxu0 0
      %2525 = vmatmul.mubr.bf16.gmra.mrb[0].mxu0 %v2320
      %v2526 = vpop.f32.mrb[0].mxu0
      %v2527 = vadd.f32 0.0, %v2526
      %v2528 = vpop.f32.mrb[0].mxu0
      %v2529 = vpop.f32.mrb[0].mxu0
      %v2530 = vadd.f32 0.0, %v2529
      %v2531 = vpop.f32.mrb[0].mxu0
      %2532 = vmatprep.mubr.bf16.mxu0 0
      %2533 = vmatmul.mubr.bf16.gmra.mrb[0].mxu0 %v2321
      %v2534 = vpop.f32.mrb[0].mxu0
      %v2535 = vadd.f32 0.0, %v2534
      %v2536 = vpop.f32.mrb[0].mxu0
      %v2537 = vpop.f32.mrb[0].mxu0
      %v2538 = vadd.f32 0.0, %v2537
      %v2539 = vpop.f32.mrb[0].mxu0
      %2540 = vmatprep.mubr.bf16.mxu0 0
      %2541 = vmatmul.mubr.bf16.gmra.mrb[0].mxu0 %v2322
      %v2542 = vpop.f32.mrb[0].mxu0
      %v2543 = vadd.f32 0.0, %v2542
      %v2544 = vpop.f32.mrb[0].mxu0
      %v2545 = vpop.f32.mrb[0].mxu0
      %v2546 = vadd.f32 0.0, %v2545
      %v2547 = vpop.f32.mrb[0].mxu0
      %2548 = vdwg.mxu0
      %v2549 = vadd.f32 %v2242, %v2423
      %v2550 = vadd.f32 %v2243, %v2426
      %v2551 = vadd.f32 %v2244, %v2431
      %v2552 = vadd.f32 %v2245, %v2434
      %v2553 = vadd.f32 %v2246, %v2439
      %v2554 = vadd.f32 %v2247, %v2442
      %v2555 = vadd.f32 %v2248, %v2447
      %v2556 = vadd.f32 %v2249, %v2450
      %v2557 = vadd.f32 %v2250, %v2455
      %v2558 = vadd.f32 %v2251, %v2458
      %v2559 = vadd.f32 %v2252, %v2463
      %v2560 = vadd.f32 %v2253, %v2466
      %v2561 = vadd.f32 %v2254, %v2471
      %v2562 = vadd.f32 %v2255, %v2474
      %v2563 = vadd.f32 %v2256, %v2479
      %v2564 = vadd.f32 %v2257, %v2482
      %v2565 = vadd.f32 %v2258, %v2487
      %v2566 = vadd.f32 %v2259, %v2490
      %v2567 = vadd.f32 %v2260, %v2495
      %v2568 = vadd.f32 %v2261, %v2498
      %v2569 = vadd.f32 %v2262, %v2503
      %v2570 = vadd.f32 %v2263, %v2506
      %v2571 = vadd.f32 %v2264, %v2511
      %v2572 = vadd.f32 %v2265, %v2514
      %v2573 = vadd.f32 %v2266, %v2519
      %v2574 = vadd.f32 %v2267, %v2522
      %v2575 = vadd.f32 %v2268, %v2527
      %v2576 = vadd.f32 %v2269, %v2530
      %v2577 = vadd.f32 %v2270, %v2535
      %v2578 = vadd.f32 %v2271, %v2538
      %v2579 = vadd.f32 %v2272, %v2543
      %v2580 = vadd.f32 %v2273, %v2546
      %v2581 = vld [vmem:[%s2274 + $0x1] sm:$0xff]
      %v2582 = vld [vmem:[%s2274 + $0x9] sm:$0xff]
      %v2583 = vld [vmem:[%s2274 + $0x19] sm:$0xff]
      %v2584 = vld [vmem:[%s2274 + $0x21] sm:$0xff]
      %v2585 = vld [vmem:[%s2274 + $0x31] sm:$0xff]
      %v2586 = vld [vmem:[%s2274 + $0x39] sm:$0xff]
      %v2587 = vld [vmem:[%s2274 + $0x49] sm:$0xff]
      %v2588 = vld [vmem:[%s2274 + $0x51] sm:$0xff]
      %v2589 = vld [vmem:[%s2274 + $0x61] sm:$0xff]
      %v2590 = vld [vmem:[%s2274 + $0x69] sm:$0xff]
      %v2591 = vld [vmem:[%s2274 + $0x79] sm:$0xff]
      %v2592 = vld [vmem:[%s2274 + $0x81] sm:$0xff]
      %v2593 = vld [vmem:[%s2274 + $0x91] sm:$0xff]
      %v2594 = vld [vmem:[%s2274 + $0x99] sm:$0xff]
      %v2595 = vld [vmem:[%s2274 + $0xa9] sm:$0xff]
      %v2596 = vld [vmem:[%s2274 + $0xb1] sm:$0xff]
      %v2597 = vld [vmem:[%s2274 + $0xc1] sm:$0xff]
      %v2598 = vld [vmem:[%s2274 + $0xc9] sm:$0xff]
      %v2599 = vld [vmem:[%s2274 + $0xd9] sm:$0xff]
      %v2600 = vld [vmem:[%s2274 + $0xe1] sm:$0xff]
      %v2601 = vld [vmem:[%s2274 + $0xf1] sm:$0xff]
      %v2602 = vld [vmem:[%s2274 + $0xf9] sm:$0xff]
      %v2603 = vld [vmem:[%s2274 + $0x109] sm:$0xff]
      %v2604 = vld [vmem:[%s2274 + $0x111] sm:$0xff]
      %v2605 = vld [vmem:[%s2274 + $0x121] sm:$0xff]
      %v2606 = vld [vmem:[%s2274 + $0x129] sm:$0xff]
      %v2607 = vld [vmem:[%s2274 + $0x139] sm:$0xff]
      %v2608 = vld [vmem:[%s2274 + $0x141] sm:$0xff]
      %v2609 = vld [vmem:[%s2274 + $0x151] sm:$0xff]
      %v2610 = vld [vmem:[%s2274 + $0x159] sm:$0xff]
      %v2611 = vld [vmem:[%s2274 + $0x169] sm:$0xff]
      %v2612 = vld [vmem:[%s2274 + $0x171] sm:$0xff]
      %v2613 = vpack.c.bf16 %v2582, %v2581
      %v2614 = vpack.c.bf16 %v2584, %v2583
      %v2615 = vpack.c.bf16 %v2586, %v2585
      %v2616 = vpack.c.bf16 %v2588, %v2587
      %v2617 = vpack.c.bf16 %v2590, %v2589
      %v2618 = vpack.c.bf16 %v2592, %v2591
      %v2619 = vpack.c.bf16 %v2594, %v2593
      %v2620 = vpack.c.bf16 %v2596, %v2595
      %v2621 = vpack.c.bf16 %v2598, %v2597
      %v2622 = vpack.c.bf16 %v2600, %v2599
      %v2623 = vpack.c.bf16 %v2602, %v2601
      %v2624 = vpack.c.bf16 %v2604, %v2603
      %v2625 = vpack.c.bf16 %v2606, %v2605
      %v2626 = vpack.c.bf16 %v2608, %v2607
      %v2627 = vpack.c.bf16 %v2610, %v2609
      %v2628 = vpack.c.bf16 %v2612, %v2611
      %s2629 = scalar_lea.vmem %s3, 448
      %v2630 = vld [vmem:[%s2629] sm:$0xf]
      %v2631 = vld [vmem:[%s2629 + $0x4] sm:$0xf]
      %v2632 = vld [vmem:[%s2629 + $0x8] sm:$0xf]
      %v2633 = vld [vmem:[%s2629 + $0xc] sm:$0xf]
      %v2634 = vld [vmem:[%s2629 + $0x10] sm:$0xf]
      %v2635 = vld [vmem:[%s2629 + $0x14] sm:$0xf]
      %v2636 = vld [vmem:[%s2629 + $0x18] sm:$0xf]
      %v2637 = vld [vmem:[%s2629 + $0x1c] sm:$0xf]
      %v2638 = vld [vmem:[%s2629 + $0x20] sm:$0xf]
      %v2639 = vld [vmem:[%s2629 + $0x24] sm:$0xf]
      %v2640 = vld [vmem:[%s2629 + $0x28] sm:$0xf]
      %v2641 = vld [vmem:[%s2629 + $0x2c] sm:$0xf]
      %v2642 = vld [vmem:[%s2629 + $0x30] sm:$0xf]
      %v2643 = vld [vmem:[%s2629 + $0x34] sm:$0xf]
      %v2644 = vld [vmem:[%s2629 + $0x38] sm:$0xf]
      %v2645 = vld [vmem:[%s2629 + $0x3c] sm:$0xf]
      %v2662 = vunpack.c.l.b16 %v2630
      %v2663 = vunpack.c.l.b16 %v2631
      %v2664 = vunpack.c.l.b16 %v2632
      %v2665 = vunpack.c.l.b16 %v2633
      %v2666 = vunpack.c.l.b16 %v2634
      %v2667 = vunpack.c.l.b16 %v2635
      %v2668 = vunpack.c.l.b16 %v2636
      %v2669 = vunpack.c.l.b16 %v2637
      %v2670 = vunpack.c.l.b16 %v2638
      %v2671 = vunpack.c.l.b16 %v2639
      %v2672 = vunpack.c.l.b16 %v2640
      %v2673 = vunpack.c.l.b16 %v2641
      %v2674 = vunpack.c.l.b16 %v2642
      %v2675 = vunpack.c.l.b16 %v2643
      %v2676 = vunpack.c.l.b16 %v2644
      %v2677 = vunpack.c.l.b16 %v2645
      %v2678 = vpack.c.b16 %v2663, %v2662
      %v2679 = vpack.c.b16 %v2665, %v2664
      %v2680 = vpack.c.b16 %v2667, %v2666
      %v2681 = vpack.c.b16 %v2669, %v2668
      %v2682 = vpack.c.b16 %v2671, %v2670
      %v2683 = vpack.c.b16 %v2673, %v2672
      %v2684 = vpack.c.b16 %v2675, %v2674
      %v2685 = vpack.c.b16 %v2677, %v2676
      %2694 = vmatprep.subr.bf16.mxu0 0
      %2695 = vmatpush1.bf16.msra.mxu0 %v2678
      %2696 = vmatprep.subr.bf16.mxu0 0
      %2697 = vmatpush1.bf16.msra.mxu0 %v2679
      %2698 = vmatprep.subr.bf16.mxu0 0
      %2699 = vmatpush1.bf16.msra.mxu0 %v2680
      %2700 = vmatprep.subr.bf16.mxu0 0
      %2701 = vmatpush1.bf16.msra.mxu0 %v2681
      %2702 = vmatprep.subr.bf16.mxu0 0
      %2703 = vmatpush1.bf16.msra.mxu0 %v2682
      %2704 = vmatprep.subr.bf16.mxu0 0
      %2705 = vmatpush1.bf16.msra.mxu0 %v2683
      %2706 = vmatprep.subr.bf16.mxu0 0
      %2707 = vmatpush1.bf16.msra.mxu0 %v2684
      %2708 = vmatprep.subr.bf16.mxu0 0
      %2709 = vmatpush1.bf16.msra.mxu0 %v2685
      %2710 = vmatprep.subr.bf16.mxu0 0
      %2711 = vmatpush1.bf16.msra.mxu0 0
      %2712 = vmatprep.subr.bf16.mxu0 0
      %2713 = vmatpush1.bf16.msra.mxu0 0
      %2714 = vmatprep.subr.bf16.mxu0 0
      %2715 = vmatpush1.bf16.msra.mxu0 0
      %2716 = vmatprep.subr.bf16.mxu0 0
      %2717 = vmatpush1.bf16.msra.mxu0 0
      %2718 = vmatprep.subr.bf16.mxu0 0
      %2719 = vmatpush1.bf16.msra.mxu0 0
      %2720 = vmatprep.subr.bf16.mxu0 0
      %2721 = vmatpush1.bf16.msra.mxu0 0
      %2722 = vmatprep.subr.bf16.mxu0 0
      %2723 = vmatpush1.bf16.msra.mxu0 0
      %2724 = vmatprep.subr.bf16.mxu0 0
      %2725 = vmatpush1.bf16.msra.mxu0 0
      %2726 = vmatprep.mubr.bf16.mxu0 0
      %2727 = vmatmul.mubr.bf16.gmra.mrb[0].mxu0 %v2613
      %v2728 = vpop.f32.mrb[0].mxu0
      %v2729 = vadd.f32 0.0, %v2728
      %v2730 = vpop.f32.mrb[0].mxu0
      %v2731 = vpop.f32.mrb[0].mxu0
      %v2732 = vadd.f32 0.0, %v2731
      %v2733 = vpop.f32.mrb[0].mxu0
      %2734 = vmatprep.mubr.bf16.mxu0 0
      %2735 = vmatmul.mubr.bf16.gmra.mrb[0].mxu0 %v2614
      %v2736 = vpop.f32.mrb[0].mxu0
      %v2737 = vadd.f32 0.0, %v2736
      %v2738 = vpop.f32.mrb[0].mxu0
      %v2739 = vpop.f32.mrb[0].mxu0
      %v2740 = vadd.f32 0.0, %v2739
      %v2741 = vpop.f32.mrb[0].mxu0
      %2742 = vmatprep.mubr.bf16.mxu0 0
      %2743 = vmatmul.mubr.bf16.gmra.mrb[0].mxu0 %v2615
      %v2744 = vpop.f32.mrb[0].mxu0
      %v2745 = vadd.f32 0.0, %v2744
      %v2746 = vpop.f32.mrb[0].mxu0
      %v2747 = vpop.f32.mrb[0].mxu0
      %v2748 = vadd.f32 0.0, %v2747
      %v2749 = vpop.f32.mrb[0].mxu0
      %2750 = vmatprep.mubr.bf16.mxu0 0
      %2751 = vmatmul.mubr.bf16.gmra.mrb[0].mxu0 %v2616
      %v2752 = vpop.f32.mrb[0].mxu0
      %v2753 = vadd.f32 0.0, %v2752
      %v2754 = vpop.f32.mrb[0].mxu0
      %v2755 = vpop.f32.mrb[0].mxu0
      %v2756 = vadd.f32 0.0, %v2755
      %v2757 = vpop.f32.mrb[0].mxu0
      %2758 = vmatprep.mubr.bf16.mxu0 0
      %2759 = vmatmul.mubr.bf16.gmra.mrb[0].mxu0 %v2617
      %v2760 = vpop.f32.mrb[0].mxu0
      %v2761 = vadd.f32 0.0, %v2760
      %v2762 = vpop.f32.mrb[0].mxu0
      %v2763 = vpop.f32.mrb[0].mxu0
      %v2764 = vadd.f32 0.0, %v2763
      %v2765 = vpop.f32.mrb[0].mxu0
      %2766 = vmatprep.mubr.bf16.mxu0 0
      %2767 = vmatmul.mubr.bf16.gmra.mrb[0].mxu0 %v2618
      %v2768 = vpop.f32.mrb[0].mxu0
      %v2769 = vadd.f32 0.0, %v2768
      %v2770 = vpop.f32.mrb[0].mxu0
      %v2771 = vpop.f32.mrb[0].mxu0
      %v2772 = vadd.f32 0.0, %v2771
      %v2773 = vpop.f32.mrb[0].mxu0
      %2774 = vmatprep.mubr.bf16.mxu0 0
      %2775 = vmatmul.mubr.bf16.gmra.mrb[0].mxu0 %v2619
      %v2776 = vpop.f32.mrb[0].mxu0
      %v2777 = vadd.f32 0.0, %v2776
      %v2778 = vpop.f32.mrb[0].mxu0
      %v2779 = vpop.f32.mrb[0].mxu0
      %v2780 = vadd.f32 0.0, %v2779
      %v2781 = vpop.f32.mrb[0].mxu0
      %2782 = vmatprep.mubr.bf16.mxu0 0
      %2783 = vmatmul.mubr.bf16.gmra.mrb[0].mxu0 %v2620
      %v2784 = vpop.f32.mrb[0].mxu0
      %v2785 = vadd.f32 0.0, %v2784
      %v2786 = vpop.f32.mrb[0].mxu0
      %v2787 = vpop.f32.mrb[0].mxu0
      %v2788 = vadd.f32 0.0, %v2787
      %v2789 = vpop.f32.mrb[0].mxu0
      %2790 = vmatprep.mubr.bf16.mxu0 0
      %2791 = vmatmul.mubr.bf16.gmra.mrb[0].mxu0 %v2621
      %v2792 = vpop.f32.mrb[0].mxu0
      %v2793 = vadd.f32 0.0, %v2792
      %v2794 = vpop.f32.mrb[0].mxu0
      %v2795 = vpop.f32.mrb[0].mxu0
      %v2796 = vadd.f32 0.0, %v2795
      %v2797 = vpop.f32.mrb[0].mxu0
      %2798 = vmatprep.mubr.bf16.mxu0 0
      %2799 = vmatmul.mubr.bf16.gmra.mrb[0].mxu0 %v2622
      %v2800 = vpop.f32.mrb[0].mxu0
      %v2801 = vadd.f32 0.0, %v2800
      %v2802 = vpop.f32.mrb[0].mxu0
      %v2803 = vpop.f32.mrb[0].mxu0
      %v2804 = vadd.f32 0.0, %v2803
      %v2805 = vpop.f32.mrb[0].mxu0
      %2806 = vmatprep.mubr.bf16.mxu0 0
      %2807 = vmatmul.mubr.bf16.gmra.mrb[0].mxu0 %v2623
      %v2808 = vpop.f32.mrb[0].mxu0
      %v2809 = vadd.f32 0.0, %v2808
      %v2810 = vpop.f32.mrb[0].mxu0
      %v2811 = vpop.f32.mrb[0].mxu0
      %v2812 = vadd.f32 0.0, %v2811
      %v2813 = vpop.f32.mrb[0].mxu0
      %2814 = vmatprep.mubr.bf16.mxu0 0
      %2815 = vmatmul.mubr.bf16.gmra.mrb[0].mxu0 %v2624
      %v2816 = vpop.f32.mrb[0].mxu0
      %v2817 = vadd.f32 0.0, %v2816
      %v2818 = vpop.f32.mrb[0].mxu0
      %v2819 = vpop.f32.mrb[0].mxu0
      %v2820 = vadd.f32 0.0, %v2819
      %v2821 = vpop.f32.mrb[0].mxu0
      %2822 = vmatprep.mubr.bf16.mxu0 0
      %2823 = vmatmul.mubr.bf16.gmra.mrb[0].mxu0 %v2625
      %v2824 = vpop.f32.mrb[0].mxu0
      %v2825 = vadd.f32 0.0, %v2824
      %v2826 = vpop.f32.mrb[0].mxu0
      %v2827 = vpop.f32.mrb[0].mxu0
      %v2828 = vadd.f32 0.0, %v2827
      %v2829 = vpop.f32.mrb[0].mxu0
      %2830 = vmatprep.mubr.bf16.mxu0 0
      %2831 = vmatmul.mubr.bf16.gmra.mrb[0].mxu0 %v2626
      %v2832 = vpop.f32.mrb[0].mxu0
      %v2833 = vadd.f32 0.0, %v2832
      %v2834 = vpop.f32.mrb[0].mxu0
      %v2835 = vpop.f32.mrb[0].mxu0
      %v2836 = vadd.f32 0.0, %v2835
      %v2837 = vpop.f32.mrb[0].mxu0
      %2838 = vmatprep.mubr.bf16.mxu0 0
      %2839 = vmatmul.mubr.bf16.gmra.mrb[0].mxu0 %v2627
      %v2840 = vpop.f32.mrb[0].mxu0
      %v2841 = vadd.f32 0.0, %v2840
      %v2842 = vpop.f32.mrb[0].mxu0
      %v2843 = vpop.f32.mrb[0].mxu0
      %v2844 = vadd.f32 0.0, %v2843
      %v2845 = vpop.f32.mrb[0].mxu0
      %2846 = vmatprep.mubr.bf16.mxu0 0
      %2847 = vmatmul.mubr.bf16.gmra.mrb[0].mxu0 %v2628
      %v2848 = vpop.f32.mrb[0].mxu0
      %v2849 = vadd.f32 0.0, %v2848
      %v2850 = vpop.f32.mrb[0].mxu0
      %v2851 = vpop.f32.mrb[0].mxu0
      %v2852 = vadd.f32 0.0, %v2851
      %v2853 = vpop.f32.mrb[0].mxu0
      %2854 = vdwg.mxu0
      %v2855 = vadd.f32 %v2549, %v2729
      %v2856 = vadd.f32 %v2550, %v2732
      %v2857 = vadd.f32 %v2551, %v2737
      %v2858 = vadd.f32 %v2552, %v2740
      %v2859 = vadd.f32 %v2553, %v2745
      %v2860 = vadd.f32 %v2554, %v2748
      %v2861 = vadd.f32 %v2555, %v2753
      %v2862 = vadd.f32 %v2556, %v2756
      %v2863 = vadd.f32 %v2557, %v2761
      %v2864 = vadd.f32 %v2558, %v2764
      %v2865 = vadd.f32 %v2559, %v2769
      %v2866 = vadd.f32 %v2560, %v2772
      %v2867 = vadd.f32 %v2561, %v2777
      %v2868 = vadd.f32 %v2562, %v2780
      %v2869 = vadd.f32 %v2563, %v2785
      %v2870 = vadd.f32 %v2564, %v2788
      %v2871 = vadd.f32 %v2565, %v2793
      %v2872 = vadd.f32 %v2566, %v2796
      %v2873 = vadd.f32 %v2567, %v2801
      %v2874 = vadd.f32 %v2568, %v2804
      %v2875 = vadd.f32 %v2569, %v2809
      %v2876 = vadd.f32 %v2570, %v2812
      %v2877 = vadd.f32 %v2571, %v2817
      %v2878 = vadd.f32 %v2572, %v2820
      %v2879 = vadd.f32 %v2573, %v2825
      %v2880 = vadd.f32 %v2574, %v2828
      %v2881 = vadd.f32 %v2575, %v2833
      %v2882 = vadd.f32 %v2576, %v2836
      %v2883 = vadd.f32 %v2577, %v2841
      %v2884 = vadd.f32 %v2578, %v2844
      %v2885 = vadd.f32 %v2579, %v2849
      %v2886 = vadd.f32 %v2580, %v2852
      %v2887 = vld [vmem:[%s2274 + $0x2] sm:$0xff]
      %v2888 = vld [vmem:[%s2274 + $0xa] sm:$0xff]
      %v2889 = vld [vmem:[%s2274 + $0x1a] sm:$0xff]
      %v2890 = vld [vmem:[%s2274 + $0x22] sm:$0xff]
      %v2891 = vld [vmem:[%s2274 + $0x32] sm:$0xff]
      %v2892 = vld [vmem:[%s2274 + $0x3a] sm:$0xff]
      %v2893 = vld [vmem:[%s2274 + $0x4a] sm:$0xff]
      %v2894 = vld [vmem:[%s2274 + $0x52] sm:$0xff]
      %v2895 = vld [vmem:[%s2274 + $0x62] sm:$0xff]
      %v2896 = vld [vmem:[%s2274 + $0x6a] sm:$0xff]
      %v2897 = vld [vmem:[%s2274 + $0x7a] sm:$0xff]
      %v2898 = vld [vmem:[%s2274 + $0x82] sm:$0xff]
      %v2899 = vld [vmem:[%s2274 + $0x92] sm:$0xff]
      %v2900 = vld [vmem:[%s2274 + $0x9a] sm:$0xff]
      %v2901 = vld [vmem:[%s2274 + $0xaa] sm:$0xff]
      %v2902 = vld [vmem:[%s2274 + $0xb2] sm:$0xff]
      %v2903 = vld [vmem:[%s2274 + $0xc2] sm:$0xff]
      %v2904 = vld [vmem:[%s2274 + $0xca] sm:$0xff]
      %v2905 = vld [vmem:[%s2274 + $0xda] sm:$0xff]
      %v2906 = vld [vmem:[%s2274 + $0xe2] sm:$0xff]
      %v2907 = vld [vmem:[%s2274 + $0xf2] sm:$0xff]
      %v2908 = vld [vmem:[%s2274 + $0xfa] sm:$0xff]
      %v2909 = vld [vmem:[%s2274 + $0x10a] sm:$0xff]
      %v2910 = vld [vmem:[%s2274 + $0x112] sm:$0xff]
      %v2911 = vld [vmem:[%s2274 + $0x122] sm:$0xff]
      %v2912 = vld [vmem:[%s2274 + $0x12a] sm:$0xff]
      %v2913 = vld [vmem:[%s2274 + $0x13a] sm:$0xff]
      %v2914 = vld [vmem:[%s2274 + $0x142] sm:$0xff]
      %v2915 = vld [vmem:[%s2274 + $0x152] sm:$0xff]
      %v2916 = vld [vmem:[%s2274 + $0x15a] sm:$0xff]
      %v2917 = vld [vmem:[%s2274 + $0x16a] sm:$0xff]
      %v2918 = vld [vmem:[%s2274 + $0x172] sm:$0xff]
      %v2919 = vpack.c.bf16 %v2888, %v2887
      %v2920 = vpack.c.bf16 %v2890, %v2889
      %v2921 = vpack.c.bf16 %v2892, %v2891
      %v2922 = vpack.c.bf16 %v2894, %v2893
      %v2923 = vpack.c.bf16 %v2896, %v2895
      %v2924 = vpack.c.bf16 %v2898, %v2897
      %v2925 = vpack.c.bf16 %v2900, %v2899
      %v2926 = vpack.c.bf16 %v2902, %v2901
      %v2927 = vpack.c.bf16 %v2904, %v2903
      %v2928 = vpack.c.bf16 %v2906, %v2905
      %v2929 = vpack.c.bf16 %v2908, %v2907
      %v2930 = vpack.c.bf16 %v2910, %v2909
      %v2931 = vpack.c.bf16 %v2912, %v2911
      %v2932 = vpack.c.bf16 %v2914, %v2913
      %v2933 = vpack.c.bf16 %v2916, %v2915
      %v2934 = vpack.c.bf16 %v2918, %v2917
      %s2935 = scalar_lea.vmem %s3, 512
      %v2936 = vld [vmem:[%s2935] sm:$0xf]
      %v2937 = vld [vmem:[%s2935 + $0x4] sm:$0xf]
      %v2938 = vld [vmem:[%s2935 + $0x8] sm:$0xf]
      %v2939 = vld [vmem:[%s2935 + $0xc] sm:$0xf]
      %v2940 = vld [vmem:[%s2935 + $0x10] sm:$0xf]
      %v2941 = vld [vmem:[%s2935 + $0x14] sm:$0xf]
      %v2942 = vld [vmem:[%s2935 + $0x18] sm:$0xf]
      %v2943 = vld [vmem:[%s2935 + $0x1c] sm:$0xf]
      %v2944 = vld [vmem:[%s2935 + $0x20] sm:$0xf]
      %v2945 = vld [vmem:[%s2935 + $0x24] sm:$0xf]
      %v2946 = vld [vmem:[%s2935 + $0x28] sm:$0xf]
      %v2947 = vld [vmem:[%s2935 + $0x2c] sm:$0xf]
      %v2948 = vld [vmem:[%s2935 + $0x30] sm:$0xf]
      %v2949 = vld [vmem:[%s2935 + $0x34] sm:$0xf]
      %v2950 = vld [vmem:[%s2935 + $0x38] sm:$0xf]
      %v2951 = vld [vmem:[%s2935 + $0x3c] sm:$0xf]
      %v2968 = vunpack.c.l.b16 %v2936
      %v2969 = vunpack.c.l.b16 %v2937
      %v2970 = vunpack.c.l.b16 %v2938
      %v2971 = vunpack.c.l.b16 %v2939
      %v2972 = vunpack.c.l.b16 %v2940
      %v2973 = vunpack.c.l.b16 %v2941
      %v2974 = vunpack.c.l.b16 %v2942
      %v2975 = vunpack.c.l.b16 %v2943
      %v2976 = vunpack.c.l.b16 %v2944
      %v2977 = vunpack.c.l.b16 %v2945
      %v2978 = vunpack.c.l.b16 %v2946
      %v2979 = vunpack.c.l.b16 %v2947
      %v2980 = vunpack.c.l.b16 %v2948
      %v2981 = vunpack.c.l.b16 %v2949
      %v2982 = vunpack.c.l.b16 %v2950
      %v2983 = vunpack.c.l.b16 %v2951
      %v2984 = vpack.c.b16 %v2969, %v2968
      %v2985 = vpack.c.b16 %v2971, %v2970
      %v2986 = vpack.c.b16 %v2973, %v2972
      %v2987 = vpack.c.b16 %v2975, %v2974
      %v2988 = vpack.c.b16 %v2977, %v2976
      %v2989 = vpack.c.b16 %v2979, %v2978
      %v2990 = vpack.c.b16 %v2981, %v2980
      %v2991 = vpack.c.b16 %v2983, %v2982
      %3000 = vmatprep.subr.bf16.mxu0 0
      %3001 = vmatpush1.bf16.msra.mxu0 %v2984
      %3002 = vmatprep.subr.bf16.mxu0 0
      %3003 = vmatpush1.bf16.msra.mxu0 %v2985
      %3004 = vmatprep.subr.bf16.mxu0 0
      %3005 = vmatpush1.bf16.msra.mxu0 %v2986
      %3006 = vmatprep.subr.bf16.mxu0 0
      %3007 = vmatpush1.bf16.msra.mxu0 %v2987
      %3008 = vmatprep.subr.bf16.mxu0 0
      %3009 = vmatpush1.bf16.msra.mxu0 %v2988
      %3010 = vmatprep.subr.bf16.mxu0 0
      %3011 = vmatpush1.bf16.msra.mxu0 %v2989
      %3012 = vmatprep.subr.bf16.mxu0 0
      %3013 = vmatpush1.bf16.msra.mxu0 %v2990
      %3014 = vmatprep.subr.bf16.mxu0 0
      %3015 = vmatpush1.bf16.msra.mxu0 %v2991
      %3016 = vmatprep.subr.bf16.mxu0 0
      %3017 = vmatpush1.bf16.msra.mxu0 0
      %3018 = vmatprep.subr.bf16.mxu0 0
      %3019 = vmatpush1.bf16.msra.mxu0 0
      %3020 = vmatprep.subr.bf16.mxu0 0
      %3021 = vmatpush1.bf16.msra.mxu0 0
      %3022 = vmatprep.subr.bf16.mxu0 0
      %3023 = vmatpush1.bf16.msra.mxu0 0
      %3024 = vmatprep.subr.bf16.mxu0 0
      %3025 = vmatpush1.bf16.msra.mxu0 0
      %3026 = vmatprep.subr.bf16.mxu0 0
      %3027 = vmatpush1.bf16.msra.mxu0 0
      %3028 = vmatprep.subr.bf16.mxu0 0
      %3029 = vmatpush1.bf16.msra.mxu0 0
      %3030 = vmatprep.subr.bf16.mxu0 0
      %3031 = vmatpush1.bf16.msra.mxu0 0
      %3032 = vmatprep.mubr.bf16.mxu0 0
      %3033 = vmatmul.mubr.bf16.gmra.mrb[0].mxu0 %v2919
      %v3034 = vpop.f32.mrb[0].mxu0
      %v3035 = vadd.f32 0.0, %v3034
      %v3036 = vpop.f32.mrb[0].mxu0
      %v3037 = vpop.f32.mrb[0].mxu0
      %v3038 = vadd.f32 0.0, %v3037
      %v3039 = vpop.f32.mrb[0].mxu0
      %3040 = vmatprep.mubr.bf16.mxu0 0
      %3041 = vmatmul.mubr.bf16.gmra.mrb[0].mxu0 %v2920
      %v3042 = vpop.f32.mrb[0].mxu0
      %v3043 = vadd.f32 0.0, %v3042
      %v3044 = vpop.f32.mrb[0].mxu0
      %v3045 = vpop.f32.mrb[0].mxu0
      %v3046 = vadd.f32 0.0, %v3045
      %v3047 = vpop.f32.mrb[0].mxu0
      %3048 = vmatprep.mubr.bf16.mxu0 0
      %3049 = vmatmul.mubr.bf16.gmra.mrb[0].mxu0 %v2921
      %v3050 = vpop.f32.mrb[0].mxu0
      %v3051 = vadd.f32 0.0, %v3050
      %v3052 = vpop.f32.mrb[0].mxu0
      %v3053 = vpop.f32.mrb[0].mxu0
      %v3054 = vadd.f32 0.0, %v3053
      %v3055 = vpop.f32.mrb[0].mxu0
      %3056 = vmatprep.mubr.bf16.mxu0 0
      %3057 = vmatmul.mubr.bf16.gmra.mrb[0].mxu0 %v2922
      %v3058 = vpop.f32.mrb[0].mxu0
      %v3059 = vadd.f32 0.0, %v3058
      %v3060 = vpop.f32.mrb[0].mxu0
      %v3061 = vpop.f32.mrb[0].mxu0
      %v3062 = vadd.f32 0.0, %v3061
      %v3063 = vpop.f32.mrb[0].mxu0
      %3064 = vmatprep.mubr.bf16.mxu0 0
      %3065 = vmatmul.mubr.bf16.gmra.mrb[0].mxu0 %v2923
      %v3066 = vpop.f32.mrb[0].mxu0
      %v3067 = vadd.f32 0.0, %v3066
      %v3068 = vpop.f32.mrb[0].mxu0
      %v3069 = vpop.f32.mrb[0].mxu0
      %v3070 = vadd.f32 0.0, %v3069
      %v3071 = vpop.f32.mrb[0].mxu0
      %3072 = vmatprep.mubr.bf16.mxu0 0
      %3073 = vmatmul.mubr.bf16.gmra.mrb[0].mxu0 %v2924
      %v3074 = vpop.f32.mrb[0].mxu0
      %v3075 = vadd.f32 0.0, %v3074
      %v3076 = vpop.f32.mrb[0].mxu0
      %v3077 = vpop.f32.mrb[0].mxu0
      %v3078 = vadd.f32 0.0, %v3077
      %v3079 = vpop.f32.mrb[0].mxu0
      %3080 = vmatprep.mubr.bf16.mxu0 0
      %3081 = vmatmul.mubr.bf16.gmra.mrb[0].mxu0 %v2925
      %v3082 = vpop.f32.mrb[0].mxu0
      %v3083 = vadd.f32 0.0, %v3082
      %v3084 = vpop.f32.mrb[0].mxu0
      %v3085 = vpop.f32.mrb[0].mxu0
      %v3086 = vadd.f32 0.0, %v3085
      %v3087 = vpop.f32.mrb[0].mxu0
      %3088 = vmatprep.mubr.bf16.mxu0 0
      %3089 = vmatmul.mubr.bf16.gmra.mrb[0].mxu0 %v2926
      %v3090 = vpop.f32.mrb[0].mxu0
      %v3091 = vadd.f32 0.0, %v3090
      %v3092 = vpop.f32.mrb[0].mxu0
      %v3093 = vpop.f32.mrb[0].mxu0
      %v3094 = vadd.f32 0.0, %v3093
      %v3095 = vpop.f32.mrb[0].mxu0
      %3096 = vmatprep.mubr.bf16.mxu0 0
      %3097 = vmatmul.mubr.bf16.gmra.mrb[0].mxu0 %v2927
      %v3098 = vpop.f32.mrb[0].mxu0
      %v3099 = vadd.f32 0.0, %v3098
      %v3100 = vpop.f32.mrb[0].mxu0
      %v3101 = vpop.f32.mrb[0].mxu0
      %v3102 = vadd.f32 0.0, %v3101
      %v3103 = vpop.f32.mrb[0].mxu0
      %3104 = vmatprep.mubr.bf16.mxu0 0
      %3105 = vmatmul.mubr.bf16.gmra.mrb[0].mxu0 %v2928
      %v3106 = vpop.f32.mrb[0].mxu0
      %v3107 = vadd.f32 0.0, %v3106
      %v3108 = vpop.f32.mrb[0].mxu0
      %v3109 = vpop.f32.mrb[0].mxu0
      %v3110 = vadd.f32 0.0, %v3109
      %v3111 = vpop.f32.mrb[0].mxu0
      %3112 = vmatprep.mubr.bf16.mxu0 0
      %3113 = vmatmul.mubr.bf16.gmra.mrb[0].mxu0 %v2929
      %v3114 = vpop.f32.mrb[0].mxu0
      %v3115 = vadd.f32 0.0, %v3114
      %v3116 = vpop.f32.mrb[0].mxu0
      %v3117 = vpop.f32.mrb[0].mxu0
      %v3118 = vadd.f32 0.0, %v3117
      %v3119 = vpop.f32.mrb[0].mxu0
      %3120 = vmatprep.mubr.bf16.mxu0 0
      %3121 = vmatmul.mubr.bf16.gmra.mrb[0].mxu0 %v2930
      %v3122 = vpop.f32.mrb[0].mxu0
      %v3123 = vadd.f32 0.0, %v3122
      %v3124 = vpop.f32.mrb[0].mxu0
      %v3125 = vpop.f32.mrb[0].mxu0
      %v3126 = vadd.f32 0.0, %v3125
      %v3127 = vpop.f32.mrb[0].mxu0
      %3128 = vmatprep.mubr.bf16.mxu0 0
      %3129 = vmatmul.mubr.bf16.gmra.mrb[0].mxu0 %v2931
      %v3130 = vpop.f32.mrb[0].mxu0
      %v3131 = vadd.f32 0.0, %v3130
      %v3132 = vpop.f32.mrb[0].mxu0
      %v3133 = vpop.f32.mrb[0].mxu0
      %v3134 = vadd.f32 0.0, %v3133
      %v3135 = vpop.f32.mrb[0].mxu0
      %3136 = vmatprep.mubr.bf16.mxu0 0
      %3137 = vmatmul.mubr.bf16.gmra.mrb[0].mxu0 %v2932
      %v3138 = vpop.f32.mrb[0].mxu0
      %v3139 = vadd.f32 0.0, %v3138
      %v3140 = vpop.f32.mrb[0].mxu0
      %v3141 = vpop.f32.mrb[0].mxu0
      %v3142 = vadd.f32 0.0, %v3141
      %v3143 = vpop.f32.mrb[0].mxu0
      %3144 = vmatprep.mubr.bf16.mxu0 0
      %3145 = vmatmul.mubr.bf16.gmra.mrb[0].mxu0 %v2933
      %v3146 = vpop.f32.mrb[0].mxu0
      %v3147 = vadd.f32 0.0, %v3146
      %v3148 = vpop.f32.mrb[0].mxu0
      %v3149 = vpop.f32.mrb[0].mxu0
      %v3150 = vadd.f32 0.0, %v3149
      %v3151 = vpop.f32.mrb[0].mxu0
      %3152 = vmatprep.mubr.bf16.mxu0 0
      %3153 = vmatmul.mubr.bf16.gmra.mrb[0].mxu0 %v2934
      %v3154 = vpop.f32.mrb[0].mxu0
      %v3155 = vadd.f32 0.0, %v3154
      %v3156 = vpop.f32.mrb[0].mxu0
      %v3157 = vpop.f32.mrb[0].mxu0
      %v3158 = vadd.f32 0.0, %v3157
      %v3159 = vpop.f32.mrb[0].mxu0
      %3160 = vdwg.mxu0
      %v3161 = vadd.f32 %v2855, %v3035
      %v3162 = vadd.f32 %v2856, %v3038
      %v3163 = vadd.f32 %v2857, %v3043
      %v3164 = vadd.f32 %v2858, %v3046
      %v3165 = vadd.f32 %v2859, %v3051
      %v3166 = vadd.f32 %v2860, %v3054
      %v3167 = vadd.f32 %v2861, %v3059
      %v3168 = vadd.f32 %v2862, %v3062
      %v3169 = vadd.f32 %v2863, %v3067
      %v3170 = vadd.f32 %v2864, %v3070
      %v3171 = vadd.f32 %v2865, %v3075
      %v3172 = vadd.f32 %v2866, %v3078
      %v3173 = vadd.f32 %v2867, %v3083
      %v3174 = vadd.f32 %v2868, %v3086
      %v3175 = vadd.f32 %v2869, %v3091
      %v3176 = vadd.f32 %v2870, %v3094
      %v3177 = vadd.f32 %v2871, %v3099
      %v3178 = vadd.f32 %v2872, %v3102
      %v3179 = vadd.f32 %v2873, %v3107
      %v3180 = vadd.f32 %v2874, %v3110
      %v3181 = vadd.f32 %v2875, %v3115
      %v3182 = vadd.f32 %v2876, %v3118
      %v3183 = vadd.f32 %v2877, %v3123
      %v3184 = vadd.f32 %v2878, %v3126
      %v3185 = vadd.f32 %v2879, %v3131
      %v3186 = vadd.f32 %v2880, %v3134
      %v3187 = vadd.f32 %v2881, %v3139
      %v3188 = vadd.f32 %v2882, %v3142
      %v3189 = vadd.f32 %v2883, %v3147
      %v3190 = vadd.f32 %v2884, %v3150
      %v3191 = vadd.f32 %v2885, %v3155
      %v3192 = vadd.f32 %v2886, %v3158
      %3193 = vst [vmem:[%s264] sm:$0xff] %v3161
      %3194 = vst [vmem:[%s264 + $0x8] sm:$0xff] %v3162
      %3195 = vst [vmem:[%s264 + $0x10] sm:$0xff] %v3163
      %3196 = vst [vmem:[%s264 + $0x18] sm:$0xff] %v3164
      %3197 = vst [vmem:[%s264 + $0x20] sm:$0xff] %v3165
      %3198 = vst [vmem:[%s264 + $0x28] sm:$0xff] %v3166
      %3199 = vst [vmem:[%s264 + $0x30] sm:$0xff] %v3167
      %3200 = vst [vmem:[%s264 + $0x38] sm:$0xff] %v3168
      %3201 = vst [vmem:[%s264 + $0x40] sm:$0xff] %v3169
      %3202 = vst [vmem:[%s264 + $0x48] sm:$0xff] %v3170
      %3203 = vst [vmem:[%s264 + $0x50] sm:$0xff] %v3171
      %3204 = vst [vmem:[%s264 + $0x58] sm:$0xff] %v3172
      %3205 = vst [vmem:[%s264 + $0x60] sm:$0xff] %v3173
      %3206 = vst [vmem:[%s264 + $0x68] sm:$0xff] %v3174
      %3207 = vst [vmem:[%s264 + $0x70] sm:$0xff] %v3175
      %3208 = vst [vmem:[%s264 + $0x78] sm:$0xff] %v3176
      %3209 = vst [vmem:[%s264 + $0x80] sm:$0xff] %v3177
      %3210 = vst [vmem:[%s264 + $0x88] sm:$0xff] %v3178
      %3211 = vst [vmem:[%s264 + $0x90] sm:$0xff] %v3179
      %3212 = vst [vmem:[%s264 + $0x98] sm:$0xff] %v3180
      %3213 = vst [vmem:[%s264 + $0xa0] sm:$0xff] %v3181
      %3214 = vst [vmem:[%s264 + $0xa8] sm:$0xff] %v3182
      %3215 = vst [vmem:[%s264 + $0xb0] sm:$0xff] %v3183
      %3216 = vst [vmem:[%s264 + $0xb8] sm:$0xff] %v3184
      %3217 = vst [vmem:[%s264 + $0xc0] sm:$0xff] %v3185
      %3218 = vst [vmem:[%s264 + $0xc8] sm:$0xff] %v3186
      %3219 = vst [vmem:[%s264 + $0xd0] sm:$0xff] %v3187
      %3220 = vst [vmem:[%s264 + $0xd8] sm:$0xff] %v3188
      %3221 = vst [vmem:[%s264 + $0xe0] sm:$0xff] %v3189
      %3222 = vst [vmem:[%s264 + $0xe8] sm:$0xff] %v3190
      %3223 = vst [vmem:[%s264 + $0xf0] sm:$0xff] %v3191
      %3224 = vst [vmem:[%s264 + $0xf8] sm:$0xff] %v3192
      %v3225 = vadd.f32 %v3161, %v3162
      %v3226 = vadd.f32 %v3225, %v3163
      %v3227 = vadd.f32 %v3226, %v3164
      %v3228 = vadd.f32 %v3227, %v3165
      %v3229 = vadd.f32 %v3228, %v3166
      %v3230 = vadd.f32 %v3229, %v3167
      %v3231 = vadd.f32 %v3230, %v3168
      %v3232 = vadd.f32 %v3231, %v3169
      %v3233 = vadd.f32 %v3232, %v3170
      %v3234 = vadd.f32 %v3233, %v3171
      %v3235 = vadd.f32 %v3234, %v3172
      %v3236 = vadd.f32 %v3235, %v3173
      %v3237 = vadd.f32 %v3236, %v3174
      %v3238 = vadd.f32 %v3237, %v3175
      %v3239 = vadd.f32 %v3238, %v3176
      %v3240 = vadd.f32 %v3239, %v3177
      %v3241 = vadd.f32 %v3240, %v3178
      %v3242 = vadd.f32 %v3241, %v3179
      %v3243 = vadd.f32 %v3242, %v3180
      %v3244 = vadd.f32 %v3243, %v3181
      %v3245 = vadd.f32 %v3244, %v3182
      %v3246 = vadd.f32 %v3245, %v3183
      %v3247 = vadd.f32 %v3246, %v3184
      %v3248 = vadd.f32 %v3247, %v3185
      %v3249 = vadd.f32 %v3248, %v3186
      %v3250 = vadd.f32 %v3249, %v3187
      %v3251 = vadd.f32 %v3250, %v3188
      %v3252 = vadd.f32 %v3251, %v3189
      %v3253 = vadd.f32 %v3252, %v3190
      %v3254 = vadd.f32 %v3253, %v3191
      %v3255 = vadd.f32 %v3254, %v3192
      %v3256 = vrot.slane %v3255, 4
      %v3257 = vadd.f32 %v3255, %v3256
      %v3258 = vrot.slane %v3257, 2
      %v3259 = vadd.f32 %v3257, %v3258
      %v3260 = vrot.slane %v3259, 1
      %v3261 = vadd.f32 %v3259, %v3260
      %3262 = vst [vmem:[%s268] sm:$0xff] %v3261
      %v3263 = vmul.f32 %v3161, %v3161
      %v3264 = vmul.f32 %v3162, %v3162
      %v3265 = vmul.f32 %v3163, %v3163
      %v3266 = vmul.f32 %v3164, %v3164
      %v3267 = vmul.f32 %v3165, %v3165
      %v3268 = vmul.f32 %v3166, %v3166
      %v3269 = vmul.f32 %v3167, %v3167
      %v3270 = vmul.f32 %v3168, %v3168
      %v3271 = vmul.f32 %v3169, %v3169
      %v3272 = vmul.f32 %v3170, %v3170
      %v3273 = vmul.f32 %v3171, %v3171
      %v3274 = vmul.f32 %v3172, %v3172
      %v3275 = vmul.f32 %v3173, %v3173
      %v3276 = vmul.f32 %v3174, %v3174
      %v3277 = vmul.f32 %v3175, %v3175
      %v3278 = vmul.f32 %v3176, %v3176
      %v3279 = vmul.f32 %v3177, %v3177
      %v3280 = vmul.f32 %v3178, %v3178
      %v3281 = vmul.f32 %v3179, %v3179
      %v3282 = vmul.f32 %v3180, %v3180
      %v3283 = vmul.f32 %v3181, %v3181
      %v3284 = vmul.f32 %v3182, %v3182
      %v3285 = vmul.f32 %v3183, %v3183
      %v3286 = vmul.f32 %v3184, %v3184
      %v3287 = vmul.f32 %v3185, %v3185
      %v3288 = vmul.f32 %v3186, %v3186
      %v3289 = vmul.f32 %v3187, %v3187
      %v3290 = vmul.f32 %v3188, %v3188
      %v3291 = vmul.f32 %v3189, %v3189
      %v3292 = vmul.f32 %v3190, %v3190
      %v3293 = vmul.f32 %v3191, %v3191
      %v3294 = vmul.f32 %v3192, %v3192
      %v3295 = vadd.f32 %v3263, %v3264
      %v3296 = vadd.f32 %v3295, %v3265
      %v3297 = vadd.f32 %v3296, %v3266
      %v3298 = vadd.f32 %v3297, %v3267
      %v3299 = vadd.f32 %v3298, %v3268
      %v3300 = vadd.f32 %v3299, %v3269
      %v3301 = vadd.f32 %v3300, %v3270
      %v3302 = vadd.f32 %v3301, %v3271
      %v3303 = vadd.f32 %v3302, %v3272
      %v3304 = vadd.f32 %v3303, %v3273
      %v3305 = vadd.f32 %v3304, %v3274
      %v3306 = vadd.f32 %v3305, %v3275
      %v3307 = vadd.f32 %v3306, %v3276
      %v3308 = vadd.f32 %v3307, %v3277
      %v3309 = vadd.f32 %v3308, %v3278
      %v3310 = vadd.f32 %v3309, %v3279
      %v3311 = vadd.f32 %v3310, %v3280
      %v3312 = vadd.f32 %v3311, %v3281
      %v3313 = vadd.f32 %v3312, %v3282
      %v3314 = vadd.f32 %v3313, %v3283
      %v3315 = vadd.f32 %v3314, %v3284
      %v3316 = vadd.f32 %v3315, %v3285
      %v3317 = vadd.f32 %v3316, %v3286
      %v3318 = vadd.f32 %v3317, %v3287
      %v3319 = vadd.f32 %v3318, %v3288
      %v3320 = vadd.f32 %v3319, %v3289
      %v3321 = vadd.f32 %v3320, %v3290
      %v3322 = vadd.f32 %v3321, %v3291
      %v3323 = vadd.f32 %v3322, %v3292
      %v3324 = vadd.f32 %v3323, %v3293
      %v3325 = vadd.f32 %v3324, %v3294
      %v3326 = vrot.slane %v3325, 4
      %v3327 = vadd.f32 %v3325, %v3326
      %v3328 = vrot.slane %v3327, 2
      %v3329 = vadd.f32 %v3327, %v3328
      %v3330 = vrot.slane %v3329, 1
      %v3331 = vadd.f32 %v3329, %v3330
      %3332 = vst [vmem:[%s272] sm:$0xff] %v3331
      %p3333 = scmp.lt.s32.totalorder %s18, 1
      %s3334 = scalar_select %p3333, %s18, 1
      %s3335 = smul.addr %s3334, 32
      %s3336 = smul.addr %s3335, 8
      %s3337 = scalar_lea.vmem %s4, %s3336
      %p3338 = scmp.lt.s32.totalorder %s18, 1
      %s3339 = scalar_select %p3338, %s18, 1
      %s3340 = smul.addr %s3339, 8
      %s3341 = scalar_lea.vmem %s5, %s3340
      %p3342 = scmp.lt.s32.totalorder %s18, 1
      %s3343 = scalar_select %p3342, %s18, 1
      %s3344 = smul.addr %s3343, 8
      %s3345 = scalar_lea.vmem %s6, %s3344
      // Predicated region
      $region37: #{bottleneck_forward.5} parent=35 // pred_check
        %p3346 = pneg %p125
      $region38: #{bottleneck_forward.5} parent=35 // pred_check_branch
        %3348 = sbr.rel (%p3346) target = $region40
      $region39: #{bottleneck_forward.5} parent=35 // pred_region
        _
      $region40: #{bottleneck_forward.5} parent=35 // pred_fallthru
        _
      // Predicated region
      $region41: #{bottleneck_forward.5} parent=35 // pred_check
        %p3349 = pneg %p151
      $region42: #{bottleneck_forward.5} parent=35 // pred_check_branch
        %3351 = sbr.rel (%p3349) target = $region44
      $region43: #{bottleneck_forward.5} parent=35 // pred_region
        _
      $region44: #{bottleneck_forward.5} parent=35 // pred_fallthru
        _
      // Predicated region
      $region45: #{bottleneck_forward.5} parent=35 // pred_check
        %p3352 = pneg %p177
      $region46: #{bottleneck_forward.5} parent=35 // pred_check_branch
        %3354 = sbr.rel (%p3352) target = $region48
      $region47: #{bottleneck_forward.5} parent=35 // pred_region
        _
      $region48: #{bottleneck_forward.5} parent=35 // pred_fallthru
        _
    $region36: #{bottleneck_forward.5} parent=5 // pred_fallthru
      _
    %p3355 = scmp.le.s32.totalorder 2, %s13
    // Predicated region
    $region49: #{bottleneck_forward.5} parent=5 // pred_check
      %p3356 = pneg %p3355
    $region50: #{bottleneck_forward.5} parent=5 // pred_check_branch
      %3358 = sbr.rel (%p3356) target = $region52
    $region51: #{bottleneck_forward.5} parent=5 // pred_region
      %s3359 = ssub.s32 %s13, 2
      // Predicated region
      $region53: #{bottleneck_forward.5} parent=51 // pred_check
        %p3360 = pneg %p131
      $region54: #{bottleneck_forward.5} parent=51 // pred_check_branch
        %3362 = sbr.rel (%p3360) target = $region56
      $region55: #{bottleneck_forward.5} parent=51 // pred_region
        %p3363 = scmp.lt.s32.totalorder %s19, 1
        %s3364 = scalar_select %p3363, %s19, 1
        %s3365 = smul.addr %s3364, 32
        %s3366 = smul.addr %s3365, 8
        %s3367 = scalar_lea.vmem %s4, %s3366
      $region56: #{bottleneck_forward.5} parent=51 // pred_fallthru
        _
      // Predicated region
      $region57: #{bottleneck_forward.5} parent=51 // pred_check
        %p3368 = pneg %p157
      $region58: #{bottleneck_forward.5} parent=51 // pred_check_branch
        %3370 = sbr.rel (%p3368) target = $region60
      $region59: #{bottleneck_forward.5} parent=51 // pred_region
        %p3371 = scmp.lt.s32.totalorder %s19, 1
        %s3372 = scalar_select %p3371, %s19, 1
        %s3373 = smul.addr %s3372, 8
        %s3374 = scalar_lea.vmem %s5, %s3373
      $region60: #{bottleneck_forward.5} parent=51 // pred_fallthru
        _
      // Predicated region
      $region61: #{bottleneck_forward.5} parent=51 // pred_check
        %p3375 = pneg %p183
      $region62: #{bottleneck_forward.5} parent=51 // pred_check_branch
        %3377 = sbr.rel (%p3375) target = $region64
      $region63: #{bottleneck_forward.5} parent=51 // pred_region
        %p3378 = scmp.lt.s32.totalorder %s19, 1
        %s3379 = scalar_select %p3378, %s19, 1
        %s3380 = smul.addr %s3379, 8
        %s3381 = scalar_lea.vmem %s6, %s3380
      $region64: #{bottleneck_forward.5} parent=51 // pred_fallthru
        _
    $region52: #{bottleneck_forward.5} parent=5 // pred_fallthru
      _
  $region6: #{bottleneck_forward.5} parent=0 // loop_footer
    %s17 = sadd.s32 1, %s13
  $region7: #{bottleneck_forward.5} parent=0 // loop_footer_branch
    %12 = sbr.rel target = $region3
  $region8: #{bottleneck_forward.5} parent=0 // loop_exit
    _

</llo_original>
